<compile_context>
chip_gen: v7x
topology: tpu7x:2x2x1
jax: 0.10.0
libtpu: 0.0.40
codegen_flags: <defaults>
</compile_context>

<pallas_src>
import functools
import math

import jax
import jax.numpy as jnp
from jax.experimental import pallas as pl
from jax.experimental.pallas import tpu as pltpu

VMEM_LIMIT_BYTES = 32 * 1024 * 1024


def _round_up(x, m):
    return ((x + m - 1) // m) * m


def _cparams(ngrid):
    return pltpu.CompilerParams(
        dimension_semantics=("parallel",) * ngrid,
        vmem_limit_bytes=VMEM_LIMIT_BYTES)


def _time_masks(F, T):
    # col 0: valid for a (t-1) tap, col 1: valid for a (t+1) tap (flattened n = f*T + t)
    t_idx = jnp.arange(F * T, dtype=jnp.int32) % T
    return jnp.stack([(t_idx > 0), (t_idx < (T - 1))], axis=1).astype(jnp.float32)


# ----------------------------------------------------------------------------
# Pallas kernels
# ----------------------------------------------------------------------------
def _mm_affine_kernel(x_ref, w_ref, s_ref, b_ref, o_ref, *, relu):
    # (tm, K) @ (K, Cout) -> f32 accumulate, * scale + bias [+ relu], store bf16
    acc = jnp.dot(x_ref[...], w_ref[...], preferred_element_type=jnp.float32)
    acc = acc * s_ref[...] + b_ref[...]
    if relu:
        acc = jnp.maximum(acc, 0.0)
    o_ref[...] = acc.astype(o_ref.dtype)


def _mm_bias_kernel(x_ref, w_ref, b_ref, o_ref):
    # plain Linear: (tm, K) @ (K, N) + bias  (no dummy scale multiply)
    acc = jnp.dot(x_ref[...], w_ref[...], preferred_element_type=jnp.float32)
    o_ref[...] = (acc + b_ref[...]).astype(o_ref.dtype)


def _stem_kernel(x_ref, tmask_ref, w_ref, s_ref, b_ref, o_ref, xp_ref, *, T, pad):
    # 3x3 conv with Cin=1, stride 1, padding 1, as 9 VPU tap-accumulates.
    # x_ref: (1, N, 1) f32, w_ref: (9, C0) f32, scratch xp_ref: (rows, 1) f32.
    N = x_ref.shape[1]
    xp_ref[...] = jnp.zeros(xp_ref.shape, xp_ref.dtype)
    xp_ref[pl.ds(pad, N), :] = x_ref[0].astype(jnp.float32)
    xp = xp_ref[...]

    m = tmask_ref[...]
    mask_lo = m[:, 0:1]
    mask_hi = m[:, 1:2]
    w = w_ref[...]                                    # (9, C0)

    acc = None
    for dy in range(3):
        for dx in range(3):
            k = dy * 3 + dx
            start = pad + (dy - 1) * T + (dx - 1)
            tap = xp[start:start + N, :]              # (N, 1)
            contrib = tap * w[k:k + 1, :]             # (N, C0)
            if dx == 0:
                contrib = contrib * mask_lo
            elif dx == 2:
                contrib = contrib * mask_hi
            acc = contrib if acc is None else acc + contrib

    acc = jnp.maximum(acc * s_ref[...] + b_ref[...], 0.0)
    o_ref[0] = acc.astype(o_ref.dtype)


def _bottleneck_kernel(x_ref, tmask_ref, w1_ref, s1_ref, b1_ref, wdw_ref,
                       s2_ref, b2_ref, w3_ref, s3_ref, b3_ref, o_ref, xp_ref,
                       *, T, pad):
    # Fused Inverted_Bottleneck for one batch element, spatially flattened.
    # x_ref: (1, N, C) bf16, w1: (C, 4C) bf16, wdw: (9, 4C) f32, w3: (4C, C) bf16.
    N = x_ref.shape[1]
    x = x_ref[0]                                               # (N, C) bf16

    # --- 1x1 expand + BN + ReLU (MXU, f32 accumulate) ---
    h = jnp.dot(x, w1_ref[...], preferred_element_type=jnp.float32)
    h = jnp.maximum(h * s1_ref[...] + b1_ref[...], 0.0)        # (N, 4C) f32

    # --- depthwise 3x3 + BN + ReLU, halo held in a zero-padded VMEM scratch ---
    xp_ref[...] = jnp.zeros(xp_ref.shape, xp_ref.dtype)
    xp_ref[pl.ds(pad, N), :] = h
    xp = xp_ref[...]

    m = tmask_ref[...]
    mask_lo = m[:, 0:1]
    mask_hi = m[:, 1:2]
    wdw = wdw_ref[...]                                         # (9, 4C) f32

    acc = None
    for dy in range(3):
        for dx in range(3):
            k = dy * 3 + dx
            start = pad + (dy - 1) * T + (dx - 1)
            tap = xp[start:start + N, :]                       # (N, 4C)
            contrib = tap * wdw[k:k + 1, :]
            if dx == 0:
                contrib = contrib * mask_lo
            elif dx == 2:
                contrib = contrib * mask_hi
            acc = contrib if acc is None else acc + contrib
    acc = jnp.maximum(acc * s2_ref[...] + b2_ref[...], 0.0)    # (N, 4C) f32

    # --- 1x1 project + BN + residual + ReLU ---
    out = jnp.dot(acc.astype(w3_ref.dtype), w3_ref[...],
                  preferred_element_type=jnp.float32)
    out = out * s3_ref[...] + b3_ref[...] + x.astype(jnp.float32)
    out = jnp.maximum(out, 0.0)
    o_ref[0] = out.astype(o_ref.dtype)


def _pool_kernel(x_ref, mean_ref, std_ref, *, T):
    # one-pass mean / unbiased std over the time axis for one batch element
    x = x_ref[0].astype(jnp.float32)                  # (F, T, C)
    s = jnp.sum(x, axis=1)                            # (F, C)
    ss = jnp.sum(x * x, axis=1)
    mean = s * (1.0 / T)
    var = (ss - mean * mean * T) * (1.0 / (T - 1))
    var = jnp.maximum(var, 0.0)
    mean_ref[0] = mean
    std_ref[0] = jnp.sqrt(var + 1e-10)


# ----------------------------------------------------------------------------
# Pallas call wrappers
# ----------------------------------------------------------------------------
def matmul_affine(x, w, scale, bias, relu=False, out_dtype=jnp.bfloat16):
    M, K = x.shape
    Cout = w.shape[1]
    tm = M if M <= 512 else 512
    kern = functools.partial(_mm_affine_kernel, relu=relu)
    return pl.pallas_call(
        kern,
        out_shape=jax.ShapeDtypeStruct((M, Cout), out_dtype),
        grid=(pl.cdiv(M, tm),),
        in_specs=[pl.BlockSpec((tm, K), lambda i: (i, 0)),
                  pl.BlockSpec((K, Cout), lambda i: (0, 0)),
                  pl.BlockSpec((1, Cout), lambda i: (0, 0)),
                  pl.BlockSpec((1, Cout), lambda i: (0, 0))],
        out_specs=pl.BlockSpec((tm, Cout), lambda i: (i, 0)),
        compiler_params=_cparams(1),
    )(x, w, scale, bias)


def matmul_bias(x, w, bias):
    M, K = x.shape
    N = w.shape[1]
    tm = M if M <= 512 else 512
    return pl.pallas_call(
        _mm_bias_kernel,
        out_shape=jax.ShapeDtypeStruct((M, N), jnp.float32),
        grid=(pl.cdiv(M, tm),),
        in_specs=[pl.BlockSpec((tm, K), lambda i: (i, 0)),
                  pl.BlockSpec((K, N), lambda i: (0, 0)),
                  pl.BlockSpec((1, N), lambda i: (0, 0))],
        out_specs=pl.BlockSpec((tm, N), lambda i: (i, 0)),
        compiler_params=_cparams(1),
    )(x, w, bias)


def stem_conv(x, w9c, scale, bias):
    # x: (B, F, T, 1) f32 -> (B, F, T, C0) bf16
    B, F, T, _ = x.shape
    N = F * T
    C0 = w9c.shape[1]
    pad = _round_up(T + 1, 8)
    rows = _round_up(pad + N + T + 1, 8)
    xf = x.reshape(B, N, 1)
    tmask = _time_masks(F, T)
    kern = functools.partial(_stem_kernel, T=T, pad=pad)
    out = pl.pallas_call(
        kern,
        out_shape=jax.ShapeDtypeStruct((B, N, C0), jnp.bfloat16),
        grid=(B,),
        in_specs=[pl.BlockSpec((1, N, 1), lambda b: (b, 0, 0)),
                  pl.BlockSpec((N, 2), lambda b: (0, 0)),
                  pl.BlockSpec((9, C0), lambda b: (0, 0)),
                  pl.BlockSpec((1, C0), lambda b: (0, 0)),
                  pl.BlockSpec((1, C0), lambda b: (0, 0))],
        out_specs=pl.BlockSpec((1, N, C0), lambda b: (b, 0, 0)),
        scratch_shapes=[pltpu.VMEM((rows, 1), jnp.float32)],
        compiler_params=_cparams(1),
    )(xf, tmask, w9c, scale, bias)
    return out.reshape(B, F, T, C0)


def conv3x3_bn(x, w2, scale, bias, stride):
    # Strided 3x3 conv + BN (no ReLU) for the downsample layers.
    # TODO(synk): the stride/halo gather here is still a JAX-level im2col feeding
    # the tiled Pallas matmul; strided overlapping tiles are not expressible with
    # a plain BlockSpec index_map (would need a manual-DMA kernel).
    sf, st = stride
    B, F, T, Cin = x.shape
    Cout = w2.shape[1]
    Fo = (F - 1) // sf + 1
    To = (T - 1) // st + 1
    xp = jnp.pad(x, ((0, 0), (1, 1), (1, 1), (0, 0)))
    taps = [xp[:, dy:dy + (Fo - 1) * sf + 1:sf, dx:dx + (To - 1) * st + 1:st, :]
            for dy in range(3) for dx in range(3)]
    patches = jnp.concatenate(taps, axis=-1).reshape(B * Fo * To, 9 * Cin)
    out = matmul_affine(patches, w2, scale, bias, relu=False)
    return out.reshape(B, Fo, To, Cout)


def inverted_bottleneck(x, blk):
    # x: (B, F, T, C) bf16 -> (B, F, T, C) bf16, fully fused in one kernel.
    B, F, T, C = x.shape
    N = F * T
    C4 = blk['w1'].shape[1]
    pad = _round_up(T + 1, 8)
    rows = _round_up(pad + N + T + 1, 8)
    xf = x.reshape(B, N, C)
    tmask = _time_masks(F, T)
    kern = functools.partial(_bottleneck_kernel, T=T, pad=pad)
    out = pl.pallas_call(
        kern,
        out_shape=jax.ShapeDtypeStruct((B, N, C), x.dtype),
        grid=(B,),
        in_specs=[pl.BlockSpec((1, N, C), lambda b: (b, 0, 0)),
                  pl.BlockSpec((N, 2), lambda b: (0, 0)),
                  pl.BlockSpec((C, C4), lambda b: (0, 0)),
                  pl.BlockSpec((1, C4), lambda b: (0, 0)),
                  pl.BlockSpec((1, C4), lambda b: (0, 0)),
                  pl.BlockSpec((9, C4), lambda b: (0, 0)),
                  pl.BlockSpec((1, C4), lambda b: (0, 0)),
                  pl.BlockSpec((1, C4), lambda b: (0, 0)),
                  pl.BlockSpec((C4, C), lambda b: (0, 0)),
                  pl.BlockSpec((1, C), lambda b: (0, 0)),
                  pl.BlockSpec((1, C), lambda b: (0, 0))],
        out_specs=pl.BlockSpec((1, N, C), lambda b: (b, 0, 0)),
        scratch_shapes=[pltpu.VMEM((rows, C4), jnp.float32)],
        compiler_params=_cparams(1),
    )(xf, tmask, blk['w1'], blk['s1'], blk['b1'], blk['wdw'], blk['s2'],
      blk['b2'], blk['w3'], blk['s3'], blk['b3'])
    return out.reshape(B, F, T, C)


def pool_mean_std(x):
    B, F, T, C = x.shape
    kern = functools.partial(_pool_kernel, T=T)
    return pl.pallas_call(
        kern,
        out_shape=(jax.ShapeDtypeStruct((B, F, C), jnp.float32),
                   jax.ShapeDtypeStruct((B, F, C), jnp.float32)),
        grid=(B,),
        in_specs=[pl.BlockSpec((1, F, T, C), lambda b: (b, 0, 0, 0))],
        out_specs=(pl.BlockSpec((1, F, C), lambda b: (b, 0, 0)),
                   pl.BlockSpec((1, F, C), lambda b: (b, 0, 0))),
        compiler_params=_cparams(1),
    )(x)


# ----------------------------------------------------------------------------
# Parameter construction (deterministic, synthetic, pre-laid-out for kernels)
# ----------------------------------------------------------------------------
def _conv_w(key, shape):
    fan_in = shape[1] * shape[2] * shape[3]
    return jax.random.normal(key, shape, jnp.float32) / math.sqrt(fan_in)


def _bn(key, c):
    k1, k2, k3, k4 = jax.random.split(key, 4)
    gamma = jax.random.uniform(k1, (c,), jnp.float32, 0.5, 1.5)
    beta = 0.1 * jax.random.normal(k2, (c,), jnp.float32)
    rmean = 0.1 * jax.random.normal(k3, (c,), jnp.float32)
    rvar = jax.random.uniform(k4, (c,), jnp.float32, 0.5, 1.5)
    scale = gamma / jnp.sqrt(rvar + 1e-5)
    bias = beta - rmean * scale
    return scale.reshape(1, c), bias.reshape(1, c)


def init_params(key, depths, dims, feat_dim, emb_dim):
    p = {}
    keys = iter(jax.random.split(key, 256))

    # stem: torch (C0, 1, 3, 3) -> (9, C0) f32 for the tap-accumulate kernel
    c0 = dims[0]
    w = _conv_w(next(keys), (c0, 1, 3, 3)).reshape(c0, 3, 3)
    p['stem_w9c'] = jnp.transpose(w, (1, 2, 0)).reshape(9, c0)
    p['stem_s'], p['stem_b'] = _bn(next(keys), c0)

    # 4 downsample layers: torch (Cout, Cin, 3, 3) -> (9*Cin, Cout) bf16
    for i in range(4):
        cin, cout = dims[i], dims[i + 1]
        w = _conv_w(next(keys), (cout, cin, 3, 3))
        p[f'down{i}_w'] = jnp.transpose(w, (2, 3, 1, 0)).reshape(
            9 * cin, cout).astype(jnp.bfloat16)
        p[f'down{i}_s'], p[f'down{i}_b'] = _bn(next(keys), cout)

    # stages of Inverted_Bottleneck blocks
    for i in range(4):
        dim = dims[i + 1]
        for j in range(depths[i]):
            blk = {}
            w1 = _conv_w(next(keys), (4 * dim, dim, 1, 1))
            blk['w1'] = w1.reshape(4 * dim, dim).T.astype(jnp.bfloat16)
            blk['s1'], blk['b1'] = _bn(next(keys), 4 * dim)
            wdw = _conv_w(next(keys), (4 * dim, 1, 3, 3)).reshape(4 * dim, 3, 3)
            blk['wdw'] = jnp.transpose(wdw, (1, 2, 0)).reshape(9, 4 * dim)
            blk['s2'], blk['b2'] = _bn(next(keys), 4 * dim)
            w3 = _conv_w(next(keys), (dim, 4 * dim, 1, 1))
            blk['w3'] = w3.reshape(dim, 4 * dim).T.astype(jnp.bfloat16)
            blk['s3'], blk['b3'] = _bn(next(keys), dim)
            p[f'stage{i}_{j}'] = blk

    emb_in = math.ceil(feat_dim / 8) * dims[-1]
    p['emb_w'] = jax.random.normal(next(keys), (emb_in, emb_dim),
                                   jnp.float32) / math.sqrt(emb_in)
    p['emb_b'] = (0.1 * jax.random.normal(next(keys), (emb_dim,),
                                          jnp.float32)).reshape(1, emb_dim)
    return p


# ----------------------------------------------------------------------------
# Forward pass
# ----------------------------------------------------------------------------
def gemini_df_resnet_forward(x, p, depths):
    # x: (B, T, feat_dim) -- matches the torch module's input before permute
    b = x.shape[0]
    stride_f = [2, 2, 2, 2]
    stride_t = [1, 2, 1, 1]

    # permute(0,2,1).unsqueeze(1) (NCHW, C=1) -> channels-last (B, F, T, 1)
    h = jnp.transpose(x, (0, 2, 1))[..., None].astype(jnp.float32)

    # stem (conv3x3 s1, Cin=1 + BN + ReLU) -- fused VPU tap-accumulate kernel
    h = stem_conv(h, p['stem_w9c'], p['stem_s'], p['stem_b'])

    for i in range(4):
        h = conv3x3_bn(h, p[f'down{i}_w'], p[f'down{i}_s'], p[f'down{i}_b'],
                       (stride_f[i], stride_t[i]))
        for j in range(depths[i]):
            h = inverted_bottleneck(h, p[f'stage{i}_{j}'])

    # temporal statistics pooling (mean / unbiased std over time)
    mean, std = pool_mean_std(h)                             # (B, F, C) each
    mean = jnp.transpose(mean, (0, 2, 1)).reshape(b, -1)     # torch flatten of (B,C,F)
    std = jnp.transpose(std, (0, 2, 1)).reshape(b, -1)
    feat = jnp.concatenate([mean, std], axis=1)

    return matmul_bias(feat, p['emb_w'], p['emb_b'])


# ----------------------------------------------------------------------------
if __name__ == "__main__":
    # Small config consistent with the module structure (5 dims needed by init);
    # feat_dim chosen so 2*ceil(feat/16) == ceil(feat/8) and the embedding fits.
    depths = [1, 1, 1, 1]
    dims = [16, 16, 32, 32, 64]
    feat_dim = 16
    emb_dim = 128
    B, T = 2, 8

    key = jax.random.PRNGKey(0)
    kp, kx = jax.random.split(key)
    params = init_params(kp, depths, dims, feat_dim, emb_dim)
    x = jax.random.normal(kx, (B, T, feat_dim), jnp.float32)

    fwd = jax.jit(functools.partial(gemini_df_resnet_forward, depths=depths))
    out = fwd(x, params)
    out = jax.block_until_ready(out)
    assert out.shape == (B, emb_dim), out.shape
    assert bool(jnp.all(jnp.isfinite(out)))
    print("KERNEL_OK")
</pallas_src>

<mosaic_0001>
module attributes {stable_mosaic.version = 11 : i64} {
  func.func @_stem_kernel(%arg0: i32, %arg1: memref<1x128x1xf32, #tpu.memory_space<vmem>>, %arg2: memref<128x2xf32, #tpu.memory_space<vmem>>, %arg3: memref<9x16xf32, #tpu.memory_space<vmem>>, %arg4: memref<1x16xf32, #tpu.memory_space<vmem>>, %arg5: memref<1x16xf32, #tpu.memory_space<vmem>>, %arg6: memref<1x128x16xbf16, #tpu.memory_space<vmem>>, %arg7: memref<160x1xf32, #tpu.memory_space<vmem>>) attributes {dimension_semantics = [#tpu.dimension_semantics<parallel>], iteration_bounds = array<i64: 2>, scalar_prefetch = 0 : i64, scratch_operands = 1 : i64, tpu.core_type = #tpu.core_type<tc>, window_params = [{transform_indices = @transform_0, window_bounds = array<i64: 1, 128, 1>}, {pipeline_mode = #tpu.pipeline_mode<synchronous>, transform_indices = @transform_1, window_bounds = array<i64: 128, 2>}, {pipeline_mode = #tpu.pipeline_mode<synchronous>, transform_indices = @transform_2, window_bounds = array<i64: 9, 16>}, {pipeline_mode = #tpu.pipeline_mode<synchronous>, transform_indices = @transform_3, window_bounds = array<i64: 1, 16>}, {pipeline_mode = #tpu.pipeline_mode<synchronous>, transform_indices = @transform_4, window_bounds = array<i64: 1, 16>}, {transform_indices = @transform_5, window_bounds = array<i64: 1, 128, 16>}]} {
    %cst = arith.constant 0.000000e+00 : f32
    %0 = vector.broadcast %cst : f32 to vector<160x1xf32>
    %c0 = arith.constant 0 : index
    %c0_0 = arith.constant 0 : index
    %1 = vector.load %arg7[%c0, %c0_0] : memref<160x1xf32, #tpu.memory_space<vmem>>, vector<160x1xf32>
    tpu.vector_store %arg7[%c0, %c0_0], %0 {strides = array<i32>} : memref<160x1xf32, #tpu.memory_space<vmem>>, vector<160x1xf32>,
    %c0_1 = arith.constant 0 : index
    %c0_2 = arith.constant 0 : index
    %c0_3 = arith.constant 0 : index
    %2 = vector.load %arg1[%c0_1, %c0_2, %c0_3] : memref<1x128x1xf32, #tpu.memory_space<vmem>>, vector<1x128x1xf32>
    %3 = vector.shape_cast %2 : vector<1x128x1xf32> to vector<128x1xf32>
    %c16 = arith.constant 16 : index
    %c0_4 = arith.constant 0 : index
    %4 = vector.load %arg7[%c16, %c0_4] : memref<160x1xf32, #tpu.memory_space<vmem>>, vector<128x1xf32>
    tpu.vector_store %arg7[%c16, %c0_4], %3 {strides = array<i32>} : memref<160x1xf32, #tpu.memory_space<vmem>>, vector<128x1xf32>,
    %c0_5 = arith.constant 0 : index
    %c0_6 = arith.constant 0 : index
    %5 = vector.load %arg7[%c0_5, %c0_6] : memref<160x1xf32, #tpu.memory_space<vmem>>, vector<160x1xf32>
    %c0_7 = arith.constant 0 : index
    %c0_8 = arith.constant 0 : index
    %6 = vector.load %arg2[%c0_7, %c0_8] : memref<128x2xf32, #tpu.memory_space<vmem>>, vector<128x2xf32>
    %7 = vector.extract_strided_slice %6 {offsets = [0, 0], sizes = [128, 1], strides = [1, 1]} : vector<128x2xf32> to vector<128x1xf32>
    %8 = vector.extract_strided_slice %6 {offsets = [0, 1], sizes = [128, 1], strides = [1, 1]} : vector<128x2xf32> to vector<128x1xf32>
    %c0_9 = arith.constant 0 : index
    %c0_10 = arith.constant 0 : index
    %9 = vector.load %arg3[%c0_9, %c0_10] : memref<9x16xf32, #tpu.memory_space<vmem>>, vector<9x16xf32>
    %10 = vector.extract_strided_slice %5 {offsets = [7, 0], sizes = [128, 1], strides = [1, 1]} : vector<160x1xf32> to vector<128x1xf32>
    %11 = vector.extract_strided_slice %9 {offsets = [0, 0], sizes = [1, 16], strides = [1, 1]} : vector<9x16xf32> to vector<1x16xf32>
    %12 = vector.broadcast %10 : vector<128x1xf32> to vector<128x16xf32>
    %13 = vector.broadcast %11 : vector<1x16xf32> to vector<128x16xf32>
    %14 = arith.mulf %12, %13 : vector<128x16xf32>
    %15 = vector.broadcast %7 : vector<128x1xf32> to vector<128x16xf32>
    %16 = arith.mulf %14, %15 : vector<128x16xf32>
    %17 = vector.extract_strided_slice %5 {offsets = [8, 0], sizes = [128, 1], strides = [1, 1]} : vector<160x1xf32> to vector<128x1xf32>
    %18 = vector.extract_strided_slice %9 {offsets = [1, 0], sizes = [1, 16], strides = [1, 1]} : vector<9x16xf32> to vector<1x16xf32>
    %19 = vector.broadcast %17 : vector<128x1xf32> to vector<128x16xf32>
    %20 = vector.broadcast %18 : vector<1x16xf32> to vector<128x16xf32>
    %21 = arith.mulf %19, %20 : vector<128x16xf32>
    %22 = arith.addf %16, %21 : vector<128x16xf32>
    %23 = vector.extract_strided_slice %5 {offsets = [9, 0], sizes = [128, 1], strides = [1, 1]} : vector<160x1xf32> to vector<128x1xf32>
    %24 = vector.extract_strided_slice %9 {offsets = [2, 0], sizes = [1, 16], strides = [1, 1]} : vector<9x16xf32> to vector<1x16xf32>
    %25 = vector.broadcast %23 : vector<128x1xf32> to vector<128x16xf32>
    %26 = vector.broadcast %24 : vector<1x16xf32> to vector<128x16xf32>
    %27 = arith.mulf %25, %26 : vector<128x16xf32>
    %28 = vector.broadcast %8 : vector<128x1xf32> to vector<128x16xf32>
    %29 = arith.mulf %27, %28 : vector<128x16xf32>
    %30 = arith.addf %22, %29 : vector<128x16xf32>
    %31 = vector.extract_strided_slice %5 {offsets = [15, 0], sizes = [128, 1], strides = [1, 1]} : vector<160x1xf32> to vector<128x1xf32>
    %32 = vector.extract_strided_slice %9 {offsets = [3, 0], sizes = [1, 16], strides = [1, 1]} : vector<9x16xf32> to vector<1x16xf32>
    %33 = vector.broadcast %31 : vector<128x1xf32> to vector<128x16xf32>
    %34 = vector.broadcast %32 : vector<1x16xf32> to vector<128x16xf32>
    %35 = arith.mulf %33, %34 : vector<128x16xf32>
    %36 = vector.broadcast %7 : vector<128x1xf32> to vector<128x16xf32>
    %37 = arith.mulf %35, %36 : vector<128x16xf32>
    %38 = arith.addf %30, %37 : vector<128x16xf32>
    %39 = vector.extract_strided_slice %5 {offsets = [16, 0], sizes = [128, 1], strides = [1, 1]} : vector<160x1xf32> to vector<128x1xf32>
    %40 = vector.extract_strided_slice %9 {offsets = [4, 0], sizes = [1, 16], strides = [1, 1]} : vector<9x16xf32> to vector<1x16xf32>
    %41 = vector.broadcast %39 : vector<128x1xf32> to vector<128x16xf32>
    %42 = vector.broadcast %40 : vector<1x16xf32> to vector<128x16xf32>
    %43 = arith.mulf %41, %42 : vector<128x16xf32>
    %44 = arith.addf %38, %43 : vector<128x16xf32>
    %45 = vector.extract_strided_slice %5 {offsets = [17, 0], sizes = [128, 1], strides = [1, 1]} : vector<160x1xf32> to vector<128x1xf32>
    %46 = vector.extract_strided_slice %9 {offsets = [5, 0], sizes = [1, 16], strides = [1, 1]} : vector<9x16xf32> to vector<1x16xf32>
    %47 = vector.broadcast %45 : vector<128x1xf32> to vector<128x16xf32>
    %48 = vector.broadcast %46 : vector<1x16xf32> to vector<128x16xf32>
    %49 = arith.mulf %47, %48 : vector<128x16xf32>
    %50 = vector.broadcast %8 : vector<128x1xf32> to vector<128x16xf32>
    %51 = arith.mulf %49, %50 : vector<128x16xf32>
    %52 = arith.addf %44, %51 : vector<128x16xf32>
    %53 = vector.extract_strided_slice %5 {offsets = [23, 0], sizes = [128, 1], strides = [1, 1]} : vector<160x1xf32> to vector<128x1xf32>
    %54 = vector.extract_strided_slice %9 {offsets = [6, 0], sizes = [1, 16], strides = [1, 1]} : vector<9x16xf32> to vector<1x16xf32>
    %55 = vector.broadcast %53 : vector<128x1xf32> to vector<128x16xf32>
    %56 = vector.broadcast %54 : vector<1x16xf32> to vector<128x16xf32>
    %57 = arith.mulf %55, %56 : vector<128x16xf32>
    %58 = vector.broadcast %7 : vector<128x1xf32> to vector<128x16xf32>
    %59 = arith.mulf %57, %58 : vector<128x16xf32>
    %60 = arith.addf %52, %59 : vector<128x16xf32>
    %61 = vector.extract_strided_slice %5 {offsets = [24, 0], sizes = [128, 1], strides = [1, 1]} : vector<160x1xf32> to vector<128x1xf32>
    %62 = vector.extract_strided_slice %9 {offsets = [7, 0], sizes = [1, 16], strides = [1, 1]} : vector<9x16xf32> to vector<1x16xf32>
    %63 = vector.broadcast %61 : vector<128x1xf32> to vector<128x16xf32>
    %64 = vector.broadcast %62 : vector<1x16xf32> to vector<128x16xf32>
    %65 = arith.mulf %63, %64 : vector<128x16xf32>
    %66 = arith.addf %60, %65 : vector<128x16xf32>
    %67 = vector.extract_strided_slice %5 {offsets = [25, 0], sizes = [128, 1], strides = [1, 1]} : vector<160x1xf32> to vector<128x1xf32>
    %68 = vector.extract_strided_slice %9 {offsets = [8, 0], sizes = [1, 16], strides = [1, 1]} : vector<9x16xf32> to vector<1x16xf32>
    %69 = vector.broadcast %67 : vector<128x1xf32> to vector<128x16xf32>
    %70 = vector.broadcast %68 : vector<1x16xf32> to vector<128x16xf32>
    %71 = arith.mulf %69, %70 : vector<128x16xf32>
    %72 = vector.broadcast %8 : vector<128x1xf32> to vector<128x16xf32>
    %73 = arith.mulf %71, %72 : vector<128x16xf32>
    %74 = arith.addf %66, %73 : vector<128x16xf32>
    %c0_11 = arith.constant 0 : index
    %c0_12 = arith.constant 0 : index
    %75 = vector.load %arg4[%c0_11, %c0_12] : memref<1x16xf32, #tpu.memory_space<vmem>>, vector<1x16xf32>
    %76 = vector.broadcast %75 : vector<1x16xf32> to vector<128x16xf32>
    %77 = arith.mulf %74, %76 : vector<128x16xf32>
    %c0_13 = arith.constant 0 : index
    %c0_14 = arith.constant 0 : index
    %78 = vector.load %arg5[%c0_13, %c0_14] : memref<1x16xf32, #tpu.memory_space<vmem>>, vector<1x16xf32>
    %79 = vector.broadcast %78 : vector<1x16xf32> to vector<128x16xf32>
    %80 = arith.addf %77, %79 : vector<128x16xf32>
    %cst_15 = arith.constant 0.000000e+00 : f32
    %81 = vector.broadcast %cst_15 : f32 to vector<128x16xf32>
    %82 = arith.maximumf %80, %81 : vector<128x16xf32>
    %83 = arith.truncf %82 : vector<128x16xf32> to vector<128x16xbf16>
    %c0_16 = arith.constant 0 : index
    %c0_17 = arith.constant 0 : index
    %c0_18 = arith.constant 0 : index
    %84 = vector.load %arg6[%c0_16, %c0_17, %c0_18] : memref<1x128x16xbf16, #tpu.memory_space<vmem>>, vector<1x128x16xbf16>
    %85 = vector.shape_cast %84 : vector<1x128x16xbf16> to vector<128x16xbf16>
    %86 = vector.shape_cast %83 : vector<128x16xbf16> to vector<1x128x16xbf16>
    tpu.vector_store %arg6[%c0_16, %c0_17, %c0_18], %86 {strides = array<i32>} : memref<1x128x16xbf16, #tpu.memory_space<vmem>>, vector<1x128x16xbf16>,
    return
  }
  func.func @transform_0(%arg0: i32) -> (i32, i32, i32) {
    %c0_i32 = arith.constant 0 : i32
    %c0_i32_0 = arith.constant 0 : i32
    %c0_i32_1 = arith.constant 0 : i32
    return %arg0, %c0_i32, %c0_i32_0 : i32, i32, i32
  }
  func.func @transform_1(%arg0: i32) -> (i32, i32) {
    %c0_i32 = arith.constant 0 : i32
    %c0_i32_0 = arith.constant 0 : i32
    %c0_i32_1 = arith.constant 0 : i32
    return %c0_i32, %c0_i32_0 : i32, i32
  }
  func.func @transform_2(%arg0: i32) -> (i32, i32) {
    %c0_i32 = arith.constant 0 : i32
    %c0_i32_0 = arith.constant 0 : i32
    %c0_i32_1 = arith.constant 0 : i32
    return %c0_i32, %c0_i32_0 : i32, i32
  }
  func.func @transform_3(%arg0: i32) -> (i32, i32) {
    %c0_i32 = arith.constant 0 : i32
    %c0_i32_0 = arith.constant 0 : i32
    %c0_i32_1 = arith.constant 0 : i32
    return %c0_i32, %c0_i32_0 : i32, i32
  }
  func.func @transform_4(%arg0: i32) -> (i32, i32) {
    %c0_i32 = arith.constant 0 : i32
    %c0_i32_0 = arith.constant 0 : i32
    %c0_i32_1 = arith.constant 0 : i32
    return %c0_i32, %c0_i32_0 : i32, i32
  }
  func.func @transform_5(%arg0: i32) -> (i32, i32, i32) {
    %c0_i32 = arith.constant 0 : i32
    %c0_i32_0 = arith.constant 0 : i32
    %c0_i32_1 = arith.constant 0 : i32
    return %arg0, %c0_i32, %c0_i32_0 : i32, i32, i32
  }
}

module attributes {stable_mosaic.version = 11 : i64} {
  func.func @_mm_affine_kernel(%arg0: i32, %arg1: memref<128x144xbf16, #tpu.memory_space<vmem>>, %arg2: memref<144x16xbf16, #tpu.memory_space<vmem>>, %arg3: memref<1x16xf32, #tpu.memory_space<vmem>>, %arg4: memref<1x16xf32, #tpu.memory_space<vmem>>, %arg5: memref<128x16xbf16, #tpu.memory_space<vmem>>) attributes {dimension_semantics = [#tpu.dimension_semantics<parallel>], iteration_bounds = array<i64: 1>, scalar_prefetch = 0 : i64, scratch_operands = 0 : i64, tpu.core_type = #tpu.core_type<tc>, window_params = [{transform_indices = @transform_0, window_bounds = array<i64: 128, 144>}, {pipeline_mode = #tpu.pipeline_mode<synchronous>, transform_indices = @transform_1, window_bounds = array<i64: 144, 16>}, {pipeline_mode = #tpu.pipeline_mode<synchronous>, transform_indices = @transform_2, window_bounds = array<i64: 1, 16>}, {pipeline_mode = #tpu.pipeline_mode<synchronous>, transform_indices = @transform_3, window_bounds = array<i64: 1, 16>}, {transform_indices = @transform_4, window_bounds = array<i64: 128, 16>}]} {
    %c0 = arith.constant 0 : index
    %c0_0 = arith.constant 0 : index
    %0 = vector.load %arg1[%c0, %c0_0] : memref<128x144xbf16, #tpu.memory_space<vmem>>, vector<128x144xbf16>
    %c0_1 = arith.constant 0 : index
    %c0_2 = arith.constant 0 : index
    %1 = vector.load %arg2[%c0_1, %c0_2] : memref<144x16xbf16, #tpu.memory_space<vmem>>, vector<144x16xbf16>
    %cst = arith.constant dense<0.000000e+00> : vector<128x16xf32>
    %2 = tpu.matmul %0, %1, %cst {dimension_numbers = #tpu.dot_dimension_numbers<[1], [0], [0], [1], [0, 0, 1, 1], [], []>} : vector<128x144xbf16>, vector<144x16xbf16>, vector<128x16xf32> -> vector<128x16xf32>
    %c0_3 = arith.constant 0 : index
    %c0_4 = arith.constant 0 : index
    %3 = vector.load %arg3[%c0_3, %c0_4] : memref<1x16xf32, #tpu.memory_space<vmem>>, vector<1x16xf32>
    %4 = vector.broadcast %3 : vector<1x16xf32> to vector<128x16xf32>
    %5 = arith.mulf %2, %4 : vector<128x16xf32>
    %c0_5 = arith.constant 0 : index
    %c0_6 = arith.constant 0 : index
    %6 = vector.load %arg4[%c0_5, %c0_6] : memref<1x16xf32, #tpu.memory_space<vmem>>, vector<1x16xf32>
    %7 = vector.broadcast %6 : vector<1x16xf32> to vector<128x16xf32>
    %8 = arith.addf %5, %7 : vector<128x16xf32>
    %9 = arith.truncf %8 : vector<128x16xf32> to vector<128x16xbf16>
    %c0_7 = arith.constant 0 : index
    %c0_8 = arith.constant 0 : index
    %10 = vector.load %arg5[%c0_7, %c0_8] : memref<128x16xbf16, #tpu.memory_space<vmem>>, vector<128x16xbf16>
    tpu.vector_store %arg5[%c0_7, %c0_8], %9 {strides = array<i32>} : memref<128x16xbf16, #tpu.memory_space<vmem>>, vector<128x16xbf16>,
    return
  }
  func.func @transform_0(%arg0: i32) -> (i32, i32) {
    %c0_i32 = arith.constant 0 : i32
    %c0_i32_0 = arith.constant 0 : i32
    return %arg0, %c0_i32 : i32, i32
  }
  func.func @transform_1(%arg0: i32) -> (i32, i32) {
    %c0_i32 = arith.constant 0 : i32
    %c0_i32_0 = arith.constant 0 : i32
    %c0_i32_1 = arith.constant 0 : i32
    return %c0_i32, %c0_i32_0 : i32, i32
  }
  func.func @transform_2(%arg0: i32) -> (i32, i32) {
    %c0_i32 = arith.constant 0 : i32
    %c0_i32_0 = arith.constant 0 : i32
    %c0_i32_1 = arith.constant 0 : i32
    return %c0_i32, %c0_i32_0 : i32, i32
  }
  func.func @transform_3(%arg0: i32) -> (i32, i32) {
    %c0_i32 = arith.constant 0 : i32
    %c0_i32_0 = arith.constant 0 : i32
    %c0_i32_1 = arith.constant 0 : i32
    return %c0_i32, %c0_i32_0 : i32, i32
  }
  func.func @transform_4(%arg0: i32) -> (i32, i32) {
    %c0_i32 = arith.constant 0 : i32
    %c0_i32_0 = arith.constant 0 : i32
    return %arg0, %c0_i32 : i32, i32
  }
}

module attributes {stable_mosaic.version = 11 : i64} {
  func.func @_bottleneck_kernel(%arg0: i32, %arg1: memref<1x64x16xbf16, #tpu.memory_space<vmem>>, %arg2: memref<64x2xf32, #tpu.memory_space<vmem>>, %arg3: memref<16x64xbf16, #tpu.memory_space<vmem>>, %arg4: memref<1x64xf32, #tpu.memory_space<vmem>>, %arg5: memref<1x64xf32, #tpu.memory_space<vmem>>, %arg6: memref<9x64xf32, #tpu.memory_space<vmem>>, %arg7: memref<1x64xf32, #tpu.memory_space<vmem>>, %arg8: memref<1x64xf32, #tpu.memory_space<vmem>>, %arg9: memref<64x16xbf16, #tpu.memory_space<vmem>>, %arg10: memref<1x16xf32, #tpu.memory_space<vmem>>, %arg11: memref<1x16xf32, #tpu.memory_space<vmem>>, %arg12: memref<1x64x16xbf16, #tpu.memory_space<vmem>>, %arg13: memref<96x64xf32, #tpu.memory_space<vmem>>) attributes {dimension_semantics = [#tpu.dimension_semantics<parallel>], iteration_bounds = array<i64: 2>, scalar_prefetch = 0 : i64, scratch_operands = 1 : i64, tpu.core_type = #tpu.core_type<tc>, window_params = [{transform_indices = @transform_0, window_bounds = array<i64: 1, 64, 16>}, {pipeline_mode = #tpu.pipeline_mode<synchronous>, transform_indices = @transform_1, window_bounds = array<i64: 64, 2>}, {pipeline_mode = #tpu.pipeline_mode<synchronous>, transform_indices = @transform_2, window_bounds = array<i64: 16, 64>}, {pipeline_mode = #tpu.pipeline_mode<synchronous>, transform_indices = @transform_3, window_bounds = array<i64: 1, 64>}, {pipeline_mode = #tpu.pipeline_mode<synchronous>, transform_indices = @transform_4, window_bounds = array<i64: 1, 64>}, {pipeline_mode = #tpu.pipeline_mode<synchronous>, transform_indices = @transform_5, window_bounds = array<i64: 9, 64>}, {pipeline_mode = #tpu.pipeline_mode<synchronous>, transform_indices = @transform_6, window_bounds = array<i64: 1, 64>}, {pipeline_mode = #tpu.pipeline_mode<synchronous>, transform_indices = @transform_7, window_bounds = array<i64: 1, 64>}, {pipeline_mode = #tpu.pipeline_mode<synchronous>, transform_indices = @transform_8, window_bounds = array<i64: 64, 16>}, {pipeline_mode = #tpu.pipeline_mode<synchronous>, transform_indices = @transform_9, window_bounds = array<i64: 1, 16>}, {pipeline_mode = #tpu.pipeline_mode<synchronous>, transform_indices = @transform_10, window_bounds = array<i64: 1, 16>}, {transform_indices = @transform_11, window_bounds = array<i64: 1, 64, 16>}]} {
    %c0 = arith.constant 0 : index
    %c0_0 = arith.constant 0 : index
    %c0_1 = arith.constant 0 : index
    %0 = vector.load %arg1[%c0, %c0_0, %c0_1] : memref<1x64x16xbf16, #tpu.memory_space<vmem>>, vector<1x64x16xbf16>
    %1 = vector.shape_cast %0 : vector<1x64x16xbf16> to vector<64x16xbf16>
    %c0_2 = arith.constant 0 : index
    %c0_3 = arith.constant 0 : index
    %2 = vector.load %arg3[%c0_2, %c0_3] : memref<16x64xbf16, #tpu.memory_space<vmem>>, vector<16x64xbf16>
    %cst = arith.constant dense<0.000000e+00> : vector<64x64xf32>
    %3 = tpu.matmul %1, %2, %cst {dimension_numbers = #tpu.dot_dimension_numbers<[1], [0], [0], [1], [0, 0, 1, 1], [], []>} : vector<64x16xbf16>, vector<16x64xbf16>, vector<64x64xf32> -> vector<64x64xf32>
    %c0_4 = arith.constant 0 : index
    %c0_5 = arith.constant 0 : index
    %4 = vector.load %arg4[%c0_4, %c0_5] : memref<1x64xf32, #tpu.memory_space<vmem>>, vector<1x64xf32>
    %5 = vector.broadcast %4 : vector<1x64xf32> to vector<64x64xf32>
    %6 = arith.mulf %3, %5 : vector<64x64xf32>
    %c0_6 = arith.constant 0 : index
    %c0_7 = arith.constant 0 : index
    %7 = vector.load %arg5[%c0_6, %c0_7] : memref<1x64xf32, #tpu.memory_space<vmem>>, vector<1x64xf32>
    %8 = vector.broadcast %7 : vector<1x64xf32> to vector<64x64xf32>
    %9 = arith.addf %6, %8 : vector<64x64xf32>
    %cst_8 = arith.constant 0.000000e+00 : f32
    %10 = vector.broadcast %cst_8 : f32 to vector<64x64xf32>
    %11 = arith.maximumf %9, %10 : vector<64x64xf32>
    %cst_9 = arith.constant 0.000000e+00 : f32
    %12 = vector.broadcast %cst_9 : f32 to vector<96x64xf32>
    %c0_10 = arith.constant 0 : index
    %c0_11 = arith.constant 0 : index
    %13 = vector.load %arg13[%c0_10, %c0_11] : memref<96x64xf32, #tpu.memory_space<vmem>>, vector<96x64xf32>
    tpu.vector_store %arg13[%c0_10, %c0_11], %12 {strides = array<i32>} : memref<96x64xf32, #tpu.memory_space<vmem>>, vector<96x64xf32>,
    %c16 = arith.constant 16 : index
    %c0_12 = arith.constant 0 : index
    %14 = vector.load %arg13[%c16, %c0_12] : memref<96x64xf32, #tpu.memory_space<vmem>>, vector<64x64xf32>
    tpu.vector_store %arg13[%c16, %c0_12], %11 {strides = array<i32>} : memref<96x64xf32, #tpu.memory_space<vmem>>, vector<64x64xf32>,
    %c0_13 = arith.constant 0 : index
    %c0_14 = arith.constant 0 : index
    %15 = vector.load %arg13[%c0_13, %c0_14] : memref<96x64xf32, #tpu.memory_space<vmem>>, vector<96x64xf32>
    %c0_15 = arith.constant 0 : index
    %c0_16 = arith.constant 0 : index
    %16 = vector.load %arg2[%c0_15, %c0_16] : memref<64x2xf32, #tpu.memory_space<vmem>>, vector<64x2xf32>
    %17 = vector.extract_strided_slice %16 {offsets = [0, 0], sizes = [64, 1], strides = [1, 1]} : vector<64x2xf32> to vector<64x1xf32>
    %18 = vector.extract_strided_slice %16 {offsets = [0, 1], sizes = [64, 1], strides = [1, 1]} : vector<64x2xf32> to vector<64x1xf32>
    %c0_17 = arith.constant 0 : index
    %c0_18 = arith.constant 0 : index
    %19 = vector.load %arg6[%c0_17, %c0_18] : memref<9x64xf32, #tpu.memory_space<vmem>>, vector<9x64xf32>
    %20 = vector.extract_strided_slice %15 {offsets = [7, 0], sizes = [64, 64], strides = [1, 1]} : vector<96x64xf32> to vector<64x64xf32>
    %21 = vector.extract_strided_slice %19 {offsets = [0, 0], sizes = [1, 64], strides = [1, 1]} : vector<9x64xf32> to vector<1x64xf32>
    %22 = vector.broadcast %21 : vector<1x64xf32> to vector<64x64xf32>
    %23 = arith.mulf %20, %22 : vector<64x64xf32>
    %24 = vector.broadcast %17 : vector<64x1xf32> to vector<64x64xf32>
    %25 = arith.mulf %23, %24 : vector<64x64xf32>
    %26 = vector.extract_strided_slice %15 {offsets = [8, 0], sizes = [64, 64], strides = [1, 1]} : vector<96x64xf32> to vector<64x64xf32>
    %27 = vector.extract_strided_slice %19 {offsets = [1, 0], sizes = [1, 64], strides = [1, 1]} : vector<9x64xf32> to vector<1x64xf32>
    %28 = vector.broadcast %27 : vector<1x64xf32> to vector<64x64xf32>
    %29 = arith.mulf %26, %28 : vector<64x64xf32>
    %30 = arith.addf %25, %29 : vector<64x64xf32>
    %31 = vector.extract_strided_slice %15 {offsets = [9, 0], sizes = [64, 64], strides = [1, 1]} : vector<96x64xf32> to vector<64x64xf32>
    %32 = vector.extract_strided_slice %19 {offsets = [2, 0], sizes = [1, 64], strides = [1, 1]} : vector<9x64xf32> to vector<1x64xf32>
    %33 = vector.broadcast %32 : vector<1x64xf32> to vector<64x64xf32>
    %34 = arith.mulf %31, %33 : vector<64x64xf32>
    %35 = vector.broadcast %18 : vector<64x1xf32> to vector<64x64xf32>
    %36 = arith.mulf %34, %35 : vector<64x64xf32>
    %37 = arith.addf %30, %36 : vector<64x64xf32>
    %38 = vector.extract_strided_slice %15 {offsets = [15, 0], sizes = [64, 64], strides = [1, 1]} : vector<96x64xf32> to vector<64x64xf32>
    %39 = vector.extract_strided_slice %19 {offsets = [3, 0], sizes = [1, 64], strides = [1, 1]} : vector<9x64xf32> to vector<1x64xf32>
    %40 = vector.broadcast %39 : vector<1x64xf32> to vector<64x64xf32>
    %41 = arith.mulf %38, %40 : vector<64x64xf32>
    %42 = vector.broadcast %17 : vector<64x1xf32> to vector<64x64xf32>
    %43 = arith.mulf %41, %42 : vector<64x64xf32>
    %44 = arith.addf %37, %43 : vector<64x64xf32>
    %45 = vector.extract_strided_slice %15 {offsets = [16, 0], sizes = [64, 64], strides = [1, 1]} : vector<96x64xf32> to vector<64x64xf32>
    %46 = vector.extract_strided_slice %19 {offsets = [4, 0], sizes = [1, 64], strides = [1, 1]} : vector<9x64xf32> to vector<1x64xf32>
    %47 = vector.broadcast %46 : vector<1x64xf32> to vector<64x64xf32>
    %48 = arith.mulf %45, %47 : vector<64x64xf32>
    %49 = arith.addf %44, %48 : vector<64x64xf32>
    %50 = vector.extract_strided_slice %15 {offsets = [17, 0], sizes = [64, 64], strides = [1, 1]} : vector<96x64xf32> to vector<64x64xf32>
    %51 = vector.extract_strided_slice %19 {offsets = [5, 0], sizes = [1, 64], strides = [1, 1]} : vector<9x64xf32> to vector<1x64xf32>
    %52 = vector.broadcast %51 : vector<1x64xf32> to vector<64x64xf32>
    %53 = arith.mulf %50, %52 : vector<64x64xf32>
    %54 = vector.broadcast %18 : vector<64x1xf32> to vector<64x64xf32>
    %55 = arith.mulf %53, %54 : vector<64x64xf32>
    %56 = arith.addf %49, %55 : vector<64x64xf32>
    %57 = vector.extract_strided_slice %15 {offsets = [23, 0], sizes = [64, 64], strides = [1, 1]} : vector<96x64xf32> to vector<64x64xf32>
    %58 = vector.extract_strided_slice %19 {offsets = [6, 0], sizes = [1, 64], strides = [1, 1]} : vector<9x64xf32> to vector<1x64xf32>
    %59 = vector.broadcast %58 : vector<1x64xf32> to vector<64x64xf32>
    %60 = arith.mulf %57, %59 : vector<64x64xf32>
    %61 = vector.broadcast %17 : vector<64x1xf32> to vector<64x64xf32>
    %62 = arith.mulf %60, %61 : vector<64x64xf32>
    %63 = arith.addf %56, %62 : vector<64x64xf32>
    %64 = vector.extract_strided_slice %15 {offsets = [24, 0], sizes = [64, 64], strides = [1, 1]} : vector<96x64xf32> to vector<64x64xf32>
    %65 = vector.extract_strided_slice %19 {offsets = [7, 0], sizes = [1, 64], strides = [1, 1]} : vector<9x64xf32> to vector<1x64xf32>
    %66 = vector.broadcast %65 : vector<1x64xf32> to vector<64x64xf32>
    %67 = arith.mulf %64, %66 : vector<64x64xf32>
    %68 = arith.addf %63, %67 : vector<64x64xf32>
    %69 = vector.extract_strided_slice %15 {offsets = [25, 0], sizes = [64, 64], strides = [1, 1]} : vector<96x64xf32> to vector<64x64xf32>
    %70 = vector.extract_strided_slice %19 {offsets = [8, 0], sizes = [1, 64], strides = [1, 1]} : vector<9x64xf32> to vector<1x64xf32>
    %71 = vector.broadcast %70 : vector<1x64xf32> to vector<64x64xf32>
    %72 = arith.mulf %69, %71 : vector<64x64xf32>
    %73 = vector.broadcast %18 : vector<64x1xf32> to vector<64x64xf32>
    %74 = arith.mulf %72, %73 : vector<64x64xf32>
    %75 = arith.addf %68, %74 : vector<64x64xf32>
    %c0_19 = arith.constant 0 : index
    %c0_20 = arith.constant 0 : index
    %76 = vector.load %arg7[%c0_19, %c0_20] : memref<1x64xf32, #tpu.memory_space<vmem>>, vector<1x64xf32>
    %77 = vector.broadcast %76 : vector<1x64xf32> to vector<64x64xf32>
    %78 = arith.mulf %75, %77 : vector<64x64xf32>
    %c0_21 = arith.constant 0 : index
    %c0_22 = arith.constant 0 : index
    %79 = vector.load %arg8[%c0_21, %c0_22] : memref<1x64xf32, #tpu.memory_space<vmem>>, vector<1x64xf32>
    %80 = vector.broadcast %79 : vector<1x64xf32> to vector<64x64xf32>
    %81 = arith.addf %78, %80 : vector<64x64xf32>
    %cst_23 = arith.constant 0.000000e+00 : f32
    %82 = vector.broadcast %cst_23 : f32 to vector<64x64xf32>
    %83 = arith.maximumf %81, %82 : vector<64x64xf32>
    %84 = arith.truncf %83 : vector<64x64xf32> to vector<64x64xbf16>
    %c0_24 = arith.constant 0 : index
    %c0_25 = arith.constant 0 : index
    %85 = vector.load %arg9[%c0_24, %c0_25] : memref<64x16xbf16, #tpu.memory_space<vmem>>, vector<64x16xbf16>
    %cst_26 = arith.constant dense<0.000000e+00> : vector<64x16xf32>
    %86 = tpu.matmul %84, %85, %cst_26 {dimension_numbers = #tpu.dot_dimension_numbers<[1], [0], [0], [1], [0, 0, 1, 1], [], []>} : vector<64x64xbf16>, vector<64x16xbf16>, vector<64x16xf32> -> vector<64x16xf32>
    %c0_27 = arith.constant 0 : index
    %c0_28 = arith.constant 0 : index
    %87 = vector.load %arg10[%c0_27, %c0_28] : memref<1x16xf32, #tpu.memory_space<vmem>>, vector<1x16xf32>
    %88 = vector.broadcast %87 : vector<1x16xf32> to vector<64x16xf32>
    %89 = arith.mulf %86, %88 : vector<64x16xf32>
    %c0_29 = arith.constant 0 : index
    %c0_30 = arith.constant 0 : index
    %90 = vector.load %arg11[%c0_29, %c0_30] : memref<1x16xf32, #tpu.memory_space<vmem>>, vector<1x16xf32>
    %91 = vector.broadcast %90 : vector<1x16xf32> to vector<64x16xf32>
    %92 = arith.addf %89, %91 : vector<64x16xf32>
    %93 = arith.extf %1 : vector<64x16xbf16> to vector<64x16xf32>
    %94 = arith.addf %92, %93 : vector<64x16xf32>
    %cst_31 = arith.constant 0.000000e+00 : f32
    %95 = vector.broadcast %cst_31 : f32 to vector<64x16xf32>
    %96 = arith.maximumf %94, %95 : vector<64x16xf32>
    %97 = arith.truncf %96 : vector<64x16xf32> to vector<64x16xbf16>
    %c0_32 = arith.constant 0 : index
    %c0_33 = arith.constant 0 : index
    %c0_34 = arith.constant 0 : index
    %98 = vector.load %arg12[%c0_32, %c0_33, %c0_34] : memref<1x64x16xbf16, #tpu.memory_space<vmem>>, vector<1x64x16xbf16>
    %99 = vector.shape_cast %98 : vector<1x64x16xbf16> to vector<64x16xbf16>
    %100 = vector.shape_cast %97 : vector<64x16xbf16> to vector<1x64x16xbf16>
    tpu.vector_store %arg12[%c0_32, %c0_33, %c0_34], %100 {strides = array<i32>} : memref<1x64x16xbf16, #tpu.memory_space<vmem>>, vector<1x64x16xbf16>,
    return
  }
  func.func @transform_0(%arg0: i32) -> (i32, i32, i32) {
    %c0_i32 = arith.constant 0 : i32
    %c0_i32_0 = arith.constant 0 : i32
    %c0_i32_1 = arith.constant 0 : i32
    return %arg0, %c0_i32, %c0_i32_0 : i32, i32, i32
  }
  func.func @transform_1(%arg0: i32) -> (i32, i32) {
    %c0_i32 = arith.constant 0 : i32
    %c0_i32_0 = arith.constant 0 : i32
    %c0_i32_1 = arith.constant 0 : i32
    return %c0_i32, %c0_i32_0 : i32, i32
  }
  func.func @transform_2(%arg0: i32) -> (i32, i32) {
    %c0_i32 = arith.constant 0 : i32
    %c0_i32_0 = arith.constant 0 : i32
    %c0_i32_1 = arith.constant 0 : i32
    return %c0_i32, %c0_i32_0 : i32, i32
  }
  func.func @transform_3(%arg0: i32) -> (i32, i32) {
    %c0_i32 = arith.constant 0 : i32
    %c0_i32_0 = arith.constant 0 : i32
    %c0_i32_1 = arith.constant 0 : i32
    return %c0_i32, %c0_i32_0 : i32, i32
  }
  func.func @transform_4(%arg0: i32) -> (i32, i32) {
    %c0_i32 = arith.constant 0 : i32
    %c0_i32_0 = arith.constant 0 : i32
    %c0_i32_1 = arith.constant 0 : i32
    return %c0_i32, %c0_i32_0 : i32, i32
  }
  func.func @transform_5(%arg0: i32) -> (i32, i32) {
    %c0_i32 = arith.constant 0 : i32
    %c0_i32_0 = arith.constant 0 : i32
    %c0_i32_1 = arith.constant 0 : i32
    return %c0_i32, %c0_i32_0 : i32, i32
  }
  func.func @transform_6(%arg0: i32) -> (i32, i32) {
    %c0_i32 = arith.constant 0 : i32
    %c0_i32_0 = arith.constant 0 : i32
    %c0_i32_1 = arith.constant 0 : i32
    return %c0_i32, %c0_i32_0 : i32, i32
  }
  func.func @transform_7(%arg0: i32) -> (i32, i32) {
    %c0_i32 = arith.constant 0 : i32
    %c0_i32_0 = arith.constant 0 : i32
    %c0_i32_1 = arith.constant 0 : i32
    return %c0_i32, %c0_i32_0 : i32, i32
  }
  func.func @transform_8(%arg0: i32) -> (i32, i32) {
    %c0_i32 = arith.constant 0 : i32
    %c0_i32_0 = arith.constant 0 : i32
    %c0_i32_1 = arith.constant 0 : i32
    return %c0_i32, %c0_i32_0 : i32, i32
  }
  func.func @transform_9(%arg0: i32) -> (i32, i32) {
    %c0_i32 = arith.constant 0 : i32
    %c0_i32_0 = arith.constant 0 : i32
    %c0_i32_1 = arith.constant 0 : i32
    return %c0_i32, %c0_i32_0 : i32, i32
  }
  func.func @transform_10(%arg0: i32) -> (i32, i32) {
    %c0_i32 = arith.constant 0 : i32
    %c0_i32_0 = arith.constant 0 : i32
    %c0_i32_1 = arith.constant 0 : i32
    return %c0_i32, %c0_i32_0 : i32, i32
  }
  func.func @transform_11(%arg0: i32) -> (i32, i32, i32) {
    %c0_i32 = arith.constant 0 : i32
    %c0_i32_0 = arith.constant 0 : i32
    %c0_i32_1 = arith.constant 0 : i32
    return %arg0, %c0_i32, %c0_i32_0 : i32, i32, i32
  }
}

module attributes {stable_mosaic.version = 11 : i64} {
  func.func @_mm_affine_kernel(%arg0: i32, %arg1: memref<32x144xbf16, #tpu.memory_space<vmem>>, %arg2: memref<144x32xbf16, #tpu.memory_space<vmem>>, %arg3: memref<1x32xf32, #tpu.memory_space<vmem>>, %arg4: memref<1x32xf32, #tpu.memory_space<vmem>>, %arg5: memref<32x32xbf16, #tpu.memory_space<vmem>>) attributes {dimension_semantics = [#tpu.dimension_semantics<parallel>], iteration_bounds = array<i64: 1>, scalar_prefetch = 0 : i64, scratch_operands = 0 : i64, tpu.core_type = #tpu.core_type<tc>, window_params = [{transform_indices = @transform_0, window_bounds = array<i64: 32, 144>}, {pipeline_mode = #tpu.pipeline_mode<synchronous>, transform_indices = @transform_1, window_bounds = array<i64: 144, 32>}, {pipeline_mode = #tpu.pipeline_mode<synchronous>, transform_indices = @transform_2, window_bounds = array<i64: 1, 32>}, {pipeline_mode = #tpu.pipeline_mode<synchronous>, transform_indices = @transform_3, window_bounds = array<i64: 1, 32>}, {transform_indices = @transform_4, window_bounds = array<i64: 32, 32>}]} {
    %c0 = arith.constant 0 : index
    %c0_0 = arith.constant 0 : index
    %0 = vector.load %arg1[%c0, %c0_0] : memref<32x144xbf16, #tpu.memory_space<vmem>>, vector<32x144xbf16>
    %c0_1 = arith.constant 0 : index
    %c0_2 = arith.constant 0 : index
    %1 = vector.load %arg2[%c0_1, %c0_2] : memref<144x32xbf16, #tpu.memory_space<vmem>>, vector<144x32xbf16>
    %cst = arith.constant dense<0.000000e+00> : vector<32x32xf32>
    %2 = tpu.matmul %0, %1, %cst {dimension_numbers = #tpu.dot_dimension_numbers<[1], [0], [0], [1], [0, 0, 1, 1], [], []>} : vector<32x144xbf16>, vector<144x32xbf16>, vector<32x32xf32> -> vector<32x32xf32>
    %c0_3 = arith.constant 0 : index
    %c0_4 = arith.constant 0 : index
    %3 = vector.load %arg3[%c0_3, %c0_4] : memref<1x32xf32, #tpu.memory_space<vmem>>, vector<1x32xf32>
    %4 = vector.broadcast %3 : vector<1x32xf32> to vector<32x32xf32>
    %5 = arith.mulf %2, %4 : vector<32x32xf32>
    %c0_5 = arith.constant 0 : index
    %c0_6 = arith.constant 0 : index
    %6 = vector.load %arg4[%c0_5, %c0_6] : memref<1x32xf32, #tpu.memory_space<vmem>>, vector<1x32xf32>
    %7 = vector.broadcast %6 : vector<1x32xf32> to vector<32x32xf32>
    %8 = arith.addf %5, %7 : vector<32x32xf32>
    %9 = arith.truncf %8 : vector<32x32xf32> to vector<32x32xbf16>
    %c0_7 = arith.constant 0 : index
    %c0_8 = arith.constant 0 : index
    %10 = vector.load %arg5[%c0_7, %c0_8] : memref<32x32xbf16, #tpu.memory_space<vmem>>, vector<32x32xbf16>
    tpu.vector_store %arg5[%c0_7, %c0_8], %9 {strides = array<i32>} : memref<32x32xbf16, #tpu.memory_space<vmem>>, vector<32x32xbf16>,
    return
  }
  func.func @transform_0(%arg0: i32) -> (i32, i32) {
    %c0_i32 = arith.constant 0 : i32
    %c0_i32_0 = arith.constant 0 : i32
    return %arg0, %c0_i32 : i32, i32
  }
  func.func @transform_1(%arg0: i32) -> (i32, i32) {
    %c0_i32 = arith.constant 0 : i32
    %c0_i32_0 = arith.constant 0 : i32
    %c0_i32_1 = arith.constant 0 : i32
    return %c0_i32, %c0_i32_0 : i32, i32
  }
  func.func @transform_2(%arg0: i32) -> (i32, i32) {
    %c0_i32 = arith.constant 0 : i32
    %c0_i32_0 = arith.constant 0 : i32
    %c0_i32_1 = arith.constant 0 : i32
    return %c0_i32, %c0_i32_0 : i32, i32
  }
  func.func @transform_3(%arg0: i32) -> (i32, i32) {
    %c0_i32 = arith.constant 0 : i32
    %c0_i32_0 = arith.constant 0 : i32
    %c0_i32_1 = arith.constant 0 : i32
    return %c0_i32, %c0_i32_0 : i32, i32
  }
  func.func @transform_4(%arg0: i32) -> (i32, i32) {
    %c0_i32 = arith.constant 0 : i32
    %c0_i32_0 = arith.constant 0 : i32
    return %arg0, %c0_i32 : i32, i32
  }
}

module attributes {stable_mosaic.version = 11 : i64} {
  func.func @_bottleneck_kernel(%arg0: i32, %arg1: memref<1x16x32xbf16, #tpu.memory_space<vmem>>, %arg2: memref<16x2xf32, #tpu.memory_space<vmem>>, %arg3: memref<32x128xbf16, #tpu.memory_space<vmem>>, %arg4: memref<1x128xf32, #tpu.memory_space<vmem>>, %arg5: memref<1x128xf32, #tpu.memory_space<vmem>>, %arg6: memref<9x128xf32, #tpu.memory_space<vmem>>, %arg7: memref<1x128xf32, #tpu.memory_space<vmem>>, %arg8: memref<1x128xf32, #tpu.memory_space<vmem>>, %arg9: memref<128x32xbf16, #tpu.memory_space<vmem>>, %arg10: memref<1x32xf32, #tpu.memory_space<vmem>>, %arg11: memref<1x32xf32, #tpu.memory_space<vmem>>, %arg12: memref<1x16x32xbf16, #tpu.memory_space<vmem>>, %arg13: memref<32x128xf32, #tpu.memory_space<vmem>>) attributes {dimension_semantics = [#tpu.dimension_semantics<parallel>], iteration_bounds = array<i64: 2>, scalar_prefetch = 0 : i64, scratch_operands = 1 : i64, tpu.core_type = #tpu.core_type<tc>, window_params = [{transform_indices = @transform_0, window_bounds = array<i64: 1, 16, 32>}, {pipeline_mode = #tpu.pipeline_mode<synchronous>, transform_indices = @transform_1, window_bounds = array<i64: 16, 2>}, {pipeline_mode = #tpu.pipeline_mode<synchronous>, transform_indices = @transform_2, window_bounds = array<i64: 32, 128>}, {pipeline_mode = #tpu.pipeline_mode<synchronous>, transform_indices = @transform_3, window_bounds = array<i64: 1, 128>}, {pipeline_mode = #tpu.pipeline_mode<synchronous>, transform_indices = @transform_4, window_bounds = array<i64: 1, 128>}, {pipeline_mode = #tpu.pipeline_mode<synchronous>, transform_indices = @transform_5, window_bounds = array<i64: 9, 128>}, {pipeline_mode = #tpu.pipeline_mode<synchronous>, transform_indices = @transform_6, window_bounds = array<i64: 1, 128>}, {pipeline_mode = #tpu.pipeline_mode<synchronous>, transform_indices = @transform_7, window_bounds = array<i64: 1, 128>}, {pipeline_mode = #tpu.pipeline_mode<synchronous>, transform_indices = @transform_8, window_bounds = array<i64: 128, 32>}, {pipeline_mode = #tpu.pipeline_mode<synchronous>, transform_indices = @transform_9, window_bounds = array<i64: 1, 32>}, {pipeline_mode = #tpu.pipeline_mode<synchronous>, transform_indices = @transform_10, window_bounds = array<i64: 1, 32>}, {transform_indices = @transform_11, window_bounds = array<i64: 1, 16, 32>}]} {
    %c0 = arith.constant 0 : index
    %c0_0 = arith.constant 0 : index
    %c0_1 = arith.constant 0 : index
    %0 = vector.load %arg1[%c0, %c0_0, %c0_1] : memref<1x16x32xbf16, #tpu.memory_space<vmem>>, vector<1x16x32xbf16>
    %1 = vector.shape_cast %0 : vector<1x16x32xbf16> to vector<16x32xbf16>
    %c0_2 = arith.constant 0 : index
    %c0_3 = arith.constant 0 : index
    %2 = vector.load %arg3[%c0_2, %c0_3] : memref<32x128xbf16, #tpu.memory_space<vmem>>, vector<32x128xbf16>
    %cst = arith.constant dense<0.000000e+00> : vector<16x128xf32>
    %3 = tpu.matmul %1, %2, %cst {dimension_numbers = #tpu.dot_dimension_numbers<[1], [0], [0], [1], [0, 0, 1, 1], [], []>} : vector<16x32xbf16>, vector<32x128xbf16>, vector<16x128xf32> -> vector<16x128xf32>
    %c0_4 = arith.constant 0 : index
    %c0_5 = arith.constant 0 : index
    %4 = vector.load %arg4[%c0_4, %c0_5] : memref<1x128xf32, #tpu.memory_space<vmem>>, vector<1x128xf32>
    %5 = vector.broadcast %4 : vector<1x128xf32> to vector<16x128xf32>
    %6 = arith.mulf %3, %5 : vector<16x128xf32>
    %c0_6 = arith.constant 0 : index
    %c0_7 = arith.constant 0 : index
    %7 = vector.load %arg5[%c0_6, %c0_7] : memref<1x128xf32, #tpu.memory_space<vmem>>, vector<1x128xf32>
    %8 = vector.broadcast %7 : vector<1x128xf32> to vector<16x128xf32>
    %9 = arith.addf %6, %8 : vector<16x128xf32>
    %cst_8 = arith.constant 0.000000e+00 : f32
    %10 = vector.broadcast %cst_8 : f32 to vector<16x128xf32>
    %11 = arith.maximumf %9, %10 : vector<16x128xf32>
    %cst_9 = arith.constant 0.000000e+00 : f32
    %12 = vector.broadcast %cst_9 : f32 to vector<32x128xf32>
    %c0_10 = arith.constant 0 : index
    %c0_11 = arith.constant 0 : index
    %13 = vector.load %arg13[%c0_10, %c0_11] : memref<32x128xf32, #tpu.memory_space<vmem>>, vector<32x128xf32>
    tpu.vector_store %arg13[%c0_10, %c0_11], %12 {strides = array<i32>} : memref<32x128xf32, #tpu.memory_space<vmem>>, vector<32x128xf32>,
    %c8 = arith.constant 8 : index
    %c0_12 = arith.constant 0 : index
    %14 = vector.load %arg13[%c8, %c0_12] : memref<32x128xf32, #tpu.memory_space<vmem>>, vector<16x128xf32>
    tpu.vector_store %arg13[%c8, %c0_12], %11 {strides = array<i32>} : memref<32x128xf32, #tpu.memory_space<vmem>>, vector<16x128xf32>,
    %c0_13 = arith.constant 0 : index
    %c0_14 = arith.constant 0 : index
    %15 = vector.load %arg13[%c0_13, %c0_14] : memref<32x128xf32, #tpu.memory_space<vmem>>, vector<32x128xf32>
    %c0_15 = arith.constant 0 : index
    %c0_16 = arith.constant 0 : index
    %16 = vector.load %arg2[%c0_15, %c0_16] : memref<16x2xf32, #tpu.memory_space<vmem>>, vector<16x2xf32>
    %17 = vector.extract_strided_slice %16 {offsets = [0, 0], sizes = [16, 1], strides = [1, 1]} : vector<16x2xf32> to vector<16x1xf32>
    %18 = vector.extract_strided_slice %16 {offsets = [0, 1], sizes = [16, 1], strides = [1, 1]} : vector<16x2xf32> to vector<16x1xf32>
    %c0_17 = arith.constant 0 : index
    %c0_18 = arith.constant 0 : index
    %19 = vector.load %arg6[%c0_17, %c0_18] : memref<9x128xf32, #tpu.memory_space<vmem>>, vector<9x128xf32>
    %20 = vector.extract_strided_slice %15 {offsets = [3, 0], sizes = [16, 128], strides = [1, 1]} : vector<32x128xf32> to vector<16x128xf32>
    %21 = vector.extract_strided_slice %19 {offsets = [0, 0], sizes = [1, 128], strides = [1, 1]} : vector<9x128xf32> to vector<1x128xf32>
    %22 = vector.broadcast %21 : vector<1x128xf32> to vector<16x128xf32>
    %23 = arith.mulf %20, %22 : vector<16x128xf32>
    %24 = vector.broadcast %17 : vector<16x1xf32> to vector<16x128xf32>
    %25 = arith.mulf %23, %24 : vector<16x128xf32>
    %26 = vector.extract_strided_slice %15 {offsets = [4, 0], sizes = [16, 128], strides = [1, 1]} : vector<32x128xf32> to vector<16x128xf32>
    %27 = vector.extract_strided_slice %19 {offsets = [1, 0], sizes = [1, 128], strides = [1, 1]} : vector<9x128xf32> to vector<1x128xf32>
    %28 = vector.broadcast %27 : vector<1x128xf32> to vector<16x128xf32>
    %29 = arith.mulf %26, %28 : vector<16x128xf32>
    %30 = arith.addf %25, %29 : vector<16x128xf32>
    %31 = vector.extract_strided_slice %15 {offsets = [5, 0], sizes = [16, 128], strides = [1, 1]} : vector<32x128xf32> to vector<16x128xf32>
    %32 = vector.extract_strided_slice %19 {offsets = [2, 0], sizes = [1, 128], strides = [1, 1]} : vector<9x128xf32> to vector<1x128xf32>
    %33 = vector.broadcast %32 : vector<1x128xf32> to vector<16x128xf32>
    %34 = arith.mulf %31, %33 : vector<16x128xf32>
    %35 = vector.broadcast %18 : vector<16x1xf32> to vector<16x128xf32>
    %36 = arith.mulf %34, %35 : vector<16x128xf32>
    %37 = arith.addf %30, %36 : vector<16x128xf32>
    %38 = vector.extract_strided_slice %15 {offsets = [7, 0], sizes = [16, 128], strides = [1, 1]} : vector<32x128xf32> to vector<16x128xf32>
    %39 = vector.extract_strided_slice %19 {offsets = [3, 0], sizes = [1, 128], strides = [1, 1]} : vector<9x128xf32> to vector<1x128xf32>
    %40 = vector.broadcast %39 : vector<1x128xf32> to vector<16x128xf32>
    %41 = arith.mulf %38, %40 : vector<16x128xf32>
    %42 = vector.broadcast %17 : vector<16x1xf32> to vector<16x128xf32>
    %43 = arith.mulf %41, %42 : vector<16x128xf32>
    %44 = arith.addf %37, %43 : vector<16x128xf32>
    %45 = vector.extract_strided_slice %15 {offsets = [8, 0], sizes = [16, 128], strides = [1, 1]} : vector<32x128xf32> to vector<16x128xf32>
    %46 = vector.extract_strided_slice %19 {offsets = [4, 0], sizes = [1, 128], strides = [1, 1]} : vector<9x128xf32> to vector<1x128xf32>
    %47 = vector.broadcast %46 : vector<1x128xf32> to vector<16x128xf32>
    %48 = arith.mulf %45, %47 : vector<16x128xf32>
    %49 = arith.addf %44, %48 : vector<16x128xf32>
    %50 = vector.extract_strided_slice %15 {offsets = [9, 0], sizes = [16, 128], strides = [1, 1]} : vector<32x128xf32> to vector<16x128xf32>
    %51 = vector.extract_strided_slice %19 {offsets = [5, 0], sizes = [1, 128], strides = [1, 1]} : vector<9x128xf32> to vector<1x128xf32>
    %52 = vector.broadcast %51 : vector<1x128xf32> to vector<16x128xf32>
    %53 = arith.mulf %50, %52 : vector<16x128xf32>
    %54 = vector.broadcast %18 : vector<16x1xf32> to vector<16x128xf32>
    %55 = arith.mulf %53, %54 : vector<16x128xf32>
    %56 = arith.addf %49, %55 : vector<16x128xf32>
    %57 = vector.extract_strided_slice %15 {offsets = [11, 0], sizes = [16, 128], strides = [1, 1]} : vector<32x128xf32> to vector<16x128xf32>
    %58 = vector.extract_strided_slice %19 {offsets = [6, 0], sizes = [1, 128], strides = [1, 1]} : vector<9x128xf32> to vector<1x128xf32>
    %59 = vector.broadcast %58 : vector<1x128xf32> to vector<16x128xf32>
    %60 = arith.mulf %57, %59 : vector<16x128xf32>
    %61 = vector.broadcast %17 : vector<16x1xf32> to vector<16x128xf32>
    %62 = arith.mulf %60, %61 : vector<16x128xf32>
    %63 = arith.addf %56, %62 : vector<16x128xf32>
    %64 = vector.extract_strided_slice %15 {offsets = [12, 0], sizes = [16, 128], strides = [1, 1]} : vector<32x128xf32> to vector<16x128xf32>
    %65 = vector.extract_strided_slice %19 {offsets = [7, 0], sizes = [1, 128], strides = [1, 1]} : vector<9x128xf32> to vector<1x128xf32>
    %66 = vector.broadcast %65 : vector<1x128xf32> to vector<16x128xf32>
    %67 = arith.mulf %64, %66 : vector<16x128xf32>
    %68 = arith.addf %63, %67 : vector<16x128xf32>
    %69 = vector.extract_strided_slice %15 {offsets = [13, 0], sizes = [16, 128], strides = [1, 1]} : vector<32x128xf32> to vector<16x128xf32>
    %70 = vector.extract_strided_slice %19 {offsets = [8, 0], sizes = [1, 128], strides = [1, 1]} : vector<9x128xf32> to vector<1x128xf32>
    %71 = vector.broadcast %70 : vector<1x128xf32> to vector<16x128xf32>
    %72 = arith.mulf %69, %71 : vector<16x128xf32>
    %73 = vector.broadcast %18 : vector<16x1xf32> to vector<16x128xf32>
    %74 = arith.mulf %72, %73 : vector<16x128xf32>
    %75 = arith.addf %68, %74 : vector<16x128xf32>
    %c0_19 = arith.constant 0 : index
    %c0_20 = arith.constant 0 : index
    %76 = vector.load %arg7[%c0_19, %c0_20] : memref<1x128xf32, #tpu.memory_space<vmem>>, vector<1x128xf32>
    %77 = vector.broadcast %76 : vector<1x128xf32> to vector<16x128xf32>
    %78 = arith.mulf %75, %77 : vector<16x128xf32>
    %c0_21 = arith.constant 0 : index
    %c0_22 = arith.constant 0 : index
    %79 = vector.load %arg8[%c0_21, %c0_22] : memref<1x128xf32, #tpu.memory_space<vmem>>, vector<1x128xf32>
    %80 = vector.broadcast %79 : vector<1x128xf32> to vector<16x128xf32>
    %81 = arith.addf %78, %80 : vector<16x128xf32>
    %cst_23 = arith.constant 0.000000e+00 : f32
    %82 = vector.broadcast %cst_23 : f32 to vector<16x128xf32>
    %83 = arith.maximumf %81, %82 : vector<16x128xf32>
    %84 = arith.truncf %83 : vector<16x128xf32> to vector<16x128xbf16>
    %c0_24 = arith.constant 0 : index
    %c0_25 = arith.constant 0 : index
    %85 = vector.load %arg9[%c0_24, %c0_25] : memref<128x32xbf16, #tpu.memory_space<vmem>>, vector<128x32xbf16>
    %cst_26 = arith.constant dense<0.000000e+00> : vector<16x32xf32>
    %86 = tpu.matmul %84, %85, %cst_26 {dimension_numbers = #tpu.dot_dimension_numbers<[1], [0], [0], [1], [0, 0, 1, 1], [], []>} : vector<16x128xbf16>, vector<128x32xbf16>, vector<16x32xf32> -> vector<16x32xf32>
    %c0_27 = arith.constant 0 : index
    %c0_28 = arith.constant 0 : index
    %87 = vector.load %arg10[%c0_27, %c0_28] : memref<1x32xf32, #tpu.memory_space<vmem>>, vector<1x32xf32>
    %88 = vector.broadcast %87 : vector<1x32xf32> to vector<16x32xf32>
    %89 = arith.mulf %86, %88 : vector<16x32xf32>
    %c0_29 = arith.constant 0 : index
    %c0_30 = arith.constant 0 : index
    %90 = vector.load %arg11[%c0_29, %c0_30] : memref<1x32xf32, #tpu.memory_space<vmem>>, vector<1x32xf32>
    %91 = vector.broadcast %90 : vector<1x32xf32> to vector<16x32xf32>
    %92 = arith.addf %89, %91 : vector<16x32xf32>
    %93 = arith.extf %1 : vector<16x32xbf16> to vector<16x32xf32>
    %94 = arith.addf %92, %93 : vector<16x32xf32>
    %cst_31 = arith.constant 0.000000e+00 : f32
    %95 = vector.broadcast %cst_31 : f32 to vector<16x32xf32>
    %96 = arith.maximumf %94, %95 : vector<16x32xf32>
    %97 = arith.truncf %96 : vector<16x32xf32> to vector<16x32xbf16>
    %c0_32 = arith.constant 0 : index
    %c0_33 = arith.constant 0 : index
    %c0_34 = arith.constant 0 : index
    %98 = vector.load %arg12[%c0_32, %c0_33, %c0_34] : memref<1x16x32xbf16, #tpu.memory_space<vmem>>, vector<1x16x32xbf16>
    %99 = vector.shape_cast %98 : vector<1x16x32xbf16> to vector<16x32xbf16>
    %100 = vector.shape_cast %97 : vector<16x32xbf16> to vector<1x16x32xbf16>
    tpu.vector_store %arg12[%c0_32, %c0_33, %c0_34], %100 {strides = array<i32>} : memref<1x16x32xbf16, #tpu.memory_space<vmem>>, vector<1x16x32xbf16>,
    return
  }
  func.func @transform_0(%arg0: i32) -> (i32, i32, i32) {
    %c0_i32 = arith.constant 0 : i32
    %c0_i32_0 = arith.constant 0 : i32
    %c0_i32_1 = arith.constant 0 : i32
    return %arg0, %c0_i32, %c0_i32_0 : i32, i32, i32
  }
  func.func @transform_1(%arg0: i32) -> (i32, i32) {
    %c0_i32 = arith.constant 0 : i32
    %c0_i32_0 = arith.constant 0 : i32
    %c0_i32_1 = arith.constant 0 : i32
    return %c0_i32, %c0_i32_0 : i32, i32
  }
  func.func @transform_2(%arg0: i32) -> (i32, i32) {
    %c0_i32 = arith.constant 0 : i32
    %c0_i32_0 = arith.constant 0 : i32
    %c0_i32_1 = arith.constant 0 : i32
    return %c0_i32, %c0_i32_0 : i32, i32
  }
  func.func @transform_3(%arg0: i32) -> (i32, i32) {
    %c0_i32 = arith.constant 0 : i32
    %c0_i32_0 = arith.constant 0 : i32
    %c0_i32_1 = arith.constant 0 : i32
    return %c0_i32, %c0_i32_0 : i32, i32
  }
  func.func @transform_4(%arg0: i32) -> (i32, i32) {
    %c0_i32 = arith.constant 0 : i32
    %c0_i32_0 = arith.constant 0 : i32
    %c0_i32_1 = arith.constant 0 : i32
    return %c0_i32, %c0_i32_0 : i32, i32
  }
  func.func @transform_5(%arg0: i32) -> (i32, i32) {
    %c0_i32 = arith.constant 0 : i32
    %c0_i32_0 = arith.constant 0 : i32
    %c0_i32_1 = arith.constant 0 : i32
    return %c0_i32, %c0_i32_0 : i32, i32
  }
  func.func @transform_6(%arg0: i32) -> (i32, i32) {
    %c0_i32 = arith.constant 0 : i32
    %c0_i32_0 = arith.constant 0 : i32
    %c0_i32_1 = arith.constant 0 : i32
    return %c0_i32, %c0_i32_0 : i32, i32
  }
  func.func @transform_7(%arg0: i32) -> (i32, i32) {
    %c0_i32 = arith.constant 0 : i32
    %c0_i32_0 = arith.constant 0 : i32
    %c0_i32_1 = arith.constant 0 : i32
    return %c0_i32, %c0_i32_0 : i32, i32
  }
  func.func @transform_8(%arg0: i32) -> (i32, i32) {
    %c0_i32 = arith.constant 0 : i32
    %c0_i32_0 = arith.constant 0 : i32
    %c0_i32_1 = arith.constant 0 : i32
    return %c0_i32, %c0_i32_0 : i32, i32
  }
  func.func @transform_9(%arg0: i32) -> (i32, i32) {
    %c0_i32 = arith.constant 0 : i32
    %c0_i32_0 = arith.constant 0 : i32
    %c0_i32_1 = arith.constant 0 : i32
    return %c0_i32, %c0_i32_0 : i32, i32
  }
  func.func @transform_10(%arg0: i32) -> (i32, i32) {
    %c0_i32 = arith.constant 0 : i32
    %c0_i32_0 = arith.constant 0 : i32
    %c0_i32_1 = arith.constant 0 : i32
    return %c0_i32, %c0_i32_0 : i32, i32
  }
  func.func @transform_11(%arg0: i32) -> (i32, i32, i32) {
    %c0_i32 = arith.constant 0 : i32
    %c0_i32_0 = arith.constant 0 : i32
    %c0_i32_1 = arith.constant 0 : i32
    return %arg0, %c0_i32, %c0_i32_0 : i32, i32, i32
  }
}

module attributes {stable_mosaic.version = 11 : i64} {
  func.func @_mm_affine_kernel(%arg0: i32, %arg1: memref<16x288xbf16, #tpu.memory_space<vmem>>, %arg2: memref<288x32xbf16, #tpu.memory_space<vmem>>, %arg3: memref<1x32xf32, #tpu.memory_space<vmem>>, %arg4: memref<1x32xf32, #tpu.memory_space<vmem>>, %arg5: memref<16x32xbf16, #tpu.memory_space<vmem>>) attributes {dimension_semantics = [#tpu.dimension_semantics<parallel>], iteration_bounds = array<i64: 1>, scalar_prefetch = 0 : i64, scratch_operands = 0 : i64, tpu.core_type = #tpu.core_type<tc>, window_params = [{transform_indices = @transform_0, window_bounds = array<i64: 16, 288>}, {pipeline_mode = #tpu.pipeline_mode<synchronous>, transform_indices = @transform_1, window_bounds = array<i64: 288, 32>}, {pipeline_mode = #tpu.pipeline_mode<synchronous>, transform_indices = @transform_2, window_bounds = array<i64: 1, 32>}, {pipeline_mode = #tpu.pipeline_mode<synchronous>, transform_indices = @transform_3, window_bounds = array<i64: 1, 32>}, {transform_indices = @transform_4, window_bounds = array<i64: 16, 32>}]} {
    %c0 = arith.constant 0 : index
    %c0_0 = arith.constant 0 : index
    %0 = vector.load %arg1[%c0, %c0_0] : memref<16x288xbf16, #tpu.memory_space<vmem>>, vector<16x288xbf16>
    %c0_1 = arith.constant 0 : index
    %c0_2 = arith.constant 0 : index
    %1 = vector.load %arg2[%c0_1, %c0_2] : memref<288x32xbf16, #tpu.memory_space<vmem>>, vector<288x32xbf16>
    %cst = arith.constant dense<0.000000e+00> : vector<16x32xf32>
    %2 = tpu.matmul %0, %1, %cst {dimension_numbers = #tpu.dot_dimension_numbers<[1], [0], [0], [1], [0, 0, 1, 1], [], []>} : vector<16x288xbf16>, vector<288x32xbf16>, vector<16x32xf32> -> vector<16x32xf32>
    %c0_3 = arith.constant 0 : index
    %c0_4 = arith.constant 0 : index
    %3 = vector.load %arg3[%c0_3, %c0_4] : memref<1x32xf32, #tpu.memory_space<vmem>>, vector<1x32xf32>
    %4 = vector.broadcast %3 : vector<1x32xf32> to vector<16x32xf32>
    %5 = arith.mulf %2, %4 : vector<16x32xf32>
    %c0_5 = arith.constant 0 : index
    %c0_6 = arith.constant 0 : index
    %6 = vector.load %arg4[%c0_5, %c0_6] : memref<1x32xf32, #tpu.memory_space<vmem>>, vector<1x32xf32>
    %7 = vector.broadcast %6 : vector<1x32xf32> to vector<16x32xf32>
    %8 = arith.addf %5, %7 : vector<16x32xf32>
    %9 = arith.truncf %8 : vector<16x32xf32> to vector<16x32xbf16>
    %c0_7 = arith.constant 0 : index
    %c0_8 = arith.constant 0 : index
    %10 = vector.load %arg5[%c0_7, %c0_8] : memref<16x32xbf16, #tpu.memory_space<vmem>>, vector<16x32xbf16>
    tpu.vector_store %arg5[%c0_7, %c0_8], %9 {strides = array<i32>} : memref<16x32xbf16, #tpu.memory_space<vmem>>, vector<16x32xbf16>,
    return
  }
  func.func @transform_0(%arg0: i32) -> (i32, i32) {
    %c0_i32 = arith.constant 0 : i32
    %c0_i32_0 = arith.constant 0 : i32
    return %arg0, %c0_i32 : i32, i32
  }
  func.func @transform_1(%arg0: i32) -> (i32, i32) {
    %c0_i32 = arith.constant 0 : i32
    %c0_i32_0 = arith.constant 0 : i32
    %c0_i32_1 = arith.constant 0 : i32
    return %c0_i32, %c0_i32_0 : i32, i32
  }
  func.func @transform_2(%arg0: i32) -> (i32, i32) {
    %c0_i32 = arith.constant 0 : i32
    %c0_i32_0 = arith.constant 0 : i32
    %c0_i32_1 = arith.constant 0 : i32
    return %c0_i32, %c0_i32_0 : i32, i32
  }
  func.func @transform_3(%arg0: i32) -> (i32, i32) {
    %c0_i32 = arith.constant 0 : i32
    %c0_i32_0 = arith.constant 0 : i32
    %c0_i32_1 = arith.constant 0 : i32
    return %c0_i32, %c0_i32_0 : i32, i32
  }
  func.func @transform_4(%arg0: i32) -> (i32, i32) {
    %c0_i32 = arith.constant 0 : i32
    %c0_i32_0 = arith.constant 0 : i32
    return %arg0, %c0_i32 : i32, i32
  }
}

module attributes {stable_mosaic.version = 11 : i64} {
  func.func @_bottleneck_kernel(%arg0: i32, %arg1: memref<1x8x32xbf16, #tpu.memory_space<vmem>>, %arg2: memref<8x2xf32, #tpu.memory_space<vmem>>, %arg3: memref<32x128xbf16, #tpu.memory_space<vmem>>, %arg4: memref<1x128xf32, #tpu.memory_space<vmem>>, %arg5: memref<1x128xf32, #tpu.memory_space<vmem>>, %arg6: memref<9x128xf32, #tpu.memory_space<vmem>>, %arg7: memref<1x128xf32, #tpu.memory_space<vmem>>, %arg8: memref<1x128xf32, #tpu.memory_space<vmem>>, %arg9: memref<128x32xbf16, #tpu.memory_space<vmem>>, %arg10: memref<1x32xf32, #tpu.memory_space<vmem>>, %arg11: memref<1x32xf32, #tpu.memory_space<vmem>>, %arg12: memref<1x8x32xbf16, #tpu.memory_space<vmem>>, %arg13: memref<24x128xf32, #tpu.memory_space<vmem>>) attributes {dimension_semantics = [#tpu.dimension_semantics<parallel>], iteration_bounds = array<i64: 2>, scalar_prefetch = 0 : i64, scratch_operands = 1 : i64, tpu.core_type = #tpu.core_type<tc>, window_params = [{transform_indices = @transform_0, window_bounds = array<i64: 1, 8, 32>}, {pipeline_mode = #tpu.pipeline_mode<synchronous>, transform_indices = @transform_1, window_bounds = array<i64: 8, 2>}, {pipeline_mode = #tpu.pipeline_mode<synchronous>, transform_indices = @transform_2, window_bounds = array<i64: 32, 128>}, {pipeline_mode = #tpu.pipeline_mode<synchronous>, transform_indices = @transform_3, window_bounds = array<i64: 1, 128>}, {pipeline_mode = #tpu.pipeline_mode<synchronous>, transform_indices = @transform_4, window_bounds = array<i64: 1, 128>}, {pipeline_mode = #tpu.pipeline_mode<synchronous>, transform_indices = @transform_5, window_bounds = array<i64: 9, 128>}, {pipeline_mode = #tpu.pipeline_mode<synchronous>, transform_indices = @transform_6, window_bounds = array<i64: 1, 128>}, {pipeline_mode = #tpu.pipeline_mode<synchronous>, transform_indices = @transform_7, window_bounds = array<i64: 1, 128>}, {pipeline_mode = #tpu.pipeline_mode<synchronous>, transform_indices = @transform_8, window_bounds = array<i64: 128, 32>}, {pipeline_mode = #tpu.pipeline_mode<synchronous>, transform_indices = @transform_9, window_bounds = array<i64: 1, 32>}, {pipeline_mode = #tpu.pipeline_mode<synchronous>, transform_indices = @transform_10, window_bounds = array<i64: 1, 32>}, {transform_indices = @transform_11, window_bounds = array<i64: 1, 8, 32>}]} {
    %c0 = arith.constant 0 : index
    %c0_0 = arith.constant 0 : index
    %c0_1 = arith.constant 0 : index
    %0 = vector.load %arg1[%c0, %c0_0, %c0_1] : memref<1x8x32xbf16, #tpu.memory_space<vmem>>, vector<1x8x32xbf16>
    %1 = vector.shape_cast %0 : vector<1x8x32xbf16> to vector<8x32xbf16>
    %c0_2 = arith.constant 0 : index
    %c0_3 = arith.constant 0 : index
    %2 = vector.load %arg3[%c0_2, %c0_3] : memref<32x128xbf16, #tpu.memory_space<vmem>>, vector<32x128xbf16>
    %cst = arith.constant dense<0.000000e+00> : vector<8x128xf32>
    %3 = tpu.matmul %1, %2, %cst {dimension_numbers = #tpu.dot_dimension_numbers<[1], [0], [0], [1], [0, 0, 1, 1], [], []>} : vector<8x32xbf16>, vector<32x128xbf16>, vector<8x128xf32> -> vector<8x128xf32>
    %c0_4 = arith.constant 0 : index
    %c0_5 = arith.constant 0 : index
    %4 = vector.load %arg4[%c0_4, %c0_5] : memref<1x128xf32, #tpu.memory_space<vmem>>, vector<1x128xf32>
    %5 = vector.broadcast %4 : vector<1x128xf32> to vector<8x128xf32>
    %6 = arith.mulf %3, %5 : vector<8x128xf32>
    %c0_6 = arith.constant 0 : index
    %c0_7 = arith.constant 0 : index
    %7 = vector.load %arg5[%c0_6, %c0_7] : memref<1x128xf32, #tpu.memory_space<vmem>>, vector<1x128xf32>
    %8 = vector.broadcast %7 : vector<1x128xf32> to vector<8x128xf32>
    %9 = arith.addf %6, %8 : vector<8x128xf32>
    %cst_8 = arith.constant 0.000000e+00 : f32
    %10 = vector.broadcast %cst_8 : f32 to vector<8x128xf32>
    %11 = arith.maximumf %9, %10 : vector<8x128xf32>
    %cst_9 = arith.constant 0.000000e+00 : f32
    %12 = vector.broadcast %cst_9 : f32 to vector<24x128xf32>
    %c0_10 = arith.constant 0 : index
    %c0_11 = arith.constant 0 : index
    %13 = vector.load %arg13[%c0_10, %c0_11] : memref<24x128xf32, #tpu.memory_space<vmem>>, vector<24x128xf32>
    tpu.vector_store %arg13[%c0_10, %c0_11], %12 {strides = array<i32>} : memref<24x128xf32, #tpu.memory_space<vmem>>, vector<24x128xf32>,
    %c8 = arith.constant 8 : index
    %c0_12 = arith.constant 0 : index
    %14 = vector.load %arg13[%c8, %c0_12] : memref<24x128xf32, #tpu.memory_space<vmem>>, vector<8x128xf32>
    tpu.vector_store %arg13[%c8, %c0_12], %11 {strides = array<i32>} : memref<24x128xf32, #tpu.memory_space<vmem>>, vector<8x128xf32>,
    %c0_13 = arith.constant 0 : index
    %c0_14 = arith.constant 0 : index
    %15 = vector.load %arg13[%c0_13, %c0_14] : memref<24x128xf32, #tpu.memory_space<vmem>>, vector<24x128xf32>
    %c0_15 = arith.constant 0 : index
    %c0_16 = arith.constant 0 : index
    %16 = vector.load %arg2[%c0_15, %c0_16] : memref<8x2xf32, #tpu.memory_space<vmem>>, vector<8x2xf32>
    %17 = vector.extract_strided_slice %16 {offsets = [0, 0], sizes = [8, 1], strides = [1, 1]} : vector<8x2xf32> to vector<8x1xf32>
    %18 = vector.extract_strided_slice %16 {offsets = [0, 1], sizes = [8, 1], strides = [1, 1]} : vector<8x2xf32> to vector<8x1xf32>
    %c0_17 = arith.constant 0 : index
    %c0_18 = arith.constant 0 : index
    %19 = vector.load %arg6[%c0_17, %c0_18] : memref<9x128xf32, #tpu.memory_space<vmem>>, vector<9x128xf32>
    %20 = vector.extract_strided_slice %15 {offsets = [3, 0], sizes = [8, 128], strides = [1, 1]} : vector<24x128xf32> to vector<8x128xf32>
    %21 = vector.extract_strided_slice %19 {offsets = [0, 0], sizes = [1, 128], strides = [1, 1]} : vector<9x128xf32> to vector<1x128xf32>
    %22 = vector.broadcast %21 : vector<1x128xf32> to vector<8x128xf32>
    %23 = arith.mulf %20, %22 : vector<8x128xf32>
    %24 = vector.broadcast %17 : vector<8x1xf32> to vector<8x128xf32>
    %25 = arith.mulf %23, %24 : vector<8x128xf32>
    %26 = vector.extract_strided_slice %15 {offsets = [4, 0], sizes = [8, 128], strides = [1, 1]} : vector<24x128xf32> to vector<8x128xf32>
    %27 = vector.extract_strided_slice %19 {offsets = [1, 0], sizes = [1, 128], strides = [1, 1]} : vector<9x128xf32> to vector<1x128xf32>
    %28 = vector.broadcast %27 : vector<1x128xf32> to vector<8x128xf32>
    %29 = arith.mulf %26, %28 : vector<8x128xf32>
    %30 = arith.addf %25, %29 : vector<8x128xf32>
    %31 = vector.extract_strided_slice %15 {offsets = [5, 0], sizes = [8, 128], strides = [1, 1]} : vector<24x128xf32> to vector<8x128xf32>
    %32 = vector.extract_strided_slice %19 {offsets = [2, 0], sizes = [1, 128], strides = [1, 1]} : vector<9x128xf32> to vector<1x128xf32>
    %33 = vector.broadcast %32 : vector<1x128xf32> to vector<8x128xf32>
    %34 = arith.mulf %31, %33 : vector<8x128xf32>
    %35 = vector.broadcast %18 : vector<8x1xf32> to vector<8x128xf32>
    %36 = arith.mulf %34, %35 : vector<8x128xf32>
    %37 = arith.addf %30, %36 : vector<8x128xf32>
    %38 = vector.extract_strided_slice %15 {offsets = [7, 0], sizes = [8, 128], strides = [1, 1]} : vector<24x128xf32> to vector<8x128xf32>
    %39 = vector.extract_strided_slice %19 {offsets = [3, 0], sizes = [1, 128], strides = [1, 1]} : vector<9x128xf32> to vector<1x128xf32>
    %40 = vector.broadcast %39 : vector<1x128xf32> to vector<8x128xf32>
    %41 = arith.mulf %38, %40 : vector<8x128xf32>
    %42 = vector.broadcast %17 : vector<8x1xf32> to vector<8x128xf32>
    %43 = arith.mulf %41, %42 : vector<8x128xf32>
    %44 = arith.addf %37, %43 : vector<8x128xf32>
    %45 = vector.extract_strided_slice %15 {offsets = [8, 0], sizes = [8, 128], strides = [1, 1]} : vector<24x128xf32> to vector<8x128xf32>
    %46 = vector.extract_strided_slice %19 {offsets = [4, 0], sizes = [1, 128], strides = [1, 1]} : vector<9x128xf32> to vector<1x128xf32>
    %47 = vector.broadcast %46 : vector<1x128xf32> to vector<8x128xf32>
    %48 = arith.mulf %45, %47 : vector<8x128xf32>
    %49 = arith.addf %44, %48 : vector<8x128xf32>
    %50 = vector.extract_strided_slice %15 {offsets = [9, 0], sizes = [8, 128], strides = [1, 1]} : vector<24x128xf32> to vector<8x128xf32>
    %51 = vector.extract_strided_slice %19 {offsets = [5, 0], sizes = [1, 128], strides = [1, 1]} : vector<9x128xf32> to vector<1x128xf32>
    %52 = vector.broadcast %51 : vector<1x128xf32> to vector<8x128xf32>
    %53 = arith.mulf %50, %52 : vector<8x128xf32>
    %54 = vector.broadcast %18 : vector<8x1xf32> to vector<8x128xf32>
    %55 = arith.mulf %53, %54 : vector<8x128xf32>
    %56 = arith.addf %49, %55 : vector<8x128xf32>
    %57 = vector.extract_strided_slice %15 {offsets = [11, 0], sizes = [8, 128], strides = [1, 1]} : vector<24x128xf32> to vector<8x128xf32>
    %58 = vector.extract_strided_slice %19 {offsets = [6, 0], sizes = [1, 128], strides = [1, 1]} : vector<9x128xf32> to vector<1x128xf32>
    %59 = vector.broadcast %58 : vector<1x128xf32> to vector<8x128xf32>
    %60 = arith.mulf %57, %59 : vector<8x128xf32>
    %61 = vector.broadcast %17 : vector<8x1xf32> to vector<8x128xf32>
    %62 = arith.mulf %60, %61 : vector<8x128xf32>
    %63 = arith.addf %56, %62 : vector<8x128xf32>
    %64 = vector.extract_strided_slice %15 {offsets = [12, 0], sizes = [8, 128], strides = [1, 1]} : vector<24x128xf32> to vector<8x128xf32>
    %65 = vector.extract_strided_slice %19 {offsets = [7, 0], sizes = [1, 128], strides = [1, 1]} : vector<9x128xf32> to vector<1x128xf32>
    %66 = vector.broadcast %65 : vector<1x128xf32> to vector<8x128xf32>
    %67 = arith.mulf %64, %66 : vector<8x128xf32>
    %68 = arith.addf %63, %67 : vector<8x128xf32>
    %69 = vector.extract_strided_slice %15 {offsets = [13, 0], sizes = [8, 128], strides = [1, 1]} : vector<24x128xf32> to vector<8x128xf32>
    %70 = vector.extract_strided_slice %19 {offsets = [8, 0], sizes = [1, 128], strides = [1, 1]} : vector<9x128xf32> to vector<1x128xf32>
    %71 = vector.broadcast %70 : vector<1x128xf32> to vector<8x128xf32>
    %72 = arith.mulf %69, %71 : vector<8x128xf32>
    %73 = vector.broadcast %18 : vector<8x1xf32> to vector<8x128xf32>
    %74 = arith.mulf %72, %73 : vector<8x128xf32>
    %75 = arith.addf %68, %74 : vector<8x128xf32>
    %c0_19 = arith.constant 0 : index
    %c0_20 = arith.constant 0 : index
    %76 = vector.load %arg7[%c0_19, %c0_20] : memref<1x128xf32, #tpu.memory_space<vmem>>, vector<1x128xf32>
    %77 = vector.broadcast %76 : vector<1x128xf32> to vector<8x128xf32>
    %78 = arith.mulf %75, %77 : vector<8x128xf32>
    %c0_21 = arith.constant 0 : index
    %c0_22 = arith.constant 0 : index
    %79 = vector.load %arg8[%c0_21, %c0_22] : memref<1x128xf32, #tpu.memory_space<vmem>>, vector<1x128xf32>
    %80 = vector.broadcast %79 : vector<1x128xf32> to vector<8x128xf32>
    %81 = arith.addf %78, %80 : vector<8x128xf32>
    %cst_23 = arith.constant 0.000000e+00 : f32
    %82 = vector.broadcast %cst_23 : f32 to vector<8x128xf32>
    %83 = arith.maximumf %81, %82 : vector<8x128xf32>
    %84 = arith.truncf %83 : vector<8x128xf32> to vector<8x128xbf16>
    %c0_24 = arith.constant 0 : index
    %c0_25 = arith.constant 0 : index
    %85 = vector.load %arg9[%c0_24, %c0_25] : memref<128x32xbf16, #tpu.memory_space<vmem>>, vector<128x32xbf16>
    %cst_26 = arith.constant dense<0.000000e+00> : vector<8x32xf32>
    %86 = tpu.matmul %84, %85, %cst_26 {dimension_numbers = #tpu.dot_dimension_numbers<[1], [0], [0], [1], [0, 0, 1, 1], [], []>} : vector<8x128xbf16>, vector<128x32xbf16>, vector<8x32xf32> -> vector<8x32xf32>
    %c0_27 = arith.constant 0 : index
    %c0_28 = arith.constant 0 : index
    %87 = vector.load %arg10[%c0_27, %c0_28] : memref<1x32xf32, #tpu.memory_space<vmem>>, vector<1x32xf32>
    %88 = vector.broadcast %87 : vector<1x32xf32> to vector<8x32xf32>
    %89 = arith.mulf %86, %88 : vector<8x32xf32>
    %c0_29 = arith.constant 0 : index
    %c0_30 = arith.constant 0 : index
    %90 = vector.load %arg11[%c0_29, %c0_30] : memref<1x32xf32, #tpu.memory_space<vmem>>, vector<1x32xf32>
    %91 = vector.broadcast %90 : vector<1x32xf32> to vector<8x32xf32>
    %92 = arith.addf %89, %91 : vector<8x32xf32>
    %93 = arith.extf %1 : vector<8x32xbf16> to vector<8x32xf32>
    %94 = arith.addf %92, %93 : vector<8x32xf32>
    %cst_31 = arith.constant 0.000000e+00 : f32
    %95 = vector.broadcast %cst_31 : f32 to vector<8x32xf32>
    %96 = arith.maximumf %94, %95 : vector<8x32xf32>
    %97 = arith.truncf %96 : vector<8x32xf32> to vector<8x32xbf16>
    %c0_32 = arith.constant 0 : index
    %c0_33 = arith.constant 0 : index
    %c0_34 = arith.constant 0 : index
    %98 = vector.load %arg12[%c0_32, %c0_33, %c0_34] : memref<1x8x32xbf16, #tpu.memory_space<vmem>>, vector<1x8x32xbf16>
    %99 = vector.shape_cast %98 : vector<1x8x32xbf16> to vector<8x32xbf16>
    %100 = vector.shape_cast %97 : vector<8x32xbf16> to vector<1x8x32xbf16>
    tpu.vector_store %arg12[%c0_32, %c0_33, %c0_34], %100 {strides = array<i32>} : memref<1x8x32xbf16, #tpu.memory_space<vmem>>, vector<1x8x32xbf16>,
    return
  }
  func.func @transform_0(%arg0: i32) -> (i32, i32, i32) {
    %c0_i32 = arith.constant 0 : i32
    %c0_i32_0 = arith.constant 0 : i32
    %c0_i32_1 = arith.constant 0 : i32
    return %arg0, %c0_i32, %c0_i32_0 : i32, i32, i32
  }
  func.func @transform_1(%arg0: i32) -> (i32, i32) {
    %c0_i32 = arith.constant 0 : i32
    %c0_i32_0 = arith.constant 0 : i32
    %c0_i32_1 = arith.constant 0 : i32
    return %c0_i32, %c0_i32_0 : i32, i32
  }
  func.func @transform_2(%arg0: i32) -> (i32, i32) {
    %c0_i32 = arith.constant 0 : i32
    %c0_i32_0 = arith.constant 0 : i32
    %c0_i32_1 = arith.constant 0 : i32
    return %c0_i32, %c0_i32_0 : i32, i32
  }
  func.func @transform_3(%arg0: i32) -> (i32, i32) {
    %c0_i32 = arith.constant 0 : i32
    %c0_i32_0 = arith.constant 0 : i32
    %c0_i32_1 = arith.constant 0 : i32
    return %c0_i32, %c0_i32_0 : i32, i32
  }
  func.func @transform_4(%arg0: i32) -> (i32, i32) {
    %c0_i32 = arith.constant 0 : i32
    %c0_i32_0 = arith.constant 0 : i32
    %c0_i32_1 = arith.constant 0 : i32
    return %c0_i32, %c0_i32_0 : i32, i32
  }
  func.func @transform_5(%arg0: i32) -> (i32, i32) {
    %c0_i32 = arith.constant 0 : i32
    %c0_i32_0 = arith.constant 0 : i32
    %c0_i32_1 = arith.constant 0 : i32
    return %c0_i32, %c0_i32_0 : i32, i32
  }
  func.func @transform_6(%arg0: i32) -> (i32, i32) {
    %c0_i32 = arith.constant 0 : i32
    %c0_i32_0 = arith.constant 0 : i32
    %c0_i32_1 = arith.constant 0 : i32
    return %c0_i32, %c0_i32_0 : i32, i32
  }
  func.func @transform_7(%arg0: i32) -> (i32, i32) {
    %c0_i32 = arith.constant 0 : i32
    %c0_i32_0 = arith.constant 0 : i32
    %c0_i32_1 = arith.constant 0 : i32
    return %c0_i32, %c0_i32_0 : i32, i32
  }
  func.func @transform_8(%arg0: i32) -> (i32, i32) {
    %c0_i32 = arith.constant 0 : i32
    %c0_i32_0 = arith.constant 0 : i32
    %c0_i32_1 = arith.constant 0 : i32
    return %c0_i32, %c0_i32_0 : i32, i32
  }
  func.func @transform_9(%arg0: i32) -> (i32, i32) {
    %c0_i32 = arith.constant 0 : i32
    %c0_i32_0 = arith.constant 0 : i32
    %c0_i32_1 = arith.constant 0 : i32
    return %c0_i32, %c0_i32_0 : i32, i32
  }
  func.func @transform_10(%arg0: i32) -> (i32, i32) {
    %c0_i32 = arith.constant 0 : i32
    %c0_i32_0 = arith.constant 0 : i32
    %c0_i32_1 = arith.constant 0 : i32
    return %c0_i32, %c0_i32_0 : i32, i32
  }
  func.func @transform_11(%arg0: i32) -> (i32, i32, i32) {
    %c0_i32 = arith.constant 0 : i32
    %c0_i32_0 = arith.constant 0 : i32
    %c0_i32_1 = arith.constant 0 : i32
    return %arg0, %c0_i32, %c0_i32_0 : i32, i32, i32
  }
}

module attributes {stable_mosaic.version = 11 : i64} {
  func.func @_mm_affine_kernel(%arg0: i32, %arg1: memref<8x288xbf16, #tpu.memory_space<vmem>>, %arg2: memref<288x64xbf16, #tpu.memory_space<vmem>>, %arg3: memref<1x64xf32, #tpu.memory_space<vmem>>, %arg4: memref<1x64xf32, #tpu.memory_space<vmem>>, %arg5: memref<8x64xbf16, #tpu.memory_space<vmem>>) attributes {dimension_semantics = [#tpu.dimension_semantics<parallel>], iteration_bounds = array<i64: 1>, scalar_prefetch = 0 : i64, scratch_operands = 0 : i64, tpu.core_type = #tpu.core_type<tc>, window_params = [{transform_indices = @transform_0, window_bounds = array<i64: 8, 288>}, {pipeline_mode = #tpu.pipeline_mode<synchronous>, transform_indices = @transform_1, window_bounds = array<i64: 288, 64>}, {pipeline_mode = #tpu.pipeline_mode<synchronous>, transform_indices = @transform_2, window_bounds = array<i64: 1, 64>}, {pipeline_mode = #tpu.pipeline_mode<synchronous>, transform_indices = @transform_3, window_bounds = array<i64: 1, 64>}, {transform_indices = @transform_4, window_bounds = array<i64: 8, 64>}]} {
    %c0 = arith.constant 0 : index
    %c0_0 = arith.constant 0 : index
    %0 = vector.load %arg1[%c0, %c0_0] : memref<8x288xbf16, #tpu.memory_space<vmem>>, vector<8x288xbf16>
    %c0_1 = arith.constant 0 : index
    %c0_2 = arith.constant 0 : index
    %1 = vector.load %arg2[%c0_1, %c0_2] : memref<288x64xbf16, #tpu.memory_space<vmem>>, vector<288x64xbf16>
    %cst = arith.constant dense<0.000000e+00> : vector<8x64xf32>
    %2 = tpu.matmul %0, %1, %cst {dimension_numbers = #tpu.dot_dimension_numbers<[1], [0], [0], [1], [0, 0, 1, 1], [], []>} : vector<8x288xbf16>, vector<288x64xbf16>, vector<8x64xf32> -> vector<8x64xf32>
    %c0_3 = arith.constant 0 : index
    %c0_4 = arith.constant 0 : index
    %3 = vector.load %arg3[%c0_3, %c0_4] : memref<1x64xf32, #tpu.memory_space<vmem>>, vector<1x64xf32>
    %4 = vector.broadcast %3 : vector<1x64xf32> to vector<8x64xf32>
    %5 = arith.mulf %2, %4 : vector<8x64xf32>
    %c0_5 = arith.constant 0 : index
    %c0_6 = arith.constant 0 : index
    %6 = vector.load %arg4[%c0_5, %c0_6] : memref<1x64xf32, #tpu.memory_space<vmem>>, vector<1x64xf32>
    %7 = vector.broadcast %6 : vector<1x64xf32> to vector<8x64xf32>
    %8 = arith.addf %5, %7 : vector<8x64xf32>
    %9 = arith.truncf %8 : vector<8x64xf32> to vector<8x64xbf16>
    %c0_7 = arith.constant 0 : index
    %c0_8 = arith.constant 0 : index
    %10 = vector.load %arg5[%c0_7, %c0_8] : memref<8x64xbf16, #tpu.memory_space<vmem>>, vector<8x64xbf16>
    tpu.vector_store %arg5[%c0_7, %c0_8], %9 {strides = array<i32>} : memref<8x64xbf16, #tpu.memory_space<vmem>>, vector<8x64xbf16>,
    return
  }
  func.func @transform_0(%arg0: i32) -> (i32, i32) {
    %c0_i32 = arith.constant 0 : i32
    %c0_i32_0 = arith.constant 0 : i32
    return %arg0, %c0_i32 : i32, i32
  }
  func.func @transform_1(%arg0: i32) -> (i32, i32) {
    %c0_i32 = arith.constant 0 : i32
    %c0_i32_0 = arith.constant 0 : i32
    %c0_i32_1 = arith.constant 0 : i32
    return %c0_i32, %c0_i32_0 : i32, i32
  }
  func.func @transform_2(%arg0: i32) -> (i32, i32) {
    %c0_i32 = arith.constant 0 : i32
    %c0_i32_0 = arith.constant 0 : i32
    %c0_i32_1 = arith.constant 0 : i32
    return %c0_i32, %c0_i32_0 : i32, i32
  }
  func.func @transform_3(%arg0: i32) -> (i32, i32) {
    %c0_i32 = arith.constant 0 : i32
    %c0_i32_0 = arith.constant 0 : i32
    %c0_i32_1 = arith.constant 0 : i32
    return %c0_i32, %c0_i32_0 : i32, i32
  }
  func.func @transform_4(%arg0: i32) -> (i32, i32) {
    %c0_i32 = arith.constant 0 : i32
    %c0_i32_0 = arith.constant 0 : i32
    return %arg0, %c0_i32 : i32, i32
  }
}

module attributes {stable_mosaic.version = 11 : i64} {
  func.func @_bottleneck_kernel(%arg0: i32, %arg1: memref<1x4x64xbf16, #tpu.memory_space<vmem>>, %arg2: memref<4x2xf32, #tpu.memory_space<vmem>>, %arg3: memref<64x256xbf16, #tpu.memory_space<vmem>>, %arg4: memref<1x256xf32, #tpu.memory_space<vmem>>, %arg5: memref<1x256xf32, #tpu.memory_space<vmem>>, %arg6: memref<9x256xf32, #tpu.memory_space<vmem>>, %arg7: memref<1x256xf32, #tpu.memory_space<vmem>>, %arg8: memref<1x256xf32, #tpu.memory_space<vmem>>, %arg9: memref<256x64xbf16, #tpu.memory_space<vmem>>, %arg10: memref<1x64xf32, #tpu.memory_space<vmem>>, %arg11: memref<1x64xf32, #tpu.memory_space<vmem>>, %arg12: memref<1x4x64xbf16, #tpu.memory_space<vmem>>, %arg13: memref<24x256xf32, #tpu.memory_space<vmem>>) attributes {dimension_semantics = [#tpu.dimension_semantics<parallel>], iteration_bounds = array<i64: 2>, scalar_prefetch = 0 : i64, scratch_operands = 1 : i64, tpu.core_type = #tpu.core_type<tc>, window_params = [{transform_indices = @transform_0, window_bounds = array<i64: 1, 4, 64>}, {pipeline_mode = #tpu.pipeline_mode<synchronous>, transform_indices = @transform_1, window_bounds = array<i64: 4, 2>}, {pipeline_mode = #tpu.pipeline_mode<synchronous>, transform_indices = @transform_2, window_bounds = array<i64: 64, 256>}, {pipeline_mode = #tpu.pipeline_mode<synchronous>, transform_indices = @transform_3, window_bounds = array<i64: 1, 256>}, {pipeline_mode = #tpu.pipeline_mode<synchronous>, transform_indices = @transform_4, window_bounds = array<i64: 1, 256>}, {pipeline_mode = #tpu.pipeline_mode<synchronous>, transform_indices = @transform_5, window_bounds = array<i64: 9, 256>}, {pipeline_mode = #tpu.pipeline_mode<synchronous>, transform_indices = @transform_6, window_bounds = array<i64: 1, 256>}, {pipeline_mode = #tpu.pipeline_mode<synchronous>, transform_indices = @transform_7, window_bounds = array<i64: 1, 256>}, {pipeline_mode = #tpu.pipeline_mode<synchronous>, transform_indices = @transform_8, window_bounds = array<i64: 256, 64>}, {pipeline_mode = #tpu.pipeline_mode<synchronous>, transform_indices = @transform_9, window_bounds = array<i64: 1, 64>}, {pipeline_mode = #tpu.pipeline_mode<synchronous>, transform_indices = @transform_10, window_bounds = array<i64: 1, 64>}, {transform_indices = @transform_11, window_bounds = array<i64: 1, 4, 64>}]} {
    %c0 = arith.constant 0 : index
    %c0_0 = arith.constant 0 : index
    %c0_1 = arith.constant 0 : index
    %0 = vector.load %arg1[%c0, %c0_0, %c0_1] : memref<1x4x64xbf16, #tpu.memory_space<vmem>>, vector<1x4x64xbf16>
    %1 = vector.shape_cast %0 : vector<1x4x64xbf16> to vector<4x64xbf16>
    %c0_2 = arith.constant 0 : index
    %c0_3 = arith.constant 0 : index
    %2 = vector.load %arg3[%c0_2, %c0_3] : memref<64x256xbf16, #tpu.memory_space<vmem>>, vector<64x256xbf16>
    %cst = arith.constant dense<0.000000e+00> : vector<4x256xf32>
    %3 = tpu.matmul %1, %2, %cst {dimension_numbers = #tpu.dot_dimension_numbers<[1], [0], [0], [1], [0, 0, 1, 1], [], []>} : vector<4x64xbf16>, vector<64x256xbf16>, vector<4x256xf32> -> vector<4x256xf32>
    %c0_4 = arith.constant 0 : index
    %c0_5 = arith.constant 0 : index
    %4 = vector.load %arg4[%c0_4, %c0_5] : memref<1x256xf32, #tpu.memory_space<vmem>>, vector<1x256xf32>
    %5 = vector.broadcast %4 : vector<1x256xf32> to vector<4x256xf32>
    %6 = arith.mulf %3, %5 : vector<4x256xf32>
    %c0_6 = arith.constant 0 : index
    %c0_7 = arith.constant 0 : index
    %7 = vector.load %arg5[%c0_6, %c0_7] : memref<1x256xf32, #tpu.memory_space<vmem>>, vector<1x256xf32>
    %8 = vector.broadcast %7 : vector<1x256xf32> to vector<4x256xf32>
    %9 = arith.addf %6, %8 : vector<4x256xf32>
    %cst_8 = arith.constant 0.000000e+00 : f32
    %10 = vector.broadcast %cst_8 : f32 to vector<4x256xf32>
    %11 = arith.maximumf %9, %10 : vector<4x256xf32>
    %cst_9 = arith.constant 0.000000e+00 : f32
    %12 = vector.broadcast %cst_9 : f32 to vector<24x256xf32>
    %c0_10 = arith.constant 0 : index
    %c0_11 = arith.constant 0 : index
    %13 = vector.load %arg13[%c0_10, %c0_11] : memref<24x256xf32, #tpu.memory_space<vmem>>, vector<24x256xf32>
    tpu.vector_store %arg13[%c0_10, %c0_11], %12 {strides = array<i32>} : memref<24x256xf32, #tpu.memory_space<vmem>>, vector<24x256xf32>,
    %c8 = arith.constant 8 : index
    %c0_12 = arith.constant 0 : index
    %14 = vector.load %arg13[%c8, %c0_12] : memref<24x256xf32, #tpu.memory_space<vmem>>, vector<4x256xf32>
    tpu.vector_store %arg13[%c8, %c0_12], %11 {strides = array<i32>} : memref<24x256xf32, #tpu.memory_space<vmem>>, vector<4x256xf32>,
    %c0_13 = arith.constant 0 : index
    %c0_14 = arith.constant 0 : index
    %15 = vector.load %arg13[%c0_13, %c0_14] : memref<24x256xf32, #tpu.memory_space<vmem>>, vector<24x256xf32>
    %c0_15 = arith.constant 0 : index
    %c0_16 = arith.constant 0 : index
    %16 = vector.load %arg2[%c0_15, %c0_16] : memref<4x2xf32, #tpu.memory_space<vmem>>, vector<4x2xf32>
    %17 = vector.extract_strided_slice %16 {offsets = [0, 0], sizes = [4, 1], strides = [1, 1]} : vector<4x2xf32> to vector<4x1xf32>
    %18 = vector.extract_strided_slice %16 {offsets = [0, 1], sizes = [4, 1], strides = [1, 1]} : vector<4x2xf32> to vector<4x1xf32>
    %c0_17 = arith.constant 0 : index
    %c0_18 = arith.constant 0 : index
    %19 = vector.load %arg6[%c0_17, %c0_18] : memref<9x256xf32, #tpu.memory_space<vmem>>, vector<9x256xf32>
    %20 = vector.extract_strided_slice %15 {offsets = [3, 0], sizes = [4, 256], strides = [1, 1]} : vector<24x256xf32> to vector<4x256xf32>
    %21 = vector.extract_strided_slice %19 {offsets = [0, 0], sizes = [1, 256], strides = [1, 1]} : vector<9x256xf32> to vector<1x256xf32>
    %22 = vector.broadcast %21 : vector<1x256xf32> to vector<4x256xf32>
    %23 = arith.mulf %20, %22 : vector<4x256xf32>
    %24 = vector.broadcast %17 : vector<4x1xf32> to vector<4x256xf32>
    %25 = arith.mulf %23, %24 : vector<4x256xf32>
    %26 = vector.extract_strided_slice %15 {offsets = [4, 0], sizes = [4, 256], strides = [1, 1]} : vector<24x256xf32> to vector<4x256xf32>
    %27 = vector.extract_strided_slice %19 {offsets = [1, 0], sizes = [1, 256], strides = [1, 1]} : vector<9x256xf32> to vector<1x256xf32>
    %28 = vector.broadcast %27 : vector<1x256xf32> to vector<4x256xf32>
    %29 = arith.mulf %26, %28 : vector<4x256xf32>
    %30 = arith.addf %25, %29 : vector<4x256xf32>
    %31 = vector.extract_strided_slice %15 {offsets = [5, 0], sizes = [4, 256], strides = [1, 1]} : vector<24x256xf32> to vector<4x256xf32>
    %32 = vector.extract_strided_slice %19 {offsets = [2, 0], sizes = [1, 256], strides = [1, 1]} : vector<9x256xf32> to vector<1x256xf32>
    %33 = vector.broadcast %32 : vector<1x256xf32> to vector<4x256xf32>
    %34 = arith.mulf %31, %33 : vector<4x256xf32>
    %35 = vector.broadcast %18 : vector<4x1xf32> to vector<4x256xf32>
    %36 = arith.mulf %34, %35 : vector<4x256xf32>
    %37 = arith.addf %30, %36 : vector<4x256xf32>
    %38 = vector.extract_strided_slice %15 {offsets = [7, 0], sizes = [4, 256], strides = [1, 1]} : vector<24x256xf32> to vector<4x256xf32>
    %39 = vector.extract_strided_slice %19 {offsets = [3, 0], sizes = [1, 256], strides = [1, 1]} : vector<9x256xf32> to vector<1x256xf32>
    %40 = vector.broadcast %39 : vector<1x256xf32> to vector<4x256xf32>
    %41 = arith.mulf %38, %40 : vector<4x256xf32>
    %42 = vector.broadcast %17 : vector<4x1xf32> to vector<4x256xf32>
    %43 = arith.mulf %41, %42 : vector<4x256xf32>
    %44 = arith.addf %37, %43 : vector<4x256xf32>
    %45 = vector.extract_strided_slice %15 {offsets = [8, 0], sizes = [4, 256], strides = [1, 1]} : vector<24x256xf32> to vector<4x256xf32>
    %46 = vector.extract_strided_slice %19 {offsets = [4, 0], sizes = [1, 256], strides = [1, 1]} : vector<9x256xf32> to vector<1x256xf32>
    %47 = vector.broadcast %46 : vector<1x256xf32> to vector<4x256xf32>
    %48 = arith.mulf %45, %47 : vector<4x256xf32>
    %49 = arith.addf %44, %48 : vector<4x256xf32>
    %50 = vector.extract_strided_slice %15 {offsets = [9, 0], sizes = [4, 256], strides = [1, 1]} : vector<24x256xf32> to vector<4x256xf32>
    %51 = vector.extract_strided_slice %19 {offsets = [5, 0], sizes = [1, 256], strides = [1, 1]} : vector<9x256xf32> to vector<1x256xf32>
    %52 = vector.broadcast %51 : vector<1x256xf32> to vector<4x256xf32>
    %53 = arith.mulf %50, %52 : vector<4x256xf32>
    %54 = vector.broadcast %18 : vector<4x1xf32> to vector<4x256xf32>
    %55 = arith.mulf %53, %54 : vector<4x256xf32>
    %56 = arith.addf %49, %55 : vector<4x256xf32>
    %57 = vector.extract_strided_slice %15 {offsets = [11, 0], sizes = [4, 256], strides = [1, 1]} : vector<24x256xf32> to vector<4x256xf32>
    %58 = vector.extract_strided_slice %19 {offsets = [6, 0], sizes = [1, 256], strides = [1, 1]} : vector<9x256xf32> to vector<1x256xf32>
    %59 = vector.broadcast %58 : vector<1x256xf32> to vector<4x256xf32>
    %60 = arith.mulf %57, %59 : vector<4x256xf32>
    %61 = vector.broadcast %17 : vector<4x1xf32> to vector<4x256xf32>
    %62 = arith.mulf %60, %61 : vector<4x256xf32>
    %63 = arith.addf %56, %62 : vector<4x256xf32>
    %64 = vector.extract_strided_slice %15 {offsets = [12, 0], sizes = [4, 256], strides = [1, 1]} : vector<24x256xf32> to vector<4x256xf32>
    %65 = vector.extract_strided_slice %19 {offsets = [7, 0], sizes = [1, 256], strides = [1, 1]} : vector<9x256xf32> to vector<1x256xf32>
    %66 = vector.broadcast %65 : vector<1x256xf32> to vector<4x256xf32>
    %67 = arith.mulf %64, %66 : vector<4x256xf32>
    %68 = arith.addf %63, %67 : vector<4x256xf32>
    %69 = vector.extract_strided_slice %15 {offsets = [13, 0], sizes = [4, 256], strides = [1, 1]} : vector<24x256xf32> to vector<4x256xf32>
    %70 = vector.extract_strided_slice %19 {offsets = [8, 0], sizes = [1, 256], strides = [1, 1]} : vector<9x256xf32> to vector<1x256xf32>
    %71 = vector.broadcast %70 : vector<1x256xf32> to vector<4x256xf32>
    %72 = arith.mulf %69, %71 : vector<4x256xf32>
    %73 = vector.broadcast %18 : vector<4x1xf32> to vector<4x256xf32>
    %74 = arith.mulf %72, %73 : vector<4x256xf32>
    %75 = arith.addf %68, %74 : vector<4x256xf32>
    %c0_19 = arith.constant 0 : index
    %c0_20 = arith.constant 0 : index
    %76 = vector.load %arg7[%c0_19, %c0_20] : memref<1x256xf32, #tpu.memory_space<vmem>>, vector<1x256xf32>
    %77 = vector.broadcast %76 : vector<1x256xf32> to vector<4x256xf32>
    %78 = arith.mulf %75, %77 : vector<4x256xf32>
    %c0_21 = arith.constant 0 : index
    %c0_22 = arith.constant 0 : index
    %79 = vector.load %arg8[%c0_21, %c0_22] : memref<1x256xf32, #tpu.memory_space<vmem>>, vector<1x256xf32>
    %80 = vector.broadcast %79 : vector<1x256xf32> to vector<4x256xf32>
    %81 = arith.addf %78, %80 : vector<4x256xf32>
    %cst_23 = arith.constant 0.000000e+00 : f32
    %82 = vector.broadcast %cst_23 : f32 to vector<4x256xf32>
    %83 = arith.maximumf %81, %82 : vector<4x256xf32>
    %84 = arith.truncf %83 : vector<4x256xf32> to vector<4x256xbf16>
    %c0_24 = arith.constant 0 : index
    %c0_25 = arith.constant 0 : index
    %85 = vector.load %arg9[%c0_24, %c0_25] : memref<256x64xbf16, #tpu.memory_space<vmem>>, vector<256x64xbf16>
    %cst_26 = arith.constant dense<0.000000e+00> : vector<4x64xf32>
    %86 = tpu.matmul %84, %85, %cst_26 {dimension_numbers = #tpu.dot_dimension_numbers<[1], [0], [0], [1], [0, 0, 1, 1], [], []>} : vector<4x256xbf16>, vector<256x64xbf16>, vector<4x64xf32> -> vector<4x64xf32>
    %c0_27 = arith.constant 0 : index
    %c0_28 = arith.constant 0 : index
    %87 = vector.load %arg10[%c0_27, %c0_28] : memref<1x64xf32, #tpu.memory_space<vmem>>, vector<1x64xf32>
    %88 = vector.broadcast %87 : vector<1x64xf32> to vector<4x64xf32>
    %89 = arith.mulf %86, %88 : vector<4x64xf32>
    %c0_29 = arith.constant 0 : index
    %c0_30 = arith.constant 0 : index
    %90 = vector.load %arg11[%c0_29, %c0_30] : memref<1x64xf32, #tpu.memory_space<vmem>>, vector<1x64xf32>
    %91 = vector.broadcast %90 : vector<1x64xf32> to vector<4x64xf32>
    %92 = arith.addf %89, %91 : vector<4x64xf32>
    %93 = arith.extf %1 : vector<4x64xbf16> to vector<4x64xf32>
    %94 = arith.addf %92, %93 : vector<4x64xf32>
    %cst_31 = arith.constant 0.000000e+00 : f32
    %95 = vector.broadcast %cst_31 : f32 to vector<4x64xf32>
    %96 = arith.maximumf %94, %95 : vector<4x64xf32>
    %97 = arith.truncf %96 : vector<4x64xf32> to vector<4x64xbf16>
    %c0_32 = arith.constant 0 : index
    %c0_33 = arith.constant 0 : index
    %c0_34 = arith.constant 0 : index
    %98 = vector.load %arg12[%c0_32, %c0_33, %c0_34] : memref<1x4x64xbf16, #tpu.memory_space<vmem>>, vector<1x4x64xbf16>
    %99 = vector.shape_cast %98 : vector<1x4x64xbf16> to vector<4x64xbf16>
    %100 = vector.shape_cast %97 : vector<4x64xbf16> to vector<1x4x64xbf16>
    tpu.vector_store %arg12[%c0_32, %c0_33, %c0_34], %100 {strides = array<i32>} : memref<1x4x64xbf16, #tpu.memory_space<vmem>>, vector<1x4x64xbf16>,
    return
  }
  func.func @transform_0(%arg0: i32) -> (i32, i32, i32) {
    %c0_i32 = arith.constant 0 : i32
    %c0_i32_0 = arith.constant 0 : i32
    %c0_i32_1 = arith.constant 0 : i32
    return %arg0, %c0_i32, %c0_i32_0 : i32, i32, i32
  }
  func.func @transform_1(%arg0: i32) -> (i32, i32) {
    %c0_i32 = arith.constant 0 : i32
    %c0_i32_0 = arith.constant 0 : i32
    %c0_i32_1 = arith.constant 0 : i32
    return %c0_i32, %c0_i32_0 : i32, i32
  }
  func.func @transform_2(%arg0: i32) -> (i32, i32) {
    %c0_i32 = arith.constant 0 : i32
    %c0_i32_0 = arith.constant 0 : i32
    %c0_i32_1 = arith.constant 0 : i32
    return %c0_i32, %c0_i32_0 : i32, i32
  }
  func.func @transform_3(%arg0: i32) -> (i32, i32) {
    %c0_i32 = arith.constant 0 : i32
    %c0_i32_0 = arith.constant 0 : i32
    %c0_i32_1 = arith.constant 0 : i32
    return %c0_i32, %c0_i32_0 : i32, i32
  }
  func.func @transform_4(%arg0: i32) -> (i32, i32) {
    %c0_i32 = arith.constant 0 : i32
    %c0_i32_0 = arith.constant 0 : i32
    %c0_i32_1 = arith.constant 0 : i32
    return %c0_i32, %c0_i32_0 : i32, i32
  }
  func.func @transform_5(%arg0: i32) -> (i32, i32) {
    %c0_i32 = arith.constant 0 : i32
    %c0_i32_0 = arith.constant 0 : i32
    %c0_i32_1 = arith.constant 0 : i32
    return %c0_i32, %c0_i32_0 : i32, i32
  }
  func.func @transform_6(%arg0: i32) -> (i32, i32) {
    %c0_i32 = arith.constant 0 : i32
    %c0_i32_0 = arith.constant 0 : i32
    %c0_i32_1 = arith.constant 0 : i32
    return %c0_i32, %c0_i32_0 : i32, i32
  }
  func.func @transform_7(%arg0: i32) -> (i32, i32) {
    %c0_i32 = arith.constant 0 : i32
    %c0_i32_0 = arith.constant 0 : i32
    %c0_i32_1 = arith.constant 0 : i32
    return %c0_i32, %c0_i32_0 : i32, i32
  }
  func.func @transform_8(%arg0: i32) -> (i32, i32) {
    %c0_i32 = arith.constant 0 : i32
    %c0_i32_0 = arith.constant 0 : i32
    %c0_i32_1 = arith.constant 0 : i32
    return %c0_i32, %c0_i32_0 : i32, i32
  }
  func.func @transform_9(%arg0: i32) -> (i32, i32) {
    %c0_i32 = arith.constant 0 : i32
    %c0_i32_0 = arith.constant 0 : i32
    %c0_i32_1 = arith.constant 0 : i32
    return %c0_i32, %c0_i32_0 : i32, i32
  }
  func.func @transform_10(%arg0: i32) -> (i32, i32) {
    %c0_i32 = arith.constant 0 : i32
    %c0_i32_0 = arith.constant 0 : i32
    %c0_i32_1 = arith.constant 0 : i32
    return %c0_i32, %c0_i32_0 : i32, i32
  }
  func.func @transform_11(%arg0: i32) -> (i32, i32, i32) {
    %c0_i32 = arith.constant 0 : i32
    %c0_i32_0 = arith.constant 0 : i32
    %c0_i32_1 = arith.constant 0 : i32
    return %arg0, %c0_i32, %c0_i32_0 : i32, i32, i32
  }
}

module attributes {stable_mosaic.version = 11 : i64} {
  func.func @_pool_kernel(%arg0: i32, %arg1: memref<1x1x4x64xbf16, #tpu.memory_space<vmem>>, %arg2: memref<1x1x64xf32, #tpu.memory_space<vmem>>, %arg3: memref<1x1x64xf32, #tpu.memory_space<vmem>>) attributes {dimension_semantics = [#tpu.dimension_semantics<parallel>], iteration_bounds = array<i64: 2>, scalar_prefetch = 0 : i64, scratch_operands = 0 : i64, tpu.core_type = #tpu.core_type<tc>, window_params = [{transform_indices = @transform_0, window_bounds = array<i64: 1, 1, 4, 64>}, {transform_indices = @transform_1, window_bounds = array<i64: 1, 1, 64>}, {transform_indices = @transform_2, window_bounds = array<i64: 1, 1, 64>}]} {
    %c0 = arith.constant 0 : index
    %c0_0 = arith.constant 0 : index
    %c0_1 = arith.constant 0 : index
    %c0_2 = arith.constant 0 : index
    %0 = vector.load %arg1[%c0, %c0_0, %c0_1, %c0_2] : memref<1x1x4x64xbf16, #tpu.memory_space<vmem>>, vector<1x1x4x64xbf16>
    %1 = vector.shape_cast %0 : vector<1x1x4x64xbf16> to vector<1x4x64xbf16>
    %2 = arith.extf %1 : vector<1x4x64xbf16> to vector<1x4x64xf32>
    %cst = arith.constant dense<0.000000e+00> : vector<1x64xf32>
    %3 = vector.multi_reduction <add>, %2, %cst [1] : vector<1x4x64xf32> to vector<1x64xf32>
    %4 = arith.mulf %2, %2 : vector<1x4x64xf32>
    %cst_3 = arith.constant dense<0.000000e+00> : vector<1x64xf32>
    %5 = vector.multi_reduction <add>, %4, %cst_3 [1] : vector<1x4x64xf32> to vector<1x64xf32>
    %cst_4 = arith.constant 2.500000e-01 : f32
    %6 = vector.broadcast %cst_4 : f32 to vector<1x64xf32>
    %7 = arith.mulf %3, %6 : vector<1x64xf32>
    %8 = arith.mulf %7, %7 : vector<1x64xf32>
    %cst_5 = arith.constant 4.000000e+00 : f32
    %9 = vector.broadcast %cst_5 : f32 to vector<1x64xf32>
    %10 = arith.mulf %8, %9 : vector<1x64xf32>
    %11 = arith.subf %5, %10 : vector<1x64xf32>
    %cst_6 = arith.constant 0.333333343 : f32
    %12 = vector.broadcast %cst_6 : f32 to vector<1x64xf32>
    %13 = arith.mulf %11, %12 : vector<1x64xf32>
    %cst_7 = arith.constant 0.000000e+00 : f32
    %14 = vector.broadcast %cst_7 : f32 to vector<1x64xf32>
    %15 = arith.maximumf %13, %14 : vector<1x64xf32>
    %c0_8 = arith.constant 0 : index
    %c0_9 = arith.constant 0 : index
    %c0_10 = arith.constant 0 : index
    %16 = vector.load %arg2[%c0_8, %c0_9, %c0_10] : memref<1x1x64xf32, #tpu.memory_space<vmem>>, vector<1x1x64xf32>
    %17 = vector.shape_cast %16 : vector<1x1x64xf32> to vector<1x64xf32>
    %18 = vector.shape_cast %7 : vector<1x64xf32> to vector<1x1x64xf32>
    tpu.vector_store %arg2[%c0_8, %c0_9, %c0_10], %18 {strides = array<i32>} : memref<1x1x64xf32, #tpu.memory_space<vmem>>, vector<1x1x64xf32>,
    %cst_11 = arith.constant 1.000000e-10 : f32
    %19 = vector.broadcast %cst_11 : f32 to vector<1x64xf32>
    %20 = arith.addf %15, %19 : vector<1x64xf32>
    %21 = math.sqrt %20 : vector<1x64xf32>
    %c0_12 = arith.constant 0 : index
    %c0_13 = arith.constant 0 : index
    %c0_14 = arith.constant 0 : index
    %22 = vector.load %arg3[%c0_12, %c0_13, %c0_14] : memref<1x1x64xf32, #tpu.memory_space<vmem>>, vector<1x1x64xf32>
    %23 = vector.shape_cast %22 : vector<1x1x64xf32> to vector<1x64xf32>
    %24 = vector.shape_cast %21 : vector<1x64xf32> to vector<1x1x64xf32>
    tpu.vector_store %arg3[%c0_12, %c0_13, %c0_14], %24 {strides = array<i32>} : memref<1x1x64xf32, #tpu.memory_space<vmem>>, vector<1x1x64xf32>,
    return
  }
  func.func @transform_0(%arg0: i32) -> (i32, i32, i32, i32) {
    %c0_i32 = arith.constant 0 : i32
    %c0_i32_0 = arith.constant 0 : i32
    %c0_i32_1 = arith.constant 0 : i32
    %c0_i32_2 = arith.constant 0 : i32
    return %arg0, %c0_i32, %c0_i32_0, %c0_i32_1 : i32, i32, i32, i32
  }
  func.func @transform_1(%arg0: i32) -> (i32, i32, i32) {
    %c0_i32 = arith.constant 0 : i32
    %c0_i32_0 = arith.constant 0 : i32
    %c0_i32_1 = arith.constant 0 : i32
    return %arg0, %c0_i32, %c0_i32_0 : i32, i32, i32
  }
  func.func @transform_2(%arg0: i32) -> (i32, i32, i32) {
    %c0_i32 = arith.constant 0 : i32
    %c0_i32_0 = arith.constant 0 : i32
    %c0_i32_1 = arith.constant 0 : i32
    return %arg0, %c0_i32, %c0_i32_0 : i32, i32, i32
  }
}

module attributes {stable_mosaic.version = 11 : i64} {
  func.func @_mm_bias_kernel(%arg0: i32, %arg1: memref<2x128xf32, #tpu.memory_space<vmem>>, %arg2: memref<128x128xf32, #tpu.memory_space<vmem>>, %arg3: memref<1x128xf32, #tpu.memory_space<vmem>>, %arg4: memref<2x128xf32, #tpu.memory_space<vmem>>) attributes {dimension_semantics = [#tpu.dimension_semantics<parallel>], iteration_bounds = array<i64: 1>, scalar_prefetch = 0 : i64, scratch_operands = 0 : i64, tpu.core_type = #tpu.core_type<tc>, window_params = [{transform_indices = @transform_0, window_bounds = array<i64: 2, 128>}, {pipeline_mode = #tpu.pipeline_mode<synchronous>, transform_indices = @transform_1, window_bounds = array<i64: 128, 128>}, {pipeline_mode = #tpu.pipeline_mode<synchronous>, transform_indices = @transform_2, window_bounds = array<i64: 1, 128>}, {transform_indices = @transform_3, window_bounds = array<i64: 2, 128>}]} {
    %c0 = arith.constant 0 : index
    %c0_0 = arith.constant 0 : index
    %0 = vector.load %arg1[%c0, %c0_0] : memref<2x128xf32, #tpu.memory_space<vmem>>, vector<2x128xf32>
    %c0_1 = arith.constant 0 : index
    %c0_2 = arith.constant 0 : index
    %1 = vector.load %arg2[%c0_1, %c0_2] : memref<128x128xf32, #tpu.memory_space<vmem>>, vector<128x128xf32>
    %cst = arith.constant dense<0.000000e+00> : vector<2x128xf32>
    %2 = tpu.matmul %0, %1, %cst {dimension_numbers = #tpu.dot_dimension_numbers<[1], [0], [0], [1], [0, 0, 1, 1], [], []>} : vector<2x128xf32>, vector<128x128xf32>, vector<2x128xf32> -> vector<2x128xf32>
    %c0_3 = arith.constant 0 : index
    %c0_4 = arith.constant 0 : index
    %3 = vector.load %arg3[%c0_3, %c0_4] : memref<1x128xf32, #tpu.memory_space<vmem>>, vector<1x128xf32>
    %4 = vector.broadcast %3 : vector<1x128xf32> to vector<2x128xf32>
    %5 = arith.addf %2, %4 : vector<2x128xf32>
    %c0_5 = arith.constant 0 : index
    %c0_6 = arith.constant 0 : index
    %6 = vector.load %arg4[%c0_5, %c0_6] : memref<2x128xf32, #tpu.memory_space<vmem>>, vector<2x128xf32>
    tpu.vector_store %arg4[%c0_5, %c0_6], %5 {strides = array<i32>} : memref<2x128xf32, #tpu.memory_space<vmem>>, vector<2x128xf32>,
    return
  }
  func.func @transform_0(%arg0: i32) -> (i32, i32) {
    %c0_i32 = arith.constant 0 : i32
    %c0_i32_0 = arith.constant 0 : i32
    return %arg0, %c0_i32 : i32, i32
  }
  func.func @transform_1(%arg0: i32) -> (i32, i32) {
    %c0_i32 = arith.constant 0 : i32
    %c0_i32_0 = arith.constant 0 : i32
    %c0_i32_1 = arith.constant 0 : i32
    return %c0_i32, %c0_i32_0 : i32, i32
  }
  func.func @transform_2(%arg0: i32) -> (i32, i32) {
    %c0_i32 = arith.constant 0 : i32
    %c0_i32_0 = arith.constant 0 : i32
    %c0_i32_1 = arith.constant 0 : i32
    return %c0_i32, %c0_i32_0 : i32, i32
  }
  func.func @transform_3(%arg0: i32) -> (i32, i32) {
    %c0_i32 = arith.constant 0 : i32
    %c0_i32_0 = arith.constant 0 : i32
    return %arg0, %c0_i32 : i32, i32
  }
}

</mosaic_0001>

<llo_original>
// kernel: gemini_df_resnet_forward.12
$region0: #{gemini_df_resnet_forward.12}
  #allocation0 [shape = 'u32[]', space=smem, size = 0x4, offset = 0x4, fixed_abs, tag = 'smem constant byte address 0x4 - core index']
  #allocation1 [shape = 'u32[144,128]{1,0:T(1,128)}', space=vmem, size = 0x12000, scoped, tag = 'internal scratch']
  %s0 = inlined_call_operand.vmem [shape: bf16[128,144], index: 0, kind: input, shape index: {}]
  %s1 = inlined_call_operand.vmem [shape: bf16[144,16], index: 1, kind: input, shape index: {}]
  %s2 = inlined_call_operand.vmem [shape: f32[1,16], index: 2, kind: input, shape index: {}]
  %s3 = inlined_call_operand.vmem [shape: f32[1,16], index: 3, kind: input, shape index: {}]
  %s4 = inlined_call_operand.vmem [shape: bf16[128,16], index: 4, kind: output, shape index: {}]
  %s5 = sld [smem:[#allocation0]]
  $region26: #{gemini_df_resnet_forward.12} parent=0
    _
  %s7 = ssub.s32 1, %s5
  %s8 = scalar_select 0, %s7, %s5
  // Predicated region
  $region2: #{gemini_df_resnet_forward.12} parent=0 // pred_check
    _
  $region3: #{gemini_df_resnet_forward.12} parent=0 // pred_check_branch
    %10 = sbr.rel (0) target = $region5
  $region4: #{gemini_df_resnet_forward.12} parent=0 // pred_region
    _
  $region5: #{gemini_df_resnet_forward.12} parent=0 // pred_fallthru
    _
  // Predicated region
  $region6: #{gemini_df_resnet_forward.12} parent=0 // pred_check
    _
  $region7: #{gemini_df_resnet_forward.12} parent=0 // pred_check_branch
    %12 = sbr.rel (0) target = $region9
  $region8: #{gemini_df_resnet_forward.12} parent=0 // pred_region
    _
  $region9: #{gemini_df_resnet_forward.12} parent=0 // pred_fallthru
    _
  // Predicated region
  $region10: #{gemini_df_resnet_forward.12} parent=0 // pred_check
    _
  $region11: #{gemini_df_resnet_forward.12} parent=0 // pred_check_branch
    %14 = sbr.rel (0) target = $region13
  $region12: #{gemini_df_resnet_forward.12} parent=0 // pred_region
    _
  $region13: #{gemini_df_resnet_forward.12} parent=0 // pred_fallthru
    _
  // Predicated region
  $region14: #{gemini_df_resnet_forward.12} parent=0 // pred_check
    _
  $region15: #{gemini_df_resnet_forward.12} parent=0 // pred_check_branch
    %16 = sbr.rel (0) target = $region17
  $region16: #{gemini_df_resnet_forward.12} parent=0 // pred_region
    _
  $region17: #{gemini_df_resnet_forward.12} parent=0 // pred_fallthru
    _
  %v18 = vld [vmem:[%s0] sm:$0xff]
  %v19 = vld [vmem:[%s0 + $0x8] sm:$0xff]
  %v20 = vld [vmem:[%s0 + $0x10] sm:$0xff]
  %v21 = vld [vmem:[%s0 + $0x18] sm:$0xff]
  %v22 = vld [vmem:[%s0 + $0x20] sm:$0xff]
  %v23 = vld [vmem:[%s0 + $0x28] sm:$0xff]
  %v24 = vld [vmem:[%s0 + $0x30] sm:$0xff]
  %v25 = vld [vmem:[%s0 + $0x38] sm:$0xff]
  %v26 = vld [vmem:[%s0 + $0x40] sm:$0xff]
  %v27 = vld [vmem:[%s0 + $0x48] sm:$0xff]
  %v28 = vld [vmem:[%s0 + $0x50] sm:$0xff]
  %v29 = vld [vmem:[%s0 + $0x58] sm:$0xff]
  %v30 = vld [vmem:[%s0 + $0x60] sm:$0xff]
  %v31 = vld [vmem:[%s0 + $0x68] sm:$0xff]
  %v32 = vld [vmem:[%s0 + $0x70] sm:$0xff]
  %v33 = vld [vmem:[%s0 + $0x78] sm:$0xff]
  %v34 = vld [vmem:[%s1] sm:$0xf]
  %v35 = vld [vmem:[%s1 + $0x4] sm:$0xf]
  %v36 = vld [vmem:[%s1 + $0x8] sm:$0xf]
  %v37 = vld [vmem:[%s1 + $0xc] sm:$0xf]
  %v38 = vld [vmem:[%s1 + $0x10] sm:$0xf]
  %v39 = vld [vmem:[%s1 + $0x14] sm:$0xf]
  %v40 = vld [vmem:[%s1 + $0x18] sm:$0xf]
  %v41 = vld [vmem:[%s1 + $0x1c] sm:$0xf]
  %v42 = vld [vmem:[%s1 + $0x20] sm:$0xf]
  %v43 = vld [vmem:[%s1 + $0x24] sm:$0xf]
  %v44 = vld [vmem:[%s1 + $0x28] sm:$0xf]
  %v45 = vld [vmem:[%s1 + $0x2c] sm:$0xf]
  %v46 = vld [vmem:[%s1 + $0x30] sm:$0xf]
  %v47 = vld [vmem:[%s1 + $0x34] sm:$0xf]
  %v48 = vld [vmem:[%s1 + $0x38] sm:$0xf]
  %v49 = vld [vmem:[%s1 + $0x3c] sm:$0xf]
  %v50 = vld [vmem:[%s1 + $0x40] sm:$0xf]
  %v51 = vld [vmem:[%s1 + $0x44] sm:$0xf]
  %v68 = vunpack.c.l.b16 %v18
  %v69 = vunpack.c.h.b16 %v18
  %v70 = vunpack.c.l.b16 %v19
  %v71 = vunpack.c.h.b16 %v19
  %v72 = vunpack.c.l.b16 %v20
  %v73 = vunpack.c.h.b16 %v20
  %v74 = vunpack.c.l.b16 %v21
  %v75 = vunpack.c.h.b16 %v21
  %v76 = vunpack.c.l.b16 %v22
  %v77 = vunpack.c.h.b16 %v22
  %v78 = vunpack.c.l.b16 %v23
  %v79 = vunpack.c.h.b16 %v23
  %v80 = vunpack.c.l.b16 %v24
  %v81 = vunpack.c.h.b16 %v24
  %v82 = vunpack.c.l.b16 %v25
  %v83 = vunpack.c.h.b16 %v25
  %v84 = vunpack.c.l.b16 %v26
  %v85 = vunpack.c.h.b16 %v26
  %v86 = vunpack.c.l.b16 %v27
  %v87 = vunpack.c.h.b16 %v27
  %v88 = vunpack.c.l.b16 %v28
  %v89 = vunpack.c.h.b16 %v28
  %v90 = vunpack.c.l.b16 %v29
  %v91 = vunpack.c.h.b16 %v29
  %v92 = vunpack.c.l.b16 %v30
  %v93 = vunpack.c.h.b16 %v30
  %v94 = vunpack.c.l.b16 %v31
  %v95 = vunpack.c.h.b16 %v31
  %v96 = vunpack.c.l.b16 %v32
  %v97 = vunpack.c.h.b16 %v32
  %v98 = vunpack.c.l.b16 %v33
  %v99 = vunpack.c.h.b16 %v33
  %v100 = vpack.c.b16 %v70, %v68
  %v101 = vpack.c.b16 %v71, %v69
  %v102 = vpack.c.b16 %v74, %v72
  %v103 = vpack.c.b16 %v75, %v73
  %v104 = vpack.c.b16 %v78, %v76
  %v105 = vpack.c.b16 %v79, %v77
  %v106 = vpack.c.b16 %v82, %v80
  %v107 = vpack.c.b16 %v83, %v81
  %v108 = vpack.c.b16 %v86, %v84
  %v109 = vpack.c.b16 %v87, %v85
  %v110 = vpack.c.b16 %v90, %v88
  %v111 = vpack.c.b16 %v91, %v89
  %v112 = vpack.c.b16 %v94, %v92
  %v113 = vpack.c.b16 %v95, %v93
  %v114 = vpack.c.b16 %v98, %v96
  %v115 = vpack.c.b16 %v99, %v97
  %v142 = vunpack.c.l.b16 %v34
  %v143 = vunpack.c.l.b16 %v35
  %v144 = vunpack.c.l.b16 %v36
  %v145 = vunpack.c.l.b16 %v37
  %v146 = vunpack.c.l.b16 %v38
  %v147 = vunpack.c.l.b16 %v39
  %v148 = vunpack.c.l.b16 %v40
  %v149 = vunpack.c.l.b16 %v41
  %v150 = vunpack.c.l.b16 %v42
  %v151 = vunpack.c.l.b16 %v43
  %v152 = vunpack.c.l.b16 %v44
  %v153 = vunpack.c.l.b16 %v45
  %v154 = vunpack.c.l.b16 %v46
  %v155 = vunpack.c.l.b16 %v47
  %v156 = vunpack.c.l.b16 %v48
  %v157 = vunpack.c.l.b16 %v49
  %v158 = vunpack.c.l.b16 %v50
  %v159 = vunpack.c.l.b16 %v51
  %v160 = vpack.c.b16 %v143, %v142
  %v161 = vpack.c.b16 %v145, %v144
  %v162 = vpack.c.b16 %v147, %v146
  %v163 = vpack.c.b16 %v149, %v148
  %v164 = vpack.c.b16 %v151, %v150
  %v165 = vpack.c.b16 %v153, %v152
  %v166 = vpack.c.b16 %v155, %v154
  %v167 = vpack.c.b16 %v157, %v156
  %v168 = vpack.c.b16 %v159, %v158
  %vm178 = vcmask 130048
  %v180 = vsel %vm178, %v101, 0
  %v183 = vsel %vm178, %v103, 0
  %v186 = vsel %vm178, %v105, 0
  %v189 = vsel %vm178, %v107, 0
  %v192 = vsel %vm178, %v109, 0
  %v195 = vsel %vm178, %v111, 0
  %v198 = vsel %vm178, %v113, 0
  %v201 = vsel %vm178, %v115, 0
  %203 = vmatprep.subr.bf16.mxu0 0
  %204 = vmatpush1.bf16.msra.mxu0 %v160
  %205 = vmatprep.subr.bf16.mxu0 0
  %206 = vmatpush1.bf16.msra.mxu0 %v161
  %207 = vmatprep.subr.bf16.mxu0 0
  %208 = vmatpush1.bf16.msra.mxu0 %v162
  %209 = vmatprep.subr.bf16.mxu0 0
  %210 = vmatpush1.bf16.msra.mxu0 %v163
  %211 = vmatprep.subr.bf16.mxu0 0
  %212 = vmatpush1.bf16.msra.mxu0 %v164
  %213 = vmatprep.subr.bf16.mxu0 0
  %214 = vmatpush1.bf16.msra.mxu0 %v165
  %215 = vmatprep.subr.bf16.mxu0 0
  %216 = vmatpush1.bf16.msra.mxu0 %v166
  %217 = vmatprep.subr.bf16.mxu0 0
  %218 = vmatpush1.bf16.msra.mxu0 %v167
  %219 = vmatprep.subr.bf16.mxu0 0
  %220 = vmatpush1.bf16.msra.mxu0 %v168
  %221 = vmatprep.subr.bf16.mxu0 0
  %222 = vmatpush1.bf16.msra.mxu0 0
  %223 = vmatprep.subr.bf16.mxu0 0
  %224 = vmatpush1.bf16.msra.mxu0 0
  %225 = vmatprep.subr.bf16.mxu0 0
  %226 = vmatpush1.bf16.msra.mxu0 0
  %227 = vmatprep.subr.bf16.mxu0 0
  %228 = vmatpush1.bf16.msra.mxu0 0
  %229 = vmatprep.subr.bf16.mxu0 0
  %230 = vmatpush1.bf16.msra.mxu0 0
  %231 = vmatprep.subr.bf16.mxu0 0
  %232 = vmatpush1.bf16.msra.mxu0 0
  %233 = vmatprep.subr.bf16.mxu0 0
  %234 = vmatpush1.bf16.msra.mxu0 0
  %235 = vmatprep.mubr.bf16.mxu0 %v180
  %236 = vmatmul.mubr.bf16.gmra.mrb[0].mxu0 %v100
  %v237 = vpop.f32.mrb[0].mxu0
  %v238 = vadd.f32 0.0, %v237
  %v239 = vpop.f32.mrb[0].mxu0
  %v240 = vpop.f32.mrb[0].mxu0
  %v241 = vadd.f32 0.0, %v240
  %v242 = vpop.f32.mrb[0].mxu0
  %243 = vmatprep.mubr.bf16.mxu0 %v183
  %244 = vmatmul.mubr.bf16.gmra.mrb[0].mxu0 %v102
  %v245 = vpop.f32.mrb[0].mxu0
  %v246 = vadd.f32 0.0, %v245
  %v247 = vpop.f32.mrb[0].mxu0
  %v248 = vpop.f32.mrb[0].mxu0
  %v249 = vadd.f32 0.0, %v248
  %v250 = vpop.f32.mrb[0].mxu0
  %251 = vmatprep.mubr.bf16.mxu0 %v186
  %252 = vmatmul.mubr.bf16.gmra.mrb[0].mxu0 %v104
  %v253 = vpop.f32.mrb[0].mxu0
  %v254 = vadd.f32 0.0, %v253
  %v255 = vpop.f32.mrb[0].mxu0
  %v256 = vpop.f32.mrb[0].mxu0
  %v257 = vadd.f32 0.0, %v256
  %v258 = vpop.f32.mrb[0].mxu0
  %259 = vmatprep.mubr.bf16.mxu0 %v189
  %260 = vmatmul.mubr.bf16.gmra.mrb[0].mxu0 %v106
  %v261 = vpop.f32.mrb[0].mxu0
  %v262 = vadd.f32 0.0, %v261
  %v263 = vpop.f32.mrb[0].mxu0
  %v264 = vpop.f32.mrb[0].mxu0
  %v265 = vadd.f32 0.0, %v264
  %v266 = vpop.f32.mrb[0].mxu0
  %267 = vmatprep.mubr.bf16.mxu0 %v192
  %268 = vmatmul.mubr.bf16.gmra.mrb[0].mxu0 %v108
  %v269 = vpop.f32.mrb[0].mxu0
  %v270 = vadd.f32 0.0, %v269
  %v271 = vpop.f32.mrb[0].mxu0
  %v272 = vpop.f32.mrb[0].mxu0
  %v273 = vadd.f32 0.0, %v272
  %v274 = vpop.f32.mrb[0].mxu0
  %275 = vmatprep.mubr.bf16.mxu0 %v195
  %276 = vmatmul.mubr.bf16.gmra.mrb[0].mxu0 %v110
  %v277 = vpop.f32.mrb[0].mxu0
  %v278 = vadd.f32 0.0, %v277
  %v279 = vpop.f32.mrb[0].mxu0
  %v280 = vpop.f32.mrb[0].mxu0
  %v281 = vadd.f32 0.0, %v280
  %v282 = vpop.f32.mrb[0].mxu0
  %283 = vmatprep.mubr.bf16.mxu0 %v198
  %284 = vmatmul.mubr.bf16.gmra.mrb[0].mxu0 %v112
  %v285 = vpop.f32.mrb[0].mxu0
  %v286 = vadd.f32 0.0, %v285
  %v287 = vpop.f32.mrb[0].mxu0
  %v288 = vpop.f32.mrb[0].mxu0
  %v289 = vadd.f32 0.0, %v288
  %v290 = vpop.f32.mrb[0].mxu0
  %291 = vmatprep.mubr.bf16.mxu0 %v201
  %292 = vmatmul.mubr.bf16.gmra.mrb[0].mxu0 %v114
  %v293 = vpop.f32.mrb[0].mxu0
  %v294 = vadd.f32 0.0, %v293
  %v295 = vpop.f32.mrb[0].mxu0
  %v296 = vpop.f32.mrb[0].mxu0
  %v297 = vadd.f32 0.0, %v296
  %v298 = vpop.f32.mrb[0].mxu0
  %299 = vdwg.mxu0
  %v300 = vld [vmem:[%s2] sm:$0x1]
  %v302 = vlaneseq
  %v303 = vshrl.u32 %v302, 7
  %v304 = vsub.s32 0, %v303
  %v305 = vrot.slane %v300, %v304
  %v307 = vmul.f32 %v238, %v305
  %v308 = vmul.f32 %v241, %v305
  %v309 = vmul.f32 %v246, %v305
  %v310 = vmul.f32 %v249, %v305
  %v311 = vmul.f32 %v254, %v305
  %v312 = vmul.f32 %v257, %v305
  %v313 = vmul.f32 %v262, %v305
  %v314 = vmul.f32 %v265, %v305
  %v315 = vmul.f32 %v270, %v305
  %v316 = vmul.f32 %v273, %v305
  %v317 = vmul.f32 %v278, %v305
  %v318 = vmul.f32 %v281, %v305
  %v319 = vmul.f32 %v286, %v305
  %v320 = vmul.f32 %v289, %v305
  %v321 = vmul.f32 %v294, %v305
  %v322 = vmul.f32 %v297, %v305
  %v323 = vld [vmem:[%s3] sm:$0x1]
  %v325 = vlaneseq
  %v326 = vshrl.u32 %v325, 7
  %v327 = vsub.s32 0, %v326
  %v328 = vrot.slane %v323, %v327
  %v330 = vadd.f32 %v307, %v328
  %v331 = vadd.f32 %v308, %v328
  %v332 = vadd.f32 %v309, %v328
  %v333 = vadd.f32 %v310, %v328
  %v334 = vadd.f32 %v311, %v328
  %v335 = vadd.f32 %v312, %v328
  %v336 = vadd.f32 %v313, %v328
  %v337 = vadd.f32 %v314, %v328
  %v338 = vadd.f32 %v315, %v328
  %v339 = vadd.f32 %v316, %v328
  %v340 = vadd.f32 %v317, %v328
  %v341 = vadd.f32 %v318, %v328
  %v342 = vadd.f32 %v319, %v328
  %v343 = vadd.f32 %v320, %v328
  %v344 = vadd.f32 %v321, %v328
  %v345 = vadd.f32 %v322, %v328
  %v346 = vpack.c.bf16 %v331, %v330
  %v347 = vpack.c.bf16 %v333, %v332
  %v348 = vpack.c.bf16 %v335, %v334
  %v349 = vpack.c.bf16 %v337, %v336
  %v350 = vpack.c.bf16 %v339, %v338
  %v351 = vpack.c.bf16 %v341, %v340
  %v352 = vpack.c.bf16 %v343, %v342
  %v353 = vpack.c.bf16 %v345, %v344
  %v362 = vunpack.c.l.b16 %v346
  %v363 = vunpack.c.h.b16 %v346
  %v364 = vunpack.c.l.b16 %v347
  %v365 = vunpack.c.h.b16 %v347
  %v366 = vunpack.c.l.b16 %v348
  %v367 = vunpack.c.h.b16 %v348
  %v368 = vunpack.c.l.b16 %v349
  %v369 = vunpack.c.h.b16 %v349
  %v370 = vunpack.c.l.b16 %v350
  %v371 = vunpack.c.h.b16 %v350
  %v372 = vunpack.c.l.b16 %v351
  %v373 = vunpack.c.h.b16 %v351
  %v374 = vunpack.c.l.b16 %v352
  %v375 = vunpack.c.h.b16 %v352
  %v376 = vunpack.c.l.b16 %v353
  %v377 = vunpack.c.h.b16 %v353
  %v378 = vpack.c.b16 %v362, %v362
  %v379 = vpack.c.b16 %v363, %v363
  %v380 = vpack.c.b16 %v364, %v364
  %v381 = vpack.c.b16 %v365, %v365
  %v382 = vpack.c.b16 %v366, %v366
  %v383 = vpack.c.b16 %v367, %v367
  %v384 = vpack.c.b16 %v368, %v368
  %v385 = vpack.c.b16 %v369, %v369
  %v386 = vpack.c.b16 %v370, %v370
  %v387 = vpack.c.b16 %v371, %v371
  %v388 = vpack.c.b16 %v372, %v372
  %v389 = vpack.c.b16 %v373, %v373
  %v390 = vpack.c.b16 %v374, %v374
  %v391 = vpack.c.b16 %v375, %v375
  %v392 = vpack.c.b16 %v376, %v376
  %v393 = vpack.c.b16 %v377, %v377
  %vm410 = vcmask 125952
  %411 = vst.msk [vmem:[%s4] sm:$0xf] %vm410, %v378
  %412 = vst.msk [vmem:[%s4 + $0x4] sm:$0xf] %vm410, %v379
  %413 = vst.msk [vmem:[%s4 + $0x8] sm:$0xf] %vm410, %v380
  %414 = vst.msk [vmem:[%s4 + $0xc] sm:$0xf] %vm410, %v381
  %415 = vst.msk [vmem:[%s4 + $0x10] sm:$0xf] %vm410, %v382
  %416 = vst.msk [vmem:[%s4 + $0x14] sm:$0xf] %vm410, %v383
  %417 = vst.msk [vmem:[%s4 + $0x18] sm:$0xf] %vm410, %v384
  %418 = vst.msk [vmem:[%s4 + $0x1c] sm:$0xf] %vm410, %v385
  %419 = vst.msk [vmem:[%s4 + $0x20] sm:$0xf] %vm410, %v386
  %420 = vst.msk [vmem:[%s4 + $0x24] sm:$0xf] %vm410, %v387
  %421 = vst.msk [vmem:[%s4 + $0x28] sm:$0xf] %vm410, %v388
  %422 = vst.msk [vmem:[%s4 + $0x2c] sm:$0xf] %vm410, %v389
  %423 = vst.msk [vmem:[%s4 + $0x30] sm:$0xf] %vm410, %v390
  %424 = vst.msk [vmem:[%s4 + $0x34] sm:$0xf] %vm410, %v391
  %425 = vst.msk [vmem:[%s4 + $0x38] sm:$0xf] %vm410, %v392
  %426 = vst.msk [vmem:[%s4 + $0x3c] sm:$0xf] %vm410, %v393
  // Predicated region
  $region18: #{gemini_df_resnet_forward.12} parent=0 // pred_check
    _
  $region19: #{gemini_df_resnet_forward.12} parent=0 // pred_check_branch
    %428 = sbr.rel (0) target = $region21
  $region20: #{gemini_df_resnet_forward.12} parent=0 // pred_region
    _
  $region21: #{gemini_df_resnet_forward.12} parent=0 // pred_fallthru
    _
  // Predicated region
  $region22: #{gemini_df_resnet_forward.12} parent=0 // pred_check
    _
  $region23: #{gemini_df_resnet_forward.12} parent=0 // pred_check_branch
    %430 = sbr.rel (0) target = $region25
  $region24: #{gemini_df_resnet_forward.12} parent=0 // pred_region
    _
  $region25: #{gemini_df_resnet_forward.12} parent=0 // pred_fallthru
    _

// kernel: gemini_df_resnet_forward.13
$region0: #{gemini_df_resnet_forward.13}
  #allocation0 [shape = 'u32[]', space=smem, size = 0x4, offset = 0x4, fixed_abs, tag = 'smem constant byte address 0x4 - core index']
  #allocation1 [shape = 'u32[144,128]{1,0:T(1,128)}', space=vmem, size = 0x12000, scoped, tag = 'internal scratch']
  #allocation2 [shape = 'f32[96,64]{1,0:T(8,128)}', space=vmem, size = 0xc000, scoped, tag = 'scratch operand']
  %s0 = inlined_call_operand.vmem [shape: bf16[2,64,16], index: 0, kind: input, shape index: {}]
  %s1 = inlined_call_operand.vmem [shape: f32[64,2], index: 1, kind: input, shape index: {}]
  %s2 = inlined_call_operand.vmem [shape: bf16[16,64], index: 2, kind: input, shape index: {}]
  %s3 = inlined_call_operand.vmem [shape: f32[1,64], index: 3, kind: input, shape index: {}]
  %s4 = inlined_call_operand.vmem [shape: f32[1,64], index: 4, kind: input, shape index: {}]
  %s5 = inlined_call_operand.vmem [shape: f32[9,64], index: 5, kind: input, shape index: {}]
  %s6 = inlined_call_operand.vmem [shape: f32[1,64], index: 6, kind: input, shape index: {}]
  %s7 = inlined_call_operand.vmem [shape: f32[1,64], index: 7, kind: input, shape index: {}]
  %s8 = inlined_call_operand.vmem [shape: bf16[64,16], index: 8, kind: input, shape index: {}]
  %s9 = inlined_call_operand.vmem [shape: f32[1,16], index: 9, kind: input, shape index: {}]
  %s10 = inlined_call_operand.vmem [shape: f32[1,16], index: 10, kind: input, shape index: {}]
  %s11 = inlined_call_operand.vmem [shape: bf16[2,64,16], index: 11, kind: output, shape index: {}]
  %s12 = sld [smem:[#allocation0]]
  $region77: #{gemini_df_resnet_forward.13} parent=0
    _
  %s14 = ssub.s32 1, %s12
  %s15 = scalar_select 0, %s14, %s12
  loop: start=0, step=1, limit=4
  $region2: #{gemini_df_resnet_forward.13} parent=0 // loop_pre_header
    _
  $region3: #{gemini_df_resnet_forward.13} parent=0 // loop_header
    %s17 = sphi 0, %s21
    %p18 = scmp.ge.s32.totalorder %s17, 4
    %s27 = sphi 0, %s29
    %s30 = sphi 0, %s27
    %s31 = sphi 0, %s30
    %s47 = sphi 0, %s31
    %s51 = sphi 0, %s51
    %s53 = sphi 0, %s51
    %s54 = sphi 0, %s53
    %s68 = sphi 0, %s54
    %s72 = sphi 0, %s72
    %s74 = sphi 0, %s72
    %s75 = sphi 0, %s74
    %s89 = sphi 0, %s75
    %s93 = sphi 0, %s93
    %s95 = sphi 0, %s93
    %s96 = sphi 0, %s95
    %s110 = sphi 0, %s96
    %s114 = sphi 0, %s114
    %s116 = sphi 0, %s114
    %s117 = sphi 0, %s116
    %s131 = sphi 0, %s117
    %s135 = sphi 0, %s135
    %s137 = sphi 0, %s135
    %s138 = sphi 0, %s137
    %s152 = sphi 0, %s138
    %s156 = sphi 0, %s156
    %s158 = sphi 0, %s156
    %s159 = sphi 0, %s158
    %s173 = sphi 0, %s159
    %s177 = sphi 0, %s177
    %s179 = sphi 0, %s177
    %s180 = sphi 0, %s179
    %s194 = sphi 0, %s180
    %s198 = sphi 0, %s198
    %s200 = sphi 0, %s198
    %s201 = sphi 0, %s200
    %s215 = sphi 0, %s201
    %s219 = sphi 0, %s219
    %s221 = sphi 0, %s219
    %s222 = sphi 0, %s221
    %s236 = sphi 0, %s222
    %s240 = sphi 0, %s240
    %s242 = sphi 0, %s240
    %s243 = sphi 0, %s242
    %s257 = sphi 0, %s243
    %s263 = sphi 0, %s265
    %s266 = sphi 0, %s263
    %s267 = sphi 0, %s266
    %s283 = sphi 0, %s267
  $region4: #{gemini_df_resnet_forward.13} parent=0 // loop_header_branch
    %20 = sbr.rel (%p18) target = $region8
  $region5: #{gemini_df_resnet_forward.13} parent=0 // loop_body
    %s22 = ssub.s32 %s17, 1
    %s23 = ssub.s32 %s17, 2
    %s24 = sadd.s32 %s17, 1
    %s25 = ssub.s32 %s17, %s24
    %p26 = scmp.eq.s32.totalorder %s25, 0
    %s28 = sadd.s32 %s27, 1
    %s29 = scalar_select %p26, %s27, %s28
    %p32 = pneg %p26
    %p33 = scmp.eq.s32.totalorder %s17, 1
    %p34 = por %p32, %p33
    %p35 = scmp.ne.s32.totalorder %s27, %s30
    %p36 = scmp.eq.s32.totalorder %s17, 0
    %p37 = por %p35, %p36
    %p38 = scmp.ne.s32.totalorder %s27, %s30
    %p39 = scmp.eq.s32.totalorder %s22, 1
    %p40 = por %p38, %p39
    %p41 = scmp.ne.s32.totalorder %s30, %s31
    %p42 = scmp.eq.s32.totalorder %s22, 0
    %p43 = por %p41, %p42
    %p44 = scmp.ne.s32.totalorder %s30, %s31
    %p45 = scmp.eq.s32.totalorder %s23, 1
    %p46 = por %p44, %p45
    %p48 = scmp.ne.s32.totalorder %s31, %s47
    %p49 = scmp.eq.s32.totalorder %s23, 0
    %p50 = por %p48, %p49
    %s52 = sadd.s32 %s51, 1
    %p55 = scmp.eq.s32.totalorder %s17, 1
    %p56 = scmp.ne.s32.totalorder %s51, %s53
    %p57 = scmp.eq.s32.totalorder %s17, 0
    %p58 = por %p56, %p57
    %p59 = scmp.ne.s32.totalorder %s51, %s53
    %p60 = scmp.eq.s32.totalorder %s22, 1
    %p61 = por %p59, %p60
    %p62 = scmp.ne.s32.totalorder %s53, %s54
    %p63 = scmp.eq.s32.totalorder %s22, 0
    %p64 = por %p62, %p63
    %p65 = scmp.ne.s32.totalorder %s53, %s54
    %p66 = scmp.eq.s32.totalorder %s23, 1
    %p67 = por %p65, %p66
    %p69 = scmp.ne.s32.totalorder %s54, %s68
    %p70 = scmp.eq.s32.totalorder %s23, 0
    %p71 = por %p69, %p70
    %s73 = sadd.s32 %s72, 1
    %p76 = scmp.eq.s32.totalorder %s17, 1
    %p77 = scmp.ne.s32.totalorder %s72, %s74
    %p78 = scmp.eq.s32.totalorder %s17, 0
    %p79 = por %p77, %p78
    %p80 = scmp.ne.s32.totalorder %s72, %s74
    %p81 = scmp.eq.s32.totalorder %s22, 1
    %p82 = por %p80, %p81
    %p83 = scmp.ne.s32.totalorder %s74, %s75
    %p84 = scmp.eq.s32.totalorder %s22, 0
    %p85 = por %p83, %p84
    %p86 = scmp.ne.s32.totalorder %s74, %s75
    %p87 = scmp.eq.s32.totalorder %s23, 1
    %p88 = por %p86, %p87
    %p90 = scmp.ne.s32.totalorder %s75, %s89
    %p91 = scmp.eq.s32.totalorder %s23, 0
    %p92 = por %p90, %p91
    %s94 = sadd.s32 %s93, 1
    %p97 = scmp.eq.s32.totalorder %s17, 1
    %p98 = scmp.ne.s32.totalorder %s93, %s95
    %p99 = scmp.eq.s32.totalorder %s17, 0
    %p100 = por %p98, %p99
    %p101 = scmp.ne.s32.totalorder %s93, %s95
    %p102 = scmp.eq.s32.totalorder %s22, 1
    %p103 = por %p101, %p102
    %p104 = scmp.ne.s32.totalorder %s95, %s96
    %p105 = scmp.eq.s32.totalorder %s22, 0
    %p106 = por %p104, %p105
    %p107 = scmp.ne.s32.totalorder %s95, %s96
    %p108 = scmp.eq.s32.totalorder %s23, 1
    %p109 = por %p107, %p108
    %p111 = scmp.ne.s32.totalorder %s96, %s110
    %p112 = scmp.eq.s32.totalorder %s23, 0
    %p113 = por %p111, %p112
    %s115 = sadd.s32 %s114, 1
    %p118 = scmp.eq.s32.totalorder %s17, 1
    %p119 = scmp.ne.s32.totalorder %s114, %s116
    %p120 = scmp.eq.s32.totalorder %s17, 0
    %p121 = por %p119, %p120
    %p122 = scmp.ne.s32.totalorder %s114, %s116
    %p123 = scmp.eq.s32.totalorder %s22, 1
    %p124 = por %p122, %p123
    %p125 = scmp.ne.s32.totalorder %s116, %s117
    %p126 = scmp.eq.s32.totalorder %s22, 0
    %p127 = por %p125, %p126
    %p128 = scmp.ne.s32.totalorder %s116, %s117
    %p129 = scmp.eq.s32.totalorder %s23, 1
    %p130 = por %p128, %p129
    %p132 = scmp.ne.s32.totalorder %s117, %s131
    %p133 = scmp.eq.s32.totalorder %s23, 0
    %p134 = por %p132, %p133
    %s136 = sadd.s32 %s135, 1
    %p139 = scmp.eq.s32.totalorder %s17, 1
    %p140 = scmp.ne.s32.totalorder %s135, %s137
    %p141 = scmp.eq.s32.totalorder %s17, 0
    %p142 = por %p140, %p141
    %p143 = scmp.ne.s32.totalorder %s135, %s137
    %p144 = scmp.eq.s32.totalorder %s22, 1
    %p145 = por %p143, %p144
    %p146 = scmp.ne.s32.totalorder %s137, %s138
    %p147 = scmp.eq.s32.totalorder %s22, 0
    %p148 = por %p146, %p147
    %p149 = scmp.ne.s32.totalorder %s137, %s138
    %p150 = scmp.eq.s32.totalorder %s23, 1
    %p151 = por %p149, %p150
    %p153 = scmp.ne.s32.totalorder %s138, %s152
    %p154 = scmp.eq.s32.totalorder %s23, 0
    %p155 = por %p153, %p154
    %s157 = sadd.s32 %s156, 1
    %p160 = scmp.eq.s32.totalorder %s17, 1
    %p161 = scmp.ne.s32.totalorder %s156, %s158
    %p162 = scmp.eq.s32.totalorder %s17, 0
    %p163 = por %p161, %p162
    %p164 = scmp.ne.s32.totalorder %s156, %s158
    %p165 = scmp.eq.s32.totalorder %s22, 1
    %p166 = por %p164, %p165
    %p167 = scmp.ne.s32.totalorder %s158, %s159
    %p168 = scmp.eq.s32.totalorder %s22, 0
    %p169 = por %p167, %p168
    %p170 = scmp.ne.s32.totalorder %s158, %s159
    %p171 = scmp.eq.s32.totalorder %s23, 1
    %p172 = por %p170, %p171
    %p174 = scmp.ne.s32.totalorder %s159, %s173
    %p175 = scmp.eq.s32.totalorder %s23, 0
    %p176 = por %p174, %p175
    %s178 = sadd.s32 %s177, 1
    %p181 = scmp.eq.s32.totalorder %s17, 1
    %p182 = scmp.ne.s32.totalorder %s177, %s179
    %p183 = scmp.eq.s32.totalorder %s17, 0
    %p184 = por %p182, %p183
    %p185 = scmp.ne.s32.totalorder %s177, %s179
    %p186 = scmp.eq.s32.totalorder %s22, 1
    %p187 = por %p185, %p186
    %p188 = scmp.ne.s32.totalorder %s179, %s180
    %p189 = scmp.eq.s32.totalorder %s22, 0
    %p190 = por %p188, %p189
    %p191 = scmp.ne.s32.totalorder %s179, %s180
    %p192 = scmp.eq.s32.totalorder %s23, 1
    %p193 = por %p191, %p192
    %p195 = scmp.ne.s32.totalorder %s180, %s194
    %p196 = scmp.eq.s32.totalorder %s23, 0
    %p197 = por %p195, %p196
    %s199 = sadd.s32 %s198, 1
    %p202 = scmp.eq.s32.totalorder %s17, 1
    %p203 = scmp.ne.s32.totalorder %s198, %s200
    %p204 = scmp.eq.s32.totalorder %s17, 0
    %p205 = por %p203, %p204
    %p206 = scmp.ne.s32.totalorder %s198, %s200
    %p207 = scmp.eq.s32.totalorder %s22, 1
    %p208 = por %p206, %p207
    %p209 = scmp.ne.s32.totalorder %s200, %s201
    %p210 = scmp.eq.s32.totalorder %s22, 0
    %p211 = por %p209, %p210
    %p212 = scmp.ne.s32.totalorder %s200, %s201
    %p213 = scmp.eq.s32.totalorder %s23, 1
    %p214 = por %p212, %p213
    %p216 = scmp.ne.s32.totalorder %s201, %s215
    %p217 = scmp.eq.s32.totalorder %s23, 0
    %p218 = por %p216, %p217
    %s220 = sadd.s32 %s219, 1
    %p223 = scmp.eq.s32.totalorder %s17, 1
    %p224 = scmp.ne.s32.totalorder %s219, %s221
    %p225 = scmp.eq.s32.totalorder %s17, 0
    %p226 = por %p224, %p225
    %p227 = scmp.ne.s32.totalorder %s219, %s221
    %p228 = scmp.eq.s32.totalorder %s22, 1
    %p229 = por %p227, %p228
    %p230 = scmp.ne.s32.totalorder %s221, %s222
    %p231 = scmp.eq.s32.totalorder %s22, 0
    %p232 = por %p230, %p231
    %p233 = scmp.ne.s32.totalorder %s221, %s222
    %p234 = scmp.eq.s32.totalorder %s23, 1
    %p235 = por %p233, %p234
    %p237 = scmp.ne.s32.totalorder %s222, %s236
    %p238 = scmp.eq.s32.totalorder %s23, 0
    %p239 = por %p237, %p238
    %s241 = sadd.s32 %s240, 1
    %p244 = scmp.eq.s32.totalorder %s17, 1
    %p245 = scmp.ne.s32.totalorder %s240, %s242
    %p246 = scmp.eq.s32.totalorder %s17, 0
    %p247 = por %p245, %p246
    %p248 = scmp.ne.s32.totalorder %s240, %s242
    %p249 = scmp.eq.s32.totalorder %s22, 1
    %p250 = por %p248, %p249
    %p251 = scmp.ne.s32.totalorder %s242, %s243
    %p252 = scmp.eq.s32.totalorder %s22, 0
    %p253 = por %p251, %p252
    %p254 = scmp.ne.s32.totalorder %s242, %s243
    %p255 = scmp.eq.s32.totalorder %s23, 1
    %p256 = por %p254, %p255
    %p258 = scmp.ne.s32.totalorder %s243, %s257
    %p259 = scmp.eq.s32.totalorder %s23, 0
    %p260 = por %p258, %p259
    %s261 = ssub.s32 %s17, %s24
    %p262 = scmp.eq.s32.totalorder %s261, 0
    %s264 = sadd.s32 %s263, 1
    %s265 = scalar_select %p262, %s263, %s264
    %p268 = pneg %p262
    %p269 = scmp.eq.s32.totalorder %s17, 1
    %p270 = por %p268, %p269
    %p271 = scmp.ne.s32.totalorder %s263, %s266
    %p272 = scmp.eq.s32.totalorder %s17, 0
    %p273 = por %p271, %p272
    %p274 = scmp.ne.s32.totalorder %s263, %s266
    %p275 = scmp.eq.s32.totalorder %s22, 1
    %p276 = por %p274, %p275
    %p277 = scmp.ne.s32.totalorder %s266, %s267
    %p278 = scmp.eq.s32.totalorder %s22, 0
    %p279 = por %p277, %p278
    %p280 = scmp.ne.s32.totalorder %s266, %s267
    %p281 = scmp.eq.s32.totalorder %s23, 1
    %p282 = por %p280, %p281
    %p284 = scmp.ne.s32.totalorder %s267, %s283
    %p285 = scmp.eq.s32.totalorder %s23, 0
    %p286 = por %p284, %p285
    %p287 = scmp.le.s32.totalorder 1, %s17
    %p288 = scmp.lt.s32.totalorder %s17, 3
    %p289 = pnand %p287, %p288
    %p290 = pneg %p289
    // Predicated region
    $region9: #{gemini_df_resnet_forward.13} parent=5 // pred_check
      _
    $region10: #{gemini_df_resnet_forward.13} parent=5 // pred_check_branch
      %292 = sbr.rel (%p289) target = $region12
    $region11: #{gemini_df_resnet_forward.13} parent=5 // pred_region
      %s293 = ssub.s32 %s17, 1
      // Predicated region
      $region13: #{gemini_df_resnet_forward.13} parent=11 // pred_check
        %p294 = pneg %p64
      $region14: #{gemini_df_resnet_forward.13} parent=11 // pred_check_branch
        %296 = sbr.rel (%p294) target = $region16
      $region15: #{gemini_df_resnet_forward.13} parent=11 // pred_region
        _
      $region16: #{gemini_df_resnet_forward.13} parent=11 // pred_fallthru
        _
      // Predicated region
      $region17: #{gemini_df_resnet_forward.13} parent=11 // pred_check
        %p297 = pneg %p85
      $region18: #{gemini_df_resnet_forward.13} parent=11 // pred_check_branch
        %299 = sbr.rel (%p297) target = $region20
      $region19: #{gemini_df_resnet_forward.13} parent=11 // pred_region
        _
      $region20: #{gemini_df_resnet_forward.13} parent=11 // pred_fallthru
        _
      // Predicated region
      $region21: #{gemini_df_resnet_forward.13} parent=11 // pred_check
        %p300 = pneg %p106
      $region22: #{gemini_df_resnet_forward.13} parent=11 // pred_check_branch
        %302 = sbr.rel (%p300) target = $region24
      $region23: #{gemini_df_resnet_forward.13} parent=11 // pred_region
        _
      $region24: #{gemini_df_resnet_forward.13} parent=11 // pred_fallthru
        _
      // Predicated region
      $region25: #{gemini_df_resnet_forward.13} parent=11 // pred_check
        %p303 = pneg %p127
      $region26: #{gemini_df_resnet_forward.13} parent=11 // pred_check_branch
        %305 = sbr.rel (%p303) target = $region28
      $region27: #{gemini_df_resnet_forward.13} parent=11 // pred_region
        _
      $region28: #{gemini_df_resnet_forward.13} parent=11 // pred_fallthru
        _
      // Predicated region
      $region29: #{gemini_df_resnet_forward.13} parent=11 // pred_check
        %p306 = pneg %p148
      $region30: #{gemini_df_resnet_forward.13} parent=11 // pred_check_branch
        %308 = sbr.rel (%p306) target = $region32
      $region31: #{gemini_df_resnet_forward.13} parent=11 // pred_region
        _
      $region32: #{gemini_df_resnet_forward.13} parent=11 // pred_fallthru
        _
      // Predicated region
      $region33: #{gemini_df_resnet_forward.13} parent=11 // pred_check
        %p309 = pneg %p169
      $region34: #{gemini_df_resnet_forward.13} parent=11 // pred_check_branch
        %311 = sbr.rel (%p309) target = $region36
      $region35: #{gemini_df_resnet_forward.13} parent=11 // pred_region
        _
      $region36: #{gemini_df_resnet_forward.13} parent=11 // pred_fallthru
        _
      // Predicated region
      $region37: #{gemini_df_resnet_forward.13} parent=11 // pred_check
        %p312 = pneg %p190
      $region38: #{gemini_df_resnet_forward.13} parent=11 // pred_check_branch
        %314 = sbr.rel (%p312) target = $region40
      $region39: #{gemini_df_resnet_forward.13} parent=11 // pred_region
        _
      $region40: #{gemini_df_resnet_forward.13} parent=11 // pred_fallthru
        _
      // Predicated region
      $region41: #{gemini_df_resnet_forward.13} parent=11 // pred_check
        %p315 = pneg %p211
      $region42: #{gemini_df_resnet_forward.13} parent=11 // pred_check_branch
        %317 = sbr.rel (%p315) target = $region44
      $region43: #{gemini_df_resnet_forward.13} parent=11 // pred_region
        _
      $region44: #{gemini_df_resnet_forward.13} parent=11 // pred_fallthru
        _
      // Predicated region
      $region45: #{gemini_df_resnet_forward.13} parent=11 // pred_check
        %p318 = pneg %p232
      $region46: #{gemini_df_resnet_forward.13} parent=11 // pred_check_branch
        %320 = sbr.rel (%p318) target = $region48
      $region47: #{gemini_df_resnet_forward.13} parent=11 // pred_region
        _
      $region48: #{gemini_df_resnet_forward.13} parent=11 // pred_fallthru
        _
      // Predicated region
      $region49: #{gemini_df_resnet_forward.13} parent=11 // pred_check
        %p321 = pneg %p253
      $region50: #{gemini_df_resnet_forward.13} parent=11 // pred_check_branch
        %323 = sbr.rel (%p321) target = $region52
      $region51: #{gemini_df_resnet_forward.13} parent=11 // pred_region
        _
      $region52: #{gemini_df_resnet_forward.13} parent=11 // pred_fallthru
        _
    $region12: #{gemini_df_resnet_forward.13} parent=5 // pred_fallthru
      _
    %p324 = scmp.lt.s32.totalorder %s17, 2
    // Predicated region
    $region53: #{gemini_df_resnet_forward.13} parent=5 // pred_check
      %p325 = pneg %p324
    $region54: #{gemini_df_resnet_forward.13} parent=5 // pred_check_branch
      %327 = sbr.rel (%p325) target = $region56
    $region55: #{gemini_df_resnet_forward.13} parent=5 // pred_region
      // Predicated region
      $region57: #{gemini_df_resnet_forward.13} parent=55 // pred_check
        %p328 = pneg %p37
      $region58: #{gemini_df_resnet_forward.13} parent=55 // pred_check_branch
        %330 = sbr.rel (%p328) target = $region60
      $region59: #{gemini_df_resnet_forward.13} parent=55 // pred_region
        %p331 = scmp.lt.s32.totalorder %s17, 1
        %s332 = scalar_select %p331, %s17, 1
        %s333 = smul.addr %s332, 8
        %s334 = smul.addr %s333, 4
        %s335 = scalar_lea.vmem %s0, %s334
      $region60: #{gemini_df_resnet_forward.13} parent=55 // pred_fallthru
        _
    $region56: #{gemini_df_resnet_forward.13} parent=5 // pred_fallthru
      _
    %p336 = scmp.le.s32.totalorder 1, %s17
    %p337 = scmp.lt.s32.totalorder %s17, 3
    %p338 = pnand %p336, %p337
    %p339 = pneg %p338
    // Predicated region
    $region61: #{gemini_df_resnet_forward.13} parent=5 // pred_check
      _
    $region62: #{gemini_df_resnet_forward.13} parent=5 // pred_check_branch
      %341 = sbr.rel (%p338) target = $region64
    $region63: #{gemini_df_resnet_forward.13} parent=5 // pred_region
      %s342 = ssub.s32 %s17, 1
      %p343 = scmp.lt.s32.totalorder %s22, 1
      %s344 = scalar_select %p343, %s22, 1
      %s345 = smul.addr %s344, 8
      %s346 = smul.addr %s345, 4
      %s347 = scalar_lea.vmem %s0, %s346
      %p348 = pneg %p43
      %p349 = pneg %p40
      %p350 = pneg %p64
      %p351 = pneg %p61
      %p352 = pneg %p85
      %p353 = pneg %p82
      %p354 = pneg %p106
      %p355 = pneg %p103
      %p356 = pneg %p127
      %p357 = pneg %p124
      %p358 = pneg %p148
      %p359 = pneg %p145
      %p360 = pneg %p169
      %p361 = pneg %p166
      %p362 = pneg %p190
      %p363 = pneg %p187
      %p364 = pneg %p211
      %p365 = pneg %p208
      %p366 = pneg %p232
      %p367 = pneg %p229
      %p368 = pneg %p253
      %p369 = pneg %p250
      %p370 = pneg %p279
      %p371 = pneg %p276
      %p372 = scmp.lt.s32.totalorder %s22, 1
      %s373 = scalar_select %p372, %s22, 1
      %s374 = smul.addr %s373, 8
      %s375 = smul.addr %s374, 4
      %s376 = scalar_lea.vmem %s11, %s375
      %p377 = scmp.lt.s32.totalorder %s22, 1
      %s378 = scalar_select %p377, %s22, 1
      %s379 = smul.addr %s378, 8
      %s380 = smul.addr %s379, 4
      %s381 = scalar_lea.vmem %s0, %s380
      %p382 = scmp.lt.s32.totalorder %s22, 1
      %s383 = scalar_select %p382, %s22, 1
      %s384 = smul.addr %s383, 8
      %s385 = smul.addr %s384, 4
      %s386 = scalar_lea.vmem %s11, %s385
      %v388 = vld [vmem:[%s381] sm:$0xf]
      %v389 = vld [vmem:[%s381 + $0x4] sm:$0xf]
      %v390 = vld [vmem:[%s381 + $0x8] sm:$0xf]
      %v391 = vld [vmem:[%s381 + $0xc] sm:$0xf]
      %v392 = vld [vmem:[%s381 + $0x10] sm:$0xf]
      %v393 = vld [vmem:[%s381 + $0x14] sm:$0xf]
      %v394 = vld [vmem:[%s381 + $0x18] sm:$0xf]
      %v395 = vld [vmem:[%s381 + $0x1c] sm:$0xf]
      %v396 = vld [vmem:[%s2] sm:$0xf]
      %v397 = vld [vmem:[%s2 + $0x4] sm:$0xf]
      %v406 = vunpack.c.l.b16 %v388
      %v407 = vunpack.c.l.b16 %v389
      %v408 = vunpack.c.l.b16 %v390
      %v409 = vunpack.c.l.b16 %v391
      %v410 = vunpack.c.l.b16 %v392
      %v411 = vunpack.c.l.b16 %v393
      %v412 = vunpack.c.l.b16 %v394
      %v413 = vunpack.c.l.b16 %v395
      %v414 = vpack.c.b16 %v407, %v406
      %v415 = vpack.c.b16 %v409, %v408
      %v416 = vpack.c.b16 %v411, %v410
      %v417 = vpack.c.b16 %v413, %v412
      %v420 = vunpack.c.l.b16 %v396
      %v421 = vunpack.c.l.b16 %v397
      %v422 = vpack.c.b16 %v421, %v420
      %vm424 = vcmask 130048
      %v426 = vsel %vm424, %v414, 0
      %v429 = vsel %vm424, %v415, 0
      %v432 = vsel %vm424, %v416, 0
      %v435 = vsel %vm424, %v417, 0
      %437 = vmatprep.subr.bf16.mxu0 0
      %438 = vmatpush1.bf16.msra.mxu0 %v422
      %439 = vmatprep.subr.bf16.mxu0 0
      %440 = vmatpush1.bf16.msra.mxu0 0
      %441 = vmatprep.subr.bf16.mxu0 0
      %442 = vmatpush1.bf16.msra.mxu0 0
      %443 = vmatprep.subr.bf16.mxu0 0
      %444 = vmatpush1.bf16.msra.mxu0 0
      %445 = vmatprep.subr.bf16.mxu0 0
      %446 = vmatpush1.bf16.msra.mxu0 0
      %447 = vmatprep.subr.bf16.mxu0 0
      %448 = vmatpush1.bf16.msra.mxu0 0
      %449 = vmatprep.subr.bf16.mxu0 0
      %450 = vmatpush1.bf16.msra.mxu0 0
      %451 = vmatprep.subr.bf16.mxu0 0
      %452 = vmatpush1.bf16.msra.mxu0 0
      %453 = vmatprep.subr.bf16.mxu0 0
      %454 = vmatpush1.bf16.msra.mxu0 0
      %455 = vmatprep.subr.bf16.mxu0 0
      %456 = vmatpush1.bf16.msra.mxu0 0
      %457 = vmatprep.subr.bf16.mxu0 0
      %458 = vmatpush1.bf16.msra.mxu0 0
      %459 = vmatprep.subr.bf16.mxu0 0
      %460 = vmatpush1.bf16.msra.mxu0 0
      %461 = vmatprep.subr.bf16.mxu0 0
      %462 = vmatpush1.bf16.msra.mxu0 0
      %463 = vmatprep.subr.bf16.mxu0 0
      %464 = vmatpush1.bf16.msra.mxu0 0
      %465 = vmatprep.subr.bf16.mxu0 0
      %466 = vmatpush1.bf16.msra.mxu0 0
      %467 = vmatprep.subr.bf16.mxu0 0
      %468 = vmatpush1.bf16.msra.mxu0 0
      %469 = vmatprep.mubr.bf16.mxu0 0
      %470 = vmatmul.mubr.bf16.gmra.mrb[0].mxu0 %v426
      %v471 = vpop.f32.mrb[0].mxu0
      %v472 = vadd.f32 0.0, %v471
      %v473 = vpop.f32.mrb[0].mxu0
      %v474 = vpop.f32.mrb[0].mxu0
      %v475 = vadd.f32 0.0, %v474
      %v476 = vpop.f32.mrb[0].mxu0
      %477 = vmatprep.mubr.bf16.mxu0 0
      %478 = vmatmul.mubr.bf16.gmra.mrb[0].mxu0 %v429
      %v479 = vpop.f32.mrb[0].mxu0
      %v480 = vadd.f32 0.0, %v479
      %v481 = vpop.f32.mrb[0].mxu0
      %v482 = vpop.f32.mrb[0].mxu0
      %v483 = vadd.f32 0.0, %v482
      %v484 = vpop.f32.mrb[0].mxu0
      %485 = vmatprep.mubr.bf16.mxu0 0
      %486 = vmatmul.mubr.bf16.gmra.mrb[0].mxu0 %v432
      %v487 = vpop.f32.mrb[0].mxu0
      %v488 = vadd.f32 0.0, %v487
      %v489 = vpop.f32.mrb[0].mxu0
      %v490 = vpop.f32.mrb[0].mxu0
      %v491 = vadd.f32 0.0, %v490
      %v492 = vpop.f32.mrb[0].mxu0
      %493 = vmatprep.mubr.bf16.mxu0 0
      %494 = vmatmul.mubr.bf16.gmra.mrb[0].mxu0 %v435
      %v495 = vpop.f32.mrb[0].mxu0
      %v496 = vadd.f32 0.0, %v495
      %v497 = vpop.f32.mrb[0].mxu0
      %v498 = vpop.f32.mrb[0].mxu0
      %v499 = vadd.f32 0.0, %v498
      %v500 = vpop.f32.mrb[0].mxu0
      %501 = vdwg.mxu0
      %v502 = vld [vmem:[%s3] sm:$0x1]
      %v504 = vlaneseq
      %v505 = vshrl.u32 %v504, 7
      %v506 = vsub.s32 0, %v505
      %v507 = vrot.slane %v502, %v506
      %v509 = vmul.f32 %v472, %v507
      %v510 = vmul.f32 %v475, %v507
      %v511 = vmul.f32 %v480, %v507
      %v512 = vmul.f32 %v483, %v507
      %v513 = vmul.f32 %v488, %v507
      %v514 = vmul.f32 %v491, %v507
      %v515 = vmul.f32 %v496, %v507
      %v516 = vmul.f32 %v499, %v507
      %v517 = vld [vmem:[%s4] sm:$0x1]
      %v519 = vlaneseq
      %v520 = vshrl.u32 %v519, 7
      %v521 = vsub.s32 0, %v520
      %v522 = vrot.slane %v517, %v521
      %v524 = vadd.f32 %v509, %v522
      %v525 = vadd.f32 %v510, %v522
      %v526 = vadd.f32 %v511, %v522
      %v527 = vadd.f32 %v512, %v522
      %v528 = vadd.f32 %v513, %v522
      %v529 = vadd.f32 %v514, %v522
      %v530 = vadd.f32 %v515, %v522
      %v531 = vadd.f32 %v516, %v522
      %v532 = vmax.f32 %v524, 0.0
      %v533 = vmax.f32 %v525, 0.0
      %v534 = vmax.f32 %v526, 0.0
      %v535 = vmax.f32 %v527, 0.0
      %v536 = vmax.f32 %v528, 0.0
      %v537 = vmax.f32 %v529, 0.0
      %v538 = vmax.f32 %v530, 0.0
      %v539 = vmax.f32 %v531, 0.0
      %vm540 = vcmask 523264
      %541 = vst.msk [vmem:[#allocation2] sm:$0xff] %vm540, 0.0
      %542 = vst.msk [vmem:[#allocation2 + $0x8] sm:$0xff] %vm540, 0.0
      %543 = vst.msk [vmem:[#allocation2 + $0x10] sm:$0xff] %vm540, 0.0
      %544 = vst.msk [vmem:[#allocation2 + $0x18] sm:$0xff] %vm540, 0.0
      %545 = vst.msk [vmem:[#allocation2 + $0x20] sm:$0xff] %vm540, 0.0
      %546 = vst.msk [vmem:[#allocation2 + $0x28] sm:$0xff] %vm540, 0.0
      %547 = vst.msk [vmem:[#allocation2 + $0x30] sm:$0xff] %vm540, 0.0
      %548 = vst.msk [vmem:[#allocation2 + $0x38] sm:$0xff] %vm540, 0.0
      %549 = vst.msk [vmem:[#allocation2 + $0x40] sm:$0xff] %vm540, 0.0
      %550 = vst.msk [vmem:[#allocation2 + $0x48] sm:$0xff] %vm540, 0.0
      %551 = vst.msk [vmem:[#allocation2 + $0x50] sm:$0xff] %vm540, 0.0
      %552 = vst.msk [vmem:[#allocation2 + $0x58] sm:$0xff] %vm540, 0.0
      %553 = vst.msk [vmem:[#allocation2 + $0x10] sm:$0xff] %vm540, %v532
      %554 = vst.msk [vmem:[#allocation2 + $0x18] sm:$0xff] %vm540, %v533
      %555 = vst.msk [vmem:[#allocation2 + $0x20] sm:$0xff] %vm540, %v534
      %556 = vst.msk [vmem:[#allocation2 + $0x28] sm:$0xff] %vm540, %v535
      %557 = vst.msk [vmem:[#allocation2 + $0x30] sm:$0xff] %vm540, %v536
      %558 = vst.msk [vmem:[#allocation2 + $0x38] sm:$0xff] %vm540, %v537
      %559 = vst.msk [vmem:[#allocation2 + $0x40] sm:$0xff] %vm540, %v538
      %560 = vst.msk [vmem:[#allocation2 + $0x48] sm:$0xff] %vm540, %v539
      %v561 = vld [vmem:[#allocation2] sm:$0xff]
      %v562 = vld [vmem:[#allocation2 + $0x8] sm:$0xff]
      %v563 = vld [vmem:[#allocation2 + $0x10] sm:$0xff]
      %v564 = vld [vmem:[#allocation2 + $0x18] sm:$0xff]
      %v565 = vld [vmem:[#allocation2 + $0x20] sm:$0xff]
      %v566 = vld [vmem:[#allocation2 + $0x28] sm:$0xff]
      %v567 = vld [vmem:[#allocation2 + $0x30] sm:$0xff]
      %v568 = vld [vmem:[#allocation2 + $0x38] sm:$0xff]
      %v569 = vld [vmem:[#allocation2 + $0x40] sm:$0xff]
      %v570 = vld [vmem:[#allocation2 + $0x48] sm:$0xff]
      %v571 = vld [vmem:[#allocation2 + $0x50] sm:$0xff]
      %v572 = vld [vmem:[#allocation2 + $0x58] sm:$0xff]
      %v573 = vld [vmem:[%s1] sm:$0xff]
      %v574 = vld [vmem:[%s1 + $0x8] sm:$0xff]
      %v575 = vld [vmem:[%s1 + $0x10] sm:$0xff]
      %v576 = vld [vmem:[%s1 + $0x18] sm:$0xff]
      %v577 = vld [vmem:[%s1 + $0x20] sm:$0xff]
      %v578 = vld [vmem:[%s1 + $0x28] sm:$0xff]
      %v579 = vld [vmem:[%s1 + $0x30] sm:$0xff]
      %v580 = vld [vmem:[%s1 + $0x38] sm:$0xff]
      %v581 = vld [vmem:[%s5] sm:$0xff]
      %v582 = vld [vmem:[%s5 + $0x8] sm:$0x1]
      %v583 = vlaneseq
      %v584 = vshrl.u32 %v583, 7
      %v585 = vsub.s32 0, %v584
      %v586 = vrot.slane %v581, %v585
      %v587 = vmul.f32 %v561, %v586
      %v588 = vmul.f32 %v562, %v586
      %v589 = vmul.f32 %v563, %v586
      %v590 = vmul.f32 %v564, %v586
      %v591 = vmul.f32 %v565, %v586
      %v592 = vmul.f32 %v566, %v586
      %v593 = vmul.f32 %v567, %v586
      %v594 = vmul.f32 %v568, %v586
      %v595 = vmul.f32 %v569, %v586
      %597 = vset.pattern.permute.xlu0 0
      %598 = vperm.xlu0 %597, %v573
      %v599 = vpop.permute.xlu0 %598
      %601 = vset.pattern.permute.xlu0 0
      %602 = vperm.xlu0 %601, %v574
      %v603 = vpop.permute.xlu0 %602
      %605 = vset.pattern.permute.xlu0 0
      %606 = vperm.xlu0 %605, %v575
      %v607 = vpop.permute.xlu0 %606
      %609 = vset.pattern.permute.xlu0 0
      %610 = vperm.xlu0 %609, %v576
      %v611 = vpop.permute.xlu0 %610
      %613 = vset.pattern.permute.xlu0 0
      %614 = vperm.xlu0 %613, %v577
      %v615 = vpop.permute.xlu0 %614
      %617 = vset.pattern.permute.xlu0 0
      %618 = vperm.xlu0 %617, %v578
      %v619 = vpop.permute.xlu0 %618
      %621 = vset.pattern.permute.xlu0 0
      %622 = vperm.xlu0 %621, %v579
      %v623 = vpop.permute.xlu0 %622
      %625 = vset.pattern.permute.xlu0 0
      %626 = vperm.xlu0 %625, %v580
      %v627 = vpop.permute.xlu0 %626
      %vm628 = vcmask 1046528
      %v629 = vrot.slane %v599, 1
      %v630 = vrot.slane %v603, 1
      %v631 = vsel %vm628, %v629, %v630
      %v632 = vrot.slane %v607, 1
      %v633 = vsel %vm628, %v630, %v632
      %v634 = vrot.slane %v611, 1
      %v635 = vsel %vm628, %v632, %v634
      %v636 = vrot.slane %v615, 1
      %v637 = vsel %vm628, %v634, %v636
      %v638 = vrot.slane %v619, 1
      %v639 = vsel %vm628, %v636, %v638
      %v640 = vrot.slane %v623, 1
      %v641 = vsel %vm628, %v638, %v640
      %v642 = vrot.slane %v627, 1
      %v643 = vsel %vm628, %v640, %v642
      %v653 = vmul.f32 %v587, %v629
      %v654 = vmul.f32 %v588, %v631
      %v655 = vmul.f32 %v589, %v633
      %v656 = vmul.f32 %v590, %v635
      %v657 = vmul.f32 %v591, %v637
      %v658 = vmul.f32 %v592, %v639
      %v659 = vmul.f32 %v593, %v641
      %v660 = vmul.f32 %v594, %v643
      %v661 = vmul.f32 %v595, %v642
      %v662 = vlaneseq
      %v663 = vshrl.u32 %v662, 7
      %v664 = vsub.s32 1, %v663
      %v665 = vrot.slane %v581, %v664
      %v666 = vmul.f32 %v562, %v665
      %v667 = vmul.f32 %v563, %v665
      %v668 = vmul.f32 %v564, %v665
      %v669 = vmul.f32 %v565, %v665
      %v670 = vmul.f32 %v566, %v665
      %v671 = vmul.f32 %v567, %v665
      %v672 = vmul.f32 %v568, %v665
      %v673 = vmul.f32 %v569, %v665
      %v682 = vrot.slane %v666, 1
      %v683 = vrot.slane %v667, 1
      %v684 = vsel %vm628, %v682, %v683
      %v685 = vrot.slane %v668, 1
      %v686 = vsel %vm628, %v683, %v685
      %v687 = vrot.slane %v669, 1
      %v688 = vsel %vm628, %v685, %v687
      %v689 = vrot.slane %v670, 1
      %v690 = vsel %vm628, %v687, %v689
      %v691 = vrot.slane %v671, 1
      %v692 = vsel %vm628, %v689, %v691
      %v693 = vrot.slane %v672, 1
      %v694 = vsel %vm628, %v691, %v693
      %v695 = vrot.slane %v673, 1
      %v696 = vsel %vm628, %v693, %v695
      %v706 = vadd.f32 %v653, %v682
      %v707 = vadd.f32 %v654, %v684
      %v708 = vadd.f32 %v655, %v686
      %v709 = vadd.f32 %v656, %v688
      %v710 = vadd.f32 %v657, %v690
      %v711 = vadd.f32 %v658, %v692
      %v712 = vadd.f32 %v659, %v694
      %v713 = vadd.f32 %v660, %v696
      %v714 = vadd.f32 %v661, %v695
      %v715 = vlaneseq
      %v716 = vshrl.u32 %v715, 7
      %v717 = vsub.s32 2, %v716
      %v718 = vrot.slane %v581, %v717
      %v719 = vmul.f32 %v562, %v718
      %v720 = vmul.f32 %v563, %v718
      %v721 = vmul.f32 %v564, %v718
      %v722 = vmul.f32 %v565, %v718
      %v723 = vmul.f32 %v566, %v718
      %v724 = vmul.f32 %v567, %v718
      %v725 = vmul.f32 %v568, %v718
      %v726 = vmul.f32 %v569, %v718
      %v727 = vmul.f32 %v570, %v718
      %728 = vset.pattern.permute.xlu0 1
      %729 = vperm.xlu0 %728, %v573
      %v730 = vpop.permute.xlu0 %729
      %731 = vset.pattern.permute.xlu0 1
      %732 = vperm.xlu0 %731, %v574
      %v733 = vpop.permute.xlu0 %732
      %734 = vset.pattern.permute.xlu0 1
      %735 = vperm.xlu0 %734, %v575
      %v736 = vpop.permute.xlu0 %735
      %737 = vset.pattern.permute.xlu0 1
      %738 = vperm.xlu0 %737, %v576
      %v739 = vpop.permute.xlu0 %738
      %740 = vset.pattern.permute.xlu0 1
      %741 = vperm.xlu0 %740, %v577
      %v742 = vpop.permute.xlu0 %741
      %743 = vset.pattern.permute.xlu0 1
      %744 = vperm.xlu0 %743, %v578
      %v745 = vpop.permute.xlu0 %744
      %746 = vset.pattern.permute.xlu0 1
      %747 = vperm.xlu0 %746, %v579
      %v748 = vpop.permute.xlu0 %747
      %749 = vset.pattern.permute.xlu0 1
      %750 = vperm.xlu0 %749, %v580
      %v751 = vpop.permute.xlu0 %750
      %vm752 = vcmask 1040384
      %v753 = vrot.slane %v730, 7
      %v754 = vrot.slane %v733, 7
      %v755 = vsel %vm752, %v753, %v754
      %v756 = vrot.slane %v736, 7
      %v757 = vsel %vm752, %v754, %v756
      %v758 = vrot.slane %v739, 7
      %v759 = vsel %vm752, %v756, %v758
      %v760 = vrot.slane %v742, 7
      %v761 = vsel %vm752, %v758, %v760
      %v762 = vrot.slane %v745, 7
      %v763 = vsel %vm752, %v760, %v762
      %v764 = vrot.slane %v748, 7
      %v765 = vsel %vm752, %v762, %v764
      %v766 = vrot.slane %v751, 7
      %v767 = vsel %vm752, %v764, %v766
      %v777 = vmul.f32 %v719, %v753
      %v778 = vmul.f32 %v720, %v755
      %v779 = vmul.f32 %v721, %v757
      %v780 = vmul.f32 %v722, %v759
      %v781 = vmul.f32 %v723, %v761
      %v782 = vmul.f32 %v724, %v763
      %v783 = vmul.f32 %v725, %v765
      %v784 = vmul.f32 %v726, %v767
      %v785 = vmul.f32 %v727, %v766
      %vm795 = vcmask 1045504
      %v796 = vrot.slane %v777, 2
      %v797 = vrot.slane %v778, 2
      %v798 = vsel %vm795, %v796, %v797
      %v799 = vrot.slane %v779, 2
      %v800 = vsel %vm795, %v797, %v799
      %v801 = vrot.slane %v780, 2
      %v802 = vsel %vm795, %v799, %v801
      %v803 = vrot.slane %v781, 2
      %v804 = vsel %vm795, %v801, %v803
      %v805 = vrot.slane %v782, 2
      %v806 = vsel %vm795, %v803, %v805
      %v807 = vrot.slane %v783, 2
      %v808 = vsel %vm795, %v805, %v807
      %v809 = vrot.slane %v784, 2
      %v810 = vsel %vm795, %v807, %v809
      %v811 = vrot.slane %v785, 2
      %v812 = vsel %vm795, %v809, %v811
      %v822 = vadd.f32 %v706, %v796
      %v823 = vadd.f32 %v707, %v798
      %v824 = vadd.f32 %v708, %v800
      %v825 = vadd.f32 %v709, %v802
      %v826 = vadd.f32 %v710, %v804
      %v827 = vadd.f32 %v711, %v806
      %v828 = vadd.f32 %v712, %v808
      %v829 = vadd.f32 %v713, %v810
      %v830 = vadd.f32 %v714, %v812
      %v831 = vlaneseq
      %v832 = vshrl.u32 %v831, 7
      %v833 = vsub.s32 3, %v832
      %v834 = vrot.slane %v581, %v833
      %v835 = vmul.f32 %v562, %v834
      %v836 = vmul.f32 %v563, %v834
      %v837 = vmul.f32 %v564, %v834
      %v838 = vmul.f32 %v565, %v834
      %v839 = vmul.f32 %v566, %v834
      %v840 = vmul.f32 %v567, %v834
      %v841 = vmul.f32 %v568, %v834
      %v842 = vmul.f32 %v569, %v834
      %v843 = vmul.f32 %v570, %v834
      %v844 = vmul.f32 %v835, %v629
      %v845 = vmul.f32 %v836, %v631
      %v846 = vmul.f32 %v837, %v633
      %v847 = vmul.f32 %v838, %v635
      %v848 = vmul.f32 %v839, %v637
      %v849 = vmul.f32 %v840, %v639
      %v850 = vmul.f32 %v841, %v641
      %v851 = vmul.f32 %v842, %v643
      %v852 = vmul.f32 %v843, %v642
      %v853 = vadd.f32 %v822, %v844
      %v854 = vadd.f32 %v823, %v845
      %v855 = vadd.f32 %v824, %v846
      %v856 = vadd.f32 %v825, %v847
      %v857 = vadd.f32 %v826, %v848
      %v858 = vadd.f32 %v827, %v849
      %v859 = vadd.f32 %v828, %v850
      %v860 = vadd.f32 %v829, %v851
      %v861 = vadd.f32 %v830, %v852
      %v862 = vlaneseq
      %v863 = vshrl.u32 %v862, 7
      %v864 = vsub.s32 4, %v863
      %v865 = vrot.slane %v581, %v864
      %v866 = vmul.f32 %v563, %v865
      %v867 = vmul.f32 %v564, %v865
      %v868 = vmul.f32 %v565, %v865
      %v869 = vmul.f32 %v566, %v865
      %v870 = vmul.f32 %v567, %v865
      %v871 = vmul.f32 %v568, %v865
      %v872 = vmul.f32 %v569, %v865
      %v873 = vmul.f32 %v570, %v865
      %v882 = vrot.slane %v866, 1
      %v883 = vrot.slane %v867, 1
      %v884 = vsel %vm628, %v882, %v883
      %v885 = vrot.slane %v868, 1
      %v886 = vsel %vm628, %v883, %v885
      %v887 = vrot.slane %v869, 1
      %v888 = vsel %vm628, %v885, %v887
      %v889 = vrot.slane %v870, 1
      %v890 = vsel %vm628, %v887, %v889
      %v891 = vrot.slane %v871, 1
      %v892 = vsel %vm628, %v889, %v891
      %v893 = vrot.slane %v872, 1
      %v894 = vsel %vm628, %v891, %v893
      %v895 = vrot.slane %v873, 1
      %v896 = vsel %vm628, %v893, %v895
      %v906 = vadd.f32 %v853, %v882
      %v907 = vadd.f32 %v854, %v884
      %v908 = vadd.f32 %v855, %v886
      %v909 = vadd.f32 %v856, %v888
      %v910 = vadd.f32 %v857, %v890
      %v911 = vadd.f32 %v858, %v892
      %v912 = vadd.f32 %v859, %v894
      %v913 = vadd.f32 %v860, %v896
      %v914 = vadd.f32 %v861, %v895
      %v915 = vlaneseq
      %v916 = vshrl.u32 %v915, 7
      %v917 = vsub.s32 5, %v916
      %v918 = vrot.slane %v581, %v917
      %v919 = vmul.f32 %v563, %v918
      %v920 = vmul.f32 %v564, %v918
      %v921 = vmul.f32 %v565, %v918
      %v922 = vmul.f32 %v566, %v918
      %v923 = vmul.f32 %v567, %v918
      %v924 = vmul.f32 %v568, %v918
      %v925 = vmul.f32 %v569, %v918
      %v926 = vmul.f32 %v570, %v918
      %v927 = vmul.f32 %v571, %v918
      %v928 = vmul.f32 %v919, %v753
      %v929 = vmul.f32 %v920, %v755
      %v930 = vmul.f32 %v921, %v757
      %v931 = vmul.f32 %v922, %v759
      %v932 = vmul.f32 %v923, %v761
      %v933 = vmul.f32 %v924, %v763
      %v934 = vmul.f32 %v925, %v765
      %v935 = vmul.f32 %v926, %v767
      %v936 = vmul.f32 %v927, %v766
      %v946 = vrot.slane %v928, 2
      %v947 = vrot.slane %v929, 2
      %v948 = vsel %vm795, %v946, %v947
      %v949 = vrot.slane %v930, 2
      %v950 = vsel %vm795, %v947, %v949
      %v951 = vrot.slane %v931, 2
      %v952 = vsel %vm795, %v949, %v951
      %v953 = vrot.slane %v932, 2
      %v954 = vsel %vm795, %v951, %v953
      %v955 = vrot.slane %v933, 2
      %v956 = vsel %vm795, %v953, %v955
      %v957 = vrot.slane %v934, 2
      %v958 = vsel %vm795, %v955, %v957
      %v959 = vrot.slane %v935, 2
      %v960 = vsel %vm795, %v957, %v959
      %v961 = vrot.slane %v936, 2
      %v962 = vsel %vm795, %v959, %v961
      %v972 = vadd.f32 %v906, %v946
      %v973 = vadd.f32 %v907, %v948
      %v974 = vadd.f32 %v908, %v950
      %v975 = vadd.f32 %v909, %v952
      %v976 = vadd.f32 %v910, %v954
      %v977 = vadd.f32 %v911, %v956
      %v978 = vadd.f32 %v912, %v958
      %v979 = vadd.f32 %v913, %v960
      %v980 = vadd.f32 %v914, %v962
      %v981 = vlaneseq
      %v982 = vshrl.u32 %v981, 7
      %v983 = vsub.s32 6, %v982
      %v984 = vrot.slane %v581, %v983
      %v985 = vmul.f32 %v563, %v984
      %v986 = vmul.f32 %v564, %v984
      %v987 = vmul.f32 %v565, %v984
      %v988 = vmul.f32 %v566, %v984
      %v989 = vmul.f32 %v567, %v984
      %v990 = vmul.f32 %v568, %v984
      %v991 = vmul.f32 %v569, %v984
      %v992 = vmul.f32 %v570, %v984
      %v993 = vmul.f32 %v571, %v984
      %v994 = vmul.f32 %v985, %v629
      %v995 = vmul.f32 %v986, %v631
      %v996 = vmul.f32 %v987, %v633
      %v997 = vmul.f32 %v988, %v635
      %v998 = vmul.f32 %v989, %v637
      %v999 = vmul.f32 %v990, %v639
      %v1000 = vmul.f32 %v991, %v641
      %v1001 = vmul.f32 %v992, %v643
      %v1002 = vmul.f32 %v993, %v642
      %v1003 = vadd.f32 %v972, %v994
      %v1004 = vadd.f32 %v973, %v995
      %v1005 = vadd.f32 %v974, %v996
      %v1006 = vadd.f32 %v975, %v997
      %v1007 = vadd.f32 %v976, %v998
      %v1008 = vadd.f32 %v977, %v999
      %v1009 = vadd.f32 %v978, %v1000
      %v1010 = vadd.f32 %v979, %v1001
      %v1011 = vadd.f32 %v980, %v1002
      %v1012 = vlaneseq
      %v1013 = vshrl.u32 %v1012, 7
      %v1014 = vsub.s32 7, %v1013
      %v1015 = vrot.slane %v581, %v1014
      %v1016 = vmul.f32 %v564, %v1015
      %v1017 = vmul.f32 %v565, %v1015
      %v1018 = vmul.f32 %v566, %v1015
      %v1019 = vmul.f32 %v567, %v1015
      %v1020 = vmul.f32 %v568, %v1015
      %v1021 = vmul.f32 %v569, %v1015
      %v1022 = vmul.f32 %v570, %v1015
      %v1023 = vmul.f32 %v571, %v1015
      %v1032 = vrot.slane %v1016, 1
      %v1033 = vrot.slane %v1017, 1
      %v1034 = vsel %vm628, %v1032, %v1033
      %v1035 = vrot.slane %v1018, 1
      %v1036 = vsel %vm628, %v1033, %v1035
      %v1037 = vrot.slane %v1019, 1
      %v1038 = vsel %vm628, %v1035, %v1037
      %v1039 = vrot.slane %v1020, 1
      %v1040 = vsel %vm628, %v1037, %v1039
      %v1041 = vrot.slane %v1021, 1
      %v1042 = vsel %vm628, %v1039, %v1041
      %v1043 = vrot.slane %v1022, 1
      %v1044 = vsel %vm628, %v1041, %v1043
      %v1045 = vrot.slane %v1023, 1
      %v1046 = vsel %vm628, %v1043, %v1045
      %v1056 = vadd.f32 %v1003, %v1032
      %v1057 = vadd.f32 %v1004, %v1034
      %v1058 = vadd.f32 %v1005, %v1036
      %v1059 = vadd.f32 %v1006, %v1038
      %v1060 = vadd.f32 %v1007, %v1040
      %v1061 = vadd.f32 %v1008, %v1042
      %v1062 = vadd.f32 %v1009, %v1044
      %v1063 = vadd.f32 %v1010, %v1046
      %v1064 = vadd.f32 %v1011, %v1045
      %v1065 = vlaneseq
      %v1066 = vshrl.u32 %v1065, 7
      %v1067 = vsub.s32 0, %v1066
      %v1068 = vrot.slane %v582, %v1067
      %v1069 = vmul.f32 %v564, %v1068
      %v1070 = vmul.f32 %v565, %v1068
      %v1071 = vmul.f32 %v566, %v1068
      %v1072 = vmul.f32 %v567, %v1068
      %v1073 = vmul.f32 %v568, %v1068
      %v1074 = vmul.f32 %v569, %v1068
      %v1075 = vmul.f32 %v570, %v1068
      %v1076 = vmul.f32 %v571, %v1068
      %v1077 = vmul.f32 %v572, %v1068
      %v1078 = vmul.f32 %v1069, %v753
      %v1079 = vmul.f32 %v1070, %v755
      %v1080 = vmul.f32 %v1071, %v757
      %v1081 = vmul.f32 %v1072, %v759
      %v1082 = vmul.f32 %v1073, %v761
      %v1083 = vmul.f32 %v1074, %v763
      %v1084 = vmul.f32 %v1075, %v765
      %v1085 = vmul.f32 %v1076, %v767
      %v1086 = vmul.f32 %v1077, %v766
      %v1096 = vrot.slane %v1078, 2
      %v1097 = vrot.slane %v1079, 2
      %v1098 = vsel %vm795, %v1096, %v1097
      %v1099 = vrot.slane %v1080, 2
      %v1100 = vsel %vm795, %v1097, %v1099
      %v1101 = vrot.slane %v1081, 2
      %v1102 = vsel %vm795, %v1099, %v1101
      %v1103 = vrot.slane %v1082, 2
      %v1104 = vsel %vm795, %v1101, %v1103
      %v1105 = vrot.slane %v1083, 2
      %v1106 = vsel %vm795, %v1103, %v1105
      %v1107 = vrot.slane %v1084, 2
      %v1108 = vsel %vm795, %v1105, %v1107
      %v1109 = vrot.slane %v1085, 2
      %v1110 = vsel %vm795, %v1107, %v1109
      %v1111 = vrot.slane %v1086, 2
      %v1112 = vsel %vm795, %v1109, %v1111
      %v1122 = vadd.f32 %v1056, %v1096
      %v1123 = vadd.f32 %v1057, %v1098
      %v1124 = vadd.f32 %v1058, %v1100
      %v1125 = vadd.f32 %v1059, %v1102
      %v1126 = vadd.f32 %v1060, %v1104
      %v1127 = vadd.f32 %v1061, %v1106
      %v1128 = vadd.f32 %v1062, %v1108
      %v1129 = vadd.f32 %v1063, %v1110
      %v1130 = vadd.f32 %v1064, %v1112
      %v1131 = vld [vmem:[%s6] sm:$0x1]
      %v1133 = vlaneseq
      %v1134 = vshrl.u32 %v1133, 7
      %v1135 = vsub.s32 0, %v1134
      %v1136 = vrot.slane %v1131, %v1135
      %v1138 = vmul.f32 %v1122, %v1136
      %v1139 = vmul.f32 %v1123, %v1136
      %v1140 = vmul.f32 %v1124, %v1136
      %v1141 = vmul.f32 %v1125, %v1136
      %v1142 = vmul.f32 %v1126, %v1136
      %v1143 = vmul.f32 %v1127, %v1136
      %v1144 = vmul.f32 %v1128, %v1136
      %v1145 = vmul.f32 %v1129, %v1136
      %v1146 = vmul.f32 %v1130, %v1136
      %v1147 = vld [vmem:[%s7] sm:$0x1]
      %v1149 = vlaneseq
      %v1150 = vshrl.u32 %v1149, 7
      %v1151 = vsub.s32 0, %v1150
      %v1152 = vrot.slane %v1147, %v1151
      %v1154 = vadd.f32 %v1138, %v1152
      %v1155 = vadd.f32 %v1139, %v1152
      %v1156 = vadd.f32 %v1140, %v1152
      %v1157 = vadd.f32 %v1141, %v1152
      %v1158 = vadd.f32 %v1142, %v1152
      %v1159 = vadd.f32 %v1143, %v1152
      %v1160 = vadd.f32 %v1144, %v1152
      %v1161 = vadd.f32 %v1145, %v1152
      %v1162 = vadd.f32 %v1146, %v1152
      %v1163 = vmax.f32 %v1154, 0.0
      %v1164 = vmax.f32 %v1155, 0.0
      %v1165 = vmax.f32 %v1156, 0.0
      %v1166 = vmax.f32 %v1157, 0.0
      %v1167 = vmax.f32 %v1158, 0.0
      %v1168 = vmax.f32 %v1159, 0.0
      %v1169 = vmax.f32 %v1160, 0.0
      %v1170 = vmax.f32 %v1161, 0.0
      %v1171 = vmax.f32 %v1162, 0.0
      %v1172 = vpack.c.bf16 %v1164, %v1163
      %v1173 = vpack.c.bf16 %v1166, %v1165
      %v1174 = vpack.c.bf16 %v1168, %v1167
      %v1175 = vpack.c.bf16 %v1170, %v1169
      %v1176 = vpack.c.bf16 %v1171, %v1171
      %v1177 = vld [vmem:[%s8] sm:$0xf]
      %v1178 = vld [vmem:[%s8 + $0x4] sm:$0xf]
      %v1179 = vld [vmem:[%s8 + $0x8] sm:$0xf]
      %v1180 = vld [vmem:[%s8 + $0xc] sm:$0xf]
      %v1181 = vld [vmem:[%s8 + $0x10] sm:$0xf]
      %v1182 = vld [vmem:[%s8 + $0x14] sm:$0xf]
      %v1183 = vld [vmem:[%s8 + $0x18] sm:$0xf]
      %v1184 = vld [vmem:[%s8 + $0x1c] sm:$0xf]
      %vm1185 = vsmask.f32 4352
      %v1187 = vshrl.u32 %v1172, 16
      %v1189 = vrot.slane %v1187, 3
      %v1190 = vshll.u32 %v1172, 16
      %v1192 = vrot.slane %v1190, 4
      %v1193 = vor.u32 %v1189, %v1192
      %v1195 = vshrl.u32 %v1173, 16
      %v1197 = vrot.slane %v1195, 3
      %v1198 = vshll.u32 %v1173, 16
      %v1200 = vrot.slane %v1198, 4
      %v1201 = vor.u32 %v1197, %v1200
      %v1202 = vsel %vm1185, %v1193, %v1201
      %v1204 = vshrl.u32 %v1174, 16
      %v1206 = vrot.slane %v1204, 3
      %v1207 = vshll.u32 %v1174, 16
      %v1209 = vrot.slane %v1207, 4
      %v1210 = vor.u32 %v1206, %v1209
      %v1211 = vsel %vm1185, %v1201, %v1210
      %v1213 = vshrl.u32 %v1175, 16
      %v1215 = vrot.slane %v1213, 3
      %v1216 = vshll.u32 %v1175, 16
      %v1218 = vrot.slane %v1216, 4
      %v1219 = vor.u32 %v1215, %v1218
      %v1220 = vsel %vm1185, %v1210, %v1219
      %v1222 = vshrl.u32 %v1176, 16
      %v1224 = vrot.slane %v1222, 3
      %v1225 = vshll.u32 %v1176, 16
      %v1227 = vrot.slane %v1225, 4
      %v1228 = vor.u32 %v1224, %v1227
      %v1229 = vsel %vm1185, %v1219, %v1228
      %v1238 = vunpack.c.l.b16 %v1177
      %v1239 = vunpack.c.l.b16 %v1178
      %v1240 = vunpack.c.l.b16 %v1179
      %v1241 = vunpack.c.l.b16 %v1180
      %v1242 = vunpack.c.l.b16 %v1181
      %v1243 = vunpack.c.l.b16 %v1182
      %v1244 = vunpack.c.l.b16 %v1183
      %v1245 = vunpack.c.l.b16 %v1184
      %v1246 = vpack.c.b16 %v1239, %v1238
      %v1247 = vpack.c.b16 %v1241, %v1240
      %v1248 = vpack.c.b16 %v1243, %v1242
      %v1249 = vpack.c.b16 %v1245, %v1244
      %v1255 = vsel %vm540, %v1202, 0
      %v1258 = vsel %vm540, %v1211, 0
      %v1261 = vsel %vm540, %v1220, 0
      %v1264 = vsel %vm540, %v1229, 0
      %1266 = vmatprep.subr.bf16.mxu0 0
      %1267 = vmatpush1.bf16.msra.mxu0 %v1246
      %1268 = vmatprep.subr.bf16.mxu0 0
      %1269 = vmatpush1.bf16.msra.mxu0 %v1247
      %1270 = vmatprep.subr.bf16.mxu0 0
      %1271 = vmatpush1.bf16.msra.mxu0 %v1248
      %1272 = vmatprep.subr.bf16.mxu0 0
      %1273 = vmatpush1.bf16.msra.mxu0 %v1249
      %1274 = vmatprep.subr.bf16.mxu0 0
      %1275 = vmatpush1.bf16.msra.mxu0 0
      %1276 = vmatprep.subr.bf16.mxu0 0
      %1277 = vmatpush1.bf16.msra.mxu0 0
      %1278 = vmatprep.subr.bf16.mxu0 0
      %1279 = vmatpush1.bf16.msra.mxu0 0
      %1280 = vmatprep.subr.bf16.mxu0 0
      %1281 = vmatpush1.bf16.msra.mxu0 0
      %1282 = vmatprep.subr.bf16.mxu0 0
      %1283 = vmatpush1.bf16.msra.mxu0 0
      %1284 = vmatprep.subr.bf16.mxu0 0
      %1285 = vmatpush1.bf16.msra.mxu0 0
      %1286 = vmatprep.subr.bf16.mxu0 0
      %1287 = vmatpush1.bf16.msra.mxu0 0
      %1288 = vmatprep.subr.bf16.mxu0 0
      %1289 = vmatpush1.bf16.msra.mxu0 0
      %1290 = vmatprep.subr.bf16.mxu0 0
      %1291 = vmatpush1.bf16.msra.mxu0 0
      %1292 = vmatprep.subr.bf16.mxu0 0
      %1293 = vmatpush1.bf16.msra.mxu0 0
      %1294 = vmatprep.subr.bf16.mxu0 0
      %1295 = vmatpush1.bf16.msra.mxu0 0
      %1296 = vmatprep.subr.bf16.mxu0 0
      %1297 = vmatpush1.bf16.msra.mxu0 0
      %1298 = vmatprep.mubr.bf16.mxu0 0
      %1299 = vmatmul.mubr.bf16.gmra.mrb[0].mxu0 %v1255
      %v1300 = vpop.f32.mrb[0].mxu0
      %v1301 = vadd.f32 0.0, %v1300
      %v1302 = vpop.f32.mrb[0].mxu0
      %v1303 = vpop.f32.mrb[0].mxu0
      %v1304 = vadd.f32 0.0, %v1303
      %v1305 = vpop.f32.mrb[0].mxu0
      %1306 = vmatprep.mubr.bf16.mxu0 0
      %1307 = vmatmul.mubr.bf16.gmra.mrb[0].mxu0 %v1258
      %v1308 = vpop.f32.mrb[0].mxu0
      %v1309 = vadd.f32 0.0, %v1308
      %v1310 = vpop.f32.mrb[0].mxu0
      %v1311 = vpop.f32.mrb[0].mxu0
      %v1312 = vadd.f32 0.0, %v1311
      %v1313 = vpop.f32.mrb[0].mxu0
      %1314 = vmatprep.mubr.bf16.mxu0 0
      %1315 = vmatmul.mubr.bf16.gmra.mrb[0].mxu0 %v1261
      %v1316 = vpop.f32.mrb[0].mxu0
      %v1317 = vadd.f32 0.0, %v1316
      %v1318 = vpop.f32.mrb[0].mxu0
      %v1319 = vpop.f32.mrb[0].mxu0
      %v1320 = vadd.f32 0.0, %v1319
      %v1321 = vpop.f32.mrb[0].mxu0
      %1322 = vmatprep.mubr.bf16.mxu0 0
      %1323 = vmatmul.mubr.bf16.gmra.mrb[0].mxu0 %v1264
      %v1324 = vpop.f32.mrb[0].mxu0
      %v1325 = vadd.f32 0.0, %v1324
      %v1326 = vpop.f32.mrb[0].mxu0
      %v1327 = vpop.f32.mrb[0].mxu0
      %v1328 = vadd.f32 0.0, %v1327
      %v1329 = vpop.f32.mrb[0].mxu0
      %1330 = vdwg.mxu0
      %v1331 = vld [vmem:[%s9] sm:$0x1]
      %v1333 = vlaneseq
      %v1334 = vshrl.u32 %v1333, 7
      %v1335 = vsub.s32 0, %v1334
      %v1336 = vrot.slane %v1331, %v1335
      %v1338 = vmul.f32 %v1301, %v1336
      %v1339 = vmul.f32 %v1304, %v1336
      %v1340 = vmul.f32 %v1309, %v1336
      %v1341 = vmul.f32 %v1312, %v1336
      %v1342 = vmul.f32 %v1317, %v1336
      %v1343 = vmul.f32 %v1320, %v1336
      %v1344 = vmul.f32 %v1325, %v1336
      %v1345 = vmul.f32 %v1328, %v1336
      %v1346 = vld [vmem:[%s10] sm:$0x1]
      %v1348 = vlaneseq
      %v1349 = vshrl.u32 %v1348, 7
      %v1350 = vsub.s32 0, %v1349
      %v1351 = vrot.slane %v1346, %v1350
      %v1353 = vadd.f32 %v1338, %v1351
      %v1354 = vadd.f32 %v1339, %v1351
      %v1355 = vadd.f32 %v1340, %v1351
      %v1356 = vadd.f32 %v1341, %v1351
      %v1357 = vadd.f32 %v1342, %v1351
      %v1358 = vadd.f32 %v1343, %v1351
      %v1359 = vadd.f32 %v1344, %v1351
      %v1360 = vadd.f32 %v1345, %v1351
      %v1361 = vunpack.c.l.bf16 %v388
      %v1362 = vunpack.c.l.bf16 %v389
      %v1363 = vunpack.c.l.bf16 %v390
      %v1364 = vunpack.c.l.bf16 %v391
      %v1365 = vunpack.c.l.bf16 %v392
      %v1366 = vunpack.c.l.bf16 %v393
      %v1367 = vunpack.c.l.bf16 %v394
      %v1368 = vunpack.c.l.bf16 %v395
      %v1369 = vadd.f32 %v1353, %v1361
      %v1370 = vadd.f32 %v1354, %v1362
      %v1371 = vadd.f32 %v1355, %v1363
      %v1372 = vadd.f32 %v1356, %v1364
      %v1373 = vadd.f32 %v1357, %v1365
      %v1374 = vadd.f32 %v1358, %v1366
      %v1375 = vadd.f32 %v1359, %v1367
      %v1376 = vadd.f32 %v1360, %v1368
      %v1377 = vmax.f32 %v1369, 0.0
      %v1378 = vmax.f32 %v1370, 0.0
      %v1379 = vmax.f32 %v1371, 0.0
      %v1380 = vmax.f32 %v1372, 0.0
      %v1381 = vmax.f32 %v1373, 0.0
      %v1382 = vmax.f32 %v1374, 0.0
      %v1383 = vmax.f32 %v1375, 0.0
      %v1384 = vmax.f32 %v1376, 0.0
      %v1385 = vpack.c.bf16 %v1378, %v1377
      %v1386 = vpack.c.bf16 %v1380, %v1379
      %v1387 = vpack.c.bf16 %v1382, %v1381
      %v1388 = vpack.c.bf16 %v1384, %v1383
      %v1393 = vunpack.c.l.b16 %v1385
      %v1394 = vunpack.c.h.b16 %v1385
      %v1395 = vunpack.c.l.b16 %v1386
      %v1396 = vunpack.c.h.b16 %v1386
      %v1397 = vunpack.c.l.b16 %v1387
      %v1398 = vunpack.c.h.b16 %v1387
      %v1399 = vunpack.c.l.b16 %v1388
      %v1400 = vunpack.c.h.b16 %v1388
      %v1401 = vpack.c.b16 %v1393, %v1393
      %v1402 = vpack.c.b16 %v1394, %v1394
      %v1403 = vpack.c.b16 %v1395, %v1395
      %v1404 = vpack.c.b16 %v1396, %v1396
      %v1405 = vpack.c.b16 %v1397, %v1397
      %v1406 = vpack.c.b16 %v1398, %v1398
      %v1407 = vpack.c.b16 %v1399, %v1399
      %v1408 = vpack.c.b16 %v1400, %v1400
      %vm1417 = vcmask 125952
      %1418 = vst.msk [vmem:[%s386] sm:$0xf] %vm1417, %v1401
      %1419 = vst.msk [vmem:[%s386 + $0x4] sm:$0xf] %vm1417, %v1402
      %1420 = vst.msk [vmem:[%s386 + $0x8] sm:$0xf] %vm1417, %v1403
      %1421 = vst.msk [vmem:[%s386 + $0xc] sm:$0xf] %vm1417, %v1404
      %1422 = vst.msk [vmem:[%s386 + $0x10] sm:$0xf] %vm1417, %v1405
      %1423 = vst.msk [vmem:[%s386 + $0x14] sm:$0xf] %vm1417, %v1406
      %1424 = vst.msk [vmem:[%s386 + $0x18] sm:$0xf] %vm1417, %v1407
      %1425 = vst.msk [vmem:[%s386 + $0x1c] sm:$0xf] %vm1417, %v1408
      %p1426 = scmp.lt.s32.totalorder %s22, 1
      %s1427 = scalar_select %p1426, %s22, 1
      %s1428 = smul.addr %s1427, 8
      %s1429 = smul.addr %s1428, 4
      %s1430 = scalar_lea.vmem %s11, %s1429
      // Predicated region
      $region65: #{gemini_df_resnet_forward.13} parent=63 // pred_check
        %p1431 = pneg %p276
      $region66: #{gemini_df_resnet_forward.13} parent=63 // pred_check_branch
        %1433 = sbr.rel (%p1431) target = $region68
      $region67: #{gemini_df_resnet_forward.13} parent=63 // pred_region
        _
      $region68: #{gemini_df_resnet_forward.13} parent=63 // pred_fallthru
        _
    $region64: #{gemini_df_resnet_forward.13} parent=5 // pred_fallthru
      _
    %p1434 = scmp.le.s32.totalorder 2, %s17
    // Predicated region
    $region69: #{gemini_df_resnet_forward.13} parent=5 // pred_check
      %p1435 = pneg %p1434
    $region70: #{gemini_df_resnet_forward.13} parent=5 // pred_check_branch
      %1437 = sbr.rel (%p1435) target = $region72
    $region71: #{gemini_df_resnet_forward.13} parent=5 // pred_region
      %s1438 = ssub.s32 %s17, 2
      // Predicated region
      $region73: #{gemini_df_resnet_forward.13} parent=71 // pred_check
        %p1439 = pneg %p282
      $region74: #{gemini_df_resnet_forward.13} parent=71 // pred_check_branch
        %1441 = sbr.rel (%p1439) target = $region76
      $region75: #{gemini_df_resnet_forward.13} parent=71 // pred_region
        %p1442 = scmp.lt.s32.totalorder %s23, 1
        %s1443 = scalar_select %p1442, %s23, 1
        %s1444 = smul.addr %s1443, 8
        %s1445 = smul.addr %s1444, 4
        %s1446 = scalar_lea.vmem %s11, %s1445
      $region76: #{gemini_df_resnet_forward.13} parent=71 // pred_fallthru
        _
    $region72: #{gemini_df_resnet_forward.13} parent=5 // pred_fallthru
      _
  $region6: #{gemini_df_resnet_forward.13} parent=0 // loop_footer
    %s21 = sadd.s32 1, %s17
  $region7: #{gemini_df_resnet_forward.13} parent=0 // loop_footer_branch
    %16 = sbr.rel target = $region3
  $region8: #{gemini_df_resnet_forward.13} parent=0 // loop_exit
    _

// kernel: gemini_df_resnet_forward.11
$region0: #{gemini_df_resnet_forward.11}
  #allocation0 [shape = 'u32[]', space=smem, size = 0x4, offset = 0x4, fixed_abs, tag = 'smem constant byte address 0x4 - core index']
  #allocation1 [shape = 'u32[144,128]{1,0:T(1,128)}', space=vmem, size = 0x12000, scoped, tag = 'internal scratch']
  #allocation2 [shape = 'f32[160,1]{1,0:T(8,128)}', space=vmem, size = 0x14000, scoped, tag = 'scratch operand']
  %s0 = inlined_call_operand.vmem [shape: f32[2,128,1], index: 0, kind: input, shape index: {}]
  %s1 = inlined_call_operand.vmem [shape: f32[128,2], index: 1, kind: input, shape index: {}]
  %s2 = inlined_call_operand.vmem [shape: f32[9,16], index: 2, kind: input, shape index: {}]
  %s3 = inlined_call_operand.vmem [shape: f32[1,16], index: 3, kind: input, shape index: {}]
  %s4 = inlined_call_operand.vmem [shape: f32[1,16], index: 4, kind: input, shape index: {}]
  %s5 = inlined_call_operand.vmem [shape: bf16[2,128,16], index: 5, kind: output, shape index: {}]
  %s6 = sld [smem:[#allocation0]]
  $region53: #{gemini_df_resnet_forward.11} parent=0
    _
  %s8 = ssub.s32 1, %s6
  %s9 = scalar_select 0, %s8, %s6
  loop: start=0, step=1, limit=4
  $region2: #{gemini_df_resnet_forward.11} parent=0 // loop_pre_header
    _
  $region3: #{gemini_df_resnet_forward.11} parent=0 // loop_header
    %s11 = sphi 0, %s15
    %p12 = scmp.ge.s32.totalorder %s11, 4
    %s21 = sphi 0, %s23
    %s24 = sphi 0, %s21
    %s25 = sphi 0, %s24
    %s41 = sphi 0, %s25
    %s45 = sphi 0, %s45
    %s47 = sphi 0, %s45
    %s48 = sphi 0, %s47
    %s62 = sphi 0, %s48
    %s66 = sphi 0, %s66
    %s68 = sphi 0, %s66
    %s69 = sphi 0, %s68
    %s83 = sphi 0, %s69
    %s87 = sphi 0, %s87
    %s89 = sphi 0, %s87
    %s90 = sphi 0, %s89
    %s104 = sphi 0, %s90
    %s108 = sphi 0, %s108
    %s110 = sphi 0, %s108
    %s111 = sphi 0, %s110
    %s125 = sphi 0, %s111
    %s131 = sphi 0, %s133
    %s134 = sphi 0, %s131
    %s135 = sphi 0, %s134
    %s151 = sphi 0, %s135
  $region4: #{gemini_df_resnet_forward.11} parent=0 // loop_header_branch
    %14 = sbr.rel (%p12) target = $region8
  $region5: #{gemini_df_resnet_forward.11} parent=0 // loop_body
    %s16 = ssub.s32 %s11, 1
    %s17 = ssub.s32 %s11, 2
    %s18 = sadd.s32 %s11, 1
    %s19 = ssub.s32 %s11, %s18
    %p20 = scmp.eq.s32.totalorder %s19, 0
    %s22 = sadd.s32 %s21, 1
    %s23 = scalar_select %p20, %s21, %s22
    %p26 = pneg %p20
    %p27 = scmp.eq.s32.totalorder %s11, 1
    %p28 = por %p26, %p27
    %p29 = scmp.ne.s32.totalorder %s21, %s24
    %p30 = scmp.eq.s32.totalorder %s11, 0
    %p31 = por %p29, %p30
    %p32 = scmp.ne.s32.totalorder %s21, %s24
    %p33 = scmp.eq.s32.totalorder %s16, 1
    %p34 = por %p32, %p33
    %p35 = scmp.ne.s32.totalorder %s24, %s25
    %p36 = scmp.eq.s32.totalorder %s16, 0
    %p37 = por %p35, %p36
    %p38 = scmp.ne.s32.totalorder %s24, %s25
    %p39 = scmp.eq.s32.totalorder %s17, 1
    %p40 = por %p38, %p39
    %p42 = scmp.ne.s32.totalorder %s25, %s41
    %p43 = scmp.eq.s32.totalorder %s17, 0
    %p44 = por %p42, %p43
    %s46 = sadd.s32 %s45, 1
    %p49 = scmp.eq.s32.totalorder %s11, 1
    %p50 = scmp.ne.s32.totalorder %s45, %s47
    %p51 = scmp.eq.s32.totalorder %s11, 0
    %p52 = por %p50, %p51
    %p53 = scmp.ne.s32.totalorder %s45, %s47
    %p54 = scmp.eq.s32.totalorder %s16, 1
    %p55 = por %p53, %p54
    %p56 = scmp.ne.s32.totalorder %s47, %s48
    %p57 = scmp.eq.s32.totalorder %s16, 0
    %p58 = por %p56, %p57
    %p59 = scmp.ne.s32.totalorder %s47, %s48
    %p60 = scmp.eq.s32.totalorder %s17, 1
    %p61 = por %p59, %p60
    %p63 = scmp.ne.s32.totalorder %s48, %s62
    %p64 = scmp.eq.s32.totalorder %s17, 0
    %p65 = por %p63, %p64
    %s67 = sadd.s32 %s66, 1
    %p70 = scmp.eq.s32.totalorder %s11, 1
    %p71 = scmp.ne.s32.totalorder %s66, %s68
    %p72 = scmp.eq.s32.totalorder %s11, 0
    %p73 = por %p71, %p72
    %p74 = scmp.ne.s32.totalorder %s66, %s68
    %p75 = scmp.eq.s32.totalorder %s16, 1
    %p76 = por %p74, %p75
    %p77 = scmp.ne.s32.totalorder %s68, %s69
    %p78 = scmp.eq.s32.totalorder %s16, 0
    %p79 = por %p77, %p78
    %p80 = scmp.ne.s32.totalorder %s68, %s69
    %p81 = scmp.eq.s32.totalorder %s17, 1
    %p82 = por %p80, %p81
    %p84 = scmp.ne.s32.totalorder %s69, %s83
    %p85 = scmp.eq.s32.totalorder %s17, 0
    %p86 = por %p84, %p85
    %s88 = sadd.s32 %s87, 1
    %p91 = scmp.eq.s32.totalorder %s11, 1
    %p92 = scmp.ne.s32.totalorder %s87, %s89
    %p93 = scmp.eq.s32.totalorder %s11, 0
    %p94 = por %p92, %p93
    %p95 = scmp.ne.s32.totalorder %s87, %s89
    %p96 = scmp.eq.s32.totalorder %s16, 1
    %p97 = por %p95, %p96
    %p98 = scmp.ne.s32.totalorder %s89, %s90
    %p99 = scmp.eq.s32.totalorder %s16, 0
    %p100 = por %p98, %p99
    %p101 = scmp.ne.s32.totalorder %s89, %s90
    %p102 = scmp.eq.s32.totalorder %s17, 1
    %p103 = por %p101, %p102
    %p105 = scmp.ne.s32.totalorder %s90, %s104
    %p106 = scmp.eq.s32.totalorder %s17, 0
    %p107 = por %p105, %p106
    %s109 = sadd.s32 %s108, 1
    %p112 = scmp.eq.s32.totalorder %s11, 1
    %p113 = scmp.ne.s32.totalorder %s108, %s110
    %p114 = scmp.eq.s32.totalorder %s11, 0
    %p115 = por %p113, %p114
    %p116 = scmp.ne.s32.totalorder %s108, %s110
    %p117 = scmp.eq.s32.totalorder %s16, 1
    %p118 = por %p116, %p117
    %p119 = scmp.ne.s32.totalorder %s110, %s111
    %p120 = scmp.eq.s32.totalorder %s16, 0
    %p121 = por %p119, %p120
    %p122 = scmp.ne.s32.totalorder %s110, %s111
    %p123 = scmp.eq.s32.totalorder %s17, 1
    %p124 = por %p122, %p123
    %p126 = scmp.ne.s32.totalorder %s111, %s125
    %p127 = scmp.eq.s32.totalorder %s17, 0
    %p128 = por %p126, %p127
    %s129 = ssub.s32 %s11, %s18
    %p130 = scmp.eq.s32.totalorder %s129, 0
    %s132 = sadd.s32 %s131, 1
    %s133 = scalar_select %p130, %s131, %s132
    %p136 = pneg %p130
    %p137 = scmp.eq.s32.totalorder %s11, 1
    %p138 = por %p136, %p137
    %p139 = scmp.ne.s32.totalorder %s131, %s134
    %p140 = scmp.eq.s32.totalorder %s11, 0
    %p141 = por %p139, %p140
    %p142 = scmp.ne.s32.totalorder %s131, %s134
    %p143 = scmp.eq.s32.totalorder %s16, 1
    %p144 = por %p142, %p143
    %p145 = scmp.ne.s32.totalorder %s134, %s135
    %p146 = scmp.eq.s32.totalorder %s16, 0
    %p147 = por %p145, %p146
    %p148 = scmp.ne.s32.totalorder %s134, %s135
    %p149 = scmp.eq.s32.totalorder %s17, 1
    %p150 = por %p148, %p149
    %p152 = scmp.ne.s32.totalorder %s135, %s151
    %p153 = scmp.eq.s32.totalorder %s17, 0
    %p154 = por %p152, %p153
    %p155 = scmp.le.s32.totalorder 1, %s11
    %p156 = scmp.lt.s32.totalorder %s11, 3
    %p157 = pnand %p155, %p156
    %p158 = pneg %p157
    // Predicated region
    $region9: #{gemini_df_resnet_forward.11} parent=5 // pred_check
      _
    $region10: #{gemini_df_resnet_forward.11} parent=5 // pred_check_branch
      %160 = sbr.rel (%p157) target = $region12
    $region11: #{gemini_df_resnet_forward.11} parent=5 // pred_region
      %s161 = ssub.s32 %s11, 1
      // Predicated region
      $region13: #{gemini_df_resnet_forward.11} parent=11 // pred_check
        %p162 = pneg %p58
      $region14: #{gemini_df_resnet_forward.11} parent=11 // pred_check_branch
        %164 = sbr.rel (%p162) target = $region16
      $region15: #{gemini_df_resnet_forward.11} parent=11 // pred_region
        _
      $region16: #{gemini_df_resnet_forward.11} parent=11 // pred_fallthru
        _
      // Predicated region
      $region17: #{gemini_df_resnet_forward.11} parent=11 // pred_check
        %p165 = pneg %p79
      $region18: #{gemini_df_resnet_forward.11} parent=11 // pred_check_branch
        %167 = sbr.rel (%p165) target = $region20
      $region19: #{gemini_df_resnet_forward.11} parent=11 // pred_region
        _
      $region20: #{gemini_df_resnet_forward.11} parent=11 // pred_fallthru
        _
      // Predicated region
      $region21: #{gemini_df_resnet_forward.11} parent=11 // pred_check
        %p168 = pneg %p100
      $region22: #{gemini_df_resnet_forward.11} parent=11 // pred_check_branch
        %170 = sbr.rel (%p168) target = $region24
      $region23: #{gemini_df_resnet_forward.11} parent=11 // pred_region
        _
      $region24: #{gemini_df_resnet_forward.11} parent=11 // pred_fallthru
        _
      // Predicated region
      $region25: #{gemini_df_resnet_forward.11} parent=11 // pred_check
        %p171 = pneg %p121
      $region26: #{gemini_df_resnet_forward.11} parent=11 // pred_check_branch
        %173 = sbr.rel (%p171) target = $region28
      $region27: #{gemini_df_resnet_forward.11} parent=11 // pred_region
        _
      $region28: #{gemini_df_resnet_forward.11} parent=11 // pred_fallthru
        _
    $region12: #{gemini_df_resnet_forward.11} parent=5 // pred_fallthru
      _
    %p174 = scmp.lt.s32.totalorder %s11, 2
    // Predicated region
    $region29: #{gemini_df_resnet_forward.11} parent=5 // pred_check
      %p175 = pneg %p174
    $region30: #{gemini_df_resnet_forward.11} parent=5 // pred_check_branch
      %177 = sbr.rel (%p175) target = $region32
    $region31: #{gemini_df_resnet_forward.11} parent=5 // pred_region
      // Predicated region
      $region33: #{gemini_df_resnet_forward.11} parent=31 // pred_check
        %p178 = pneg %p31
      $region34: #{gemini_df_resnet_forward.11} parent=31 // pred_check_branch
        %180 = sbr.rel (%p178) target = $region36
      $region35: #{gemini_df_resnet_forward.11} parent=31 // pred_region
        %p181 = scmp.lt.s32.totalorder %s11, 1
        %s182 = scalar_select %p181, %s11, 1
        %s183 = smul.addr %s182, 16
        %s184 = smul.addr %s183, 8
        %s185 = scalar_lea.vmem %s0, %s184
      $region36: #{gemini_df_resnet_forward.11} parent=31 // pred_fallthru
        _
    $region32: #{gemini_df_resnet_forward.11} parent=5 // pred_fallthru
      _
    %p186 = scmp.le.s32.totalorder 1, %s11
    %p187 = scmp.lt.s32.totalorder %s11, 3
    %p188 = pnand %p186, %p187
    %p189 = pneg %p188
    // Predicated region
    $region37: #{gemini_df_resnet_forward.11} parent=5 // pred_check
      _
    $region38: #{gemini_df_resnet_forward.11} parent=5 // pred_check_branch
      %191 = sbr.rel (%p188) target = $region40
    $region39: #{gemini_df_resnet_forward.11} parent=5 // pred_region
      %s192 = ssub.s32 %s11, 1
      %p193 = scmp.lt.s32.totalorder %s16, 1
      %s194 = scalar_select %p193, %s16, 1
      %s195 = smul.addr %s194, 16
      %s196 = smul.addr %s195, 8
      %s197 = scalar_lea.vmem %s0, %s196
      %p198 = pneg %p37
      %p199 = pneg %p34
      %p200 = pneg %p58
      %p201 = pneg %p55
      %p202 = pneg %p79
      %p203 = pneg %p76
      %p204 = pneg %p100
      %p205 = pneg %p97
      %p206 = pneg %p121
      %p207 = pneg %p118
      %p208 = pneg %p147
      %p209 = pneg %p144
      %p210 = scmp.lt.s32.totalorder %s16, 1
      %s211 = scalar_select %p210, %s16, 1
      %s212 = smul.addr %s211, 16
      %s213 = smul.addr %s212, 4
      %s214 = scalar_lea.vmem %s5, %s213
      %p215 = scmp.lt.s32.totalorder %s16, 1
      %s216 = scalar_select %p215, %s16, 1
      %s217 = smul.addr %s216, 16
      %s218 = smul.addr %s217, 8
      %s219 = scalar_lea.vmem %s0, %s218
      %p220 = scmp.lt.s32.totalorder %s16, 1
      %s221 = scalar_select %p220, %s16, 1
      %s222 = smul.addr %s221, 16
      %s223 = smul.addr %s222, 4
      %s224 = scalar_lea.vmem %s5, %s223
      %vm225 = vcmask 7168
      %226 = vst.msk [vmem:[#allocation2] sm:$0xff] %vm225, 0.0
      %227 = vst.msk [vmem:[#allocation2 + $0x8] sm:$0xff] %vm225, 0.0
      %228 = vst.msk [vmem:[#allocation2 + $0x10] sm:$0xff] %vm225, 0.0
      %229 = vst.msk [vmem:[#allocation2 + $0x18] sm:$0xff] %vm225, 0.0
      %230 = vst.msk [vmem:[#allocation2 + $0x20] sm:$0xff] %vm225, 0.0
      %231 = vst.msk [vmem:[#allocation2 + $0x28] sm:$0xff] %vm225, 0.0
      %232 = vst.msk [vmem:[#allocation2 + $0x30] sm:$0xff] %vm225, 0.0
      %233 = vst.msk [vmem:[#allocation2 + $0x38] sm:$0xff] %vm225, 0.0
      %234 = vst.msk [vmem:[#allocation2 + $0x40] sm:$0xff] %vm225, 0.0
      %235 = vst.msk [vmem:[#allocation2 + $0x48] sm:$0xff] %vm225, 0.0
      %236 = vst.msk [vmem:[#allocation2 + $0x50] sm:$0xff] %vm225, 0.0
      %237 = vst.msk [vmem:[#allocation2 + $0x58] sm:$0xff] %vm225, 0.0
      %238 = vst.msk [vmem:[#allocation2 + $0x60] sm:$0xff] %vm225, 0.0
      %239 = vst.msk [vmem:[#allocation2 + $0x68] sm:$0xff] %vm225, 0.0
      %240 = vst.msk [vmem:[#allocation2 + $0x70] sm:$0xff] %vm225, 0.0
      %241 = vst.msk [vmem:[#allocation2 + $0x78] sm:$0xff] %vm225, 0.0
      %242 = vst.msk [vmem:[#allocation2 + $0x80] sm:$0xff] %vm225, 0.0
      %243 = vst.msk [vmem:[#allocation2 + $0x88] sm:$0xff] %vm225, 0.0
      %244 = vst.msk [vmem:[#allocation2 + $0x90] sm:$0xff] %vm225, 0.0
      %245 = vst.msk [vmem:[#allocation2 + $0x98] sm:$0xff] %vm225, 0.0
      %v246 = vld [vmem:[%s219] sm:$0xff]
      %v247 = vld [vmem:[%s219 + $0x8] sm:$0xff]
      %v248 = vld [vmem:[%s219 + $0x10] sm:$0xff]
      %v249 = vld [vmem:[%s219 + $0x18] sm:$0xff]
      %v250 = vld [vmem:[%s219 + $0x20] sm:$0xff]
      %v251 = vld [vmem:[%s219 + $0x28] sm:$0xff]
      %v252 = vld [vmem:[%s219 + $0x30] sm:$0xff]
      %v253 = vld [vmem:[%s219 + $0x38] sm:$0xff]
      %v254 = vld [vmem:[%s219 + $0x40] sm:$0xff]
      %v255 = vld [vmem:[%s219 + $0x48] sm:$0xff]
      %v256 = vld [vmem:[%s219 + $0x50] sm:$0xff]
      %v257 = vld [vmem:[%s219 + $0x58] sm:$0xff]
      %v258 = vld [vmem:[%s219 + $0x60] sm:$0xff]
      %v259 = vld [vmem:[%s219 + $0x68] sm:$0xff]
      %v260 = vld [vmem:[%s219 + $0x70] sm:$0xff]
      %v261 = vld [vmem:[%s219 + $0x78] sm:$0xff]
      %262 = vst.msk [vmem:[#allocation2 + $0x10] sm:$0xff] %vm225, %v246
      %263 = vst.msk [vmem:[#allocation2 + $0x18] sm:$0xff] %vm225, %v247
      %264 = vst.msk [vmem:[#allocation2 + $0x20] sm:$0xff] %vm225, %v248
      %265 = vst.msk [vmem:[#allocation2 + $0x28] sm:$0xff] %vm225, %v249
      %266 = vst.msk [vmem:[#allocation2 + $0x30] sm:$0xff] %vm225, %v250
      %267 = vst.msk [vmem:[#allocation2 + $0x38] sm:$0xff] %vm225, %v251
      %268 = vst.msk [vmem:[#allocation2 + $0x40] sm:$0xff] %vm225, %v252
      %269 = vst.msk [vmem:[#allocation2 + $0x48] sm:$0xff] %vm225, %v253
      %270 = vst.msk [vmem:[#allocation2 + $0x50] sm:$0xff] %vm225, %v254
      %271 = vst.msk [vmem:[#allocation2 + $0x58] sm:$0xff] %vm225, %v255
      %272 = vst.msk [vmem:[#allocation2 + $0x60] sm:$0xff] %vm225, %v256
      %273 = vst.msk [vmem:[#allocation2 + $0x68] sm:$0xff] %vm225, %v257
      %274 = vst.msk [vmem:[#allocation2 + $0x70] sm:$0xff] %vm225, %v258
      %275 = vst.msk [vmem:[#allocation2 + $0x78] sm:$0xff] %vm225, %v259
      %276 = vst.msk [vmem:[#allocation2 + $0x80] sm:$0xff] %vm225, %v260
      %277 = vst.msk [vmem:[#allocation2 + $0x88] sm:$0xff] %vm225, %v261
      %v278 = vld [vmem:[#allocation2] sm:$0xff]
      %v279 = vld [vmem:[#allocation2 + $0x8] sm:$0xff]
      %v280 = vld [vmem:[#allocation2 + $0x10] sm:$0xff]
      %v281 = vld [vmem:[#allocation2 + $0x18] sm:$0xff]
      %v282 = vld [vmem:[#allocation2 + $0x20] sm:$0xff]
      %v283 = vld [vmem:[#allocation2 + $0x28] sm:$0xff]
      %v284 = vld [vmem:[#allocation2 + $0x30] sm:$0xff]
      %v285 = vld [vmem:[#allocation2 + $0x38] sm:$0xff]
      %v286 = vld [vmem:[#allocation2 + $0x40] sm:$0xff]
      %v287 = vld [vmem:[#allocation2 + $0x48] sm:$0xff]
      %v288 = vld [vmem:[#allocation2 + $0x50] sm:$0xff]
      %v289 = vld [vmem:[#allocation2 + $0x58] sm:$0xff]
      %v290 = vld [vmem:[#allocation2 + $0x60] sm:$0xff]
      %v291 = vld [vmem:[#allocation2 + $0x68] sm:$0xff]
      %v292 = vld [vmem:[#allocation2 + $0x70] sm:$0xff]
      %v293 = vld [vmem:[#allocation2 + $0x78] sm:$0xff]
      %v294 = vld [vmem:[#allocation2 + $0x80] sm:$0xff]
      %v295 = vld [vmem:[#allocation2 + $0x88] sm:$0xff]
      %v296 = vld [vmem:[#allocation2 + $0x90] sm:$0xff]
      %v297 = vld [vmem:[#allocation2 + $0x98] sm:$0xff]
      %v298 = vld [vmem:[%s1] sm:$0xff]
      %v299 = vld [vmem:[%s1 + $0x8] sm:$0xff]
      %v300 = vld [vmem:[%s1 + $0x10] sm:$0xff]
      %v301 = vld [vmem:[%s1 + $0x18] sm:$0xff]
      %v302 = vld [vmem:[%s1 + $0x20] sm:$0xff]
      %v303 = vld [vmem:[%s1 + $0x28] sm:$0xff]
      %v304 = vld [vmem:[%s1 + $0x30] sm:$0xff]
      %v305 = vld [vmem:[%s1 + $0x38] sm:$0xff]
      %v306 = vld [vmem:[%s1 + $0x40] sm:$0xff]
      %v307 = vld [vmem:[%s1 + $0x48] sm:$0xff]
      %v308 = vld [vmem:[%s1 + $0x50] sm:$0xff]
      %v309 = vld [vmem:[%s1 + $0x58] sm:$0xff]
      %v310 = vld [vmem:[%s1 + $0x60] sm:$0xff]
      %v311 = vld [vmem:[%s1 + $0x68] sm:$0xff]
      %v312 = vld [vmem:[%s1 + $0x70] sm:$0xff]
      %v313 = vld [vmem:[%s1 + $0x78] sm:$0xff]
      %v314 = vld [vmem:[%s2] sm:$0xff]
      %v315 = vld [vmem:[%s2 + $0x8] sm:$0x1]
      %317 = vset.pattern.permute.xlu0 0
      %318 = vperm.xlu0 %317, %v278
      %v319 = vpop.permute.xlu0 %318
      %322 = vset.pattern.permute.xlu0 0
      %323 = vperm.xlu0 %322, %v279
      %v324 = vpop.permute.xlu0 %323
      %327 = vset.pattern.permute.xlu0 0
      %328 = vperm.xlu0 %327, %v280
      %v329 = vpop.permute.xlu0 %328
      %332 = vset.pattern.permute.xlu0 0
      %333 = vperm.xlu0 %332, %v281
      %v334 = vpop.permute.xlu0 %333
      %337 = vset.pattern.permute.xlu0 0
      %338 = vperm.xlu0 %337, %v282
      %v339 = vpop.permute.xlu0 %338
      %342 = vset.pattern.permute.xlu0 0
      %343 = vperm.xlu0 %342, %v283
      %v344 = vpop.permute.xlu0 %343
      %347 = vset.pattern.permute.xlu0 0
      %348 = vperm.xlu0 %347, %v284
      %v349 = vpop.permute.xlu0 %348
      %352 = vset.pattern.permute.xlu0 0
      %353 = vperm.xlu0 %352, %v285
      %v354 = vpop.permute.xlu0 %353
      %357 = vset.pattern.permute.xlu0 0
      %358 = vperm.xlu0 %357, %v286
      %v359 = vpop.permute.xlu0 %358
      %362 = vset.pattern.permute.xlu0 0
      %363 = vperm.xlu0 %362, %v287
      %v364 = vpop.permute.xlu0 %363
      %367 = vset.pattern.permute.xlu0 0
      %368 = vperm.xlu0 %367, %v288
      %v369 = vpop.permute.xlu0 %368
      %372 = vset.pattern.permute.xlu0 0
      %373 = vperm.xlu0 %372, %v289
      %v374 = vpop.permute.xlu0 %373
      %377 = vset.pattern.permute.xlu0 0
      %378 = vperm.xlu0 %377, %v290
      %v379 = vpop.permute.xlu0 %378
      %382 = vset.pattern.permute.xlu0 0
      %383 = vperm.xlu0 %382, %v291
      %v384 = vpop.permute.xlu0 %383
      %387 = vset.pattern.permute.xlu0 0
      %388 = vperm.xlu0 %387, %v292
      %v389 = vpop.permute.xlu0 %388
      %392 = vset.pattern.permute.xlu0 0
      %393 = vperm.xlu0 %392, %v293
      %v394 = vpop.permute.xlu0 %393
      %397 = vset.pattern.permute.xlu0 0
      %398 = vperm.xlu0 %397, %v294
      %v399 = vpop.permute.xlu0 %398
      %v401 = vlaneseq
      %v402 = vshrl.u32 %v401, 7
      %v403 = vsub.s32 0, %v402
      %v404 = vrot.slane %v314, %v403
      %v405 = vmul.f32 %v319, %v404
      %v406 = vmul.f32 %v324, %v404
      %v407 = vmul.f32 %v329, %v404
      %v408 = vmul.f32 %v334, %v404
      %v409 = vmul.f32 %v339, %v404
      %v410 = vmul.f32 %v344, %v404
      %v411 = vmul.f32 %v349, %v404
      %v412 = vmul.f32 %v354, %v404
      %v413 = vmul.f32 %v359, %v404
      %v414 = vmul.f32 %v364, %v404
      %v415 = vmul.f32 %v369, %v404
      %v416 = vmul.f32 %v374, %v404
      %v417 = vmul.f32 %v379, %v404
      %v418 = vmul.f32 %v384, %v404
      %v419 = vmul.f32 %v389, %v404
      %v420 = vmul.f32 %v394, %v404
      %v421 = vmul.f32 %v399, %v404
      %423 = vset.pattern.permute.xlu0 0
      %424 = vperm.xlu0 %423, %v298
      %v425 = vpop.permute.xlu0 %424
      %427 = vset.pattern.permute.xlu0 0
      %428 = vperm.xlu0 %427, %v299
      %v429 = vpop.permute.xlu0 %428
      %431 = vset.pattern.permute.xlu0 0
      %432 = vperm.xlu0 %431, %v300
      %v433 = vpop.permute.xlu0 %432
      %435 = vset.pattern.permute.xlu0 0
      %436 = vperm.xlu0 %435, %v301
      %v437 = vpop.permute.xlu0 %436
      %439 = vset.pattern.permute.xlu0 0
      %440 = vperm.xlu0 %439, %v302
      %v441 = vpop.permute.xlu0 %440
      %443 = vset.pattern.permute.xlu0 0
      %444 = vperm.xlu0 %443, %v303
      %v445 = vpop.permute.xlu0 %444
      %447 = vset.pattern.permute.xlu0 0
      %448 = vperm.xlu0 %447, %v304
      %v449 = vpop.permute.xlu0 %448
      %451 = vset.pattern.permute.xlu0 0
      %452 = vperm.xlu0 %451, %v305
      %v453 = vpop.permute.xlu0 %452
      %455 = vset.pattern.permute.xlu0 0
      %456 = vperm.xlu0 %455, %v306
      %v457 = vpop.permute.xlu0 %456
      %459 = vset.pattern.permute.xlu0 0
      %460 = vperm.xlu0 %459, %v307
      %v461 = vpop.permute.xlu0 %460
      %463 = vset.pattern.permute.xlu0 0
      %464 = vperm.xlu0 %463, %v308
      %v465 = vpop.permute.xlu0 %464
      %467 = vset.pattern.permute.xlu0 0
      %468 = vperm.xlu0 %467, %v309
      %v469 = vpop.permute.xlu0 %468
      %471 = vset.pattern.permute.xlu0 0
      %472 = vperm.xlu0 %471, %v310
      %v473 = vpop.permute.xlu0 %472
      %475 = vset.pattern.permute.xlu0 0
      %476 = vperm.xlu0 %475, %v311
      %v477 = vpop.permute.xlu0 %476
      %479 = vset.pattern.permute.xlu0 0
      %480 = vperm.xlu0 %479, %v312
      %v481 = vpop.permute.xlu0 %480
      %483 = vset.pattern.permute.xlu0 0
      %484 = vperm.xlu0 %483, %v313
      %v485 = vpop.permute.xlu0 %484
      %vm486 = vcmask 1046528
      %v487 = vrot.slane %v425, 1
      %v488 = vrot.slane %v429, 1
      %v489 = vsel %vm486, %v487, %v488
      %v490 = vrot.slane %v433, 1
      %v491 = vsel %vm486, %v488, %v490
      %v492 = vrot.slane %v437, 1
      %v493 = vsel %vm486, %v490, %v492
      %v494 = vrot.slane %v441, 1
      %v495 = vsel %vm486, %v492, %v494
      %v496 = vrot.slane %v445, 1
      %v497 = vsel %vm486, %v494, %v496
      %v498 = vrot.slane %v449, 1
      %v499 = vsel %vm486, %v496, %v498
      %v500 = vrot.slane %v453, 1
      %v501 = vsel %vm486, %v498, %v500
      %v502 = vrot.slane %v457, 1
      %v503 = vsel %vm486, %v500, %v502
      %v504 = vrot.slane %v461, 1
      %v505 = vsel %vm486, %v502, %v504
      %v506 = vrot.slane %v465, 1
      %v507 = vsel %vm486, %v504, %v506
      %v508 = vrot.slane %v469, 1
      %v509 = vsel %vm486, %v506, %v508
      %v510 = vrot.slane %v473, 1
      %v511 = vsel %vm486, %v508, %v510
      %v512 = vrot.slane %v477, 1
      %v513 = vsel %vm486, %v510, %v512
      %v514 = vrot.slane %v481, 1
      %v515 = vsel %vm486, %v512, %v514
      %v516 = vrot.slane %v485, 1
      %v517 = vsel %vm486, %v514, %v516
      %v535 = vmul.f32 %v405, %v487
      %v536 = vmul.f32 %v406, %v489
      %v537 = vmul.f32 %v407, %v491
      %v538 = vmul.f32 %v408, %v493
      %v539 = vmul.f32 %v409, %v495
      %v540 = vmul.f32 %v410, %v497
      %v541 = vmul.f32 %v411, %v499
      %v542 = vmul.f32 %v412, %v501
      %v543 = vmul.f32 %v413, %v503
      %v544 = vmul.f32 %v414, %v505
      %v545 = vmul.f32 %v415, %v507
      %v546 = vmul.f32 %v416, %v509
      %v547 = vmul.f32 %v417, %v511
      %v548 = vmul.f32 %v418, %v513
      %v549 = vmul.f32 %v419, %v515
      %v550 = vmul.f32 %v420, %v517
      %v551 = vmul.f32 %v421, %v516
      %v552 = vlaneseq
      %v553 = vshrl.u32 %v552, 7
      %v554 = vsub.s32 1, %v553
      %v555 = vrot.slane %v314, %v554
      %v556 = vmul.f32 %v324, %v555
      %v557 = vmul.f32 %v329, %v555
      %v558 = vmul.f32 %v334, %v555
      %v559 = vmul.f32 %v339, %v555
      %v560 = vmul.f32 %v344, %v555
      %v561 = vmul.f32 %v349, %v555
      %v562 = vmul.f32 %v354, %v555
      %v563 = vmul.f32 %v359, %v555
      %v564 = vmul.f32 %v364, %v555
      %v565 = vmul.f32 %v369, %v555
      %v566 = vmul.f32 %v374, %v555
      %v567 = vmul.f32 %v379, %v555
      %v568 = vmul.f32 %v384, %v555
      %v569 = vmul.f32 %v389, %v555
      %v570 = vmul.f32 %v394, %v555
      %v571 = vmul.f32 %v399, %v555
      %v588 = vrot.slane %v556, 1
      %v589 = vrot.slane %v557, 1
      %v590 = vsel %vm486, %v588, %v589
      %v591 = vrot.slane %v558, 1
      %v592 = vsel %vm486, %v589, %v591
      %v593 = vrot.slane %v559, 1
      %v594 = vsel %vm486, %v591, %v593
      %v595 = vrot.slane %v560, 1
      %v596 = vsel %vm486, %v593, %v595
      %v597 = vrot.slane %v561, 1
      %v598 = vsel %vm486, %v595, %v597
      %v599 = vrot.slane %v562, 1
      %v600 = vsel %vm486, %v597, %v599
      %v601 = vrot.slane %v563, 1
      %v602 = vsel %vm486, %v599, %v601
      %v603 = vrot.slane %v564, 1
      %v604 = vsel %vm486, %v601, %v603
      %v605 = vrot.slane %v565, 1
      %v606 = vsel %vm486, %v603, %v605
      %v607 = vrot.slane %v566, 1
      %v608 = vsel %vm486, %v605, %v607
      %v609 = vrot.slane %v567, 1
      %v610 = vsel %vm486, %v607, %v609
      %v611 = vrot.slane %v568, 1
      %v612 = vsel %vm486, %v609, %v611
      %v613 = vrot.slane %v569, 1
      %v614 = vsel %vm486, %v611, %v613
      %v615 = vrot.slane %v570, 1
      %v616 = vsel %vm486, %v613, %v615
      %v617 = vrot.slane %v571, 1
      %v618 = vsel %vm486, %v615, %v617
      %v636 = vadd.f32 %v535, %v588
      %v637 = vadd.f32 %v536, %v590
      %v638 = vadd.f32 %v537, %v592
      %v639 = vadd.f32 %v538, %v594
      %v640 = vadd.f32 %v539, %v596
      %v641 = vadd.f32 %v540, %v598
      %v642 = vadd.f32 %v541, %v600
      %v643 = vadd.f32 %v542, %v602
      %v644 = vadd.f32 %v543, %v604
      %v645 = vadd.f32 %v544, %v606
      %v646 = vadd.f32 %v545, %v608
      %v647 = vadd.f32 %v546, %v610
      %v648 = vadd.f32 %v547, %v612
      %v649 = vadd.f32 %v548, %v614
      %v650 = vadd.f32 %v549, %v616
      %v651 = vadd.f32 %v550, %v618
      %v652 = vadd.f32 %v551, %v617
      %654 = vset.pattern.permute.xlu0 0
      %655 = vperm.xlu0 %654, %v295
      %v656 = vpop.permute.xlu0 %655
      %v658 = vlaneseq
      %v659 = vshrl.u32 %v658, 7
      %v660 = vsub.s32 2, %v659
      %v661 = vrot.slane %v314, %v660
      %v662 = vmul.f32 %v324, %v661
      %v663 = vmul.f32 %v329, %v661
      %v664 = vmul.f32 %v334, %v661
      %v665 = vmul.f32 %v339, %v661
      %v666 = vmul.f32 %v344, %v661
      %v667 = vmul.f32 %v349, %v661
      %v668 = vmul.f32 %v354, %v661
      %v669 = vmul.f32 %v359, %v661
      %v670 = vmul.f32 %v364, %v661
      %v671 = vmul.f32 %v369, %v661
      %v672 = vmul.f32 %v374, %v661
      %v673 = vmul.f32 %v379, %v661
      %v674 = vmul.f32 %v384, %v661
      %v675 = vmul.f32 %v389, %v661
      %v676 = vmul.f32 %v394, %v661
      %v677 = vmul.f32 %v399, %v661
      %v678 = vmul.f32 %v656, %v661
      %679 = vset.pattern.permute.xlu0 1
      %680 = vperm.xlu0 %679, %v298
      %v681 = vpop.permute.xlu0 %680
      %682 = vset.pattern.permute.xlu0 1
      %683 = vperm.xlu0 %682, %v299
      %v684 = vpop.permute.xlu0 %683
      %685 = vset.pattern.permute.xlu0 1
      %686 = vperm.xlu0 %685, %v300
      %v687 = vpop.permute.xlu0 %686
      %688 = vset.pattern.permute.xlu0 1
      %689 = vperm.xlu0 %688, %v301
      %v690 = vpop.permute.xlu0 %689
      %691 = vset.pattern.permute.xlu0 1
      %692 = vperm.xlu0 %691, %v302
      %v693 = vpop.permute.xlu0 %692
      %694 = vset.pattern.permute.xlu0 1
      %695 = vperm.xlu0 %694, %v303
      %v696 = vpop.permute.xlu0 %695
      %697 = vset.pattern.permute.xlu0 1
      %698 = vperm.xlu0 %697, %v304
      %v699 = vpop.permute.xlu0 %698
      %700 = vset.pattern.permute.xlu0 1
      %701 = vperm.xlu0 %700, %v305
      %v702 = vpop.permute.xlu0 %701
      %703 = vset.pattern.permute.xlu0 1
      %704 = vperm.xlu0 %703, %v306
      %v705 = vpop.permute.xlu0 %704
      %706 = vset.pattern.permute.xlu0 1
      %707 = vperm.xlu0 %706, %v307
      %v708 = vpop.permute.xlu0 %707
      %709 = vset.pattern.permute.xlu0 1
      %710 = vperm.xlu0 %709, %v308
      %v711 = vpop.permute.xlu0 %710
      %712 = vset.pattern.permute.xlu0 1
      %713 = vperm.xlu0 %712, %v309
      %v714 = vpop.permute.xlu0 %713
      %715 = vset.pattern.permute.xlu0 1
      %716 = vperm.xlu0 %715, %v310
      %v717 = vpop.permute.xlu0 %716
      %718 = vset.pattern.permute.xlu0 1
      %719 = vperm.xlu0 %718, %v311
      %v720 = vpop.permute.xlu0 %719
      %721 = vset.pattern.permute.xlu0 1
      %722 = vperm.xlu0 %721, %v312
      %v723 = vpop.permute.xlu0 %722
      %724 = vset.pattern.permute.xlu0 1
      %725 = vperm.xlu0 %724, %v313
      %v726 = vpop.permute.xlu0 %725
      %vm727 = vcmask 1040384
      %v728 = vrot.slane %v681, 7
      %v729 = vrot.slane %v684, 7
      %v730 = vsel %vm727, %v728, %v729
      %v731 = vrot.slane %v687, 7
      %v732 = vsel %vm727, %v729, %v731
      %v733 = vrot.slane %v690, 7
      %v734 = vsel %vm727, %v731, %v733
      %v735 = vrot.slane %v693, 7
      %v736 = vsel %vm727, %v733, %v735
      %v737 = vrot.slane %v696, 7
      %v738 = vsel %vm727, %v735, %v737
      %v739 = vrot.slane %v699, 7
      %v740 = vsel %vm727, %v737, %v739
      %v741 = vrot.slane %v702, 7
      %v742 = vsel %vm727, %v739, %v741
      %v743 = vrot.slane %v705, 7
      %v744 = vsel %vm727, %v741, %v743
      %v745 = vrot.slane %v708, 7
      %v746 = vsel %vm727, %v743, %v745
      %v747 = vrot.slane %v711, 7
      %v748 = vsel %vm727, %v745, %v747
      %v749 = vrot.slane %v714, 7
      %v750 = vsel %vm727, %v747, %v749
      %v751 = vrot.slane %v717, 7
      %v752 = vsel %vm727, %v749, %v751
      %v753 = vrot.slane %v720, 7
      %v754 = vsel %vm727, %v751, %v753
      %v755 = vrot.slane %v723, 7
      %v756 = vsel %vm727, %v753, %v755
      %v757 = vrot.slane %v726, 7
      %v758 = vsel %vm727, %v755, %v757
      %v776 = vmul.f32 %v662, %v728
      %v777 = vmul.f32 %v663, %v730
      %v778 = vmul.f32 %v664, %v732
      %v779 = vmul.f32 %v665, %v734
      %v780 = vmul.f32 %v666, %v736
      %v781 = vmul.f32 %v667, %v738
      %v782 = vmul.f32 %v668, %v740
      %v783 = vmul.f32 %v669, %v742
      %v784 = vmul.f32 %v670, %v744
      %v785 = vmul.f32 %v671, %v746
      %v786 = vmul.f32 %v672, %v748
      %v787 = vmul.f32 %v673, %v750
      %v788 = vmul.f32 %v674, %v752
      %v789 = vmul.f32 %v675, %v754
      %v790 = vmul.f32 %v676, %v756
      %v791 = vmul.f32 %v677, %v758
      %v792 = vmul.f32 %v678, %v757
      %vm810 = vcmask 1045504
      %v811 = vrot.slane %v776, 2
      %v812 = vrot.slane %v777, 2
      %v813 = vsel %vm810, %v811, %v812
      %v814 = vrot.slane %v778, 2
      %v815 = vsel %vm810, %v812, %v814
      %v816 = vrot.slane %v779, 2
      %v817 = vsel %vm810, %v814, %v816
      %v818 = vrot.slane %v780, 2
      %v819 = vsel %vm810, %v816, %v818
      %v820 = vrot.slane %v781, 2
      %v821 = vsel %vm810, %v818, %v820
      %v822 = vrot.slane %v782, 2
      %v823 = vsel %vm810, %v820, %v822
      %v824 = vrot.slane %v783, 2
      %v825 = vsel %vm810, %v822, %v824
      %v826 = vrot.slane %v784, 2
      %v827 = vsel %vm810, %v824, %v826
      %v828 = vrot.slane %v785, 2
      %v829 = vsel %vm810, %v826, %v828
      %v830 = vrot.slane %v786, 2
      %v831 = vsel %vm810, %v828, %v830
      %v832 = vrot.slane %v787, 2
      %v833 = vsel %vm810, %v830, %v832
      %v834 = vrot.slane %v788, 2
      %v835 = vsel %vm810, %v832, %v834
      %v836 = vrot.slane %v789, 2
      %v837 = vsel %vm810, %v834, %v836
      %v838 = vrot.slane %v790, 2
      %v839 = vsel %vm810, %v836, %v838
      %v840 = vrot.slane %v791, 2
      %v841 = vsel %vm810, %v838, %v840
      %v842 = vrot.slane %v792, 2
      %v843 = vsel %vm810, %v840, %v842
      %v861 = vadd.f32 %v636, %v811
      %v862 = vadd.f32 %v637, %v813
      %v863 = vadd.f32 %v638, %v815
      %v864 = vadd.f32 %v639, %v817
      %v865 = vadd.f32 %v640, %v819
      %v866 = vadd.f32 %v641, %v821
      %v867 = vadd.f32 %v642, %v823
      %v868 = vadd.f32 %v643, %v825
      %v869 = vadd.f32 %v644, %v827
      %v870 = vadd.f32 %v645, %v829
      %v871 = vadd.f32 %v646, %v831
      %v872 = vadd.f32 %v647, %v833
      %v873 = vadd.f32 %v648, %v835
      %v874 = vadd.f32 %v649, %v837
      %v875 = vadd.f32 %v650, %v839
      %v876 = vadd.f32 %v651, %v841
      %v877 = vadd.f32 %v652, %v843
      %v878 = vlaneseq
      %v879 = vshrl.u32 %v878, 7
      %v880 = vsub.s32 3, %v879
      %v881 = vrot.slane %v314, %v880
      %v882 = vmul.f32 %v324, %v881
      %v883 = vmul.f32 %v329, %v881
      %v884 = vmul.f32 %v334, %v881
      %v885 = vmul.f32 %v339, %v881
      %v886 = vmul.f32 %v344, %v881
      %v887 = vmul.f32 %v349, %v881
      %v888 = vmul.f32 %v354, %v881
      %v889 = vmul.f32 %v359, %v881
      %v890 = vmul.f32 %v364, %v881
      %v891 = vmul.f32 %v369, %v881
      %v892 = vmul.f32 %v374, %v881
      %v893 = vmul.f32 %v379, %v881
      %v894 = vmul.f32 %v384, %v881
      %v895 = vmul.f32 %v389, %v881
      %v896 = vmul.f32 %v394, %v881
      %v897 = vmul.f32 %v399, %v881
      %v898 = vmul.f32 %v656, %v881
      %v899 = vmul.f32 %v882, %v487
      %v900 = vmul.f32 %v883, %v489
      %v901 = vmul.f32 %v884, %v491
      %v902 = vmul.f32 %v885, %v493
      %v903 = vmul.f32 %v886, %v495
      %v904 = vmul.f32 %v887, %v497
      %v905 = vmul.f32 %v888, %v499
      %v906 = vmul.f32 %v889, %v501
      %v907 = vmul.f32 %v890, %v503
      %v908 = vmul.f32 %v891, %v505
      %v909 = vmul.f32 %v892, %v507
      %v910 = vmul.f32 %v893, %v509
      %v911 = vmul.f32 %v894, %v511
      %v912 = vmul.f32 %v895, %v513
      %v913 = vmul.f32 %v896, %v515
      %v914 = vmul.f32 %v897, %v517
      %v915 = vmul.f32 %v898, %v516
      %v916 = vadd.f32 %v861, %v899
      %v917 = vadd.f32 %v862, %v900
      %v918 = vadd.f32 %v863, %v901
      %v919 = vadd.f32 %v864, %v902
      %v920 = vadd.f32 %v865, %v903
      %v921 = vadd.f32 %v866, %v904
      %v922 = vadd.f32 %v867, %v905
      %v923 = vadd.f32 %v868, %v906
      %v924 = vadd.f32 %v869, %v907
      %v925 = vadd.f32 %v870, %v908
      %v926 = vadd.f32 %v871, %v909
      %v927 = vadd.f32 %v872, %v910
      %v928 = vadd.f32 %v873, %v911
      %v929 = vadd.f32 %v874, %v912
      %v930 = vadd.f32 %v875, %v913
      %v931 = vadd.f32 %v876, %v914
      %v932 = vadd.f32 %v877, %v915
      %v933 = vlaneseq
      %v934 = vshrl.u32 %v933, 7
      %v935 = vsub.s32 4, %v934
      %v936 = vrot.slane %v314, %v935
      %v937 = vmul.f32 %v329, %v936
      %v938 = vmul.f32 %v334, %v936
      %v939 = vmul.f32 %v339, %v936
      %v940 = vmul.f32 %v344, %v936
      %v941 = vmul.f32 %v349, %v936
      %v942 = vmul.f32 %v354, %v936
      %v943 = vmul.f32 %v359, %v936
      %v944 = vmul.f32 %v364, %v936
      %v945 = vmul.f32 %v369, %v936
      %v946 = vmul.f32 %v374, %v936
      %v947 = vmul.f32 %v379, %v936
      %v948 = vmul.f32 %v384, %v936
      %v949 = vmul.f32 %v389, %v936
      %v950 = vmul.f32 %v394, %v936
      %v951 = vmul.f32 %v399, %v936
      %v952 = vmul.f32 %v656, %v936
      %v969 = vrot.slane %v937, 1
      %v970 = vrot.slane %v938, 1
      %v971 = vsel %vm486, %v969, %v970
      %v972 = vrot.slane %v939, 1
      %v973 = vsel %vm486, %v970, %v972
      %v974 = vrot.slane %v940, 1
      %v975 = vsel %vm486, %v972, %v974
      %v976 = vrot.slane %v941, 1
      %v977 = vsel %vm486, %v974, %v976
      %v978 = vrot.slane %v942, 1
      %v979 = vsel %vm486, %v976, %v978
      %v980 = vrot.slane %v943, 1
      %v981 = vsel %vm486, %v978, %v980
      %v982 = vrot.slane %v944, 1
      %v983 = vsel %vm486, %v980, %v982
      %v984 = vrot.slane %v945, 1
      %v985 = vsel %vm486, %v982, %v984
      %v986 = vrot.slane %v946, 1
      %v987 = vsel %vm486, %v984, %v986
      %v988 = vrot.slane %v947, 1
      %v989 = vsel %vm486, %v986, %v988
      %v990 = vrot.slane %v948, 1
      %v991 = vsel %vm486, %v988, %v990
      %v992 = vrot.slane %v949, 1
      %v993 = vsel %vm486, %v990, %v992
      %v994 = vrot.slane %v950, 1
      %v995 = vsel %vm486, %v992, %v994
      %v996 = vrot.slane %v951, 1
      %v997 = vsel %vm486, %v994, %v996
      %v998 = vrot.slane %v952, 1
      %v999 = vsel %vm486, %v996, %v998
      %v1017 = vadd.f32 %v916, %v969
      %v1018 = vadd.f32 %v917, %v971
      %v1019 = vadd.f32 %v918, %v973
      %v1020 = vadd.f32 %v919, %v975
      %v1021 = vadd.f32 %v920, %v977
      %v1022 = vadd.f32 %v921, %v979
      %v1023 = vadd.f32 %v922, %v981
      %v1024 = vadd.f32 %v923, %v983
      %v1025 = vadd.f32 %v924, %v985
      %v1026 = vadd.f32 %v925, %v987
      %v1027 = vadd.f32 %v926, %v989
      %v1028 = vadd.f32 %v927, %v991
      %v1029 = vadd.f32 %v928, %v993
      %v1030 = vadd.f32 %v929, %v995
      %v1031 = vadd.f32 %v930, %v997
      %v1032 = vadd.f32 %v931, %v999
      %v1033 = vadd.f32 %v932, %v998
      %1035 = vset.pattern.permute.xlu0 0
      %1036 = vperm.xlu0 %1035, %v296
      %v1037 = vpop.permute.xlu0 %1036
      %v1039 = vlaneseq
      %v1040 = vshrl.u32 %v1039, 7
      %v1041 = vsub.s32 5, %v1040
      %v1042 = vrot.slane %v314, %v1041
      %v1043 = vmul.f32 %v329, %v1042
      %v1044 = vmul.f32 %v334, %v1042
      %v1045 = vmul.f32 %v339, %v1042
      %v1046 = vmul.f32 %v344, %v1042
      %v1047 = vmul.f32 %v349, %v1042
      %v1048 = vmul.f32 %v354, %v1042
      %v1049 = vmul.f32 %v359, %v1042
      %v1050 = vmul.f32 %v364, %v1042
      %v1051 = vmul.f32 %v369, %v1042
      %v1052 = vmul.f32 %v374, %v1042
      %v1053 = vmul.f32 %v379, %v1042
      %v1054 = vmul.f32 %v384, %v1042
      %v1055 = vmul.f32 %v389, %v1042
      %v1056 = vmul.f32 %v394, %v1042
      %v1057 = vmul.f32 %v399, %v1042
      %v1058 = vmul.f32 %v656, %v1042
      %v1059 = vmul.f32 %v1037, %v1042
      %v1060 = vmul.f32 %v1043, %v728
      %v1061 = vmul.f32 %v1044, %v730
      %v1062 = vmul.f32 %v1045, %v732
      %v1063 = vmul.f32 %v1046, %v734
      %v1064 = vmul.f32 %v1047, %v736
      %v1065 = vmul.f32 %v1048, %v738
      %v1066 = vmul.f32 %v1049, %v740
      %v1067 = vmul.f32 %v1050, %v742
      %v1068 = vmul.f32 %v1051, %v744
      %v1069 = vmul.f32 %v1052, %v746
      %v1070 = vmul.f32 %v1053, %v748
      %v1071 = vmul.f32 %v1054, %v750
      %v1072 = vmul.f32 %v1055, %v752
      %v1073 = vmul.f32 %v1056, %v754
      %v1074 = vmul.f32 %v1057, %v756
      %v1075 = vmul.f32 %v1058, %v758
      %v1076 = vmul.f32 %v1059, %v757
      %v1094 = vrot.slane %v1060, 2
      %v1095 = vrot.slane %v1061, 2
      %v1096 = vsel %vm810, %v1094, %v1095
      %v1097 = vrot.slane %v1062, 2
      %v1098 = vsel %vm810, %v1095, %v1097
      %v1099 = vrot.slane %v1063, 2
      %v1100 = vsel %vm810, %v1097, %v1099
      %v1101 = vrot.slane %v1064, 2
      %v1102 = vsel %vm810, %v1099, %v1101
      %v1103 = vrot.slane %v1065, 2
      %v1104 = vsel %vm810, %v1101, %v1103
      %v1105 = vrot.slane %v1066, 2
      %v1106 = vsel %vm810, %v1103, %v1105
      %v1107 = vrot.slane %v1067, 2
      %v1108 = vsel %vm810, %v1105, %v1107
      %v1109 = vrot.slane %v1068, 2
      %v1110 = vsel %vm810, %v1107, %v1109
      %v1111 = vrot.slane %v1069, 2
      %v1112 = vsel %vm810, %v1109, %v1111
      %v1113 = vrot.slane %v1070, 2
      %v1114 = vsel %vm810, %v1111, %v1113
      %v1115 = vrot.slane %v1071, 2
      %v1116 = vsel %vm810, %v1113, %v1115
      %v1117 = vrot.slane %v1072, 2
      %v1118 = vsel %vm810, %v1115, %v1117
      %v1119 = vrot.slane %v1073, 2
      %v1120 = vsel %vm810, %v1117, %v1119
      %v1121 = vrot.slane %v1074, 2
      %v1122 = vsel %vm810, %v1119, %v1121
      %v1123 = vrot.slane %v1075, 2
      %v1124 = vsel %vm810, %v1121, %v1123
      %v1125 = vrot.slane %v1076, 2
      %v1126 = vsel %vm810, %v1123, %v1125
      %v1144 = vadd.f32 %v1017, %v1094
      %v1145 = vadd.f32 %v1018, %v1096
      %v1146 = vadd.f32 %v1019, %v1098
      %v1147 = vadd.f32 %v1020, %v1100
      %v1148 = vadd.f32 %v1021, %v1102
      %v1149 = vadd.f32 %v1022, %v1104
      %v1150 = vadd.f32 %v1023, %v1106
      %v1151 = vadd.f32 %v1024, %v1108
      %v1152 = vadd.f32 %v1025, %v1110
      %v1153 = vadd.f32 %v1026, %v1112
      %v1154 = vadd.f32 %v1027, %v1114
      %v1155 = vadd.f32 %v1028, %v1116
      %v1156 = vadd.f32 %v1029, %v1118
      %v1157 = vadd.f32 %v1030, %v1120
      %v1158 = vadd.f32 %v1031, %v1122
      %v1159 = vadd.f32 %v1032, %v1124
      %v1160 = vadd.f32 %v1033, %v1126
      %v1161 = vlaneseq
      %v1162 = vshrl.u32 %v1161, 7
      %v1163 = vsub.s32 6, %v1162
      %v1164 = vrot.slane %v314, %v1163
      %v1165 = vmul.f32 %v329, %v1164
      %v1166 = vmul.f32 %v334, %v1164
      %v1167 = vmul.f32 %v339, %v1164
      %v1168 = vmul.f32 %v344, %v1164
      %v1169 = vmul.f32 %v349, %v1164
      %v1170 = vmul.f32 %v354, %v1164
      %v1171 = vmul.f32 %v359, %v1164
      %v1172 = vmul.f32 %v364, %v1164
      %v1173 = vmul.f32 %v369, %v1164
      %v1174 = vmul.f32 %v374, %v1164
      %v1175 = vmul.f32 %v379, %v1164
      %v1176 = vmul.f32 %v384, %v1164
      %v1177 = vmul.f32 %v389, %v1164
      %v1178 = vmul.f32 %v394, %v1164
      %v1179 = vmul.f32 %v399, %v1164
      %v1180 = vmul.f32 %v656, %v1164
      %v1181 = vmul.f32 %v1037, %v1164
      %v1182 = vmul.f32 %v1165, %v487
      %v1183 = vmul.f32 %v1166, %v489
      %v1184 = vmul.f32 %v1167, %v491
      %v1185 = vmul.f32 %v1168, %v493
      %v1186 = vmul.f32 %v1169, %v495
      %v1187 = vmul.f32 %v1170, %v497
      %v1188 = vmul.f32 %v1171, %v499
      %v1189 = vmul.f32 %v1172, %v501
      %v1190 = vmul.f32 %v1173, %v503
      %v1191 = vmul.f32 %v1174, %v505
      %v1192 = vmul.f32 %v1175, %v507
      %v1193 = vmul.f32 %v1176, %v509
      %v1194 = vmul.f32 %v1177, %v511
      %v1195 = vmul.f32 %v1178, %v513
      %v1196 = vmul.f32 %v1179, %v515
      %v1197 = vmul.f32 %v1180, %v517
      %v1198 = vmul.f32 %v1181, %v516
      %v1199 = vadd.f32 %v1144, %v1182
      %v1200 = vadd.f32 %v1145, %v1183
      %v1201 = vadd.f32 %v1146, %v1184
      %v1202 = vadd.f32 %v1147, %v1185
      %v1203 = vadd.f32 %v1148, %v1186
      %v1204 = vadd.f32 %v1149, %v1187
      %v1205 = vadd.f32 %v1150, %v1188
      %v1206 = vadd.f32 %v1151, %v1189
      %v1207 = vadd.f32 %v1152, %v1190
      %v1208 = vadd.f32 %v1153, %v1191
      %v1209 = vadd.f32 %v1154, %v1192
      %v1210 = vadd.f32 %v1155, %v1193
      %v1211 = vadd.f32 %v1156, %v1194
      %v1212 = vadd.f32 %v1157, %v1195
      %v1213 = vadd.f32 %v1158, %v1196
      %v1214 = vadd.f32 %v1159, %v1197
      %v1215 = vadd.f32 %v1160, %v1198
      %v1216 = vlaneseq
      %v1217 = vshrl.u32 %v1216, 7
      %v1218 = vsub.s32 7, %v1217
      %v1219 = vrot.slane %v314, %v1218
      %v1220 = vmul.f32 %v334, %v1219
      %v1221 = vmul.f32 %v339, %v1219
      %v1222 = vmul.f32 %v344, %v1219
      %v1223 = vmul.f32 %v349, %v1219
      %v1224 = vmul.f32 %v354, %v1219
      %v1225 = vmul.f32 %v359, %v1219
      %v1226 = vmul.f32 %v364, %v1219
      %v1227 = vmul.f32 %v369, %v1219
      %v1228 = vmul.f32 %v374, %v1219
      %v1229 = vmul.f32 %v379, %v1219
      %v1230 = vmul.f32 %v384, %v1219
      %v1231 = vmul.f32 %v389, %v1219
      %v1232 = vmul.f32 %v394, %v1219
      %v1233 = vmul.f32 %v399, %v1219
      %v1234 = vmul.f32 %v656, %v1219
      %v1235 = vmul.f32 %v1037, %v1219
      %v1252 = vrot.slane %v1220, 1
      %v1253 = vrot.slane %v1221, 1
      %v1254 = vsel %vm486, %v1252, %v1253
      %v1255 = vrot.slane %v1222, 1
      %v1256 = vsel %vm486, %v1253, %v1255
      %v1257 = vrot.slane %v1223, 1
      %v1258 = vsel %vm486, %v1255, %v1257
      %v1259 = vrot.slane %v1224, 1
      %v1260 = vsel %vm486, %v1257, %v1259
      %v1261 = vrot.slane %v1225, 1
      %v1262 = vsel %vm486, %v1259, %v1261
      %v1263 = vrot.slane %v1226, 1
      %v1264 = vsel %vm486, %v1261, %v1263
      %v1265 = vrot.slane %v1227, 1
      %v1266 = vsel %vm486, %v1263, %v1265
      %v1267 = vrot.slane %v1228, 1
      %v1268 = vsel %vm486, %v1265, %v1267
      %v1269 = vrot.slane %v1229, 1
      %v1270 = vsel %vm486, %v1267, %v1269
      %v1271 = vrot.slane %v1230, 1
      %v1272 = vsel %vm486, %v1269, %v1271
      %v1273 = vrot.slane %v1231, 1
      %v1274 = vsel %vm486, %v1271, %v1273
      %v1275 = vrot.slane %v1232, 1
      %v1276 = vsel %vm486, %v1273, %v1275
      %v1277 = vrot.slane %v1233, 1
      %v1278 = vsel %vm486, %v1275, %v1277
      %v1279 = vrot.slane %v1234, 1
      %v1280 = vsel %vm486, %v1277, %v1279
      %v1281 = vrot.slane %v1235, 1
      %v1282 = vsel %vm486, %v1279, %v1281
      %v1300 = vadd.f32 %v1199, %v1252
      %v1301 = vadd.f32 %v1200, %v1254
      %v1302 = vadd.f32 %v1201, %v1256
      %v1303 = vadd.f32 %v1202, %v1258
      %v1304 = vadd.f32 %v1203, %v1260
      %v1305 = vadd.f32 %v1204, %v1262
      %v1306 = vadd.f32 %v1205, %v1264
      %v1307 = vadd.f32 %v1206, %v1266
      %v1308 = vadd.f32 %v1207, %v1268
      %v1309 = vadd.f32 %v1208, %v1270
      %v1310 = vadd.f32 %v1209, %v1272
      %v1311 = vadd.f32 %v1210, %v1274
      %v1312 = vadd.f32 %v1211, %v1276
      %v1313 = vadd.f32 %v1212, %v1278
      %v1314 = vadd.f32 %v1213, %v1280
      %v1315 = vadd.f32 %v1214, %v1282
      %v1316 = vadd.f32 %v1215, %v1281
      %1318 = vset.pattern.permute.xlu0 0
      %1319 = vperm.xlu0 %1318, %v297
      %v1320 = vpop.permute.xlu0 %1319
      %v1322 = vlaneseq
      %v1323 = vshrl.u32 %v1322, 7
      %v1324 = vsub.s32 0, %v1323
      %v1325 = vrot.slane %v315, %v1324
      %v1326 = vmul.f32 %v334, %v1325
      %v1327 = vmul.f32 %v339, %v1325
      %v1328 = vmul.f32 %v344, %v1325
      %v1329 = vmul.f32 %v349, %v1325
      %v1330 = vmul.f32 %v354, %v1325
      %v1331 = vmul.f32 %v359, %v1325
      %v1332 = vmul.f32 %v364, %v1325
      %v1333 = vmul.f32 %v369, %v1325
      %v1334 = vmul.f32 %v374, %v1325
      %v1335 = vmul.f32 %v379, %v1325
      %v1336 = vmul.f32 %v384, %v1325
      %v1337 = vmul.f32 %v389, %v1325
      %v1338 = vmul.f32 %v394, %v1325
      %v1339 = vmul.f32 %v399, %v1325
      %v1340 = vmul.f32 %v656, %v1325
      %v1341 = vmul.f32 %v1037, %v1325
      %v1342 = vmul.f32 %v1320, %v1325
      %v1343 = vmul.f32 %v1326, %v728
      %v1344 = vmul.f32 %v1327, %v730
      %v1345 = vmul.f32 %v1328, %v732
      %v1346 = vmul.f32 %v1329, %v734
      %v1347 = vmul.f32 %v1330, %v736
      %v1348 = vmul.f32 %v1331, %v738
      %v1349 = vmul.f32 %v1332, %v740
      %v1350 = vmul.f32 %v1333, %v742
      %v1351 = vmul.f32 %v1334, %v744
      %v1352 = vmul.f32 %v1335, %v746
      %v1353 = vmul.f32 %v1336, %v748
      %v1354 = vmul.f32 %v1337, %v750
      %v1355 = vmul.f32 %v1338, %v752
      %v1356 = vmul.f32 %v1339, %v754
      %v1357 = vmul.f32 %v1340, %v756
      %v1358 = vmul.f32 %v1341, %v758
      %v1359 = vmul.f32 %v1342, %v757
      %v1377 = vrot.slane %v1343, 2
      %v1378 = vrot.slane %v1344, 2
      %v1379 = vsel %vm810, %v1377, %v1378
      %v1380 = vrot.slane %v1345, 2
      %v1381 = vsel %vm810, %v1378, %v1380
      %v1382 = vrot.slane %v1346, 2
      %v1383 = vsel %vm810, %v1380, %v1382
      %v1384 = vrot.slane %v1347, 2
      %v1385 = vsel %vm810, %v1382, %v1384
      %v1386 = vrot.slane %v1348, 2
      %v1387 = vsel %vm810, %v1384, %v1386
      %v1388 = vrot.slane %v1349, 2
      %v1389 = vsel %vm810, %v1386, %v1388
      %v1390 = vrot.slane %v1350, 2
      %v1391 = vsel %vm810, %v1388, %v1390
      %v1392 = vrot.slane %v1351, 2
      %v1393 = vsel %vm810, %v1390, %v1392
      %v1394 = vrot.slane %v1352, 2
      %v1395 = vsel %vm810, %v1392, %v1394
      %v1396 = vrot.slane %v1353, 2
      %v1397 = vsel %vm810, %v1394, %v1396
      %v1398 = vrot.slane %v1354, 2
      %v1399 = vsel %vm810, %v1396, %v1398
      %v1400 = vrot.slane %v1355, 2
      %v1401 = vsel %vm810, %v1398, %v1400
      %v1402 = vrot.slane %v1356, 2
      %v1403 = vsel %vm810, %v1400, %v1402
      %v1404 = vrot.slane %v1357, 2
      %v1405 = vsel %vm810, %v1402, %v1404
      %v1406 = vrot.slane %v1358, 2
      %v1407 = vsel %vm810, %v1404, %v1406
      %v1408 = vrot.slane %v1359, 2
      %v1409 = vsel %vm810, %v1406, %v1408
      %v1427 = vadd.f32 %v1300, %v1377
      %v1428 = vadd.f32 %v1301, %v1379
      %v1429 = vadd.f32 %v1302, %v1381
      %v1430 = vadd.f32 %v1303, %v1383
      %v1431 = vadd.f32 %v1304, %v1385
      %v1432 = vadd.f32 %v1305, %v1387
      %v1433 = vadd.f32 %v1306, %v1389
      %v1434 = vadd.f32 %v1307, %v1391
      %v1435 = vadd.f32 %v1308, %v1393
      %v1436 = vadd.f32 %v1309, %v1395
      %v1437 = vadd.f32 %v1310, %v1397
      %v1438 = vadd.f32 %v1311, %v1399
      %v1439 = vadd.f32 %v1312, %v1401
      %v1440 = vadd.f32 %v1313, %v1403
      %v1441 = vadd.f32 %v1314, %v1405
      %v1442 = vadd.f32 %v1315, %v1407
      %v1443 = vadd.f32 %v1316, %v1409
      %v1444 = vld [vmem:[%s3] sm:$0x1]
      %v1446 = vlaneseq
      %v1447 = vshrl.u32 %v1446, 7
      %v1448 = vsub.s32 0, %v1447
      %v1449 = vrot.slane %v1444, %v1448
      %v1451 = vmul.f32 %v1427, %v1449
      %v1452 = vmul.f32 %v1428, %v1449
      %v1453 = vmul.f32 %v1429, %v1449
      %v1454 = vmul.f32 %v1430, %v1449
      %v1455 = vmul.f32 %v1431, %v1449
      %v1456 = vmul.f32 %v1432, %v1449
      %v1457 = vmul.f32 %v1433, %v1449
      %v1458 = vmul.f32 %v1434, %v1449
      %v1459 = vmul.f32 %v1435, %v1449
      %v1460 = vmul.f32 %v1436, %v1449
      %v1461 = vmul.f32 %v1437, %v1449
      %v1462 = vmul.f32 %v1438, %v1449
      %v1463 = vmul.f32 %v1439, %v1449
      %v1464 = vmul.f32 %v1440, %v1449
      %v1465 = vmul.f32 %v1441, %v1449
      %v1466 = vmul.f32 %v1442, %v1449
      %v1467 = vmul.f32 %v1443, %v1449
      %v1468 = vld [vmem:[%s4] sm:$0x1]
      %v1470 = vlaneseq
      %v1471 = vshrl.u32 %v1470, 7
      %v1472 = vsub.s32 0, %v1471
      %v1473 = vrot.slane %v1468, %v1472
      %v1475 = vadd.f32 %v1451, %v1473
      %v1476 = vadd.f32 %v1452, %v1473
      %v1477 = vadd.f32 %v1453, %v1473
      %v1478 = vadd.f32 %v1454, %v1473
      %v1479 = vadd.f32 %v1455, %v1473
      %v1480 = vadd.f32 %v1456, %v1473
      %v1481 = vadd.f32 %v1457, %v1473
      %v1482 = vadd.f32 %v1458, %v1473
      %v1483 = vadd.f32 %v1459, %v1473
      %v1484 = vadd.f32 %v1460, %v1473
      %v1485 = vadd.f32 %v1461, %v1473
      %v1486 = vadd.f32 %v1462, %v1473
      %v1487 = vadd.f32 %v1463, %v1473
      %v1488 = vadd.f32 %v1464, %v1473
      %v1489 = vadd.f32 %v1465, %v1473
      %v1490 = vadd.f32 %v1466, %v1473
      %v1491 = vadd.f32 %v1467, %v1473
      %v1492 = vmax.f32 %v1475, 0.0
      %v1493 = vmax.f32 %v1476, 0.0
      %v1494 = vmax.f32 %v1477, 0.0
      %v1495 = vmax.f32 %v1478, 0.0
      %v1496 = vmax.f32 %v1479, 0.0
      %v1497 = vmax.f32 %v1480, 0.0
      %v1498 = vmax.f32 %v1481, 0.0
      %v1499 = vmax.f32 %v1482, 0.0
      %v1500 = vmax.f32 %v1483, 0.0
      %v1501 = vmax.f32 %v1484, 0.0
      %v1502 = vmax.f32 %v1485, 0.0
      %v1503 = vmax.f32 %v1486, 0.0
      %v1504 = vmax.f32 %v1487, 0.0
      %v1505 = vmax.f32 %v1488, 0.0
      %v1506 = vmax.f32 %v1489, 0.0
      %v1507 = vmax.f32 %v1490, 0.0
      %v1508 = vmax.f32 %v1491, 0.0
      %v1509 = vpack.c.bf16 %v1493, %v1492
      %v1510 = vpack.c.bf16 %v1495, %v1494
      %v1511 = vpack.c.bf16 %v1497, %v1496
      %v1512 = vpack.c.bf16 %v1499, %v1498
      %v1513 = vpack.c.bf16 %v1501, %v1500
      %v1514 = vpack.c.bf16 %v1503, %v1502
      %v1515 = vpack.c.bf16 %v1505, %v1504
      %v1516 = vpack.c.bf16 %v1507, %v1506
      %v1517 = vpack.c.bf16 %v1508, %v1508
      %v1527 = vunpack.c.l.b16 %v1509
      %v1528 = vunpack.c.h.b16 %v1509
      %v1529 = vunpack.c.l.b16 %v1510
      %v1530 = vunpack.c.h.b16 %v1510
      %v1531 = vunpack.c.l.b16 %v1511
      %v1532 = vunpack.c.h.b16 %v1511
      %v1533 = vunpack.c.l.b16 %v1512
      %v1534 = vunpack.c.h.b16 %v1512
      %v1535 = vunpack.c.l.b16 %v1513
      %v1536 = vunpack.c.h.b16 %v1513
      %v1537 = vunpack.c.l.b16 %v1514
      %v1538 = vunpack.c.h.b16 %v1514
      %v1539 = vunpack.c.l.b16 %v1515
      %v1540 = vunpack.c.h.b16 %v1515
      %v1541 = vunpack.c.l.b16 %v1516
      %v1542 = vunpack.c.h.b16 %v1516
      %v1543 = vunpack.c.l.b16 %v1517
      %v1544 = vpack.c.b16 %v1527, %v1527
      %v1545 = vpack.c.b16 %v1528, %v1528
      %v1546 = vpack.c.b16 %v1529, %v1529
      %v1547 = vpack.c.b16 %v1530, %v1530
      %v1548 = vpack.c.b16 %v1531, %v1531
      %v1549 = vpack.c.b16 %v1532, %v1532
      %v1550 = vpack.c.b16 %v1533, %v1533
      %v1551 = vpack.c.b16 %v1534, %v1534
      %v1552 = vpack.c.b16 %v1535, %v1535
      %v1553 = vpack.c.b16 %v1536, %v1536
      %v1554 = vpack.c.b16 %v1537, %v1537
      %v1555 = vpack.c.b16 %v1538, %v1538
      %v1556 = vpack.c.b16 %v1539, %v1539
      %v1557 = vpack.c.b16 %v1540, %v1540
      %v1558 = vpack.c.b16 %v1541, %v1541
      %v1559 = vpack.c.b16 %v1542, %v1542
      %v1560 = vpack.c.b16 %v1543, %v1543
      %vm1561 = vsmask.f32 256
      %vm1562 = vsmask.f32 4368
      %vm1563 = vmor %vm1561, %vm1562
      %v1565 = vshrl.u32 %v1544, 16
      %v1567 = vrot.slane %v1565, 7
      %v1568 = vrot.slane %v1567, 4
      %v1570 = vshrl.u32 %v1545, 16
      %v1572 = vrot.slane %v1570, 7
      %v1573 = vshll.u32 %v1545, 16
      %v1575 = vor.u32 %v1572, %v1573
      %v1576 = vsel %vm1563, %v1568, %v1575
      %v1577 = vrot.slane %v1572, 4
      %v1579 = vshrl.u32 %v1546, 16
      %v1581 = vrot.slane %v1579, 7
      %v1582 = vshll.u32 %v1546, 16
      %v1584 = vor.u32 %v1581, %v1582
      %v1585 = vsel %vm1563, %v1577, %v1584
      %v1586 = vrot.slane %v1581, 4
      %v1588 = vshrl.u32 %v1547, 16
      %v1590 = vrot.slane %v1588, 7
      %v1591 = vshll.u32 %v1547, 16
      %v1593 = vor.u32 %v1590, %v1591
      %v1594 = vsel %vm1563, %v1586, %v1593
      %v1595 = vrot.slane %v1590, 4
      %v1597 = vshrl.u32 %v1548, 16
      %v1599 = vrot.slane %v1597, 7
      %v1600 = vshll.u32 %v1548, 16
      %v1602 = vor.u32 %v1599, %v1600
      %v1603 = vsel %vm1563, %v1595, %v1602
      %v1604 = vrot.slane %v1599, 4
      %v1606 = vshrl.u32 %v1549, 16
      %v1608 = vrot.slane %v1606, 7
      %v1609 = vshll.u32 %v1549, 16
      %v1611 = vor.u32 %v1608, %v1609
      %v1612 = vsel %vm1563, %v1604, %v1611
      %v1613 = vrot.slane %v1608, 4
      %v1615 = vshrl.u32 %v1550, 16
      %v1617 = vrot.slane %v1615, 7
      %v1618 = vshll.u32 %v1550, 16
      %v1620 = vor.u32 %v1617, %v1618
      %v1621 = vsel %vm1563, %v1613, %v1620
      %v1622 = vrot.slane %v1617, 4
      %v1624 = vshrl.u32 %v1551, 16
      %v1626 = vrot.slane %v1624, 7
      %v1627 = vshll.u32 %v1551, 16
      %v1629 = vor.u32 %v1626, %v1627
      %v1630 = vsel %vm1563, %v1622, %v1629
      %v1631 = vrot.slane %v1626, 4
      %v1633 = vshrl.u32 %v1552, 16
      %v1635 = vrot.slane %v1633, 7
      %v1636 = vshll.u32 %v1552, 16
      %v1638 = vor.u32 %v1635, %v1636
      %v1639 = vsel %vm1563, %v1631, %v1638
      %v1640 = vrot.slane %v1635, 4
      %v1642 = vshrl.u32 %v1553, 16
      %v1644 = vrot.slane %v1642, 7
      %v1645 = vshll.u32 %v1553, 16
      %v1647 = vor.u32 %v1644, %v1645
      %v1648 = vsel %vm1563, %v1640, %v1647
      %v1649 = vrot.slane %v1644, 4
      %v1651 = vshrl.u32 %v1554, 16
      %v1653 = vrot.slane %v1651, 7
      %v1654 = vshll.u32 %v1554, 16
      %v1656 = vor.u32 %v1653, %v1654
      %v1657 = vsel %vm1563, %v1649, %v1656
      %v1658 = vrot.slane %v1653, 4
      %v1660 = vshrl.u32 %v1555, 16
      %v1662 = vrot.slane %v1660, 7
      %v1663 = vshll.u32 %v1555, 16
      %v1665 = vor.u32 %v1662, %v1663
      %v1666 = vsel %vm1563, %v1658, %v1665
      %v1667 = vrot.slane %v1662, 4
      %v1669 = vshrl.u32 %v1556, 16
      %v1671 = vrot.slane %v1669, 7
      %v1672 = vshll.u32 %v1556, 16
      %v1674 = vor.u32 %v1671, %v1672
      %v1675 = vsel %vm1563, %v1667, %v1674
      %v1676 = vrot.slane %v1671, 4
      %v1678 = vshrl.u32 %v1557, 16
      %v1680 = vrot.slane %v1678, 7
      %v1681 = vshll.u32 %v1557, 16
      %v1683 = vor.u32 %v1680, %v1681
      %v1684 = vsel %vm1563, %v1676, %v1683
      %v1685 = vrot.slane %v1680, 4
      %v1687 = vshrl.u32 %v1558, 16
      %v1689 = vrot.slane %v1687, 7
      %v1690 = vshll.u32 %v1558, 16
      %v1692 = vor.u32 %v1689, %v1690
      %v1693 = vsel %vm1563, %v1685, %v1692
      %v1694 = vrot.slane %v1689, 4
      %v1696 = vshrl.u32 %v1559, 16
      %v1698 = vrot.slane %v1696, 7
      %v1699 = vshll.u32 %v1559, 16
      %v1701 = vor.u32 %v1698, %v1699
      %v1702 = vsel %vm1563, %v1694, %v1701
      %v1703 = vrot.slane %v1698, 4
      %v1705 = vshrl.u32 %v1560, 16
      %v1707 = vrot.slane %v1705, 7
      %v1708 = vshll.u32 %v1560, 16
      %v1710 = vor.u32 %v1707, %v1708
      %v1711 = vsel %vm1563, %v1703, %v1710
      %vm1728 = vcmask 125952
      %1729 = vst.msk [vmem:[%s224] sm:$0xf] %vm1728, %v1576
      %1730 = vst.msk [vmem:[%s224 + $0x4] sm:$0xf] %vm1728, %v1585
      %1731 = vst.msk [vmem:[%s224 + $0x8] sm:$0xf] %vm1728, %v1594
      %1732 = vst.msk [vmem:[%s224 + $0xc] sm:$0xf] %vm1728, %v1603
      %1733 = vst.msk [vmem:[%s224 + $0x10] sm:$0xf] %vm1728, %v1612
      %1734 = vst.msk [vmem:[%s224 + $0x14] sm:$0xf] %vm1728, %v1621
      %1735 = vst.msk [vmem:[%s224 + $0x18] sm:$0xf] %vm1728, %v1630
      %1736 = vst.msk [vmem:[%s224 + $0x1c] sm:$0xf] %vm1728, %v1639
      %1737 = vst.msk [vmem:[%s224 + $0x20] sm:$0xf] %vm1728, %v1648
      %1738 = vst.msk [vmem:[%s224 + $0x24] sm:$0xf] %vm1728, %v1657
      %1739 = vst.msk [vmem:[%s224 + $0x28] sm:$0xf] %vm1728, %v1666
      %1740 = vst.msk [vmem:[%s224 + $0x2c] sm:$0xf] %vm1728, %v1675
      %1741 = vst.msk [vmem:[%s224 + $0x30] sm:$0xf] %vm1728, %v1684
      %1742 = vst.msk [vmem:[%s224 + $0x34] sm:$0xf] %vm1728, %v1693
      %1743 = vst.msk [vmem:[%s224 + $0x38] sm:$0xf] %vm1728, %v1702
      %1744 = vst.msk [vmem:[%s224 + $0x3c] sm:$0xf] %vm1728, %v1711
      %p1745 = scmp.lt.s32.totalorder %s16, 1
      %s1746 = scalar_select %p1745, %s16, 1
      %s1747 = smul.addr %s1746, 16
      %s1748 = smul.addr %s1747, 4
      %s1749 = scalar_lea.vmem %s5, %s1748
      // Predicated region
      $region41: #{gemini_df_resnet_forward.11} parent=39 // pred_check
        %p1750 = pneg %p144
      $region42: #{gemini_df_resnet_forward.11} parent=39 // pred_check_branch
        %1752 = sbr.rel (%p1750) target = $region44
      $region43: #{gemini_df_resnet_forward.11} parent=39 // pred_region
        _
      $region44: #{gemini_df_resnet_forward.11} parent=39 // pred_fallthru
        _
    $region40: #{gemini_df_resnet_forward.11} parent=5 // pred_fallthru
      _
    %p1753 = scmp.le.s32.totalorder 2, %s11
    // Predicated region
    $region45: #{gemini_df_resnet_forward.11} parent=5 // pred_check
      %p1754 = pneg %p1753
    $region46: #{gemini_df_resnet_forward.11} parent=5 // pred_check_branch
      %1756 = sbr.rel (%p1754) target = $region48
    $region47: #{gemini_df_resnet_forward.11} parent=5 // pred_region
      %s1757 = ssub.s32 %s11, 2
      // Predicated region
      $region49: #{gemini_df_resnet_forward.11} parent=47 // pred_check
        %p1758 = pneg %p150
      $region50: #{gemini_df_resnet_forward.11} parent=47 // pred_check_branch
        %1760 = sbr.rel (%p1758) target = $region52
      $region51: #{gemini_df_resnet_forward.11} parent=47 // pred_region
        %p1761 = scmp.lt.s32.totalorder %s17, 1
        %s1762 = scalar_select %p1761, %s17, 1
        %s1763 = smul.addr %s1762, 16
        %s1764 = smul.addr %s1763, 4
        %s1765 = scalar_lea.vmem %s5, %s1764
      $region52: #{gemini_df_resnet_forward.11} parent=47 // pred_fallthru
        _
    $region48: #{gemini_df_resnet_forward.11} parent=5 // pred_fallthru
      _
  $region6: #{gemini_df_resnet_forward.11} parent=0 // loop_footer
    %s15 = sadd.s32 1, %s11
  $region7: #{gemini_df_resnet_forward.11} parent=0 // loop_footer_branch
    %10 = sbr.rel target = $region3
  $region8: #{gemini_df_resnet_forward.11} parent=0 // loop_exit
    _

// kernel: gemini_df_resnet_forward.14
$region0: #{gemini_df_resnet_forward.14}
  #allocation0 [shape = 'u32[]', space=smem, size = 0x4, offset = 0x4, fixed_abs, tag = 'smem constant byte address 0x4 - core index']
  #allocation1 [shape = 'u32[144,128]{1,0:T(1,128)}', space=vmem, size = 0x12000, scoped, tag = 'internal scratch']
  %s0 = inlined_call_operand.vmem [shape: bf16[32,144], index: 0, kind: input, shape index: {}]
  %s1 = inlined_call_operand.vmem [shape: bf16[144,32], index: 1, kind: input, shape index: {}]
  %s2 = inlined_call_operand.vmem [shape: f32[1,32], index: 2, kind: input, shape index: {}]
  %s3 = inlined_call_operand.vmem [shape: f32[1,32], index: 3, kind: input, shape index: {}]
  %s4 = inlined_call_operand.vmem [shape: bf16[32,32], index: 4, kind: output, shape index: {}]
  %s5 = sld [smem:[#allocation0]]
  $region26: #{gemini_df_resnet_forward.14} parent=0
    _
  %s7 = ssub.s32 1, %s5
  %s8 = scalar_select 0, %s7, %s5
  // Predicated region
  $region2: #{gemini_df_resnet_forward.14} parent=0 // pred_check
    _
  $region3: #{gemini_df_resnet_forward.14} parent=0 // pred_check_branch
    %10 = sbr.rel (0) target = $region5
  $region4: #{gemini_df_resnet_forward.14} parent=0 // pred_region
    _
  $region5: #{gemini_df_resnet_forward.14} parent=0 // pred_fallthru
    _
  // Predicated region
  $region6: #{gemini_df_resnet_forward.14} parent=0 // pred_check
    _
  $region7: #{gemini_df_resnet_forward.14} parent=0 // pred_check_branch
    %12 = sbr.rel (0) target = $region9
  $region8: #{gemini_df_resnet_forward.14} parent=0 // pred_region
    _
  $region9: #{gemini_df_resnet_forward.14} parent=0 // pred_fallthru
    _
  // Predicated region
  $region10: #{gemini_df_resnet_forward.14} parent=0 // pred_check
    _
  $region11: #{gemini_df_resnet_forward.14} parent=0 // pred_check_branch
    %14 = sbr.rel (0) target = $region13
  $region12: #{gemini_df_resnet_forward.14} parent=0 // pred_region
    _
  $region13: #{gemini_df_resnet_forward.14} parent=0 // pred_fallthru
    _
  // Predicated region
  $region14: #{gemini_df_resnet_forward.14} parent=0 // pred_check
    _
  $region15: #{gemini_df_resnet_forward.14} parent=0 // pred_check_branch
    %16 = sbr.rel (0) target = $region17
  $region16: #{gemini_df_resnet_forward.14} parent=0 // pred_region
    _
  $region17: #{gemini_df_resnet_forward.14} parent=0 // pred_fallthru
    _
  %v18 = vld [vmem:[%s0] sm:$0xff]
  %v19 = vld [vmem:[%s0 + $0x8] sm:$0xff]
  %v20 = vld [vmem:[%s0 + $0x10] sm:$0xff]
  %v21 = vld [vmem:[%s0 + $0x18] sm:$0xff]
  %v22 = vld [vmem:[%s1] sm:$0xf]
  %v23 = vld [vmem:[%s1 + $0x4] sm:$0xf]
  %v24 = vld [vmem:[%s1 + $0x8] sm:$0xf]
  %v25 = vld [vmem:[%s1 + $0xc] sm:$0xf]
  %v26 = vld [vmem:[%s1 + $0x10] sm:$0xf]
  %v27 = vld [vmem:[%s1 + $0x14] sm:$0xf]
  %v28 = vld [vmem:[%s1 + $0x18] sm:$0xf]
  %v29 = vld [vmem:[%s1 + $0x1c] sm:$0xf]
  %v30 = vld [vmem:[%s1 + $0x20] sm:$0xf]
  %v31 = vld [vmem:[%s1 + $0x24] sm:$0xf]
  %v32 = vld [vmem:[%s1 + $0x28] sm:$0xf]
  %v33 = vld [vmem:[%s1 + $0x2c] sm:$0xf]
  %v34 = vld [vmem:[%s1 + $0x30] sm:$0xf]
  %v35 = vld [vmem:[%s1 + $0x34] sm:$0xf]
  %v36 = vld [vmem:[%s1 + $0x38] sm:$0xf]
  %v37 = vld [vmem:[%s1 + $0x3c] sm:$0xf]
  %v38 = vld [vmem:[%s1 + $0x40] sm:$0xf]
  %v39 = vld [vmem:[%s1 + $0x44] sm:$0xf]
  %v44 = vunpack.c.l.b16 %v18
  %v45 = vunpack.c.h.b16 %v18
  %v46 = vunpack.c.l.b16 %v19
  %v47 = vunpack.c.h.b16 %v19
  %v48 = vunpack.c.l.b16 %v20
  %v49 = vunpack.c.h.b16 %v20
  %v50 = vunpack.c.l.b16 %v21
  %v51 = vunpack.c.h.b16 %v21
  %v52 = vpack.c.b16 %v46, %v44
  %v53 = vpack.c.b16 %v47, %v45
  %v54 = vpack.c.b16 %v50, %v48
  %v55 = vpack.c.b16 %v51, %v49
  %v76 = vunpack.c.l.b16 %v22
  %v77 = vunpack.c.l.b16 %v23
  %v78 = vunpack.c.l.b16 %v24
  %v79 = vunpack.c.l.b16 %v25
  %v80 = vunpack.c.l.b16 %v26
  %v81 = vunpack.c.l.b16 %v27
  %v82 = vunpack.c.l.b16 %v28
  %v83 = vunpack.c.l.b16 %v29
  %v84 = vunpack.c.l.b16 %v30
  %v85 = vunpack.c.l.b16 %v31
  %v86 = vunpack.c.l.b16 %v32
  %v87 = vunpack.c.l.b16 %v33
  %v88 = vunpack.c.l.b16 %v34
  %v89 = vunpack.c.l.b16 %v35
  %v90 = vunpack.c.l.b16 %v36
  %v91 = vunpack.c.l.b16 %v37
  %v92 = vunpack.c.l.b16 %v38
  %v93 = vunpack.c.l.b16 %v39
  %v94 = vpack.c.b16 %v77, %v76
  %v95 = vpack.c.b16 %v79, %v78
  %v96 = vpack.c.b16 %v81, %v80
  %v97 = vpack.c.b16 %v83, %v82
  %v98 = vpack.c.b16 %v85, %v84
  %v99 = vpack.c.b16 %v87, %v86
  %v100 = vpack.c.b16 %v89, %v88
  %v101 = vpack.c.b16 %v91, %v90
  %v102 = vpack.c.b16 %v93, %v92
  %vm112 = vcmask 130048
  %v114 = vsel %vm112, %v53, 0
  %v117 = vsel %vm112, %v55, 0
  %119 = vmatprep.subr.bf16.mxu0 0
  %120 = vmatpush1.bf16.msra.mxu0 %v94
  %121 = vmatprep.subr.bf16.mxu0 0
  %122 = vmatpush1.bf16.msra.mxu0 %v95
  %123 = vmatprep.subr.bf16.mxu0 0
  %124 = vmatpush1.bf16.msra.mxu0 %v96
  %125 = vmatprep.subr.bf16.mxu0 0
  %126 = vmatpush1.bf16.msra.mxu0 %v97
  %127 = vmatprep.subr.bf16.mxu0 0
  %128 = vmatpush1.bf16.msra.mxu0 %v98
  %129 = vmatprep.subr.bf16.mxu0 0
  %130 = vmatpush1.bf16.msra.mxu0 %v99
  %131 = vmatprep.subr.bf16.mxu0 0
  %132 = vmatpush1.bf16.msra.mxu0 %v100
  %133 = vmatprep.subr.bf16.mxu0 0
  %134 = vmatpush1.bf16.msra.mxu0 %v101
  %135 = vmatprep.subr.bf16.mxu0 0
  %136 = vmatpush1.bf16.msra.mxu0 %v102
  %137 = vmatprep.subr.bf16.mxu0 0
  %138 = vmatpush1.bf16.msra.mxu0 0
  %139 = vmatprep.subr.bf16.mxu0 0
  %140 = vmatpush1.bf16.msra.mxu0 0
  %141 = vmatprep.subr.bf16.mxu0 0
  %142 = vmatpush1.bf16.msra.mxu0 0
  %143 = vmatprep.subr.bf16.mxu0 0
  %144 = vmatpush1.bf16.msra.mxu0 0
  %145 = vmatprep.subr.bf16.mxu0 0
  %146 = vmatpush1.bf16.msra.mxu0 0
  %147 = vmatprep.subr.bf16.mxu0 0
  %148 = vmatpush1.bf16.msra.mxu0 0
  %149 = vmatprep.subr.bf16.mxu0 0
  %150 = vmatpush1.bf16.msra.mxu0 0
  %151 = vmatprep.mubr.bf16.mxu0 %v114
  %152 = vmatmul.mubr.bf16.gmra.mrb[0].mxu0 %v52
  %v153 = vpop.f32.mrb[0].mxu0
  %v154 = vadd.f32 0.0, %v153
  %v155 = vpop.f32.mrb[0].mxu0
  %v156 = vpop.f32.mrb[0].mxu0
  %v157 = vadd.f32 0.0, %v156
  %v158 = vpop.f32.mrb[0].mxu0
  %159 = vmatprep.mubr.bf16.mxu0 %v117
  %160 = vmatmul.mubr.bf16.gmra.mrb[0].mxu0 %v54
  %v161 = vpop.f32.mrb[0].mxu0
  %v162 = vadd.f32 0.0, %v161
  %v163 = vpop.f32.mrb[0].mxu0
  %v164 = vpop.f32.mrb[0].mxu0
  %v165 = vadd.f32 0.0, %v164
  %v166 = vpop.f32.mrb[0].mxu0
  %167 = vdwg.mxu0
  %v168 = vld [vmem:[%s2] sm:$0x1]
  %v170 = vlaneseq
  %v171 = vshrl.u32 %v170, 7
  %v172 = vsub.s32 0, %v171
  %v173 = vrot.slane %v168, %v172
  %v175 = vmul.f32 %v154, %v173
  %v176 = vmul.f32 %v157, %v173
  %v177 = vmul.f32 %v162, %v173
  %v178 = vmul.f32 %v165, %v173
  %v179 = vld [vmem:[%s3] sm:$0x1]
  %v181 = vlaneseq
  %v182 = vshrl.u32 %v181, 7
  %v183 = vsub.s32 0, %v182
  %v184 = vrot.slane %v179, %v183
  %v186 = vadd.f32 %v175, %v184
  %v187 = vadd.f32 %v176, %v184
  %v188 = vadd.f32 %v177, %v184
  %v189 = vadd.f32 %v178, %v184
  %v190 = vpack.c.bf16 %v187, %v186
  %v191 = vpack.c.bf16 %v189, %v188
  %v194 = vunpack.c.l.b16 %v190
  %v195 = vunpack.c.h.b16 %v190
  %v196 = vunpack.c.l.b16 %v191
  %v197 = vunpack.c.h.b16 %v191
  %v198 = vpack.c.b16 %v194, %v194
  %v199 = vpack.c.b16 %v195, %v195
  %v200 = vpack.c.b16 %v196, %v196
  %v201 = vpack.c.b16 %v197, %v197
  %vm206 = vcmask 257024
  %207 = vst.msk [vmem:[%s4] sm:$0xf] %vm206, %v198
  %208 = vst.msk [vmem:[%s4 + $0x4] sm:$0xf] %vm206, %v199
  %209 = vst.msk [vmem:[%s4 + $0x8] sm:$0xf] %vm206, %v200
  %210 = vst.msk [vmem:[%s4 + $0xc] sm:$0xf] %vm206, %v201
  // Predicated region
  $region18: #{gemini_df_resnet_forward.14} parent=0 // pred_check
    _
  $region19: #{gemini_df_resnet_forward.14} parent=0 // pred_check_branch
    %212 = sbr.rel (0) target = $region21
  $region20: #{gemini_df_resnet_forward.14} parent=0 // pred_region
    _
  $region21: #{gemini_df_resnet_forward.14} parent=0 // pred_fallthru
    _
  // Predicated region
  $region22: #{gemini_df_resnet_forward.14} parent=0 // pred_check
    _
  $region23: #{gemini_df_resnet_forward.14} parent=0 // pred_check_branch
    %214 = sbr.rel (0) target = $region25
  $region24: #{gemini_df_resnet_forward.14} parent=0 // pred_region
    _
  $region25: #{gemini_df_resnet_forward.14} parent=0 // pred_fallthru
    _

// kernel: gemini_df_resnet_forward.15
$region0: #{gemini_df_resnet_forward.15}
  #allocation0 [shape = 'u32[]', space=smem, size = 0x4, offset = 0x4, fixed_abs, tag = 'smem constant byte address 0x4 - core index']
  #allocation1 [shape = 'u32[144,128]{1,0:T(1,128)}', space=vmem, size = 0x12000, scoped, tag = 'internal scratch']
  #allocation2 [shape = 'f32[32,128]{1,0:T(8,128)}', space=vmem, size = 0x4000, scoped, tag = 'scratch operand']
  %s0 = inlined_call_operand.vmem [shape: bf16[2,16,32], index: 0, kind: input, shape index: {}]
  %s1 = inlined_call_operand.vmem [shape: f32[16,2], index: 1, kind: input, shape index: {}]
  %s2 = inlined_call_operand.vmem [shape: bf16[32,128], index: 2, kind: input, shape index: {}]
  %s3 = inlined_call_operand.vmem [shape: f32[1,128], index: 3, kind: input, shape index: {}]
  %s4 = inlined_call_operand.vmem [shape: f32[1,128], index: 4, kind: input, shape index: {}]
  %s5 = inlined_call_operand.vmem [shape: f32[9,128], index: 5, kind: input, shape index: {}]
  %s6 = inlined_call_operand.vmem [shape: f32[1,128], index: 6, kind: input, shape index: {}]
  %s7 = inlined_call_operand.vmem [shape: f32[1,128], index: 7, kind: input, shape index: {}]
  %s8 = inlined_call_operand.vmem [shape: bf16[128,32], index: 8, kind: input, shape index: {}]
  %s9 = inlined_call_operand.vmem [shape: f32[1,32], index: 9, kind: input, shape index: {}]
  %s10 = inlined_call_operand.vmem [shape: f32[1,32], index: 10, kind: input, shape index: {}]
  %s11 = inlined_call_operand.vmem [shape: bf16[2,16,32], index: 11, kind: output, shape index: {}]
  %s12 = sld [smem:[#allocation0]]
  $region77: #{gemini_df_resnet_forward.15} parent=0
    _
  %s14 = ssub.s32 1, %s12
  %s15 = scalar_select 0, %s14, %s12
  loop: start=0, step=1, limit=4
  $region2: #{gemini_df_resnet_forward.15} parent=0 // loop_pre_header
    _
  $region3: #{gemini_df_resnet_forward.15} parent=0 // loop_header
    %s17 = sphi 0, %s21
    %p18 = scmp.ge.s32.totalorder %s17, 4
    %s27 = sphi 0, %s29
    %s30 = sphi 0, %s27
    %s31 = sphi 0, %s30
    %s47 = sphi 0, %s31
    %s51 = sphi 0, %s51
    %s53 = sphi 0, %s51
    %s54 = sphi 0, %s53
    %s68 = sphi 0, %s54
    %s72 = sphi 0, %s72
    %s74 = sphi 0, %s72
    %s75 = sphi 0, %s74
    %s89 = sphi 0, %s75
    %s93 = sphi 0, %s93
    %s95 = sphi 0, %s93
    %s96 = sphi 0, %s95
    %s110 = sphi 0, %s96
    %s114 = sphi 0, %s114
    %s116 = sphi 0, %s114
    %s117 = sphi 0, %s116
    %s131 = sphi 0, %s117
    %s135 = sphi 0, %s135
    %s137 = sphi 0, %s135
    %s138 = sphi 0, %s137
    %s152 = sphi 0, %s138
    %s156 = sphi 0, %s156
    %s158 = sphi 0, %s156
    %s159 = sphi 0, %s158
    %s173 = sphi 0, %s159
    %s177 = sphi 0, %s177
    %s179 = sphi 0, %s177
    %s180 = sphi 0, %s179
    %s194 = sphi 0, %s180
    %s198 = sphi 0, %s198
    %s200 = sphi 0, %s198
    %s201 = sphi 0, %s200
    %s215 = sphi 0, %s201
    %s219 = sphi 0, %s219
    %s221 = sphi 0, %s219
    %s222 = sphi 0, %s221
    %s236 = sphi 0, %s222
    %s240 = sphi 0, %s240
    %s242 = sphi 0, %s240
    %s243 = sphi 0, %s242
    %s257 = sphi 0, %s243
    %s263 = sphi 0, %s265
    %s266 = sphi 0, %s263
    %s267 = sphi 0, %s266
    %s283 = sphi 0, %s267
  $region4: #{gemini_df_resnet_forward.15} parent=0 // loop_header_branch
    %20 = sbr.rel (%p18) target = $region8
  $region5: #{gemini_df_resnet_forward.15} parent=0 // loop_body
    %s22 = ssub.s32 %s17, 1
    %s23 = ssub.s32 %s17, 2
    %s24 = sadd.s32 %s17, 1
    %s25 = ssub.s32 %s17, %s24
    %p26 = scmp.eq.s32.totalorder %s25, 0
    %s28 = sadd.s32 %s27, 1
    %s29 = scalar_select %p26, %s27, %s28
    %p32 = pneg %p26
    %p33 = scmp.eq.s32.totalorder %s17, 1
    %p34 = por %p32, %p33
    %p35 = scmp.ne.s32.totalorder %s27, %s30
    %p36 = scmp.eq.s32.totalorder %s17, 0
    %p37 = por %p35, %p36
    %p38 = scmp.ne.s32.totalorder %s27, %s30
    %p39 = scmp.eq.s32.totalorder %s22, 1
    %p40 = por %p38, %p39
    %p41 = scmp.ne.s32.totalorder %s30, %s31
    %p42 = scmp.eq.s32.totalorder %s22, 0
    %p43 = por %p41, %p42
    %p44 = scmp.ne.s32.totalorder %s30, %s31
    %p45 = scmp.eq.s32.totalorder %s23, 1
    %p46 = por %p44, %p45
    %p48 = scmp.ne.s32.totalorder %s31, %s47
    %p49 = scmp.eq.s32.totalorder %s23, 0
    %p50 = por %p48, %p49
    %s52 = sadd.s32 %s51, 1
    %p55 = scmp.eq.s32.totalorder %s17, 1
    %p56 = scmp.ne.s32.totalorder %s51, %s53
    %p57 = scmp.eq.s32.totalorder %s17, 0
    %p58 = por %p56, %p57
    %p59 = scmp.ne.s32.totalorder %s51, %s53
    %p60 = scmp.eq.s32.totalorder %s22, 1
    %p61 = por %p59, %p60
    %p62 = scmp.ne.s32.totalorder %s53, %s54
    %p63 = scmp.eq.s32.totalorder %s22, 0
    %p64 = por %p62, %p63
    %p65 = scmp.ne.s32.totalorder %s53, %s54
    %p66 = scmp.eq.s32.totalorder %s23, 1
    %p67 = por %p65, %p66
    %p69 = scmp.ne.s32.totalorder %s54, %s68
    %p70 = scmp.eq.s32.totalorder %s23, 0
    %p71 = por %p69, %p70
    %s73 = sadd.s32 %s72, 1
    %p76 = scmp.eq.s32.totalorder %s17, 1
    %p77 = scmp.ne.s32.totalorder %s72, %s74
    %p78 = scmp.eq.s32.totalorder %s17, 0
    %p79 = por %p77, %p78
    %p80 = scmp.ne.s32.totalorder %s72, %s74
    %p81 = scmp.eq.s32.totalorder %s22, 1
    %p82 = por %p80, %p81
    %p83 = scmp.ne.s32.totalorder %s74, %s75
    %p84 = scmp.eq.s32.totalorder %s22, 0
    %p85 = por %p83, %p84
    %p86 = scmp.ne.s32.totalorder %s74, %s75
    %p87 = scmp.eq.s32.totalorder %s23, 1
    %p88 = por %p86, %p87
    %p90 = scmp.ne.s32.totalorder %s75, %s89
    %p91 = scmp.eq.s32.totalorder %s23, 0
    %p92 = por %p90, %p91
    %s94 = sadd.s32 %s93, 1
    %p97 = scmp.eq.s32.totalorder %s17, 1
    %p98 = scmp.ne.s32.totalorder %s93, %s95
    %p99 = scmp.eq.s32.totalorder %s17, 0
    %p100 = por %p98, %p99
    %p101 = scmp.ne.s32.totalorder %s93, %s95
    %p102 = scmp.eq.s32.totalorder %s22, 1
    %p103 = por %p101, %p102
    %p104 = scmp.ne.s32.totalorder %s95, %s96
    %p105 = scmp.eq.s32.totalorder %s22, 0
    %p106 = por %p104, %p105
    %p107 = scmp.ne.s32.totalorder %s95, %s96
    %p108 = scmp.eq.s32.totalorder %s23, 1
    %p109 = por %p107, %p108
    %p111 = scmp.ne.s32.totalorder %s96, %s110
    %p112 = scmp.eq.s32.totalorder %s23, 0
    %p113 = por %p111, %p112
    %s115 = sadd.s32 %s114, 1
    %p118 = scmp.eq.s32.totalorder %s17, 1
    %p119 = scmp.ne.s32.totalorder %s114, %s116
    %p120 = scmp.eq.s32.totalorder %s17, 0
    %p121 = por %p119, %p120
    %p122 = scmp.ne.s32.totalorder %s114, %s116
    %p123 = scmp.eq.s32.totalorder %s22, 1
    %p124 = por %p122, %p123
    %p125 = scmp.ne.s32.totalorder %s116, %s117
    %p126 = scmp.eq.s32.totalorder %s22, 0
    %p127 = por %p125, %p126
    %p128 = scmp.ne.s32.totalorder %s116, %s117
    %p129 = scmp.eq.s32.totalorder %s23, 1
    %p130 = por %p128, %p129
    %p132 = scmp.ne.s32.totalorder %s117, %s131
    %p133 = scmp.eq.s32.totalorder %s23, 0
    %p134 = por %p132, %p133
    %s136 = sadd.s32 %s135, 1
    %p139 = scmp.eq.s32.totalorder %s17, 1
    %p140 = scmp.ne.s32.totalorder %s135, %s137
    %p141 = scmp.eq.s32.totalorder %s17, 0
    %p142 = por %p140, %p141
    %p143 = scmp.ne.s32.totalorder %s135, %s137
    %p144 = scmp.eq.s32.totalorder %s22, 1
    %p145 = por %p143, %p144
    %p146 = scmp.ne.s32.totalorder %s137, %s138
    %p147 = scmp.eq.s32.totalorder %s22, 0
    %p148 = por %p146, %p147
    %p149 = scmp.ne.s32.totalorder %s137, %s138
    %p150 = scmp.eq.s32.totalorder %s23, 1
    %p151 = por %p149, %p150
    %p153 = scmp.ne.s32.totalorder %s138, %s152
    %p154 = scmp.eq.s32.totalorder %s23, 0
    %p155 = por %p153, %p154
    %s157 = sadd.s32 %s156, 1
    %p160 = scmp.eq.s32.totalorder %s17, 1
    %p161 = scmp.ne.s32.totalorder %s156, %s158
    %p162 = scmp.eq.s32.totalorder %s17, 0
    %p163 = por %p161, %p162
    %p164 = scmp.ne.s32.totalorder %s156, %s158
    %p165 = scmp.eq.s32.totalorder %s22, 1
    %p166 = por %p164, %p165
    %p167 = scmp.ne.s32.totalorder %s158, %s159
    %p168 = scmp.eq.s32.totalorder %s22, 0
    %p169 = por %p167, %p168
    %p170 = scmp.ne.s32.totalorder %s158, %s159
    %p171 = scmp.eq.s32.totalorder %s23, 1
    %p172 = por %p170, %p171
    %p174 = scmp.ne.s32.totalorder %s159, %s173
    %p175 = scmp.eq.s32.totalorder %s23, 0
    %p176 = por %p174, %p175
    %s178 = sadd.s32 %s177, 1
    %p181 = scmp.eq.s32.totalorder %s17, 1
    %p182 = scmp.ne.s32.totalorder %s177, %s179
    %p183 = scmp.eq.s32.totalorder %s17, 0
    %p184 = por %p182, %p183
    %p185 = scmp.ne.s32.totalorder %s177, %s179
    %p186 = scmp.eq.s32.totalorder %s22, 1
    %p187 = por %p185, %p186
    %p188 = scmp.ne.s32.totalorder %s179, %s180
    %p189 = scmp.eq.s32.totalorder %s22, 0
    %p190 = por %p188, %p189
    %p191 = scmp.ne.s32.totalorder %s179, %s180
    %p192 = scmp.eq.s32.totalorder %s23, 1
    %p193 = por %p191, %p192
    %p195 = scmp.ne.s32.totalorder %s180, %s194
    %p196 = scmp.eq.s32.totalorder %s23, 0
    %p197 = por %p195, %p196
    %s199 = sadd.s32 %s198, 1
    %p202 = scmp.eq.s32.totalorder %s17, 1
    %p203 = scmp.ne.s32.totalorder %s198, %s200
    %p204 = scmp.eq.s32.totalorder %s17, 0
    %p205 = por %p203, %p204
    %p206 = scmp.ne.s32.totalorder %s198, %s200
    %p207 = scmp.eq.s32.totalorder %s22, 1
    %p208 = por %p206, %p207
    %p209 = scmp.ne.s32.totalorder %s200, %s201
    %p210 = scmp.eq.s32.totalorder %s22, 0
    %p211 = por %p209, %p210
    %p212 = scmp.ne.s32.totalorder %s200, %s201
    %p213 = scmp.eq.s32.totalorder %s23, 1
    %p214 = por %p212, %p213
    %p216 = scmp.ne.s32.totalorder %s201, %s215
    %p217 = scmp.eq.s32.totalorder %s23, 0
    %p218 = por %p216, %p217
    %s220 = sadd.s32 %s219, 1
    %p223 = scmp.eq.s32.totalorder %s17, 1
    %p224 = scmp.ne.s32.totalorder %s219, %s221
    %p225 = scmp.eq.s32.totalorder %s17, 0
    %p226 = por %p224, %p225
    %p227 = scmp.ne.s32.totalorder %s219, %s221
    %p228 = scmp.eq.s32.totalorder %s22, 1
    %p229 = por %p227, %p228
    %p230 = scmp.ne.s32.totalorder %s221, %s222
    %p231 = scmp.eq.s32.totalorder %s22, 0
    %p232 = por %p230, %p231
    %p233 = scmp.ne.s32.totalorder %s221, %s222
    %p234 = scmp.eq.s32.totalorder %s23, 1
    %p235 = por %p233, %p234
    %p237 = scmp.ne.s32.totalorder %s222, %s236
    %p238 = scmp.eq.s32.totalorder %s23, 0
    %p239 = por %p237, %p238
    %s241 = sadd.s32 %s240, 1
    %p244 = scmp.eq.s32.totalorder %s17, 1
    %p245 = scmp.ne.s32.totalorder %s240, %s242
    %p246 = scmp.eq.s32.totalorder %s17, 0
    %p247 = por %p245, %p246
    %p248 = scmp.ne.s32.totalorder %s240, %s242
    %p249 = scmp.eq.s32.totalorder %s22, 1
    %p250 = por %p248, %p249
    %p251 = scmp.ne.s32.totalorder %s242, %s243
    %p252 = scmp.eq.s32.totalorder %s22, 0
    %p253 = por %p251, %p252
    %p254 = scmp.ne.s32.totalorder %s242, %s243
    %p255 = scmp.eq.s32.totalorder %s23, 1
    %p256 = por %p254, %p255
    %p258 = scmp.ne.s32.totalorder %s243, %s257
    %p259 = scmp.eq.s32.totalorder %s23, 0
    %p260 = por %p258, %p259
    %s261 = ssub.s32 %s17, %s24
    %p262 = scmp.eq.s32.totalorder %s261, 0
    %s264 = sadd.s32 %s263, 1
    %s265 = scalar_select %p262, %s263, %s264
    %p268 = pneg %p262
    %p269 = scmp.eq.s32.totalorder %s17, 1
    %p270 = por %p268, %p269
    %p271 = scmp.ne.s32.totalorder %s263, %s266
    %p272 = scmp.eq.s32.totalorder %s17, 0
    %p273 = por %p271, %p272
    %p274 = scmp.ne.s32.totalorder %s263, %s266
    %p275 = scmp.eq.s32.totalorder %s22, 1
    %p276 = por %p274, %p275
    %p277 = scmp.ne.s32.totalorder %s266, %s267
    %p278 = scmp.eq.s32.totalorder %s22, 0
    %p279 = por %p277, %p278
    %p280 = scmp.ne.s32.totalorder %s266, %s267
    %p281 = scmp.eq.s32.totalorder %s23, 1
    %p282 = por %p280, %p281
    %p284 = scmp.ne.s32.totalorder %s267, %s283
    %p285 = scmp.eq.s32.totalorder %s23, 0
    %p286 = por %p284, %p285
    %p287 = scmp.le.s32.totalorder 1, %s17
    %p288 = scmp.lt.s32.totalorder %s17, 3
    %p289 = pnand %p287, %p288
    %p290 = pneg %p289
    // Predicated region
    $region9: #{gemini_df_resnet_forward.15} parent=5 // pred_check
      _
    $region10: #{gemini_df_resnet_forward.15} parent=5 // pred_check_branch
      %292 = sbr.rel (%p289) target = $region12
    $region11: #{gemini_df_resnet_forward.15} parent=5 // pred_region
      %s293 = ssub.s32 %s17, 1
      // Predicated region
      $region13: #{gemini_df_resnet_forward.15} parent=11 // pred_check
        %p294 = pneg %p64
      $region14: #{gemini_df_resnet_forward.15} parent=11 // pred_check_branch
        %296 = sbr.rel (%p294) target = $region16
      $region15: #{gemini_df_resnet_forward.15} parent=11 // pred_region
        _
      $region16: #{gemini_df_resnet_forward.15} parent=11 // pred_fallthru
        _
      // Predicated region
      $region17: #{gemini_df_resnet_forward.15} parent=11 // pred_check
        %p297 = pneg %p85
      $region18: #{gemini_df_resnet_forward.15} parent=11 // pred_check_branch
        %299 = sbr.rel (%p297) target = $region20
      $region19: #{gemini_df_resnet_forward.15} parent=11 // pred_region
        _
      $region20: #{gemini_df_resnet_forward.15} parent=11 // pred_fallthru
        _
      // Predicated region
      $region21: #{gemini_df_resnet_forward.15} parent=11 // pred_check
        %p300 = pneg %p106
      $region22: #{gemini_df_resnet_forward.15} parent=11 // pred_check_branch
        %302 = sbr.rel (%p300) target = $region24
      $region23: #{gemini_df_resnet_forward.15} parent=11 // pred_region
        _
      $region24: #{gemini_df_resnet_forward.15} parent=11 // pred_fallthru
        _
      // Predicated region
      $region25: #{gemini_df_resnet_forward.15} parent=11 // pred_check
        %p303 = pneg %p127
      $region26: #{gemini_df_resnet_forward.15} parent=11 // pred_check_branch
        %305 = sbr.rel (%p303) target = $region28
      $region27: #{gemini_df_resnet_forward.15} parent=11 // pred_region
        _
      $region28: #{gemini_df_resnet_forward.15} parent=11 // pred_fallthru
        _
      // Predicated region
      $region29: #{gemini_df_resnet_forward.15} parent=11 // pred_check
        %p306 = pneg %p148
      $region30: #{gemini_df_resnet_forward.15} parent=11 // pred_check_branch
        %308 = sbr.rel (%p306) target = $region32
      $region31: #{gemini_df_resnet_forward.15} parent=11 // pred_region
        _
      $region32: #{gemini_df_resnet_forward.15} parent=11 // pred_fallthru
        _
      // Predicated region
      $region33: #{gemini_df_resnet_forward.15} parent=11 // pred_check
        %p309 = pneg %p169
      $region34: #{gemini_df_resnet_forward.15} parent=11 // pred_check_branch
        %311 = sbr.rel (%p309) target = $region36
      $region35: #{gemini_df_resnet_forward.15} parent=11 // pred_region
        _
      $region36: #{gemini_df_resnet_forward.15} parent=11 // pred_fallthru
        _
      // Predicated region
      $region37: #{gemini_df_resnet_forward.15} parent=11 // pred_check
        %p312 = pneg %p190
      $region38: #{gemini_df_resnet_forward.15} parent=11 // pred_check_branch
        %314 = sbr.rel (%p312) target = $region40
      $region39: #{gemini_df_resnet_forward.15} parent=11 // pred_region
        _
      $region40: #{gemini_df_resnet_forward.15} parent=11 // pred_fallthru
        _
      // Predicated region
      $region41: #{gemini_df_resnet_forward.15} parent=11 // pred_check
        %p315 = pneg %p211
      $region42: #{gemini_df_resnet_forward.15} parent=11 // pred_check_branch
        %317 = sbr.rel (%p315) target = $region44
      $region43: #{gemini_df_resnet_forward.15} parent=11 // pred_region
        _
      $region44: #{gemini_df_resnet_forward.15} parent=11 // pred_fallthru
        _
      // Predicated region
      $region45: #{gemini_df_resnet_forward.15} parent=11 // pred_check
        %p318 = pneg %p232
      $region46: #{gemini_df_resnet_forward.15} parent=11 // pred_check_branch
        %320 = sbr.rel (%p318) target = $region48
      $region47: #{gemini_df_resnet_forward.15} parent=11 // pred_region
        _
      $region48: #{gemini_df_resnet_forward.15} parent=11 // pred_fallthru
        _
      // Predicated region
      $region49: #{gemini_df_resnet_forward.15} parent=11 // pred_check
        %p321 = pneg %p253
      $region50: #{gemini_df_resnet_forward.15} parent=11 // pred_check_branch
        %323 = sbr.rel (%p321) target = $region52
      $region51: #{gemini_df_resnet_forward.15} parent=11 // pred_region
        _
      $region52: #{gemini_df_resnet_forward.15} parent=11 // pred_fallthru
        _
    $region12: #{gemini_df_resnet_forward.15} parent=5 // pred_fallthru
      _
    %p324 = scmp.lt.s32.totalorder %s17, 2
    // Predicated region
    $region53: #{gemini_df_resnet_forward.15} parent=5 // pred_check
      %p325 = pneg %p324
    $region54: #{gemini_df_resnet_forward.15} parent=5 // pred_check_branch
      %327 = sbr.rel (%p325) target = $region56
    $region55: #{gemini_df_resnet_forward.15} parent=5 // pred_region
      // Predicated region
      $region57: #{gemini_df_resnet_forward.15} parent=55 // pred_check
        %p328 = pneg %p37
      $region58: #{gemini_df_resnet_forward.15} parent=55 // pred_check_branch
        %330 = sbr.rel (%p328) target = $region60
      $region59: #{gemini_df_resnet_forward.15} parent=55 // pred_region
        %p331 = scmp.lt.s32.totalorder %s17, 1
        %s332 = scalar_select %p331, %s17, 1
        %s333 = smul.addr %s332, 2
        %s334 = smul.addr %s333, 4
        %s335 = scalar_lea.vmem %s0, %s334
      $region60: #{gemini_df_resnet_forward.15} parent=55 // pred_fallthru
        _
    $region56: #{gemini_df_resnet_forward.15} parent=5 // pred_fallthru
      _
    %p336 = scmp.le.s32.totalorder 1, %s17
    %p337 = scmp.lt.s32.totalorder %s17, 3
    %p338 = pnand %p336, %p337
    %p339 = pneg %p338
    // Predicated region
    $region61: #{gemini_df_resnet_forward.15} parent=5 // pred_check
      _
    $region62: #{gemini_df_resnet_forward.15} parent=5 // pred_check_branch
      %341 = sbr.rel (%p338) target = $region64
    $region63: #{gemini_df_resnet_forward.15} parent=5 // pred_region
      %s342 = ssub.s32 %s17, 1
      %p343 = scmp.lt.s32.totalorder %s22, 1
      %s344 = scalar_select %p343, %s22, 1
      %s345 = smul.addr %s344, 2
      %s346 = smul.addr %s345, 4
      %s347 = scalar_lea.vmem %s0, %s346
      %p348 = pneg %p43
      %p349 = pneg %p40
      %p350 = pneg %p64
      %p351 = pneg %p61
      %p352 = pneg %p85
      %p353 = pneg %p82
      %p354 = pneg %p106
      %p355 = pneg %p103
      %p356 = pneg %p127
      %p357 = pneg %p124
      %p358 = pneg %p148
      %p359 = pneg %p145
      %p360 = pneg %p169
      %p361 = pneg %p166
      %p362 = pneg %p190
      %p363 = pneg %p187
      %p364 = pneg %p211
      %p365 = pneg %p208
      %p366 = pneg %p232
      %p367 = pneg %p229
      %p368 = pneg %p253
      %p369 = pneg %p250
      %p370 = pneg %p279
      %p371 = pneg %p276
      %p372 = scmp.lt.s32.totalorder %s22, 1
      %s373 = scalar_select %p372, %s22, 1
      %s374 = smul.addr %s373, 2
      %s375 = smul.addr %s374, 4
      %s376 = scalar_lea.vmem %s11, %s375
      %p377 = scmp.lt.s32.totalorder %s22, 1
      %s378 = scalar_select %p377, %s22, 1
      %s379 = smul.addr %s378, 2
      %s380 = smul.addr %s379, 4
      %s381 = scalar_lea.vmem %s0, %s380
      %p382 = scmp.lt.s32.totalorder %s22, 1
      %s383 = scalar_select %p382, %s22, 1
      %s384 = smul.addr %s383, 2
      %s385 = smul.addr %s384, 4
      %s386 = scalar_lea.vmem %s11, %s385
      %v388 = vld [vmem:[%s381] sm:$0xf]
      %v389 = vld [vmem:[%s381 + $0x4] sm:$0xf]
      %v390 = vld [vmem:[%s2] sm:$0xf]
      %v391 = vld [vmem:[%s2 + $0x4] sm:$0xf]
      %v392 = vld [vmem:[%s2 + $0x8] sm:$0xf]
      %v393 = vld [vmem:[%s2 + $0xc] sm:$0xf]
      %v396 = vunpack.c.l.b16 %v388
      %v397 = vunpack.c.l.b16 %v389
      %v398 = vpack.c.b16 %v397, %v396
      %v403 = vunpack.c.l.b16 %v390
      %v404 = vunpack.c.l.b16 %v391
      %v405 = vunpack.c.l.b16 %v392
      %v406 = vunpack.c.l.b16 %v393
      %v407 = vpack.c.b16 %v404, %v403
      %v408 = vpack.c.b16 %v406, %v405
      %vm411 = vcmask 261120
      %v413 = vsel %vm411, %v398, 0
      %415 = vmatprep.subr.bf16.mxu0 0
      %416 = vmatpush1.bf16.msra.mxu0 %v407
      %417 = vmatprep.subr.bf16.mxu0 0
      %418 = vmatpush1.bf16.msra.mxu0 %v408
      %419 = vmatprep.subr.bf16.mxu0 0
      %420 = vmatpush1.bf16.msra.mxu0 0
      %421 = vmatprep.subr.bf16.mxu0 0
      %422 = vmatpush1.bf16.msra.mxu0 0
      %423 = vmatprep.subr.bf16.mxu0 0
      %424 = vmatpush1.bf16.msra.mxu0 0
      %425 = vmatprep.subr.bf16.mxu0 0
      %426 = vmatpush1.bf16.msra.mxu0 0
      %427 = vmatprep.subr.bf16.mxu0 0
      %428 = vmatpush1.bf16.msra.mxu0 0
      %429 = vmatprep.subr.bf16.mxu0 0
      %430 = vmatpush1.bf16.msra.mxu0 0
      %431 = vmatprep.subr.bf16.mxu0 0
      %432 = vmatpush1.bf16.msra.mxu0 0
      %433 = vmatprep.subr.bf16.mxu0 0
      %434 = vmatpush1.bf16.msra.mxu0 0
      %435 = vmatprep.subr.bf16.mxu0 0
      %436 = vmatpush1.bf16.msra.mxu0 0
      %437 = vmatprep.subr.bf16.mxu0 0
      %438 = vmatpush1.bf16.msra.mxu0 0
      %439 = vmatprep.subr.bf16.mxu0 0
      %440 = vmatpush1.bf16.msra.mxu0 0
      %441 = vmatprep.subr.bf16.mxu0 0
      %442 = vmatpush1.bf16.msra.mxu0 0
      %443 = vmatprep.subr.bf16.mxu0 0
      %444 = vmatpush1.bf16.msra.mxu0 0
      %445 = vmatprep.subr.bf16.mxu0 0
      %446 = vmatpush1.bf16.msra.mxu0 0
      %447 = vmatprep.mubr.bf16.mxu0 0
      %448 = vmatmul.mubr.bf16.gmra.mrb[0].mxu0 %v413
      %v449 = vpop.f32.mrb[0].mxu0
      %v450 = vadd.f32 0.0, %v449
      %v451 = vpop.f32.mrb[0].mxu0
      %v452 = vpop.f32.mrb[0].mxu0
      %v453 = vadd.f32 0.0, %v452
      %v454 = vpop.f32.mrb[0].mxu0
      %455 = vdwg.mxu0
      %v456 = vld [vmem:[%s3] sm:$0x1]
      %v458 = vlaneseq
      %v459 = vshrl.u32 %v458, 7
      %v460 = vsub.s32 0, %v459
      %v461 = vrot.slane %v456, %v460
      %v463 = vmul.f32 %v450, %v461
      %v464 = vmul.f32 %v453, %v461
      %v465 = vld [vmem:[%s4] sm:$0x1]
      %v467 = vlaneseq
      %v468 = vshrl.u32 %v467, 7
      %v469 = vsub.s32 0, %v468
      %v470 = vrot.slane %v465, %v469
      %v472 = vadd.f32 %v463, %v470
      %v473 = vadd.f32 %v464, %v470
      %v474 = vmax.f32 %v472, 0.0
      %v475 = vmax.f32 %v473, 0.0
      %476 = vst [vmem:[#allocation2] sm:$0xff] 0.0
      %477 = vst [vmem:[#allocation2 + $0x8] sm:$0xff] 0.0
      %478 = vst [vmem:[#allocation2 + $0x10] sm:$0xff] 0.0
      %479 = vst [vmem:[#allocation2 + $0x18] sm:$0xff] 0.0
      %480 = vst [vmem:[#allocation2 + $0x8] sm:$0xff] %v474
      %481 = vst [vmem:[#allocation2 + $0x10] sm:$0xff] %v475
      %v482 = vld [vmem:[#allocation2] sm:$0xff]
      %v483 = vld [vmem:[#allocation2 + $0x8] sm:$0xff]
      %v484 = vld [vmem:[#allocation2 + $0x10] sm:$0xff]
      %v485 = vld [vmem:[#allocation2 + $0x18] sm:$0xff]
      %v486 = vld [vmem:[%s1] sm:$0xff]
      %v487 = vld [vmem:[%s1 + $0x8] sm:$0xff]
      %v488 = vld [vmem:[%s5] sm:$0xff]
      %v489 = vld [vmem:[%s5 + $0x8] sm:$0x1]
      %v490 = vlaneseq
      %v491 = vshrl.u32 %v490, 7
      %v492 = vsub.s32 0, %v491
      %v493 = vrot.slane %v488, %v492
      %v494 = vmul.f32 %v482, %v493
      %v495 = vmul.f32 %v483, %v493
      %v496 = vmul.f32 %v484, %v493
      %498 = vset.pattern.permute.xlu0 0
      %499 = vperm.xlu0 %498, %v486
      %v500 = vpop.permute.xlu0 %499
      %502 = vset.pattern.permute.xlu0 0
      %503 = vperm.xlu0 %502, %v487
      %v504 = vpop.permute.xlu0 %503
      %vm505 = vcmask 1042432
      %v506 = vrot.slane %v500, 5
      %v507 = vrot.slane %v504, 5
      %v508 = vsel %vm505, %v506, %v507
      %v512 = vmul.f32 %v494, %v506
      %v513 = vmul.f32 %v495, %v508
      %v514 = vmul.f32 %v496, %v507
      %v515 = vlaneseq
      %v516 = vshrl.u32 %v515, 7
      %v517 = vsub.s32 1, %v516
      %v518 = vrot.slane %v488, %v517
      %v519 = vmul.f32 %v482, %v518
      %v520 = vmul.f32 %v483, %v518
      %v521 = vmul.f32 %v484, %v518
      %vm525 = vcmask 1046528
      %v526 = vrot.slane %v519, 1
      %v527 = vrot.slane %v520, 1
      %v528 = vsel %vm525, %v526, %v527
      %v529 = vrot.slane %v521, 1
      %v530 = vsel %vm525, %v527, %v529
      %v534 = vadd.f32 %v512, %v528
      %v535 = vadd.f32 %v513, %v530
      %v536 = vadd.f32 %v514, %v529
      %v537 = vlaneseq
      %v538 = vshrl.u32 %v537, 7
      %v539 = vsub.s32 2, %v538
      %v540 = vrot.slane %v488, %v539
      %v541 = vmul.f32 %v482, %v540
      %v542 = vmul.f32 %v483, %v540
      %v543 = vmul.f32 %v484, %v540
      %544 = vset.pattern.permute.xlu0 1
      %545 = vperm.xlu0 %544, %v486
      %v546 = vpop.permute.xlu0 %545
      %547 = vset.pattern.permute.xlu0 1
      %548 = vperm.xlu0 %547, %v487
      %v549 = vpop.permute.xlu0 %548
      %vm550 = vcmask 1044480
      %v551 = vrot.slane %v546, 3
      %v552 = vrot.slane %v549, 3
      %v553 = vsel %vm550, %v551, %v552
      %v557 = vmul.f32 %v541, %v551
      %v558 = vmul.f32 %v542, %v553
      %v559 = vmul.f32 %v543, %v552
      %vm563 = vcmask 1045504
      %v564 = vrot.slane %v557, 2
      %v565 = vrot.slane %v558, 2
      %v566 = vsel %vm563, %v564, %v565
      %v567 = vrot.slane %v559, 2
      %v568 = vsel %vm563, %v565, %v567
      %v572 = vadd.f32 %v534, %v566
      %v573 = vadd.f32 %v535, %v568
      %v574 = vadd.f32 %v536, %v567
      %v575 = vlaneseq
      %v576 = vshrl.u32 %v575, 7
      %v577 = vsub.s32 3, %v576
      %v578 = vrot.slane %v488, %v577
      %v579 = vmul.f32 %v482, %v578
      %v580 = vmul.f32 %v483, %v578
      %v581 = vmul.f32 %v484, %v578
      %v582 = vrot.slane %v500, 1
      %v583 = vrot.slane %v504, 1
      %v584 = vsel %vm525, %v582, %v583
      %v588 = vmul.f32 %v579, %v582
      %v589 = vmul.f32 %v580, %v584
      %v590 = vmul.f32 %v581, %v583
      %vm594 = vcmask 1043456
      %v595 = vrot.slane %v588, 4
      %v596 = vrot.slane %v589, 4
      %v597 = vsel %vm594, %v595, %v596
      %v598 = vrot.slane %v590, 4
      %v599 = vsel %vm594, %v596, %v598
      %v603 = vadd.f32 %v572, %v597
      %v604 = vadd.f32 %v573, %v599
      %v605 = vadd.f32 %v574, %v598
      %v606 = vlaneseq
      %v607 = vshrl.u32 %v606, 7
      %v608 = vsub.s32 4, %v607
      %v609 = vrot.slane %v488, %v608
      %v610 = vmul.f32 %v483, %v609
      %v611 = vmul.f32 %v484, %v609
      %v614 = vrot.slane %v610, 5
      %v615 = vrot.slane %v611, 5
      %v616 = vsel %vm505, %v614, %v615
      %v620 = vadd.f32 %v603, %v614
      %v621 = vadd.f32 %v604, %v616
      %v622 = vadd.f32 %v605, %v615
      %v623 = vlaneseq
      %v624 = vshrl.u32 %v623, 7
      %v625 = vsub.s32 5, %v624
      %v626 = vrot.slane %v488, %v625
      %v627 = vmul.f32 %v483, %v626
      %v628 = vmul.f32 %v484, %v626
      %v629 = vmul.f32 %v485, %v626
      %vm630 = vcmask 1040384
      %v631 = vrot.slane %v546, 7
      %v632 = vrot.slane %v549, 7
      %v633 = vsel %vm630, %v631, %v632
      %v637 = vmul.f32 %v627, %v631
      %v638 = vmul.f32 %v628, %v633
      %v639 = vmul.f32 %v629, %v632
      %vm643 = vcmask 1041408
      %v644 = vrot.slane %v637, 6
      %v645 = vrot.slane %v638, 6
      %v646 = vsel %vm643, %v644, %v645
      %v647 = vrot.slane %v639, 6
      %v648 = vsel %vm643, %v645, %v647
      %v652 = vadd.f32 %v620, %v644
      %v653 = vadd.f32 %v621, %v646
      %v654 = vadd.f32 %v622, %v648
      %v655 = vlaneseq
      %v656 = vshrl.u32 %v655, 7
      %v657 = vsub.s32 6, %v656
      %v658 = vrot.slane %v488, %v657
      %v659 = vmul.f32 %v483, %v658
      %v660 = vmul.f32 %v484, %v658
      %v661 = vmul.f32 %v485, %v658
      %v662 = vmul.f32 %v659, %v506
      %v663 = vmul.f32 %v660, %v508
      %v664 = vmul.f32 %v661, %v507
      %v665 = vadd.f32 %v652, %v662
      %v666 = vadd.f32 %v653, %v663
      %v667 = vadd.f32 %v654, %v664
      %v668 = vlaneseq
      %v669 = vshrl.u32 %v668, 7
      %v670 = vsub.s32 7, %v669
      %v671 = vrot.slane %v488, %v670
      %v672 = vmul.f32 %v483, %v671
      %v673 = vmul.f32 %v484, %v671
      %v674 = vmul.f32 %v485, %v671
      %v678 = vrot.slane %v672, 1
      %v679 = vrot.slane %v673, 1
      %v680 = vsel %vm525, %v678, %v679
      %v681 = vrot.slane %v674, 1
      %v682 = vsel %vm525, %v679, %v681
      %v686 = vadd.f32 %v665, %v680
      %v687 = vadd.f32 %v666, %v682
      %v688 = vadd.f32 %v667, %v681
      %v689 = vlaneseq
      %v690 = vshrl.u32 %v689, 7
      %v691 = vsub.s32 0, %v690
      %v692 = vrot.slane %v489, %v691
      %v693 = vmul.f32 %v483, %v692
      %v694 = vmul.f32 %v484, %v692
      %v695 = vmul.f32 %v485, %v692
      %v696 = vmul.f32 %v693, %v551
      %v697 = vmul.f32 %v694, %v553
      %v698 = vmul.f32 %v695, %v552
      %v702 = vrot.slane %v696, 2
      %v703 = vrot.slane %v697, 2
      %v704 = vsel %vm563, %v702, %v703
      %v705 = vrot.slane %v698, 2
      %v706 = vsel %vm563, %v703, %v705
      %v710 = vadd.f32 %v686, %v704
      %v711 = vadd.f32 %v687, %v706
      %v712 = vadd.f32 %v688, %v705
      %v713 = vld [vmem:[%s6] sm:$0x1]
      %v715 = vlaneseq
      %v716 = vshrl.u32 %v715, 7
      %v717 = vsub.s32 0, %v716
      %v718 = vrot.slane %v713, %v717
      %v720 = vmul.f32 %v710, %v718
      %v721 = vmul.f32 %v711, %v718
      %v722 = vmul.f32 %v712, %v718
      %v723 = vld [vmem:[%s7] sm:$0x1]
      %v725 = vlaneseq
      %v726 = vshrl.u32 %v725, 7
      %v727 = vsub.s32 0, %v726
      %v728 = vrot.slane %v723, %v727
      %v730 = vadd.f32 %v720, %v728
      %v731 = vadd.f32 %v721, %v728
      %v732 = vadd.f32 %v722, %v728
      %v733 = vmax.f32 %v730, 0.0
      %v734 = vmax.f32 %v731, 0.0
      %v735 = vmax.f32 %v732, 0.0
      %v736 = vpack.c.bf16 %v734, %v733
      %v737 = vpack.c.bf16 %v735, %v735
      %v738 = vld [vmem:[%s8] sm:$0xf]
      %v739 = vld [vmem:[%s8 + $0x4] sm:$0xf]
      %v740 = vld [vmem:[%s8 + $0x8] sm:$0xf]
      %v741 = vld [vmem:[%s8 + $0xc] sm:$0xf]
      %v742 = vld [vmem:[%s8 + $0x10] sm:$0xf]
      %v743 = vld [vmem:[%s8 + $0x14] sm:$0xf]
      %v744 = vld [vmem:[%s8 + $0x18] sm:$0xf]
      %v745 = vld [vmem:[%s8 + $0x1c] sm:$0xf]
      %v746 = vld [vmem:[%s8 + $0x20] sm:$0xf]
      %v747 = vld [vmem:[%s8 + $0x24] sm:$0xf]
      %v748 = vld [vmem:[%s8 + $0x28] sm:$0xf]
      %v749 = vld [vmem:[%s8 + $0x2c] sm:$0xf]
      %v750 = vld [vmem:[%s8 + $0x30] sm:$0xf]
      %v751 = vld [vmem:[%s8 + $0x34] sm:$0xf]
      %v752 = vld [vmem:[%s8 + $0x38] sm:$0xf]
      %v753 = vld [vmem:[%s8 + $0x3c] sm:$0xf]
      %vm754 = vsmask.f32 6400
      %v756 = vshrl.u32 %v736, 16
      %v758 = vrot.slane %v756, 1
      %v759 = vshll.u32 %v736, 16
      %v761 = vrot.slane %v759, 2
      %v762 = vor.u32 %v758, %v761
      %v764 = vshrl.u32 %v737, 16
      %v766 = vrot.slane %v764, 1
      %v767 = vshll.u32 %v737, 16
      %v769 = vrot.slane %v767, 2
      %v770 = vor.u32 %v766, %v769
      %v771 = vsel %vm754, %v762, %v770
      %v789 = vunpack.c.l.b16 %v738
      %v790 = vunpack.c.l.b16 %v739
      %v791 = vunpack.c.l.b16 %v740
      %v792 = vunpack.c.l.b16 %v741
      %v793 = vunpack.c.l.b16 %v742
      %v794 = vunpack.c.l.b16 %v743
      %v795 = vunpack.c.l.b16 %v744
      %v796 = vunpack.c.l.b16 %v745
      %v797 = vunpack.c.l.b16 %v746
      %v798 = vunpack.c.l.b16 %v747
      %v799 = vunpack.c.l.b16 %v748
      %v800 = vunpack.c.l.b16 %v749
      %v801 = vunpack.c.l.b16 %v750
      %v802 = vunpack.c.l.b16 %v751
      %v803 = vunpack.c.l.b16 %v752
      %v804 = vunpack.c.l.b16 %v753
      %v805 = vpack.c.b16 %v790, %v789
      %v806 = vpack.c.b16 %v792, %v791
      %v807 = vpack.c.b16 %v794, %v793
      %v808 = vpack.c.b16 %v796, %v795
      %v809 = vpack.c.b16 %v798, %v797
      %v810 = vpack.c.b16 %v800, %v799
      %v811 = vpack.c.b16 %v802, %v801
      %v812 = vpack.c.b16 %v804, %v803
      %821 = vmatprep.subr.bf16.mxu0 0
      %822 = vmatpush1.bf16.msra.mxu0 %v805
      %823 = vmatprep.subr.bf16.mxu0 0
      %824 = vmatpush1.bf16.msra.mxu0 %v806
      %825 = vmatprep.subr.bf16.mxu0 0
      %826 = vmatpush1.bf16.msra.mxu0 %v807
      %827 = vmatprep.subr.bf16.mxu0 0
      %828 = vmatpush1.bf16.msra.mxu0 %v808
      %829 = vmatprep.subr.bf16.mxu0 0
      %830 = vmatpush1.bf16.msra.mxu0 %v809
      %831 = vmatprep.subr.bf16.mxu0 0
      %832 = vmatpush1.bf16.msra.mxu0 %v810
      %833 = vmatprep.subr.bf16.mxu0 0
      %834 = vmatpush1.bf16.msra.mxu0 %v811
      %835 = vmatprep.subr.bf16.mxu0 0
      %836 = vmatpush1.bf16.msra.mxu0 %v812
      %837 = vmatprep.subr.bf16.mxu0 0
      %838 = vmatpush1.bf16.msra.mxu0 0
      %839 = vmatprep.subr.bf16.mxu0 0
      %840 = vmatpush1.bf16.msra.mxu0 0
      %841 = vmatprep.subr.bf16.mxu0 0
      %842 = vmatpush1.bf16.msra.mxu0 0
      %843 = vmatprep.subr.bf16.mxu0 0
      %844 = vmatpush1.bf16.msra.mxu0 0
      %845 = vmatprep.subr.bf16.mxu0 0
      %846 = vmatpush1.bf16.msra.mxu0 0
      %847 = vmatprep.subr.bf16.mxu0 0
      %848 = vmatpush1.bf16.msra.mxu0 0
      %849 = vmatprep.subr.bf16.mxu0 0
      %850 = vmatpush1.bf16.msra.mxu0 0
      %851 = vmatprep.subr.bf16.mxu0 0
      %852 = vmatpush1.bf16.msra.mxu0 0
      %853 = vmatprep.mubr.bf16.mxu0 0
      %854 = vmatmul.mubr.bf16.gmra.mrb[0].mxu0 %v771
      %v855 = vpop.f32.mrb[0].mxu0
      %v856 = vadd.f32 0.0, %v855
      %v857 = vpop.f32.mrb[0].mxu0
      %v858 = vpop.f32.mrb[0].mxu0
      %v859 = vadd.f32 0.0, %v858
      %v860 = vpop.f32.mrb[0].mxu0
      %861 = vdwg.mxu0
      %v862 = vld [vmem:[%s9] sm:$0x1]
      %v864 = vlaneseq
      %v865 = vshrl.u32 %v864, 7
      %v866 = vsub.s32 0, %v865
      %v867 = vrot.slane %v862, %v866
      %v869 = vmul.f32 %v856, %v867
      %v870 = vmul.f32 %v859, %v867
      %v871 = vld [vmem:[%s10] sm:$0x1]
      %v873 = vlaneseq
      %v874 = vshrl.u32 %v873, 7
      %v875 = vsub.s32 0, %v874
      %v876 = vrot.slane %v871, %v875
      %v878 = vadd.f32 %v869, %v876
      %v879 = vadd.f32 %v870, %v876
      %v880 = vunpack.c.l.bf16 %v388
      %v881 = vunpack.c.l.bf16 %v389
      %v882 = vadd.f32 %v878, %v880
      %v883 = vadd.f32 %v879, %v881
      %v884 = vmax.f32 %v882, 0.0
      %v885 = vmax.f32 %v883, 0.0
      %v886 = vpack.c.bf16 %v885, %v884
      %v888 = vunpack.c.l.b16 %v886
      %v889 = vunpack.c.h.b16 %v886
      %v890 = vpack.c.b16 %v888, %v888
      %v891 = vpack.c.b16 %v889, %v889
      %vm894 = vcmask 257024
      %895 = vst.msk [vmem:[%s386] sm:$0xf] %vm894, %v890
      %896 = vst.msk [vmem:[%s386 + $0x4] sm:$0xf] %vm894, %v891
      %p897 = scmp.lt.s32.totalorder %s22, 1
      %s898 = scalar_select %p897, %s22, 1
      %s899 = smul.addr %s898, 2
      %s900 = smul.addr %s899, 4
      %s901 = scalar_lea.vmem %s11, %s900
      // Predicated region
      $region65: #{gemini_df_resnet_forward.15} parent=63 // pred_check
        %p902 = pneg %p276
      $region66: #{gemini_df_resnet_forward.15} parent=63 // pred_check_branch
        %904 = sbr.rel (%p902) target = $region68
      $region67: #{gemini_df_resnet_forward.15} parent=63 // pred_region
        _
      $region68: #{gemini_df_resnet_forward.15} parent=63 // pred_fallthru
        _
    $region64: #{gemini_df_resnet_forward.15} parent=5 // pred_fallthru
      _
    %p905 = scmp.le.s32.totalorder 2, %s17
    // Predicated region
    $region69: #{gemini_df_resnet_forward.15} parent=5 // pred_check
      %p906 = pneg %p905
    $region70: #{gemini_df_resnet_forward.15} parent=5 // pred_check_branch
      %908 = sbr.rel (%p906) target = $region72
    $region71: #{gemini_df_resnet_forward.15} parent=5 // pred_region
      %s909 = ssub.s32 %s17, 2
      // Predicated region
      $region73: #{gemini_df_resnet_forward.15} parent=71 // pred_check
        %p910 = pneg %p282
      $region74: #{gemini_df_resnet_forward.15} parent=71 // pred_check_branch
        %912 = sbr.rel (%p910) target = $region76
      $region75: #{gemini_df_resnet_forward.15} parent=71 // pred_region
        %p913 = scmp.lt.s32.totalorder %s23, 1
        %s914 = scalar_select %p913, %s23, 1
        %s915 = smul.addr %s914, 2
        %s916 = smul.addr %s915, 4
        %s917 = scalar_lea.vmem %s11, %s916
      $region76: #{gemini_df_resnet_forward.15} parent=71 // pred_fallthru
        _
    $region72: #{gemini_df_resnet_forward.15} parent=5 // pred_fallthru
      _
  $region6: #{gemini_df_resnet_forward.15} parent=0 // loop_footer
    %s21 = sadd.s32 1, %s17
  $region7: #{gemini_df_resnet_forward.15} parent=0 // loop_footer_branch
    %16 = sbr.rel target = $region3
  $region8: #{gemini_df_resnet_forward.15} parent=0 // loop_exit
    _

// kernel: gemini_df_resnet_forward.16
$region0: #{gemini_df_resnet_forward.16}
  #allocation0 [shape = 'u32[]', space=smem, size = 0x4, offset = 0x4, fixed_abs, tag = 'smem constant byte address 0x4 - core index']
  #allocation1 [shape = 'u32[144,128]{1,0:T(1,128)}', space=vmem, size = 0x12000, scoped, tag = 'internal scratch']
  %s0 = inlined_call_operand.vmem [shape: bf16[16,288], index: 0, kind: input, shape index: {}]
  %s1 = inlined_call_operand.vmem [shape: bf16[288,32], index: 1, kind: input, shape index: {}]
  %s2 = inlined_call_operand.vmem [shape: f32[1,32], index: 2, kind: input, shape index: {}]
  %s3 = inlined_call_operand.vmem [shape: f32[1,32], index: 3, kind: input, shape index: {}]
  %s4 = inlined_call_operand.vmem [shape: bf16[16,32], index: 4, kind: output, shape index: {}]
  %s5 = sld [smem:[#allocation0]]
  $region26: #{gemini_df_resnet_forward.16} parent=0
    _
  %s7 = ssub.s32 1, %s5
  %s8 = scalar_select 0, %s7, %s5
  // Predicated region
  $region2: #{gemini_df_resnet_forward.16} parent=0 // pred_check
    _
  $region3: #{gemini_df_resnet_forward.16} parent=0 // pred_check_branch
    %10 = sbr.rel (0) target = $region5
  $region4: #{gemini_df_resnet_forward.16} parent=0 // pred_region
    _
  $region5: #{gemini_df_resnet_forward.16} parent=0 // pred_fallthru
    _
  // Predicated region
  $region6: #{gemini_df_resnet_forward.16} parent=0 // pred_check
    _
  $region7: #{gemini_df_resnet_forward.16} parent=0 // pred_check_branch
    %12 = sbr.rel (0) target = $region9
  $region8: #{gemini_df_resnet_forward.16} parent=0 // pred_region
    _
  $region9: #{gemini_df_resnet_forward.16} parent=0 // pred_fallthru
    _
  // Predicated region
  $region10: #{gemini_df_resnet_forward.16} parent=0 // pred_check
    _
  $region11: #{gemini_df_resnet_forward.16} parent=0 // pred_check_branch
    %14 = sbr.rel (0) target = $region13
  $region12: #{gemini_df_resnet_forward.16} parent=0 // pred_region
    _
  $region13: #{gemini_df_resnet_forward.16} parent=0 // pred_fallthru
    _
  // Predicated region
  $region14: #{gemini_df_resnet_forward.16} parent=0 // pred_check
    _
  $region15: #{gemini_df_resnet_forward.16} parent=0 // pred_check_branch
    %16 = sbr.rel (0) target = $region17
  $region16: #{gemini_df_resnet_forward.16} parent=0 // pred_region
    _
  $region17: #{gemini_df_resnet_forward.16} parent=0 // pred_fallthru
    _
  %v18 = vld [vmem:[%s0] sm:$0xff]
  %v19 = vld [vmem:[%s0 + $0x8] sm:$0xf]
  %v20 = vld [vmem:[%s0 + $0xc] sm:$0xff]
  %v21 = vld [vmem:[%s0 + $0x14] sm:$0xf]
  %v22 = vld [vmem:[%s1] sm:$0xf]
  %v23 = vld [vmem:[%s1 + $0x4] sm:$0xf]
  %v24 = vld [vmem:[%s1 + $0x8] sm:$0xf]
  %v25 = vld [vmem:[%s1 + $0xc] sm:$0xf]
  %v26 = vld [vmem:[%s1 + $0x10] sm:$0xf]
  %v27 = vld [vmem:[%s1 + $0x14] sm:$0xf]
  %v28 = vld [vmem:[%s1 + $0x18] sm:$0xf]
  %v29 = vld [vmem:[%s1 + $0x1c] sm:$0xf]
  %v30 = vld [vmem:[%s1 + $0x20] sm:$0xf]
  %v31 = vld [vmem:[%s1 + $0x24] sm:$0xf]
  %v32 = vld [vmem:[%s1 + $0x28] sm:$0xf]
  %v33 = vld [vmem:[%s1 + $0x2c] sm:$0xf]
  %v34 = vld [vmem:[%s1 + $0x30] sm:$0xf]
  %v35 = vld [vmem:[%s1 + $0x34] sm:$0xf]
  %v36 = vld [vmem:[%s1 + $0x38] sm:$0xf]
  %v37 = vld [vmem:[%s1 + $0x3c] sm:$0xf]
  %v38 = vld [vmem:[%s1 + $0x40] sm:$0xf]
  %v39 = vld [vmem:[%s1 + $0x44] sm:$0xf]
  %v40 = vld [vmem:[%s1 + $0x48] sm:$0xf]
  %v41 = vld [vmem:[%s1 + $0x4c] sm:$0xf]
  %v42 = vld [vmem:[%s1 + $0x50] sm:$0xf]
  %v43 = vld [vmem:[%s1 + $0x54] sm:$0xf]
  %v44 = vld [vmem:[%s1 + $0x58] sm:$0xf]
  %v45 = vld [vmem:[%s1 + $0x5c] sm:$0xf]
  %v46 = vld [vmem:[%s1 + $0x60] sm:$0xf]
  %v47 = vld [vmem:[%s1 + $0x64] sm:$0xf]
  %v48 = vld [vmem:[%s1 + $0x68] sm:$0xf]
  %v49 = vld [vmem:[%s1 + $0x6c] sm:$0xf]
  %v50 = vld [vmem:[%s1 + $0x70] sm:$0xf]
  %v51 = vld [vmem:[%s1 + $0x74] sm:$0xf]
  %v52 = vld [vmem:[%s1 + $0x78] sm:$0xf]
  %v53 = vld [vmem:[%s1 + $0x7c] sm:$0xf]
  %v54 = vld [vmem:[%s1 + $0x80] sm:$0xf]
  %v55 = vld [vmem:[%s1 + $0x84] sm:$0xf]
  %v56 = vld [vmem:[%s1 + $0x88] sm:$0xf]
  %v57 = vld [vmem:[%s1 + $0x8c] sm:$0xf]
  %v62 = vunpack.c.l.b16 %v18
  %v63 = vunpack.c.h.b16 %v18
  %v64 = vunpack.c.l.b16 %v19
  %v65 = vunpack.c.l.b16 %v20
  %v66 = vunpack.c.h.b16 %v20
  %v67 = vunpack.c.l.b16 %v21
  %v68 = vpack.c.b16 %v65, %v62
  %v69 = vpack.c.b16 %v66, %v63
  %v70 = vpack.c.b16 %v67, %v64
  %v109 = vunpack.c.l.b16 %v22
  %v110 = vunpack.c.l.b16 %v23
  %v111 = vunpack.c.l.b16 %v24
  %v112 = vunpack.c.l.b16 %v25
  %v113 = vunpack.c.l.b16 %v26
  %v114 = vunpack.c.l.b16 %v27
  %v115 = vunpack.c.l.b16 %v28
  %v116 = vunpack.c.l.b16 %v29
  %v117 = vunpack.c.l.b16 %v30
  %v118 = vunpack.c.l.b16 %v31
  %v119 = vunpack.c.l.b16 %v32
  %v120 = vunpack.c.l.b16 %v33
  %v121 = vunpack.c.l.b16 %v34
  %v122 = vunpack.c.l.b16 %v35
  %v123 = vunpack.c.l.b16 %v36
  %v124 = vunpack.c.l.b16 %v37
  %v125 = vunpack.c.l.b16 %v38
  %v126 = vunpack.c.l.b16 %v39
  %v127 = vunpack.c.l.b16 %v40
  %v128 = vunpack.c.l.b16 %v41
  %v129 = vunpack.c.l.b16 %v42
  %v130 = vunpack.c.l.b16 %v43
  %v131 = vunpack.c.l.b16 %v44
  %v132 = vunpack.c.l.b16 %v45
  %v133 = vunpack.c.l.b16 %v46
  %v134 = vunpack.c.l.b16 %v47
  %v135 = vunpack.c.l.b16 %v48
  %v136 = vunpack.c.l.b16 %v49
  %v137 = vunpack.c.l.b16 %v50
  %v138 = vunpack.c.l.b16 %v51
  %v139 = vunpack.c.l.b16 %v52
  %v140 = vunpack.c.l.b16 %v53
  %v141 = vunpack.c.l.b16 %v54
  %v142 = vunpack.c.l.b16 %v55
  %v143 = vunpack.c.l.b16 %v56
  %v144 = vunpack.c.l.b16 %v57
  %v145 = vpack.c.b16 %v110, %v109
  %v146 = vpack.c.b16 %v112, %v111
  %v147 = vpack.c.b16 %v114, %v113
  %v148 = vpack.c.b16 %v116, %v115
  %v149 = vpack.c.b16 %v118, %v117
  %v150 = vpack.c.b16 %v120, %v119
  %v151 = vpack.c.b16 %v122, %v121
  %v152 = vpack.c.b16 %v124, %v123
  %v153 = vpack.c.b16 %v126, %v125
  %v154 = vpack.c.b16 %v128, %v127
  %v155 = vpack.c.b16 %v130, %v129
  %v156 = vpack.c.b16 %v132, %v131
  %v157 = vpack.c.b16 %v134, %v133
  %v158 = vpack.c.b16 %v136, %v135
  %v159 = vpack.c.b16 %v138, %v137
  %v160 = vpack.c.b16 %v140, %v139
  %v161 = vpack.c.b16 %v142, %v141
  %v162 = vpack.c.b16 %v144, %v143
  %vm181 = vcmask 261120
  %v183 = vsel %vm181, %v70, 0
  %185 = vmatprep.subr.bf16.mxu0 0
  %186 = vmatpush1.bf16.msra.mxu0 %v145
  %187 = vmatprep.subr.bf16.mxu0 0
  %188 = vmatpush1.bf16.msra.mxu0 %v146
  %189 = vmatprep.subr.bf16.mxu0 0
  %190 = vmatpush1.bf16.msra.mxu0 %v147
  %191 = vmatprep.subr.bf16.mxu0 0
  %192 = vmatpush1.bf16.msra.mxu0 %v148
  %193 = vmatprep.subr.bf16.mxu0 0
  %194 = vmatpush1.bf16.msra.mxu0 %v149
  %195 = vmatprep.subr.bf16.mxu0 0
  %196 = vmatpush1.bf16.msra.mxu0 %v150
  %197 = vmatprep.subr.bf16.mxu0 0
  %198 = vmatpush1.bf16.msra.mxu0 %v151
  %199 = vmatprep.subr.bf16.mxu0 0
  %200 = vmatpush1.bf16.msra.mxu0 %v152
  %201 = vmatprep.subr.bf16.mxu0 0
  %202 = vmatpush1.bf16.msra.mxu0 %v153
  %203 = vmatprep.subr.bf16.mxu0 0
  %204 = vmatpush1.bf16.msra.mxu0 %v154
  %205 = vmatprep.subr.bf16.mxu0 0
  %206 = vmatpush1.bf16.msra.mxu0 %v155
  %207 = vmatprep.subr.bf16.mxu0 0
  %208 = vmatpush1.bf16.msra.mxu0 %v156
  %209 = vmatprep.subr.bf16.mxu0 0
  %210 = vmatpush1.bf16.msra.mxu0 %v157
  %211 = vmatprep.subr.bf16.mxu0 0
  %212 = vmatpush1.bf16.msra.mxu0 %v158
  %213 = vmatprep.subr.bf16.mxu0 0
  %214 = vmatpush1.bf16.msra.mxu0 %v159
  %215 = vmatprep.subr.bf16.mxu0 0
  %216 = vmatpush1.bf16.msra.mxu0 %v160
  %217 = vmatprep.mubr.bf16.mxu0 %v69
  %218 = vmatmul.mubr.bf16.gmra.mrb[0].mxu0 %v68
  %v219 = vpop.f32.mrb[0].mxu0
  %v220 = vadd.f32 0.0, %v219
  %v221 = vpop.f32.mrb[0].mxu0
  %v222 = vpop.f32.mrb[0].mxu0
  %v223 = vadd.f32 0.0, %v222
  %v224 = vpop.f32.mrb[0].mxu0
  %225 = vdwg.mxu0
  %226 = vmatprep.subr.bf16.mxu0 0
  %227 = vmatpush1.bf16.msra.mxu0 %v161
  %228 = vmatprep.subr.bf16.mxu0 0
  %229 = vmatpush1.bf16.msra.mxu0 %v162
  %230 = vmatprep.subr.bf16.mxu0 0
  %231 = vmatpush1.bf16.msra.mxu0 0
  %232 = vmatprep.subr.bf16.mxu0 0
  %233 = vmatpush1.bf16.msra.mxu0 0
  %234 = vmatprep.subr.bf16.mxu0 0
  %235 = vmatpush1.bf16.msra.mxu0 0
  %236 = vmatprep.subr.bf16.mxu0 0
  %237 = vmatpush1.bf16.msra.mxu0 0
  %238 = vmatprep.subr.bf16.mxu0 0
  %239 = vmatpush1.bf16.msra.mxu0 0
  %240 = vmatprep.subr.bf16.mxu0 0
  %241 = vmatpush1.bf16.msra.mxu0 0
  %242 = vmatprep.subr.bf16.mxu0 0
  %243 = vmatpush1.bf16.msra.mxu0 0
  %244 = vmatprep.subr.bf16.mxu0 0
  %245 = vmatpush1.bf16.msra.mxu0 0
  %246 = vmatprep.subr.bf16.mxu0 0
  %247 = vmatpush1.bf16.msra.mxu0 0
  %248 = vmatprep.subr.bf16.mxu0 0
  %249 = vmatpush1.bf16.msra.mxu0 0
  %250 = vmatprep.subr.bf16.mxu0 0
  %251 = vmatpush1.bf16.msra.mxu0 0
  %252 = vmatprep.subr.bf16.mxu0 0
  %253 = vmatpush1.bf16.msra.mxu0 0
  %254 = vmatprep.subr.bf16.mxu0 0
  %255 = vmatpush1.bf16.msra.mxu0 0
  %256 = vmatprep.subr.bf16.mxu0 0
  %257 = vmatpush1.bf16.msra.mxu0 0
  %258 = vmatprep.mubr.bf16.mxu0 0
  %259 = vmatmul.mubr.bf16.gmra.mrb[0].mxu0 %v183
  %v260 = vpop.f32.mrb[0].mxu0
  %v261 = vadd.f32 %v220, %v260
  %v262 = vpop.f32.mrb[0].mxu0
  %v263 = vpop.f32.mrb[0].mxu0
  %v264 = vadd.f32 %v223, %v263
  %v265 = vpop.f32.mrb[0].mxu0
  %266 = vdwg.mxu0
  %v267 = vld [vmem:[%s2] sm:$0x1]
  %v269 = vlaneseq
  %v270 = vshrl.u32 %v269, 7
  %v271 = vsub.s32 0, %v270
  %v272 = vrot.slane %v267, %v271
  %v274 = vmul.f32 %v261, %v272
  %v275 = vmul.f32 %v264, %v272
  %v276 = vld [vmem:[%s3] sm:$0x1]
  %v278 = vlaneseq
  %v279 = vshrl.u32 %v278, 7
  %v280 = vsub.s32 0, %v279
  %v281 = vrot.slane %v276, %v280
  %v283 = vadd.f32 %v274, %v281
  %v284 = vadd.f32 %v275, %v281
  %v285 = vpack.c.bf16 %v284, %v283
  %v287 = vunpack.c.l.b16 %v285
  %v288 = vunpack.c.h.b16 %v285
  %v289 = vpack.c.b16 %v287, %v287
  %v290 = vpack.c.b16 %v288, %v288
  %vm293 = vcmask 257024
  %294 = vst.msk [vmem:[%s4] sm:$0xf] %vm293, %v289
  %295 = vst.msk [vmem:[%s4 + $0x4] sm:$0xf] %vm293, %v290
  // Predicated region
  $region18: #{gemini_df_resnet_forward.16} parent=0 // pred_check
    _
  $region19: #{gemini_df_resnet_forward.16} parent=0 // pred_check_branch
    %297 = sbr.rel (0) target = $region21
  $region20: #{gemini_df_resnet_forward.16} parent=0 // pred_region
    _
  $region21: #{gemini_df_resnet_forward.16} parent=0 // pred_fallthru
    _
  // Predicated region
  $region22: #{gemini_df_resnet_forward.16} parent=0 // pred_check
    _
  $region23: #{gemini_df_resnet_forward.16} parent=0 // pred_check_branch
    %299 = sbr.rel (0) target = $region25
  $region24: #{gemini_df_resnet_forward.16} parent=0 // pred_region
    _
  $region25: #{gemini_df_resnet_forward.16} parent=0 // pred_fallthru
    _

// kernel: gemini_df_resnet_forward.17
$region0: #{gemini_df_resnet_forward.17}
  #allocation0 [shape = 'u32[]', space=smem, size = 0x4, offset = 0x4, fixed_abs, tag = 'smem constant byte address 0x4 - core index']
  #allocation1 [shape = 'u32[144,128]{1,0:T(1,128)}', space=vmem, size = 0x12000, scoped, tag = 'internal scratch']
  #allocation2 [shape = 'f32[24,128]{1,0:T(8,128)}', space=vmem, size = 0x3000, scoped, tag = 'scratch operand']
  %s0 = inlined_call_operand.vmem [shape: bf16[2,8,32], index: 0, kind: input, shape index: {}]
  %s1 = inlined_call_operand.vmem [shape: f32[8,2], index: 1, kind: input, shape index: {}]
  %s2 = inlined_call_operand.vmem [shape: bf16[32,128], index: 2, kind: input, shape index: {}]
  %s3 = inlined_call_operand.vmem [shape: f32[1,128], index: 3, kind: input, shape index: {}]
  %s4 = inlined_call_operand.vmem [shape: f32[1,128], index: 4, kind: input, shape index: {}]
  %s5 = inlined_call_operand.vmem [shape: f32[9,128], index: 5, kind: input, shape index: {}]
  %s6 = inlined_call_operand.vmem [shape: f32[1,128], index: 6, kind: input, shape index: {}]
  %s7 = inlined_call_operand.vmem [shape: f32[1,128], index: 7, kind: input, shape index: {}]
  %s8 = inlined_call_operand.vmem [shape: bf16[128,32], index: 8, kind: input, shape index: {}]
  %s9 = inlined_call_operand.vmem [shape: f32[1,32], index: 9, kind: input, shape index: {}]
  %s10 = inlined_call_operand.vmem [shape: f32[1,32], index: 10, kind: input, shape index: {}]
  %s11 = inlined_call_operand.vmem [shape: bf16[2,8,32], index: 11, kind: output, shape index: {}]
  %s12 = sld [smem:[#allocation0]]
  $region77: #{gemini_df_resnet_forward.17} parent=0
    _
  %s14 = ssub.s32 1, %s12
  %s15 = scalar_select 0, %s14, %s12
  loop: start=0, step=1, limit=4
  $region2: #{gemini_df_resnet_forward.17} parent=0 // loop_pre_header
    _
  $region3: #{gemini_df_resnet_forward.17} parent=0 // loop_header
    %s17 = sphi 0, %s21
    %p18 = scmp.ge.s32.totalorder %s17, 4
    %s27 = sphi 0, %s29
    %s30 = sphi 0, %s27
    %s31 = sphi 0, %s30
    %s47 = sphi 0, %s31
    %s51 = sphi 0, %s51
    %s53 = sphi 0, %s51
    %s54 = sphi 0, %s53
    %s68 = sphi 0, %s54
    %s72 = sphi 0, %s72
    %s74 = sphi 0, %s72
    %s75 = sphi 0, %s74
    %s89 = sphi 0, %s75
    %s93 = sphi 0, %s93
    %s95 = sphi 0, %s93
    %s96 = sphi 0, %s95
    %s110 = sphi 0, %s96
    %s114 = sphi 0, %s114
    %s116 = sphi 0, %s114
    %s117 = sphi 0, %s116
    %s131 = sphi 0, %s117
    %s135 = sphi 0, %s135
    %s137 = sphi 0, %s135
    %s138 = sphi 0, %s137
    %s152 = sphi 0, %s138
    %s156 = sphi 0, %s156
    %s158 = sphi 0, %s156
    %s159 = sphi 0, %s158
    %s173 = sphi 0, %s159
    %s177 = sphi 0, %s177
    %s179 = sphi 0, %s177
    %s180 = sphi 0, %s179
    %s194 = sphi 0, %s180
    %s198 = sphi 0, %s198
    %s200 = sphi 0, %s198
    %s201 = sphi 0, %s200
    %s215 = sphi 0, %s201
    %s219 = sphi 0, %s219
    %s221 = sphi 0, %s219
    %s222 = sphi 0, %s221
    %s236 = sphi 0, %s222
    %s240 = sphi 0, %s240
    %s242 = sphi 0, %s240
    %s243 = sphi 0, %s242
    %s257 = sphi 0, %s243
    %s263 = sphi 0, %s265
    %s266 = sphi 0, %s263
    %s267 = sphi 0, %s266
    %s283 = sphi 0, %s267
  $region4: #{gemini_df_resnet_forward.17} parent=0 // loop_header_branch
    %20 = sbr.rel (%p18) target = $region8
  $region5: #{gemini_df_resnet_forward.17} parent=0 // loop_body
    %s22 = ssub.s32 %s17, 1
    %s23 = ssub.s32 %s17, 2
    %s24 = sadd.s32 %s17, 1
    %s25 = ssub.s32 %s17, %s24
    %p26 = scmp.eq.s32.totalorder %s25, 0
    %s28 = sadd.s32 %s27, 1
    %s29 = scalar_select %p26, %s27, %s28
    %p32 = pneg %p26
    %p33 = scmp.eq.s32.totalorder %s17, 1
    %p34 = por %p32, %p33
    %p35 = scmp.ne.s32.totalorder %s27, %s30
    %p36 = scmp.eq.s32.totalorder %s17, 0
    %p37 = por %p35, %p36
    %p38 = scmp.ne.s32.totalorder %s27, %s30
    %p39 = scmp.eq.s32.totalorder %s22, 1
    %p40 = por %p38, %p39
    %p41 = scmp.ne.s32.totalorder %s30, %s31
    %p42 = scmp.eq.s32.totalorder %s22, 0
    %p43 = por %p41, %p42
    %p44 = scmp.ne.s32.totalorder %s30, %s31
    %p45 = scmp.eq.s32.totalorder %s23, 1
    %p46 = por %p44, %p45
    %p48 = scmp.ne.s32.totalorder %s31, %s47
    %p49 = scmp.eq.s32.totalorder %s23, 0
    %p50 = por %p48, %p49
    %s52 = sadd.s32 %s51, 1
    %p55 = scmp.eq.s32.totalorder %s17, 1
    %p56 = scmp.ne.s32.totalorder %s51, %s53
    %p57 = scmp.eq.s32.totalorder %s17, 0
    %p58 = por %p56, %p57
    %p59 = scmp.ne.s32.totalorder %s51, %s53
    %p60 = scmp.eq.s32.totalorder %s22, 1
    %p61 = por %p59, %p60
    %p62 = scmp.ne.s32.totalorder %s53, %s54
    %p63 = scmp.eq.s32.totalorder %s22, 0
    %p64 = por %p62, %p63
    %p65 = scmp.ne.s32.totalorder %s53, %s54
    %p66 = scmp.eq.s32.totalorder %s23, 1
    %p67 = por %p65, %p66
    %p69 = scmp.ne.s32.totalorder %s54, %s68
    %p70 = scmp.eq.s32.totalorder %s23, 0
    %p71 = por %p69, %p70
    %s73 = sadd.s32 %s72, 1
    %p76 = scmp.eq.s32.totalorder %s17, 1
    %p77 = scmp.ne.s32.totalorder %s72, %s74
    %p78 = scmp.eq.s32.totalorder %s17, 0
    %p79 = por %p77, %p78
    %p80 = scmp.ne.s32.totalorder %s72, %s74
    %p81 = scmp.eq.s32.totalorder %s22, 1
    %p82 = por %p80, %p81
    %p83 = scmp.ne.s32.totalorder %s74, %s75
    %p84 = scmp.eq.s32.totalorder %s22, 0
    %p85 = por %p83, %p84
    %p86 = scmp.ne.s32.totalorder %s74, %s75
    %p87 = scmp.eq.s32.totalorder %s23, 1
    %p88 = por %p86, %p87
    %p90 = scmp.ne.s32.totalorder %s75, %s89
    %p91 = scmp.eq.s32.totalorder %s23, 0
    %p92 = por %p90, %p91
    %s94 = sadd.s32 %s93, 1
    %p97 = scmp.eq.s32.totalorder %s17, 1
    %p98 = scmp.ne.s32.totalorder %s93, %s95
    %p99 = scmp.eq.s32.totalorder %s17, 0
    %p100 = por %p98, %p99
    %p101 = scmp.ne.s32.totalorder %s93, %s95
    %p102 = scmp.eq.s32.totalorder %s22, 1
    %p103 = por %p101, %p102
    %p104 = scmp.ne.s32.totalorder %s95, %s96
    %p105 = scmp.eq.s32.totalorder %s22, 0
    %p106 = por %p104, %p105
    %p107 = scmp.ne.s32.totalorder %s95, %s96
    %p108 = scmp.eq.s32.totalorder %s23, 1
    %p109 = por %p107, %p108
    %p111 = scmp.ne.s32.totalorder %s96, %s110
    %p112 = scmp.eq.s32.totalorder %s23, 0
    %p113 = por %p111, %p112
    %s115 = sadd.s32 %s114, 1
    %p118 = scmp.eq.s32.totalorder %s17, 1
    %p119 = scmp.ne.s32.totalorder %s114, %s116
    %p120 = scmp.eq.s32.totalorder %s17, 0
    %p121 = por %p119, %p120
    %p122 = scmp.ne.s32.totalorder %s114, %s116
    %p123 = scmp.eq.s32.totalorder %s22, 1
    %p124 = por %p122, %p123
    %p125 = scmp.ne.s32.totalorder %s116, %s117
    %p126 = scmp.eq.s32.totalorder %s22, 0
    %p127 = por %p125, %p126
    %p128 = scmp.ne.s32.totalorder %s116, %s117
    %p129 = scmp.eq.s32.totalorder %s23, 1
    %p130 = por %p128, %p129
    %p132 = scmp.ne.s32.totalorder %s117, %s131
    %p133 = scmp.eq.s32.totalorder %s23, 0
    %p134 = por %p132, %p133
    %s136 = sadd.s32 %s135, 1
    %p139 = scmp.eq.s32.totalorder %s17, 1
    %p140 = scmp.ne.s32.totalorder %s135, %s137
    %p141 = scmp.eq.s32.totalorder %s17, 0
    %p142 = por %p140, %p141
    %p143 = scmp.ne.s32.totalorder %s135, %s137
    %p144 = scmp.eq.s32.totalorder %s22, 1
    %p145 = por %p143, %p144
    %p146 = scmp.ne.s32.totalorder %s137, %s138
    %p147 = scmp.eq.s32.totalorder %s22, 0
    %p148 = por %p146, %p147
    %p149 = scmp.ne.s32.totalorder %s137, %s138
    %p150 = scmp.eq.s32.totalorder %s23, 1
    %p151 = por %p149, %p150
    %p153 = scmp.ne.s32.totalorder %s138, %s152
    %p154 = scmp.eq.s32.totalorder %s23, 0
    %p155 = por %p153, %p154
    %s157 = sadd.s32 %s156, 1
    %p160 = scmp.eq.s32.totalorder %s17, 1
    %p161 = scmp.ne.s32.totalorder %s156, %s158
    %p162 = scmp.eq.s32.totalorder %s17, 0
    %p163 = por %p161, %p162
    %p164 = scmp.ne.s32.totalorder %s156, %s158
    %p165 = scmp.eq.s32.totalorder %s22, 1
    %p166 = por %p164, %p165
    %p167 = scmp.ne.s32.totalorder %s158, %s159
    %p168 = scmp.eq.s32.totalorder %s22, 0
    %p169 = por %p167, %p168
    %p170 = scmp.ne.s32.totalorder %s158, %s159
    %p171 = scmp.eq.s32.totalorder %s23, 1
    %p172 = por %p170, %p171
    %p174 = scmp.ne.s32.totalorder %s159, %s173
    %p175 = scmp.eq.s32.totalorder %s23, 0
    %p176 = por %p174, %p175
    %s178 = sadd.s32 %s177, 1
    %p181 = scmp.eq.s32.totalorder %s17, 1
    %p182 = scmp.ne.s32.totalorder %s177, %s179
    %p183 = scmp.eq.s32.totalorder %s17, 0
    %p184 = por %p182, %p183
    %p185 = scmp.ne.s32.totalorder %s177, %s179
    %p186 = scmp.eq.s32.totalorder %s22, 1
    %p187 = por %p185, %p186
    %p188 = scmp.ne.s32.totalorder %s179, %s180
    %p189 = scmp.eq.s32.totalorder %s22, 0
    %p190 = por %p188, %p189
    %p191 = scmp.ne.s32.totalorder %s179, %s180
    %p192 = scmp.eq.s32.totalorder %s23, 1
    %p193 = por %p191, %p192
    %p195 = scmp.ne.s32.totalorder %s180, %s194
    %p196 = scmp.eq.s32.totalorder %s23, 0
    %p197 = por %p195, %p196
    %s199 = sadd.s32 %s198, 1
    %p202 = scmp.eq.s32.totalorder %s17, 1
    %p203 = scmp.ne.s32.totalorder %s198, %s200
    %p204 = scmp.eq.s32.totalorder %s17, 0
    %p205 = por %p203, %p204
    %p206 = scmp.ne.s32.totalorder %s198, %s200
    %p207 = scmp.eq.s32.totalorder %s22, 1
    %p208 = por %p206, %p207
    %p209 = scmp.ne.s32.totalorder %s200, %s201
    %p210 = scmp.eq.s32.totalorder %s22, 0
    %p211 = por %p209, %p210
    %p212 = scmp.ne.s32.totalorder %s200, %s201
    %p213 = scmp.eq.s32.totalorder %s23, 1
    %p214 = por %p212, %p213
    %p216 = scmp.ne.s32.totalorder %s201, %s215
    %p217 = scmp.eq.s32.totalorder %s23, 0
    %p218 = por %p216, %p217
    %s220 = sadd.s32 %s219, 1
    %p223 = scmp.eq.s32.totalorder %s17, 1
    %p224 = scmp.ne.s32.totalorder %s219, %s221
    %p225 = scmp.eq.s32.totalorder %s17, 0
    %p226 = por %p224, %p225
    %p227 = scmp.ne.s32.totalorder %s219, %s221
    %p228 = scmp.eq.s32.totalorder %s22, 1
    %p229 = por %p227, %p228
    %p230 = scmp.ne.s32.totalorder %s221, %s222
    %p231 = scmp.eq.s32.totalorder %s22, 0
    %p232 = por %p230, %p231
    %p233 = scmp.ne.s32.totalorder %s221, %s222
    %p234 = scmp.eq.s32.totalorder %s23, 1
    %p235 = por %p233, %p234
    %p237 = scmp.ne.s32.totalorder %s222, %s236
    %p238 = scmp.eq.s32.totalorder %s23, 0
    %p239 = por %p237, %p238
    %s241 = sadd.s32 %s240, 1
    %p244 = scmp.eq.s32.totalorder %s17, 1
    %p245 = scmp.ne.s32.totalorder %s240, %s242
    %p246 = scmp.eq.s32.totalorder %s17, 0
    %p247 = por %p245, %p246
    %p248 = scmp.ne.s32.totalorder %s240, %s242
    %p249 = scmp.eq.s32.totalorder %s22, 1
    %p250 = por %p248, %p249
    %p251 = scmp.ne.s32.totalorder %s242, %s243
    %p252 = scmp.eq.s32.totalorder %s22, 0
    %p253 = por %p251, %p252
    %p254 = scmp.ne.s32.totalorder %s242, %s243
    %p255 = scmp.eq.s32.totalorder %s23, 1
    %p256 = por %p254, %p255
    %p258 = scmp.ne.s32.totalorder %s243, %s257
    %p259 = scmp.eq.s32.totalorder %s23, 0
    %p260 = por %p258, %p259
    %s261 = ssub.s32 %s17, %s24
    %p262 = scmp.eq.s32.totalorder %s261, 0
    %s264 = sadd.s32 %s263, 1
    %s265 = scalar_select %p262, %s263, %s264
    %p268 = pneg %p262
    %p269 = scmp.eq.s32.totalorder %s17, 1
    %p270 = por %p268, %p269
    %p271 = scmp.ne.s32.totalorder %s263, %s266
    %p272 = scmp.eq.s32.totalorder %s17, 0
    %p273 = por %p271, %p272
    %p274 = scmp.ne.s32.totalorder %s263, %s266
    %p275 = scmp.eq.s32.totalorder %s22, 1
    %p276 = por %p274, %p275
    %p277 = scmp.ne.s32.totalorder %s266, %s267
    %p278 = scmp.eq.s32.totalorder %s22, 0
    %p279 = por %p277, %p278
    %p280 = scmp.ne.s32.totalorder %s266, %s267
    %p281 = scmp.eq.s32.totalorder %s23, 1
    %p282 = por %p280, %p281
    %p284 = scmp.ne.s32.totalorder %s267, %s283
    %p285 = scmp.eq.s32.totalorder %s23, 0
    %p286 = por %p284, %p285
    %p287 = scmp.le.s32.totalorder 1, %s17
    %p288 = scmp.lt.s32.totalorder %s17, 3
    %p289 = pnand %p287, %p288
    %p290 = pneg %p289
    // Predicated region
    $region9: #{gemini_df_resnet_forward.17} parent=5 // pred_check
      _
    $region10: #{gemini_df_resnet_forward.17} parent=5 // pred_check_branch
      %292 = sbr.rel (%p289) target = $region12
    $region11: #{gemini_df_resnet_forward.17} parent=5 // pred_region
      %s293 = ssub.s32 %s17, 1
      // Predicated region
      $region13: #{gemini_df_resnet_forward.17} parent=11 // pred_check
        %p294 = pneg %p64
      $region14: #{gemini_df_resnet_forward.17} parent=11 // pred_check_branch
        %296 = sbr.rel (%p294) target = $region16
      $region15: #{gemini_df_resnet_forward.17} parent=11 // pred_region
        _
      $region16: #{gemini_df_resnet_forward.17} parent=11 // pred_fallthru
        _
      // Predicated region
      $region17: #{gemini_df_resnet_forward.17} parent=11 // pred_check
        %p297 = pneg %p85
      $region18: #{gemini_df_resnet_forward.17} parent=11 // pred_check_branch
        %299 = sbr.rel (%p297) target = $region20
      $region19: #{gemini_df_resnet_forward.17} parent=11 // pred_region
        _
      $region20: #{gemini_df_resnet_forward.17} parent=11 // pred_fallthru
        _
      // Predicated region
      $region21: #{gemini_df_resnet_forward.17} parent=11 // pred_check
        %p300 = pneg %p106
      $region22: #{gemini_df_resnet_forward.17} parent=11 // pred_check_branch
        %302 = sbr.rel (%p300) target = $region24
      $region23: #{gemini_df_resnet_forward.17} parent=11 // pred_region
        _
      $region24: #{gemini_df_resnet_forward.17} parent=11 // pred_fallthru
        _
      // Predicated region
      $region25: #{gemini_df_resnet_forward.17} parent=11 // pred_check
        %p303 = pneg %p127
      $region26: #{gemini_df_resnet_forward.17} parent=11 // pred_check_branch
        %305 = sbr.rel (%p303) target = $region28
      $region27: #{gemini_df_resnet_forward.17} parent=11 // pred_region
        _
      $region28: #{gemini_df_resnet_forward.17} parent=11 // pred_fallthru
        _
      // Predicated region
      $region29: #{gemini_df_resnet_forward.17} parent=11 // pred_check
        %p306 = pneg %p148
      $region30: #{gemini_df_resnet_forward.17} parent=11 // pred_check_branch
        %308 = sbr.rel (%p306) target = $region32
      $region31: #{gemini_df_resnet_forward.17} parent=11 // pred_region
        _
      $region32: #{gemini_df_resnet_forward.17} parent=11 // pred_fallthru
        _
      // Predicated region
      $region33: #{gemini_df_resnet_forward.17} parent=11 // pred_check
        %p309 = pneg %p169
      $region34: #{gemini_df_resnet_forward.17} parent=11 // pred_check_branch
        %311 = sbr.rel (%p309) target = $region36
      $region35: #{gemini_df_resnet_forward.17} parent=11 // pred_region
        _
      $region36: #{gemini_df_resnet_forward.17} parent=11 // pred_fallthru
        _
      // Predicated region
      $region37: #{gemini_df_resnet_forward.17} parent=11 // pred_check
        %p312 = pneg %p190
      $region38: #{gemini_df_resnet_forward.17} parent=11 // pred_check_branch
        %314 = sbr.rel (%p312) target = $region40
      $region39: #{gemini_df_resnet_forward.17} parent=11 // pred_region
        _
      $region40: #{gemini_df_resnet_forward.17} parent=11 // pred_fallthru
        _
      // Predicated region
      $region41: #{gemini_df_resnet_forward.17} parent=11 // pred_check
        %p315 = pneg %p211
      $region42: #{gemini_df_resnet_forward.17} parent=11 // pred_check_branch
        %317 = sbr.rel (%p315) target = $region44
      $region43: #{gemini_df_resnet_forward.17} parent=11 // pred_region
        _
      $region44: #{gemini_df_resnet_forward.17} parent=11 // pred_fallthru
        _
      // Predicated region
      $region45: #{gemini_df_resnet_forward.17} parent=11 // pred_check
        %p318 = pneg %p232
      $region46: #{gemini_df_resnet_forward.17} parent=11 // pred_check_branch
        %320 = sbr.rel (%p318) target = $region48
      $region47: #{gemini_df_resnet_forward.17} parent=11 // pred_region
        _
      $region48: #{gemini_df_resnet_forward.17} parent=11 // pred_fallthru
        _
      // Predicated region
      $region49: #{gemini_df_resnet_forward.17} parent=11 // pred_check
        %p321 = pneg %p253
      $region50: #{gemini_df_resnet_forward.17} parent=11 // pred_check_branch
        %323 = sbr.rel (%p321) target = $region52
      $region51: #{gemini_df_resnet_forward.17} parent=11 // pred_region
        _
      $region52: #{gemini_df_resnet_forward.17} parent=11 // pred_fallthru
        _
    $region12: #{gemini_df_resnet_forward.17} parent=5 // pred_fallthru
      _
    %p324 = scmp.lt.s32.totalorder %s17, 2
    // Predicated region
    $region53: #{gemini_df_resnet_forward.17} parent=5 // pred_check
      %p325 = pneg %p324
    $region54: #{gemini_df_resnet_forward.17} parent=5 // pred_check_branch
      %327 = sbr.rel (%p325) target = $region56
    $region55: #{gemini_df_resnet_forward.17} parent=5 // pred_region
      // Predicated region
      $region57: #{gemini_df_resnet_forward.17} parent=55 // pred_check
        %p328 = pneg %p37
      $region58: #{gemini_df_resnet_forward.17} parent=55 // pred_check_branch
        %330 = sbr.rel (%p328) target = $region60
      $region59: #{gemini_df_resnet_forward.17} parent=55 // pred_region
        %p331 = scmp.lt.s32.totalorder %s17, 1
        %s332 = scalar_select %p331, %s17, 1
        %s333 = smul.addr %s332, 4
        %s334 = scalar_lea.vmem %s0, %s333
      $region60: #{gemini_df_resnet_forward.17} parent=55 // pred_fallthru
        _
    $region56: #{gemini_df_resnet_forward.17} parent=5 // pred_fallthru
      _
    %p335 = scmp.le.s32.totalorder 1, %s17
    %p336 = scmp.lt.s32.totalorder %s17, 3
    %p337 = pnand %p335, %p336
    %p338 = pneg %p337
    // Predicated region
    $region61: #{gemini_df_resnet_forward.17} parent=5 // pred_check
      _
    $region62: #{gemini_df_resnet_forward.17} parent=5 // pred_check_branch
      %340 = sbr.rel (%p337) target = $region64
    $region63: #{gemini_df_resnet_forward.17} parent=5 // pred_region
      %s341 = ssub.s32 %s17, 1
      %p342 = scmp.lt.s32.totalorder %s22, 1
      %s343 = scalar_select %p342, %s22, 1
      %s344 = smul.addr %s343, 4
      %s345 = scalar_lea.vmem %s0, %s344
      %p346 = pneg %p43
      %p347 = pneg %p40
      %p348 = pneg %p64
      %p349 = pneg %p61
      %p350 = pneg %p85
      %p351 = pneg %p82
      %p352 = pneg %p106
      %p353 = pneg %p103
      %p354 = pneg %p127
      %p355 = pneg %p124
      %p356 = pneg %p148
      %p357 = pneg %p145
      %p358 = pneg %p169
      %p359 = pneg %p166
      %p360 = pneg %p190
      %p361 = pneg %p187
      %p362 = pneg %p211
      %p363 = pneg %p208
      %p364 = pneg %p232
      %p365 = pneg %p229
      %p366 = pneg %p253
      %p367 = pneg %p250
      %p368 = pneg %p279
      %p369 = pneg %p276
      %p370 = scmp.lt.s32.totalorder %s22, 1
      %s371 = scalar_select %p370, %s22, 1
      %s372 = smul.addr %s371, 4
      %s373 = scalar_lea.vmem %s11, %s372
      %p374 = scmp.lt.s32.totalorder %s22, 1
      %s375 = scalar_select %p374, %s22, 1
      %s376 = smul.addr %s375, 4
      %s377 = scalar_lea.vmem %s0, %s376
      %p378 = scmp.lt.s32.totalorder %s22, 1
      %s379 = scalar_select %p378, %s22, 1
      %s380 = smul.addr %s379, 4
      %s381 = scalar_lea.vmem %s11, %s380
      %v383 = vld [vmem:[%s377] sm:$0xf]
      %v384 = vld [vmem:[%s2] sm:$0xf]
      %v385 = vld [vmem:[%s2 + $0x4] sm:$0xf]
      %v386 = vld [vmem:[%s2 + $0x8] sm:$0xf]
      %v387 = vld [vmem:[%s2 + $0xc] sm:$0xf]
      %v392 = vunpack.c.l.b16 %v384
      %v393 = vunpack.c.l.b16 %v385
      %v394 = vunpack.c.l.b16 %v386
      %v395 = vunpack.c.l.b16 %v387
      %v396 = vpack.c.b16 %v393, %v392
      %v397 = vpack.c.b16 %v395, %v394
      %vm400 = vcmask 261120
      %v402 = vsel %vm400, %v383, 0
      %404 = vmatprep.subr.bf16.mxu0 0
      %405 = vmatpush1.bf16.msra.mxu0 %v396
      %406 = vmatprep.subr.bf16.mxu0 0
      %407 = vmatpush1.bf16.msra.mxu0 %v397
      %408 = vmatprep.subr.bf16.mxu0 0
      %409 = vmatpush1.bf16.msra.mxu0 0
      %410 = vmatprep.subr.bf16.mxu0 0
      %411 = vmatpush1.bf16.msra.mxu0 0
      %412 = vmatprep.subr.bf16.mxu0 0
      %413 = vmatpush1.bf16.msra.mxu0 0
      %414 = vmatprep.subr.bf16.mxu0 0
      %415 = vmatpush1.bf16.msra.mxu0 0
      %416 = vmatprep.subr.bf16.mxu0 0
      %417 = vmatpush1.bf16.msra.mxu0 0
      %418 = vmatprep.subr.bf16.mxu0 0
      %419 = vmatpush1.bf16.msra.mxu0 0
      %420 = vmatprep.subr.bf16.mxu0 0
      %421 = vmatpush1.bf16.msra.mxu0 0
      %422 = vmatprep.subr.bf16.mxu0 0
      %423 = vmatpush1.bf16.msra.mxu0 0
      %424 = vmatprep.subr.bf16.mxu0 0
      %425 = vmatpush1.bf16.msra.mxu0 0
      %426 = vmatprep.subr.bf16.mxu0 0
      %427 = vmatpush1.bf16.msra.mxu0 0
      %428 = vmatprep.subr.bf16.mxu0 0
      %429 = vmatpush1.bf16.msra.mxu0 0
      %430 = vmatprep.subr.bf16.mxu0 0
      %431 = vmatpush1.bf16.msra.mxu0 0
      %432 = vmatprep.subr.bf16.mxu0 0
      %433 = vmatpush1.bf16.msra.mxu0 0
      %434 = vmatprep.subr.bf16.mxu0 0
      %435 = vmatpush1.bf16.msra.mxu0 0
      %436 = vmatprep.mubr.bf16.mxu0 0
      %437 = vmatmul.mubr.bf16.gmra.mrb[0].mxu0 %v402
      %v438 = vpop.f32.mrb[0].mxu0
      %v439 = vadd.f32 0.0, %v438
      %v440 = vpop.f32.mrb[0].mxu0
      %v441 = vpop.f32.mrb[0].mxu0
      %v442 = vpop.f32.mrb[0].mxu0
      %443 = vdwg.mxu0
      %v444 = vld [vmem:[%s3] sm:$0x1]
      %v446 = vlaneseq
      %v447 = vshrl.u32 %v446, 7
      %v448 = vsub.s32 0, %v447
      %v449 = vrot.slane %v444, %v448
      %v451 = vmul.f32 %v439, %v449
      %v452 = vld [vmem:[%s4] sm:$0x1]
      %v454 = vlaneseq
      %v455 = vshrl.u32 %v454, 7
      %v456 = vsub.s32 0, %v455
      %v457 = vrot.slane %v452, %v456
      %v459 = vadd.f32 %v451, %v457
      %v460 = vmax.f32 %v459, 0.0
      %461 = vst [vmem:[#allocation2] sm:$0xff] 0.0
      %462 = vst [vmem:[#allocation2 + $0x8] sm:$0xff] 0.0
      %463 = vst [vmem:[#allocation2 + $0x10] sm:$0xff] 0.0
      %464 = vst [vmem:[#allocation2 + $0x8] sm:$0xff] %v460
      %v465 = vld [vmem:[#allocation2] sm:$0xff]
      %v466 = vld [vmem:[#allocation2 + $0x8] sm:$0xff]
      %v467 = vld [vmem:[#allocation2 + $0x10] sm:$0xff]
      %v468 = vld [vmem:[%s1] sm:$0xff]
      %v469 = vld [vmem:[%s5] sm:$0xff]
      %v470 = vld [vmem:[%s5 + $0x8] sm:$0x1]
      %v471 = vlaneseq
      %v472 = vshrl.u32 %v471, 7
      %v473 = vsub.s32 0, %v472
      %v474 = vrot.slane %v469, %v473
      %v475 = vmul.f32 %v465, %v474
      %v476 = vmul.f32 %v466, %v474
      %478 = vset.pattern.permute.xlu0 0
      %479 = vperm.xlu0 %478, %v468
      %v480 = vpop.permute.xlu0 %479
      %v481 = vrot.slane %v480, 5
      %v483 = vmul.f32 %v475, %v481
      %v484 = vmul.f32 %v476, %v481
      %v485 = vlaneseq
      %v486 = vshrl.u32 %v485, 7
      %v487 = vsub.s32 1, %v486
      %v488 = vrot.slane %v469, %v487
      %v489 = vmul.f32 %v465, %v488
      %v490 = vmul.f32 %v466, %v488
      %vm493 = vcmask 1046528
      %v494 = vrot.slane %v489, 1
      %v495 = vrot.slane %v490, 1
      %v496 = vsel %vm493, %v494, %v495
      %v499 = vadd.f32 %v483, %v496
      %v500 = vadd.f32 %v484, %v495
      %v501 = vlaneseq
      %v502 = vshrl.u32 %v501, 7
      %v503 = vsub.s32 2, %v502
      %v504 = vrot.slane %v469, %v503
      %v505 = vmul.f32 %v465, %v504
      %v506 = vmul.f32 %v466, %v504
      %507 = vset.pattern.permute.xlu0 1
      %508 = vperm.xlu0 %507, %v468
      %v509 = vpop.permute.xlu0 %508
      %v510 = vrot.slane %v509, 3
      %v512 = vmul.f32 %v505, %v510
      %v513 = vmul.f32 %v506, %v510
      %vm516 = vcmask 1045504
      %v517 = vrot.slane %v512, 2
      %v518 = vrot.slane %v513, 2
      %v519 = vsel %vm516, %v517, %v518
      %v522 = vadd.f32 %v499, %v519
      %v523 = vadd.f32 %v500, %v518
      %v524 = vlaneseq
      %v525 = vshrl.u32 %v524, 7
      %v526 = vsub.s32 3, %v525
      %v527 = vrot.slane %v469, %v526
      %v528 = vmul.f32 %v465, %v527
      %v529 = vmul.f32 %v466, %v527
      %v530 = vrot.slane %v480, 1
      %v532 = vmul.f32 %v528, %v530
      %v533 = vmul.f32 %v529, %v530
      %vm536 = vcmask 1043456
      %v537 = vrot.slane %v532, 4
      %v538 = vrot.slane %v533, 4
      %v539 = vsel %vm536, %v537, %v538
      %v542 = vadd.f32 %v522, %v539
      %v543 = vadd.f32 %v523, %v538
      %v544 = vlaneseq
      %v545 = vshrl.u32 %v544, 7
      %v546 = vsub.s32 4, %v545
      %v547 = vrot.slane %v469, %v546
      %v548 = vmul.f32 %v466, %v547
      %v550 = vrot.slane %v548, 5
      %v552 = vadd.f32 %v542, %v550
      %v553 = vadd.f32 %v543, %v550
      %v554 = vlaneseq
      %v555 = vshrl.u32 %v554, 7
      %v556 = vsub.s32 5, %v555
      %v557 = vrot.slane %v469, %v556
      %v558 = vmul.f32 %v466, %v557
      %v559 = vmul.f32 %v467, %v557
      %v560 = vrot.slane %v509, 7
      %v562 = vmul.f32 %v558, %v560
      %v563 = vmul.f32 %v559, %v560
      %vm566 = vcmask 1041408
      %v567 = vrot.slane %v562, 6
      %v568 = vrot.slane %v563, 6
      %v569 = vsel %vm566, %v567, %v568
      %v572 = vadd.f32 %v552, %v567
      %v573 = vadd.f32 %v553, %v569
      %v574 = vlaneseq
      %v575 = vshrl.u32 %v574, 7
      %v576 = vsub.s32 6, %v575
      %v577 = vrot.slane %v469, %v576
      %v578 = vmul.f32 %v466, %v577
      %v579 = vmul.f32 %v467, %v577
      %v580 = vmul.f32 %v578, %v481
      %v581 = vmul.f32 %v579, %v481
      %v582 = vadd.f32 %v572, %v580
      %v583 = vadd.f32 %v573, %v581
      %v584 = vlaneseq
      %v585 = vshrl.u32 %v584, 7
      %v586 = vsub.s32 7, %v585
      %v587 = vrot.slane %v469, %v586
      %v588 = vmul.f32 %v466, %v587
      %v589 = vmul.f32 %v467, %v587
      %v592 = vrot.slane %v588, 1
      %v593 = vrot.slane %v589, 1
      %v594 = vsel %vm493, %v592, %v593
      %v597 = vadd.f32 %v582, %v594
      %v598 = vadd.f32 %v583, %v593
      %v599 = vlaneseq
      %v600 = vshrl.u32 %v599, 7
      %v601 = vsub.s32 0, %v600
      %v602 = vrot.slane %v470, %v601
      %v603 = vmul.f32 %v466, %v602
      %v604 = vmul.f32 %v467, %v602
      %v605 = vmul.f32 %v603, %v510
      %v606 = vmul.f32 %v604, %v510
      %v609 = vrot.slane %v605, 2
      %v610 = vrot.slane %v606, 2
      %v611 = vsel %vm516, %v609, %v610
      %v614 = vadd.f32 %v597, %v611
      %v615 = vadd.f32 %v598, %v610
      %v616 = vld [vmem:[%s6] sm:$0x1]
      %v618 = vlaneseq
      %v619 = vshrl.u32 %v618, 7
      %v620 = vsub.s32 0, %v619
      %v621 = vrot.slane %v616, %v620
      %v623 = vmul.f32 %v614, %v621
      %v624 = vmul.f32 %v615, %v621
      %v625 = vld [vmem:[%s7] sm:$0x1]
      %v627 = vlaneseq
      %v628 = vshrl.u32 %v627, 7
      %v629 = vsub.s32 0, %v628
      %v630 = vrot.slane %v625, %v629
      %v632 = vadd.f32 %v623, %v630
      %v633 = vadd.f32 %v624, %v630
      %v634 = vmax.f32 %v632, 0.0
      %v635 = vmax.f32 %v633, 0.0
      %v636 = vpack.c.bf16 %v635, %v634
      %v637 = vld [vmem:[%s8] sm:$0xf]
      %v638 = vld [vmem:[%s8 + $0x4] sm:$0xf]
      %v639 = vld [vmem:[%s8 + $0x8] sm:$0xf]
      %v640 = vld [vmem:[%s8 + $0xc] sm:$0xf]
      %v641 = vld [vmem:[%s8 + $0x10] sm:$0xf]
      %v642 = vld [vmem:[%s8 + $0x14] sm:$0xf]
      %v643 = vld [vmem:[%s8 + $0x18] sm:$0xf]
      %v644 = vld [vmem:[%s8 + $0x1c] sm:$0xf]
      %v645 = vld [vmem:[%s8 + $0x20] sm:$0xf]
      %v646 = vld [vmem:[%s8 + $0x24] sm:$0xf]
      %v647 = vld [vmem:[%s8 + $0x28] sm:$0xf]
      %v648 = vld [vmem:[%s8 + $0x2c] sm:$0xf]
      %v649 = vld [vmem:[%s8 + $0x30] sm:$0xf]
      %v650 = vld [vmem:[%s8 + $0x34] sm:$0xf]
      %v651 = vld [vmem:[%s8 + $0x38] sm:$0xf]
      %v652 = vld [vmem:[%s8 + $0x3c] sm:$0xf]
      %v654 = vshrl.u32 %v636, 16
      %v656 = vrot.slane %v654, 1
      %v657 = vshll.u32 %v636, 16
      %v659 = vrot.slane %v657, 2
      %v660 = vor.u32 %v656, %v659
      %v678 = vunpack.c.l.b16 %v637
      %v679 = vunpack.c.l.b16 %v638
      %v680 = vunpack.c.l.b16 %v639
      %v681 = vunpack.c.l.b16 %v640
      %v682 = vunpack.c.l.b16 %v641
      %v683 = vunpack.c.l.b16 %v642
      %v684 = vunpack.c.l.b16 %v643
      %v685 = vunpack.c.l.b16 %v644
      %v686 = vunpack.c.l.b16 %v645
      %v687 = vunpack.c.l.b16 %v646
      %v688 = vunpack.c.l.b16 %v647
      %v689 = vunpack.c.l.b16 %v648
      %v690 = vunpack.c.l.b16 %v649
      %v691 = vunpack.c.l.b16 %v650
      %v692 = vunpack.c.l.b16 %v651
      %v693 = vunpack.c.l.b16 %v652
      %v694 = vpack.c.b16 %v679, %v678
      %v695 = vpack.c.b16 %v681, %v680
      %v696 = vpack.c.b16 %v683, %v682
      %v697 = vpack.c.b16 %v685, %v684
      %v698 = vpack.c.b16 %v687, %v686
      %v699 = vpack.c.b16 %v689, %v688
      %v700 = vpack.c.b16 %v691, %v690
      %v701 = vpack.c.b16 %v693, %v692
      %710 = vmatprep.subr.bf16.mxu0 0
      %711 = vmatpush1.bf16.msra.mxu0 %v694
      %712 = vmatprep.subr.bf16.mxu0 0
      %713 = vmatpush1.bf16.msra.mxu0 %v695
      %714 = vmatprep.subr.bf16.mxu0 0
      %715 = vmatpush1.bf16.msra.mxu0 %v696
      %716 = vmatprep.subr.bf16.mxu0 0
      %717 = vmatpush1.bf16.msra.mxu0 %v697
      %718 = vmatprep.subr.bf16.mxu0 0
      %719 = vmatpush1.bf16.msra.mxu0 %v698
      %720 = vmatprep.subr.bf16.mxu0 0
      %721 = vmatpush1.bf16.msra.mxu0 %v699
      %722 = vmatprep.subr.bf16.mxu0 0
      %723 = vmatpush1.bf16.msra.mxu0 %v700
      %724 = vmatprep.subr.bf16.mxu0 0
      %725 = vmatpush1.bf16.msra.mxu0 %v701
      %726 = vmatprep.subr.bf16.mxu0 0
      %727 = vmatpush1.bf16.msra.mxu0 0
      %728 = vmatprep.subr.bf16.mxu0 0
      %729 = vmatpush1.bf16.msra.mxu0 0
      %730 = vmatprep.subr.bf16.mxu0 0
      %731 = vmatpush1.bf16.msra.mxu0 0
      %732 = vmatprep.subr.bf16.mxu0 0
      %733 = vmatpush1.bf16.msra.mxu0 0
      %734 = vmatprep.subr.bf16.mxu0 0
      %735 = vmatpush1.bf16.msra.mxu0 0
      %736 = vmatprep.subr.bf16.mxu0 0
      %737 = vmatpush1.bf16.msra.mxu0 0
      %738 = vmatprep.subr.bf16.mxu0 0
      %739 = vmatpush1.bf16.msra.mxu0 0
      %740 = vmatprep.subr.bf16.mxu0 0
      %741 = vmatpush1.bf16.msra.mxu0 0
      %742 = vmatprep.mubr.bf16.mxu0 0
      %743 = vmatmul.mubr.bf16.gmra.mrb[0].mxu0 %v660
      %v744 = vpop.f32.mrb[0].mxu0
      %v745 = vadd.f32 0.0, %v744
      %v746 = vpop.f32.mrb[0].mxu0
      %v747 = vpop.f32.mrb[0].mxu0
      %v748 = vpop.f32.mrb[0].mxu0
      %749 = vdwg.mxu0
      %v750 = vld [vmem:[%s9] sm:$0x1]
      %v752 = vlaneseq
      %v753 = vshrl.u32 %v752, 7
      %v754 = vsub.s32 0, %v753
      %v755 = vrot.slane %v750, %v754
      %v757 = vmul.f32 %v745, %v755
      %v758 = vld [vmem:[%s10] sm:$0x1]
      %v760 = vlaneseq
      %v761 = vshrl.u32 %v760, 7
      %v762 = vsub.s32 0, %v761
      %v763 = vrot.slane %v758, %v762
      %v765 = vadd.f32 %v757, %v763
      %v766 = vunpack.c.l.bf16 %v383
      %v767 = vadd.f32 %v765, %v766
      %v768 = vmax.f32 %v767, 0.0
      %v769 = vpack.c.bf16 %v768, %v768
      %vm770 = vcmask 257024
      %771 = vst.msk [vmem:[%s381] sm:$0xf] %vm770, %v769
      %p772 = scmp.lt.s32.totalorder %s22, 1
      %s773 = scalar_select %p772, %s22, 1
      %s774 = smul.addr %s773, 4
      %s775 = scalar_lea.vmem %s11, %s774
      // Predicated region
      $region65: #{gemini_df_resnet_forward.17} parent=63 // pred_check
        %p776 = pneg %p276
      $region66: #{gemini_df_resnet_forward.17} parent=63 // pred_check_branch
        %778 = sbr.rel (%p776) target = $region68
      $region67: #{gemini_df_resnet_forward.17} parent=63 // pred_region
        _
      $region68: #{gemini_df_resnet_forward.17} parent=63 // pred_fallthru
        _
    $region64: #{gemini_df_resnet_forward.17} parent=5 // pred_fallthru
      _
    %p779 = scmp.le.s32.totalorder 2, %s17
    // Predicated region
    $region69: #{gemini_df_resnet_forward.17} parent=5 // pred_check
      %p780 = pneg %p779
    $region70: #{gemini_df_resnet_forward.17} parent=5 // pred_check_branch
      %782 = sbr.rel (%p780) target = $region72
    $region71: #{gemini_df_resnet_forward.17} parent=5 // pred_region
      %s783 = ssub.s32 %s17, 2
      // Predicated region
      $region73: #{gemini_df_resnet_forward.17} parent=71 // pred_check
        %p784 = pneg %p282
      $region74: #{gemini_df_resnet_forward.17} parent=71 // pred_check_branch
        %786 = sbr.rel (%p784) target = $region76
      $region75: #{gemini_df_resnet_forward.17} parent=71 // pred_region
        %p787 = scmp.lt.s32.totalorder %s23, 1
        %s788 = scalar_select %p787, %s23, 1
        %s789 = smul.addr %s788, 4
        %s790 = scalar_lea.vmem %s11, %s789
      $region76: #{gemini_df_resnet_forward.17} parent=71 // pred_fallthru
        _
    $region72: #{gemini_df_resnet_forward.17} parent=5 // pred_fallthru
      _
  $region6: #{gemini_df_resnet_forward.17} parent=0 // loop_footer
    %s21 = sadd.s32 1, %s17
  $region7: #{gemini_df_resnet_forward.17} parent=0 // loop_footer_branch
    %16 = sbr.rel target = $region3
  $region8: #{gemini_df_resnet_forward.17} parent=0 // loop_exit
    _

// kernel: gemini_df_resnet_forward.18
$region0: #{gemini_df_resnet_forward.18}
  #allocation0 [shape = 'u32[]', space=smem, size = 0x4, offset = 0x4, fixed_abs, tag = 'smem constant byte address 0x4 - core index']
  #allocation1 [shape = 'u32[144,128]{1,0:T(1,128)}', space=vmem, size = 0x12000, scoped, tag = 'internal scratch']
  %s0 = inlined_call_operand.vmem [shape: bf16[8,288], index: 0, kind: input, shape index: {}]
  %s1 = inlined_call_operand.vmem [shape: bf16[288,64], index: 1, kind: input, shape index: {}]
  %s2 = inlined_call_operand.vmem [shape: f32[1,64], index: 2, kind: input, shape index: {}]
  %s3 = inlined_call_operand.vmem [shape: f32[1,64], index: 3, kind: input, shape index: {}]
  %s4 = inlined_call_operand.vmem [shape: bf16[8,64], index: 4, kind: output, shape index: {}]
  %s5 = sld [smem:[#allocation0]]
  $region26: #{gemini_df_resnet_forward.18} parent=0
    _
  %s7 = ssub.s32 1, %s5
  %s8 = scalar_select 0, %s7, %s5
  // Predicated region
  $region2: #{gemini_df_resnet_forward.18} parent=0 // pred_check
    _
  $region3: #{gemini_df_resnet_forward.18} parent=0 // pred_check_branch
    %10 = sbr.rel (0) target = $region5
  $region4: #{gemini_df_resnet_forward.18} parent=0 // pred_region
    _
  $region5: #{gemini_df_resnet_forward.18} parent=0 // pred_fallthru
    _
  // Predicated region
  $region6: #{gemini_df_resnet_forward.18} parent=0 // pred_check
    _
  $region7: #{gemini_df_resnet_forward.18} parent=0 // pred_check_branch
    %12 = sbr.rel (0) target = $region9
  $region8: #{gemini_df_resnet_forward.18} parent=0 // pred_region
    _
  $region9: #{gemini_df_resnet_forward.18} parent=0 // pred_fallthru
    _
  // Predicated region
  $region10: #{gemini_df_resnet_forward.18} parent=0 // pred_check
    _
  $region11: #{gemini_df_resnet_forward.18} parent=0 // pred_check_branch
    %14 = sbr.rel (0) target = $region13
  $region12: #{gemini_df_resnet_forward.18} parent=0 // pred_region
    _
  $region13: #{gemini_df_resnet_forward.18} parent=0 // pred_fallthru
    _
  // Predicated region
  $region14: #{gemini_df_resnet_forward.18} parent=0 // pred_check
    _
  $region15: #{gemini_df_resnet_forward.18} parent=0 // pred_check_branch
    %16 = sbr.rel (0) target = $region17
  $region16: #{gemini_df_resnet_forward.18} parent=0 // pred_region
    _
  $region17: #{gemini_df_resnet_forward.18} parent=0 // pred_fallthru
    _
  %v18 = vld [vmem:[%s0] sm:$0xff]
  %v19 = vld [vmem:[%s0 + $0x8] sm:$0xf]
  %v20 = vld [vmem:[%s1] sm:$0xf]
  %v21 = vld [vmem:[%s1 + $0x4] sm:$0xf]
  %v22 = vld [vmem:[%s1 + $0x8] sm:$0xf]
  %v23 = vld [vmem:[%s1 + $0xc] sm:$0xf]
  %v24 = vld [vmem:[%s1 + $0x10] sm:$0xf]
  %v25 = vld [vmem:[%s1 + $0x14] sm:$0xf]
  %v26 = vld [vmem:[%s1 + $0x18] sm:$0xf]
  %v27 = vld [vmem:[%s1 + $0x1c] sm:$0xf]
  %v28 = vld [vmem:[%s1 + $0x20] sm:$0xf]
  %v29 = vld [vmem:[%s1 + $0x24] sm:$0xf]
  %v30 = vld [vmem:[%s1 + $0x28] sm:$0xf]
  %v31 = vld [vmem:[%s1 + $0x2c] sm:$0xf]
  %v32 = vld [vmem:[%s1 + $0x30] sm:$0xf]
  %v33 = vld [vmem:[%s1 + $0x34] sm:$0xf]
  %v34 = vld [vmem:[%s1 + $0x38] sm:$0xf]
  %v35 = vld [vmem:[%s1 + $0x3c] sm:$0xf]
  %v36 = vld [vmem:[%s1 + $0x40] sm:$0xf]
  %v37 = vld [vmem:[%s1 + $0x44] sm:$0xf]
  %v38 = vld [vmem:[%s1 + $0x48] sm:$0xf]
  %v39 = vld [vmem:[%s1 + $0x4c] sm:$0xf]
  %v40 = vld [vmem:[%s1 + $0x50] sm:$0xf]
  %v41 = vld [vmem:[%s1 + $0x54] sm:$0xf]
  %v42 = vld [vmem:[%s1 + $0x58] sm:$0xf]
  %v43 = vld [vmem:[%s1 + $0x5c] sm:$0xf]
  %v44 = vld [vmem:[%s1 + $0x60] sm:$0xf]
  %v45 = vld [vmem:[%s1 + $0x64] sm:$0xf]
  %v46 = vld [vmem:[%s1 + $0x68] sm:$0xf]
  %v47 = vld [vmem:[%s1 + $0x6c] sm:$0xf]
  %v48 = vld [vmem:[%s1 + $0x70] sm:$0xf]
  %v49 = vld [vmem:[%s1 + $0x74] sm:$0xf]
  %v50 = vld [vmem:[%s1 + $0x78] sm:$0xf]
  %v51 = vld [vmem:[%s1 + $0x7c] sm:$0xf]
  %v52 = vld [vmem:[%s1 + $0x80] sm:$0xf]
  %v53 = vld [vmem:[%s1 + $0x84] sm:$0xf]
  %v54 = vld [vmem:[%s1 + $0x88] sm:$0xf]
  %v55 = vld [vmem:[%s1 + $0x8c] sm:$0xf]
  %v58 = vunpack.c.l.b16 %v18
  %v59 = vunpack.c.h.b16 %v18
  %v60 = vunpack.c.l.b16 %v19
  %v61 = vpack.c.b16 %v58, %v58
  %v62 = vpack.c.b16 %v59, %v59
  %v63 = vpack.c.b16 %v60, %v60
  %v102 = vunpack.c.l.b16 %v20
  %v103 = vunpack.c.l.b16 %v21
  %v104 = vunpack.c.l.b16 %v22
  %v105 = vunpack.c.l.b16 %v23
  %v106 = vunpack.c.l.b16 %v24
  %v107 = vunpack.c.l.b16 %v25
  %v108 = vunpack.c.l.b16 %v26
  %v109 = vunpack.c.l.b16 %v27
  %v110 = vunpack.c.l.b16 %v28
  %v111 = vunpack.c.l.b16 %v29
  %v112 = vunpack.c.l.b16 %v30
  %v113 = vunpack.c.l.b16 %v31
  %v114 = vunpack.c.l.b16 %v32
  %v115 = vunpack.c.l.b16 %v33
  %v116 = vunpack.c.l.b16 %v34
  %v117 = vunpack.c.l.b16 %v35
  %v118 = vunpack.c.l.b16 %v36
  %v119 = vunpack.c.l.b16 %v37
  %v120 = vunpack.c.l.b16 %v38
  %v121 = vunpack.c.l.b16 %v39
  %v122 = vunpack.c.l.b16 %v40
  %v123 = vunpack.c.l.b16 %v41
  %v124 = vunpack.c.l.b16 %v42
  %v125 = vunpack.c.l.b16 %v43
  %v126 = vunpack.c.l.b16 %v44
  %v127 = vunpack.c.l.b16 %v45
  %v128 = vunpack.c.l.b16 %v46
  %v129 = vunpack.c.l.b16 %v47
  %v130 = vunpack.c.l.b16 %v48
  %v131 = vunpack.c.l.b16 %v49
  %v132 = vunpack.c.l.b16 %v50
  %v133 = vunpack.c.l.b16 %v51
  %v134 = vunpack.c.l.b16 %v52
  %v135 = vunpack.c.l.b16 %v53
  %v136 = vunpack.c.l.b16 %v54
  %v137 = vunpack.c.l.b16 %v55
  %v138 = vpack.c.b16 %v103, %v102
  %v139 = vpack.c.b16 %v105, %v104
  %v140 = vpack.c.b16 %v107, %v106
  %v141 = vpack.c.b16 %v109, %v108
  %v142 = vpack.c.b16 %v111, %v110
  %v143 = vpack.c.b16 %v113, %v112
  %v144 = vpack.c.b16 %v115, %v114
  %v145 = vpack.c.b16 %v117, %v116
  %v146 = vpack.c.b16 %v119, %v118
  %v147 = vpack.c.b16 %v121, %v120
  %v148 = vpack.c.b16 %v123, %v122
  %v149 = vpack.c.b16 %v125, %v124
  %v150 = vpack.c.b16 %v127, %v126
  %v151 = vpack.c.b16 %v129, %v128
  %v152 = vpack.c.b16 %v131, %v130
  %v153 = vpack.c.b16 %v133, %v132
  %v154 = vpack.c.b16 %v135, %v134
  %v155 = vpack.c.b16 %v137, %v136
  %vm174 = vcmask 261120
  %v176 = vsel %vm174, %v63, 0
  %178 = vmatprep.subr.bf16.mxu0 0
  %179 = vmatpush1.bf16.msra.mxu0 %v138
  %180 = vmatprep.subr.bf16.mxu0 0
  %181 = vmatpush1.bf16.msra.mxu0 %v139
  %182 = vmatprep.subr.bf16.mxu0 0
  %183 = vmatpush1.bf16.msra.mxu0 %v140
  %184 = vmatprep.subr.bf16.mxu0 0
  %185 = vmatpush1.bf16.msra.mxu0 %v141
  %186 = vmatprep.subr.bf16.mxu0 0
  %187 = vmatpush1.bf16.msra.mxu0 %v142
  %188 = vmatprep.subr.bf16.mxu0 0
  %189 = vmatpush1.bf16.msra.mxu0 %v143
  %190 = vmatprep.subr.bf16.mxu0 0
  %191 = vmatpush1.bf16.msra.mxu0 %v144
  %192 = vmatprep.subr.bf16.mxu0 0
  %193 = vmatpush1.bf16.msra.mxu0 %v145
  %194 = vmatprep.subr.bf16.mxu0 0
  %195 = vmatpush1.bf16.msra.mxu0 %v146
  %196 = vmatprep.subr.bf16.mxu0 0
  %197 = vmatpush1.bf16.msra.mxu0 %v147
  %198 = vmatprep.subr.bf16.mxu0 0
  %199 = vmatpush1.bf16.msra.mxu0 %v148
  %200 = vmatprep.subr.bf16.mxu0 0
  %201 = vmatpush1.bf16.msra.mxu0 %v149
  %202 = vmatprep.subr.bf16.mxu0 0
  %203 = vmatpush1.bf16.msra.mxu0 %v150
  %204 = vmatprep.subr.bf16.mxu0 0
  %205 = vmatpush1.bf16.msra.mxu0 %v151
  %206 = vmatprep.subr.bf16.mxu0 0
  %207 = vmatpush1.bf16.msra.mxu0 %v152
  %208 = vmatprep.subr.bf16.mxu0 0
  %209 = vmatpush1.bf16.msra.mxu0 %v153
  %210 = vmatprep.mubr.bf16.mxu0 %v62
  %211 = vmatmul.mubr.bf16.gmra.mrb[0].mxu0 %v61
  %v212 = vpop.f32.mrb[0].mxu0
  %v213 = vadd.f32 0.0, %v212
  %v214 = vpop.f32.mrb[0].mxu0
  %v215 = vpop.f32.mrb[0].mxu0
  %v216 = vpop.f32.mrb[0].mxu0
  %217 = vdwg.mxu0
  %218 = vmatprep.subr.bf16.mxu0 0
  %219 = vmatpush1.bf16.msra.mxu0 %v154
  %220 = vmatprep.subr.bf16.mxu0 0
  %221 = vmatpush1.bf16.msra.mxu0 %v155
  %222 = vmatprep.subr.bf16.mxu0 0
  %223 = vmatpush1.bf16.msra.mxu0 0
  %224 = vmatprep.subr.bf16.mxu0 0
  %225 = vmatpush1.bf16.msra.mxu0 0
  %226 = vmatprep.subr.bf16.mxu0 0
  %227 = vmatpush1.bf16.msra.mxu0 0
  %228 = vmatprep.subr.bf16.mxu0 0
  %229 = vmatpush1.bf16.msra.mxu0 0
  %230 = vmatprep.subr.bf16.mxu0 0
  %231 = vmatpush1.bf16.msra.mxu0 0
  %232 = vmatprep.subr.bf16.mxu0 0
  %233 = vmatpush1.bf16.msra.mxu0 0
  %234 = vmatprep.subr.bf16.mxu0 0
  %235 = vmatpush1.bf16.msra.mxu0 0
  %236 = vmatprep.subr.bf16.mxu0 0
  %237 = vmatpush1.bf16.msra.mxu0 0
  %238 = vmatprep.subr.bf16.mxu0 0
  %239 = vmatpush1.bf16.msra.mxu0 0
  %240 = vmatprep.subr.bf16.mxu0 0
  %241 = vmatpush1.bf16.msra.mxu0 0
  %242 = vmatprep.subr.bf16.mxu0 0
  %243 = vmatpush1.bf16.msra.mxu0 0
  %244 = vmatprep.subr.bf16.mxu0 0
  %245 = vmatpush1.bf16.msra.mxu0 0
  %246 = vmatprep.subr.bf16.mxu0 0
  %247 = vmatpush1.bf16.msra.mxu0 0
  %248 = vmatprep.subr.bf16.mxu0 0
  %249 = vmatpush1.bf16.msra.mxu0 0
  %250 = vmatprep.mubr.bf16.mxu0 0
  %251 = vmatmul.mubr.bf16.gmra.mrb[0].mxu0 %v176
  %v252 = vpop.f32.mrb[0].mxu0
  %v253 = vadd.f32 %v213, %v252
  %v254 = vpop.f32.mrb[0].mxu0
  %v255 = vpop.f32.mrb[0].mxu0
  %v256 = vpop.f32.mrb[0].mxu0
  %257 = vdwg.mxu0
  %v258 = vld [vmem:[%s2] sm:$0x1]
  %v260 = vlaneseq
  %v261 = vshrl.u32 %v260, 7
  %v262 = vsub.s32 0, %v261
  %v263 = vrot.slane %v258, %v262
  %v265 = vmul.f32 %v253, %v263
  %v266 = vld [vmem:[%s3] sm:$0x1]
  %v268 = vlaneseq
  %v269 = vshrl.u32 %v268, 7
  %v270 = vsub.s32 0, %v269
  %v271 = vrot.slane %v266, %v270
  %v273 = vadd.f32 %v265, %v271
  %v274 = vpack.c.bf16 %v273, %v273
  %vm275 = vcmask 519168
  %276 = vst.msk [vmem:[%s4] sm:$0xf] %vm275, %v274
  // Predicated region
  $region18: #{gemini_df_resnet_forward.18} parent=0 // pred_check
    _
  $region19: #{gemini_df_resnet_forward.18} parent=0 // pred_check_branch
    %278 = sbr.rel (0) target = $region21
  $region20: #{gemini_df_resnet_forward.18} parent=0 // pred_region
    _
  $region21: #{gemini_df_resnet_forward.18} parent=0 // pred_fallthru
    _
  // Predicated region
  $region22: #{gemini_df_resnet_forward.18} parent=0 // pred_check
    _
  $region23: #{gemini_df_resnet_forward.18} parent=0 // pred_check_branch
    %280 = sbr.rel (0) target = $region25
  $region24: #{gemini_df_resnet_forward.18} parent=0 // pred_region
    _
  $region25: #{gemini_df_resnet_forward.18} parent=0 // pred_fallthru
    _

// kernel: gemini_df_resnet_forward.20
$region0: #{gemini_df_resnet_forward.20}
  #allocation0 [shape = 'u32[]', space=smem, size = 0x4, offset = 0x4, fixed_abs, tag = 'smem constant byte address 0x4 - core index']
  #allocation1 [shape = 'u32[144,128]{1,0:T(1,128)}', space=vmem, size = 0x12000, scoped, tag = 'internal scratch']
  %s0 = inlined_call_operand.vmem [shape: bf16[2,1,4,64], index: 0, kind: input, shape index: {}]
  %s1 = inlined_call_operand.vmem [shape: f32[2,1,64], index: 1, kind: output, shape index: {0}]
  %s2 = inlined_call_operand.vmem [shape: f32[2,1,64], index: 2, kind: output, shape index: {1}]
  %3 = xla_tuple %s1, %s2
  %s4 = sld [smem:[#allocation0]]
  $region45: #{gemini_df_resnet_forward.20} parent=0
    _
  %s6 = ssub.s32 1, %s4
  %s7 = scalar_select 0, %s6, %s4
  loop: start=0, step=1, limit=4
  $region2: #{gemini_df_resnet_forward.20} parent=0 // loop_pre_header
    _
  $region3: #{gemini_df_resnet_forward.20} parent=0 // loop_header
    %s9 = sphi 0, %s13
    %p10 = scmp.ge.s32.totalorder %s9, 4
    %s19 = sphi 0, %s21
    %s22 = sphi 0, %s19
    %s23 = sphi 0, %s22
    %s39 = sphi 0, %s23
    %s45 = sphi 0, %s47
    %s48 = sphi 0, %s45
    %s49 = sphi 0, %s48
    %s65 = sphi 0, %s49
    %s71 = sphi 0, %s73
    %s74 = sphi 0, %s71
    %s75 = sphi 0, %s74
    %s91 = sphi 0, %s75
  $region4: #{gemini_df_resnet_forward.20} parent=0 // loop_header_branch
    %12 = sbr.rel (%p10) target = $region8
  $region5: #{gemini_df_resnet_forward.20} parent=0 // loop_body
    %s14 = ssub.s32 %s9, 1
    %s15 = ssub.s32 %s9, 2
    %s16 = sadd.s32 %s9, 1
    %s17 = ssub.s32 %s9, %s16
    %p18 = scmp.eq.s32.totalorder %s17, 0
    %s20 = sadd.s32 %s19, 1
    %s21 = scalar_select %p18, %s19, %s20
    %p24 = pneg %p18
    %p25 = scmp.eq.s32.totalorder %s9, 1
    %p26 = por %p24, %p25
    %p27 = scmp.ne.s32.totalorder %s19, %s22
    %p28 = scmp.eq.s32.totalorder %s9, 0
    %p29 = por %p27, %p28
    %p30 = scmp.ne.s32.totalorder %s19, %s22
    %p31 = scmp.eq.s32.totalorder %s14, 1
    %p32 = por %p30, %p31
    %p33 = scmp.ne.s32.totalorder %s22, %s23
    %p34 = scmp.eq.s32.totalorder %s14, 0
    %p35 = por %p33, %p34
    %p36 = scmp.ne.s32.totalorder %s22, %s23
    %p37 = scmp.eq.s32.totalorder %s15, 1
    %p38 = por %p36, %p37
    %p40 = scmp.ne.s32.totalorder %s23, %s39
    %p41 = scmp.eq.s32.totalorder %s15, 0
    %p42 = por %p40, %p41
    %s43 = ssub.s32 %s9, %s16
    %p44 = scmp.eq.s32.totalorder %s43, 0
    %s46 = sadd.s32 %s45, 1
    %s47 = scalar_select %p44, %s45, %s46
    %p50 = pneg %p44
    %p51 = scmp.eq.s32.totalorder %s9, 1
    %p52 = por %p50, %p51
    %p53 = scmp.ne.s32.totalorder %s45, %s48
    %p54 = scmp.eq.s32.totalorder %s9, 0
    %p55 = por %p53, %p54
    %p56 = scmp.ne.s32.totalorder %s45, %s48
    %p57 = scmp.eq.s32.totalorder %s14, 1
    %p58 = por %p56, %p57
    %p59 = scmp.ne.s32.totalorder %s48, %s49
    %p60 = scmp.eq.s32.totalorder %s14, 0
    %p61 = por %p59, %p60
    %p62 = scmp.ne.s32.totalorder %s48, %s49
    %p63 = scmp.eq.s32.totalorder %s15, 1
    %p64 = por %p62, %p63
    %p66 = scmp.ne.s32.totalorder %s49, %s65
    %p67 = scmp.eq.s32.totalorder %s15, 0
    %p68 = por %p66, %p67
    %s69 = ssub.s32 %s9, %s16
    %p70 = scmp.eq.s32.totalorder %s69, 0
    %s72 = sadd.s32 %s71, 1
    %s73 = scalar_select %p70, %s71, %s72
    %p76 = pneg %p70
    %p77 = scmp.eq.s32.totalorder %s9, 1
    %p78 = por %p76, %p77
    %p79 = scmp.ne.s32.totalorder %s71, %s74
    %p80 = scmp.eq.s32.totalorder %s9, 0
    %p81 = por %p79, %p80
    %p82 = scmp.ne.s32.totalorder %s71, %s74
    %p83 = scmp.eq.s32.totalorder %s14, 1
    %p84 = por %p82, %p83
    %p85 = scmp.ne.s32.totalorder %s74, %s75
    %p86 = scmp.eq.s32.totalorder %s14, 0
    %p87 = por %p85, %p86
    %p88 = scmp.ne.s32.totalorder %s74, %s75
    %p89 = scmp.eq.s32.totalorder %s15, 1
    %p90 = por %p88, %p89
    %p92 = scmp.ne.s32.totalorder %s75, %s91
    %p93 = scmp.eq.s32.totalorder %s15, 0
    %p94 = por %p92, %p93
    %p95 = scmp.le.s32.totalorder 1, %s9
    %p96 = scmp.lt.s32.totalorder %s9, 3
    %p97 = pnand %p95, %p96
    %p98 = pneg %p97
    // Predicated region
    $region9: #{gemini_df_resnet_forward.20} parent=5 // pred_check
      _
    $region10: #{gemini_df_resnet_forward.20} parent=5 // pred_check_branch
      %100 = sbr.rel (%p97) target = $region12
    $region11: #{gemini_df_resnet_forward.20} parent=5 // pred_region
      %s101 = ssub.s32 %s9, 1
    $region12: #{gemini_df_resnet_forward.20} parent=5 // pred_fallthru
      _
    %p102 = scmp.lt.s32.totalorder %s9, 2
    // Predicated region
    $region13: #{gemini_df_resnet_forward.20} parent=5 // pred_check
      %p103 = pneg %p102
    $region14: #{gemini_df_resnet_forward.20} parent=5 // pred_check_branch
      %105 = sbr.rel (%p103) target = $region16
    $region15: #{gemini_df_resnet_forward.20} parent=5 // pred_region
      // Predicated region
      $region17: #{gemini_df_resnet_forward.20} parent=15 // pred_check
        %p106 = pneg %p29
      $region18: #{gemini_df_resnet_forward.20} parent=15 // pred_check_branch
        %108 = sbr.rel (%p106) target = $region20
      $region19: #{gemini_df_resnet_forward.20} parent=15 // pred_region
        %p109 = scmp.lt.s32.totalorder %s9, 1
        %s110 = scalar_select %p109, %s9, 1
        %s111 = smul.addr %s110, 2
        %s112 = scalar_lea.vmem %s0, %s111
      $region20: #{gemini_df_resnet_forward.20} parent=15 // pred_fallthru
        _
    $region16: #{gemini_df_resnet_forward.20} parent=5 // pred_fallthru
      _
    %p113 = scmp.le.s32.totalorder 1, %s9
    %p114 = scmp.lt.s32.totalorder %s9, 3
    %p115 = pnand %p113, %p114
    %p116 = pneg %p115
    // Predicated region
    $region21: #{gemini_df_resnet_forward.20} parent=5 // pred_check
      _
    $region22: #{gemini_df_resnet_forward.20} parent=5 // pred_check_branch
      %118 = sbr.rel (%p115) target = $region24
    $region23: #{gemini_df_resnet_forward.20} parent=5 // pred_region
      %s119 = ssub.s32 %s9, 1
      %p120 = scmp.lt.s32.totalorder %s14, 1
      %s121 = scalar_select %p120, %s14, 1
      %s122 = smul.addr %s121, 2
      %s123 = scalar_lea.vmem %s0, %s122
      %p124 = pneg %p35
      %p125 = pneg %p32
      %p126 = pneg %p61
      %p127 = pneg %p58
      %p128 = scmp.lt.s32.totalorder %s14, 1
      %s129 = scalar_select %p128, %s14, 1
      %s130 = scalar_lea.vmem %s1, %s129
      %p131 = pneg %p87
      %p132 = pneg %p84
      %p133 = scmp.lt.s32.totalorder %s14, 1
      %s134 = scalar_select %p133, %s14, 1
      %s135 = scalar_lea.vmem %s2, %s134
      %p136 = scmp.lt.s32.totalorder %s14, 1
      %s137 = scalar_select %p136, %s14, 1
      %s138 = smul.addr %s137, 2
      %s139 = scalar_lea.vmem %s0, %s138
      %p140 = scmp.lt.s32.totalorder %s14, 1
      %s141 = scalar_select %p140, %s14, 1
      %s142 = scalar_lea.vmem %s1, %s141
      %p143 = scmp.lt.s32.totalorder %s14, 1
      %s144 = scalar_select %p143, %s14, 1
      %s145 = scalar_lea.vmem %s2, %s144
      %v146 = vld [vmem:[%s139] sm:$0x3]
      %v147 = vunpack.c.l.bf16 %v146
      %vm148 = vcmask 519168
      %v149 = vsel %vm148, %v147, 0.0
      %v150 = vrot.slane %v149, 4
      %v151 = vadd.f32 %v149, %v150
      %v152 = vrot.slane %v151, 2
      %v153 = vadd.f32 %v151, %v152
      %v154 = vrot.slane %v153, 1
      %v155 = vadd.f32 %v153, %v154
      %v156 = vmul.f32 %v147, %v147
      %v157 = vsel %vm148, %v156, 0.0
      %v158 = vrot.slane %v157, 4
      %v159 = vadd.f32 %v157, %v158
      %v160 = vrot.slane %v159, 2
      %v161 = vadd.f32 %v159, %v160
      %v162 = vrot.slane %v161, 1
      %v163 = vadd.f32 %v161, %v162
      %v164 = vmul.f32 %v155, 0.25
      %v165 = vmul.f32 %v164, %v164
      %v166 = vmul.f32 %v165, 4.0
      %v167 = vsub.f32 %v163, %v166
      %v168 = vmul.f32 %v167, 0.33333334
      %v169 = vmax.f32 %v168, 0.0
      %vm170 = vcmask 516096
      %171 = vst.msk [vmem:[%s142] sm:$0x1] %vm170, %v164
      %v172 = vadd.f32 %v169, 1e-10
      %v173 = vrsqrt.pop %v172
      %v174 = vmul.f32 %v172, %v173
      %vm175 = vcmp.eq.f32.partialorder %v172, inf
      %v176 = vsel %vm175, %v172, %v174
      %vm177 = vcmp.eq.f32.partialorder %v172, 0.0
      %v178 = vand.u32 %v172, 2147483648
      %v179 = vsel %vm177, %v178, %v176
      %180 = vst.msk [vmem:[%s145] sm:$0x1] %vm170, %v179
      %p181 = scmp.lt.s32.totalorder %s14, 1
      %s182 = scalar_select %p181, %s14, 1
      %s183 = scalar_lea.vmem %s1, %s182
      %p184 = scmp.lt.s32.totalorder %s14, 1
      %s185 = scalar_select %p184, %s14, 1
      %s186 = scalar_lea.vmem %s2, %s185
      // Predicated region
      $region25: #{gemini_df_resnet_forward.20} parent=23 // pred_check
        %p187 = pneg %p58
      $region26: #{gemini_df_resnet_forward.20} parent=23 // pred_check_branch
        %189 = sbr.rel (%p187) target = $region28
      $region27: #{gemini_df_resnet_forward.20} parent=23 // pred_region
        _
      $region28: #{gemini_df_resnet_forward.20} parent=23 // pred_fallthru
        _
      // Predicated region
      $region29: #{gemini_df_resnet_forward.20} parent=23 // pred_check
        %p190 = pneg %p84
      $region30: #{gemini_df_resnet_forward.20} parent=23 // pred_check_branch
        %192 = sbr.rel (%p190) target = $region32
      $region31: #{gemini_df_resnet_forward.20} parent=23 // pred_region
        _
      $region32: #{gemini_df_resnet_forward.20} parent=23 // pred_fallthru
        _
    $region24: #{gemini_df_resnet_forward.20} parent=5 // pred_fallthru
      _
    %p193 = scmp.le.s32.totalorder 2, %s9
    // Predicated region
    $region33: #{gemini_df_resnet_forward.20} parent=5 // pred_check
      %p194 = pneg %p193
    $region34: #{gemini_df_resnet_forward.20} parent=5 // pred_check_branch
      %196 = sbr.rel (%p194) target = $region36
    $region35: #{gemini_df_resnet_forward.20} parent=5 // pred_region
      %s197 = ssub.s32 %s9, 2
      // Predicated region
      $region37: #{gemini_df_resnet_forward.20} parent=35 // pred_check
        %p198 = pneg %p64
      $region38: #{gemini_df_resnet_forward.20} parent=35 // pred_check_branch
        %200 = sbr.rel (%p198) target = $region40
      $region39: #{gemini_df_resnet_forward.20} parent=35 // pred_region
        %p201 = scmp.lt.s32.totalorder %s15, 1
        %s202 = scalar_select %p201, %s15, 1
        %s203 = scalar_lea.vmem %s1, %s202
      $region40: #{gemini_df_resnet_forward.20} parent=35 // pred_fallthru
        _
      // Predicated region
      $region41: #{gemini_df_resnet_forward.20} parent=35 // pred_check
        %p204 = pneg %p90
      $region42: #{gemini_df_resnet_forward.20} parent=35 // pred_check_branch
        %206 = sbr.rel (%p204) target = $region44
      $region43: #{gemini_df_resnet_forward.20} parent=35 // pred_region
        %p207 = scmp.lt.s32.totalorder %s15, 1
        %s208 = scalar_select %p207, %s15, 1
        %s209 = scalar_lea.vmem %s2, %s208
      $region44: #{gemini_df_resnet_forward.20} parent=35 // pred_fallthru
        _
    $region36: #{gemini_df_resnet_forward.20} parent=5 // pred_fallthru
      _
  $region6: #{gemini_df_resnet_forward.20} parent=0 // loop_footer
    %s13 = sadd.s32 1, %s9
  $region7: #{gemini_df_resnet_forward.20} parent=0 // loop_footer_branch
    %8 = sbr.rel target = $region3
  $region8: #{gemini_df_resnet_forward.20} parent=0 // loop_exit
    _

// kernel: gemini_df_resnet_forward.19
$region0: #{gemini_df_resnet_forward.19}
  #allocation0 [shape = 'u32[]', space=smem, size = 0x4, offset = 0x4, fixed_abs, tag = 'smem constant byte address 0x4 - core index']
  #allocation1 [shape = 'u32[144,128]{1,0:T(1,128)}', space=vmem, size = 0x12000, scoped, tag = 'internal scratch']
  #allocation2 [shape = 'f32[24,256]{1,0:T(8,128)}', space=vmem, size = 0x6000, scoped, tag = 'scratch operand']
  %s0 = inlined_call_operand.vmem [shape: bf16[2,4,64], index: 0, kind: input, shape index: {}]
  %s1 = inlined_call_operand.vmem [shape: f32[4,2], index: 1, kind: input, shape index: {}]
  %s2 = inlined_call_operand.vmem [shape: bf16[64,256], index: 2, kind: input, shape index: {}]
  %s3 = inlined_call_operand.vmem [shape: f32[1,256], index: 3, kind: input, shape index: {}]
  %s4 = inlined_call_operand.vmem [shape: f32[1,256], index: 4, kind: input, shape index: {}]
  %s5 = inlined_call_operand.vmem [shape: f32[9,256], index: 5, kind: input, shape index: {}]
  %s6 = inlined_call_operand.vmem [shape: f32[1,256], index: 6, kind: input, shape index: {}]
  %s7 = inlined_call_operand.vmem [shape: f32[1,256], index: 7, kind: input, shape index: {}]
  %s8 = inlined_call_operand.vmem [shape: bf16[256,64], index: 8, kind: input, shape index: {}]
  %s9 = inlined_call_operand.vmem [shape: f32[1,64], index: 9, kind: input, shape index: {}]
  %s10 = inlined_call_operand.vmem [shape: f32[1,64], index: 10, kind: input, shape index: {}]
  %s11 = inlined_call_operand.vmem [shape: bf16[2,4,64], index: 11, kind: output, shape index: {}]
  %s12 = sld [smem:[#allocation0]]
  $region77: #{gemini_df_resnet_forward.19} parent=0
    _
  %s14 = ssub.s32 1, %s12
  %s15 = scalar_select 0, %s14, %s12
  loop: start=0, step=1, limit=4
  $region2: #{gemini_df_resnet_forward.19} parent=0 // loop_pre_header
    _
  $region3: #{gemini_df_resnet_forward.19} parent=0 // loop_header
    %s17 = sphi 0, %s21
    %p18 = scmp.ge.s32.totalorder %s17, 4
    %s27 = sphi 0, %s29
    %s30 = sphi 0, %s27
    %s31 = sphi 0, %s30
    %s47 = sphi 0, %s31
    %s51 = sphi 0, %s51
    %s53 = sphi 0, %s51
    %s54 = sphi 0, %s53
    %s68 = sphi 0, %s54
    %s72 = sphi 0, %s72
    %s74 = sphi 0, %s72
    %s75 = sphi 0, %s74
    %s89 = sphi 0, %s75
    %s93 = sphi 0, %s93
    %s95 = sphi 0, %s93
    %s96 = sphi 0, %s95
    %s110 = sphi 0, %s96
    %s114 = sphi 0, %s114
    %s116 = sphi 0, %s114
    %s117 = sphi 0, %s116
    %s131 = sphi 0, %s117
    %s135 = sphi 0, %s135
    %s137 = sphi 0, %s135
    %s138 = sphi 0, %s137
    %s152 = sphi 0, %s138
    %s156 = sphi 0, %s156
    %s158 = sphi 0, %s156
    %s159 = sphi 0, %s158
    %s173 = sphi 0, %s159
    %s177 = sphi 0, %s177
    %s179 = sphi 0, %s177
    %s180 = sphi 0, %s179
    %s194 = sphi 0, %s180
    %s198 = sphi 0, %s198
    %s200 = sphi 0, %s198
    %s201 = sphi 0, %s200
    %s215 = sphi 0, %s201
    %s219 = sphi 0, %s219
    %s221 = sphi 0, %s219
    %s222 = sphi 0, %s221
    %s236 = sphi 0, %s222
    %s240 = sphi 0, %s240
    %s242 = sphi 0, %s240
    %s243 = sphi 0, %s242
    %s257 = sphi 0, %s243
    %s263 = sphi 0, %s265
    %s266 = sphi 0, %s263
    %s267 = sphi 0, %s266
    %s283 = sphi 0, %s267
  $region4: #{gemini_df_resnet_forward.19} parent=0 // loop_header_branch
    %20 = sbr.rel (%p18) target = $region8
  $region5: #{gemini_df_resnet_forward.19} parent=0 // loop_body
    %s22 = ssub.s32 %s17, 1
    %s23 = ssub.s32 %s17, 2
    %s24 = sadd.s32 %s17, 1
    %s25 = ssub.s32 %s17, %s24
    %p26 = scmp.eq.s32.totalorder %s25, 0
    %s28 = sadd.s32 %s27, 1
    %s29 = scalar_select %p26, %s27, %s28
    %p32 = pneg %p26
    %p33 = scmp.eq.s32.totalorder %s17, 1
    %p34 = por %p32, %p33
    %p35 = scmp.ne.s32.totalorder %s27, %s30
    %p36 = scmp.eq.s32.totalorder %s17, 0
    %p37 = por %p35, %p36
    %p38 = scmp.ne.s32.totalorder %s27, %s30
    %p39 = scmp.eq.s32.totalorder %s22, 1
    %p40 = por %p38, %p39
    %p41 = scmp.ne.s32.totalorder %s30, %s31
    %p42 = scmp.eq.s32.totalorder %s22, 0
    %p43 = por %p41, %p42
    %p44 = scmp.ne.s32.totalorder %s30, %s31
    %p45 = scmp.eq.s32.totalorder %s23, 1
    %p46 = por %p44, %p45
    %p48 = scmp.ne.s32.totalorder %s31, %s47
    %p49 = scmp.eq.s32.totalorder %s23, 0
    %p50 = por %p48, %p49
    %s52 = sadd.s32 %s51, 1
    %p55 = scmp.eq.s32.totalorder %s17, 1
    %p56 = scmp.ne.s32.totalorder %s51, %s53
    %p57 = scmp.eq.s32.totalorder %s17, 0
    %p58 = por %p56, %p57
    %p59 = scmp.ne.s32.totalorder %s51, %s53
    %p60 = scmp.eq.s32.totalorder %s22, 1
    %p61 = por %p59, %p60
    %p62 = scmp.ne.s32.totalorder %s53, %s54
    %p63 = scmp.eq.s32.totalorder %s22, 0
    %p64 = por %p62, %p63
    %p65 = scmp.ne.s32.totalorder %s53, %s54
    %p66 = scmp.eq.s32.totalorder %s23, 1
    %p67 = por %p65, %p66
    %p69 = scmp.ne.s32.totalorder %s54, %s68
    %p70 = scmp.eq.s32.totalorder %s23, 0
    %p71 = por %p69, %p70
    %s73 = sadd.s32 %s72, 1
    %p76 = scmp.eq.s32.totalorder %s17, 1
    %p77 = scmp.ne.s32.totalorder %s72, %s74
    %p78 = scmp.eq.s32.totalorder %s17, 0
    %p79 = por %p77, %p78
    %p80 = scmp.ne.s32.totalorder %s72, %s74
    %p81 = scmp.eq.s32.totalorder %s22, 1
    %p82 = por %p80, %p81
    %p83 = scmp.ne.s32.totalorder %s74, %s75
    %p84 = scmp.eq.s32.totalorder %s22, 0
    %p85 = por %p83, %p84
    %p86 = scmp.ne.s32.totalorder %s74, %s75
    %p87 = scmp.eq.s32.totalorder %s23, 1
    %p88 = por %p86, %p87
    %p90 = scmp.ne.s32.totalorder %s75, %s89
    %p91 = scmp.eq.s32.totalorder %s23, 0
    %p92 = por %p90, %p91
    %s94 = sadd.s32 %s93, 1
    %p97 = scmp.eq.s32.totalorder %s17, 1
    %p98 = scmp.ne.s32.totalorder %s93, %s95
    %p99 = scmp.eq.s32.totalorder %s17, 0
    %p100 = por %p98, %p99
    %p101 = scmp.ne.s32.totalorder %s93, %s95
    %p102 = scmp.eq.s32.totalorder %s22, 1
    %p103 = por %p101, %p102
    %p104 = scmp.ne.s32.totalorder %s95, %s96
    %p105 = scmp.eq.s32.totalorder %s22, 0
    %p106 = por %p104, %p105
    %p107 = scmp.ne.s32.totalorder %s95, %s96
    %p108 = scmp.eq.s32.totalorder %s23, 1
    %p109 = por %p107, %p108
    %p111 = scmp.ne.s32.totalorder %s96, %s110
    %p112 = scmp.eq.s32.totalorder %s23, 0
    %p113 = por %p111, %p112
    %s115 = sadd.s32 %s114, 1
    %p118 = scmp.eq.s32.totalorder %s17, 1
    %p119 = scmp.ne.s32.totalorder %s114, %s116
    %p120 = scmp.eq.s32.totalorder %s17, 0
    %p121 = por %p119, %p120
    %p122 = scmp.ne.s32.totalorder %s114, %s116
    %p123 = scmp.eq.s32.totalorder %s22, 1
    %p124 = por %p122, %p123
    %p125 = scmp.ne.s32.totalorder %s116, %s117
    %p126 = scmp.eq.s32.totalorder %s22, 0
    %p127 = por %p125, %p126
    %p128 = scmp.ne.s32.totalorder %s116, %s117
    %p129 = scmp.eq.s32.totalorder %s23, 1
    %p130 = por %p128, %p129
    %p132 = scmp.ne.s32.totalorder %s117, %s131
    %p133 = scmp.eq.s32.totalorder %s23, 0
    %p134 = por %p132, %p133
    %s136 = sadd.s32 %s135, 1
    %p139 = scmp.eq.s32.totalorder %s17, 1
    %p140 = scmp.ne.s32.totalorder %s135, %s137
    %p141 = scmp.eq.s32.totalorder %s17, 0
    %p142 = por %p140, %p141
    %p143 = scmp.ne.s32.totalorder %s135, %s137
    %p144 = scmp.eq.s32.totalorder %s22, 1
    %p145 = por %p143, %p144
    %p146 = scmp.ne.s32.totalorder %s137, %s138
    %p147 = scmp.eq.s32.totalorder %s22, 0
    %p148 = por %p146, %p147
    %p149 = scmp.ne.s32.totalorder %s137, %s138
    %p150 = scmp.eq.s32.totalorder %s23, 1
    %p151 = por %p149, %p150
    %p153 = scmp.ne.s32.totalorder %s138, %s152
    %p154 = scmp.eq.s32.totalorder %s23, 0
    %p155 = por %p153, %p154
    %s157 = sadd.s32 %s156, 1
    %p160 = scmp.eq.s32.totalorder %s17, 1
    %p161 = scmp.ne.s32.totalorder %s156, %s158
    %p162 = scmp.eq.s32.totalorder %s17, 0
    %p163 = por %p161, %p162
    %p164 = scmp.ne.s32.totalorder %s156, %s158
    %p165 = scmp.eq.s32.totalorder %s22, 1
    %p166 = por %p164, %p165
    %p167 = scmp.ne.s32.totalorder %s158, %s159
    %p168 = scmp.eq.s32.totalorder %s22, 0
    %p169 = por %p167, %p168
    %p170 = scmp.ne.s32.totalorder %s158, %s159
    %p171 = scmp.eq.s32.totalorder %s23, 1
    %p172 = por %p170, %p171
    %p174 = scmp.ne.s32.totalorder %s159, %s173
    %p175 = scmp.eq.s32.totalorder %s23, 0
    %p176 = por %p174, %p175
    %s178 = sadd.s32 %s177, 1
    %p181 = scmp.eq.s32.totalorder %s17, 1
    %p182 = scmp.ne.s32.totalorder %s177, %s179
    %p183 = scmp.eq.s32.totalorder %s17, 0
    %p184 = por %p182, %p183
    %p185 = scmp.ne.s32.totalorder %s177, %s179
    %p186 = scmp.eq.s32.totalorder %s22, 1
    %p187 = por %p185, %p186
    %p188 = scmp.ne.s32.totalorder %s179, %s180
    %p189 = scmp.eq.s32.totalorder %s22, 0
    %p190 = por %p188, %p189
    %p191 = scmp.ne.s32.totalorder %s179, %s180
    %p192 = scmp.eq.s32.totalorder %s23, 1
    %p193 = por %p191, %p192
    %p195 = scmp.ne.s32.totalorder %s180, %s194
    %p196 = scmp.eq.s32.totalorder %s23, 0
    %p197 = por %p195, %p196
    %s199 = sadd.s32 %s198, 1
    %p202 = scmp.eq.s32.totalorder %s17, 1
    %p203 = scmp.ne.s32.totalorder %s198, %s200
    %p204 = scmp.eq.s32.totalorder %s17, 0
    %p205 = por %p203, %p204
    %p206 = scmp.ne.s32.totalorder %s198, %s200
    %p207 = scmp.eq.s32.totalorder %s22, 1
    %p208 = por %p206, %p207
    %p209 = scmp.ne.s32.totalorder %s200, %s201
    %p210 = scmp.eq.s32.totalorder %s22, 0
    %p211 = por %p209, %p210
    %p212 = scmp.ne.s32.totalorder %s200, %s201
    %p213 = scmp.eq.s32.totalorder %s23, 1
    %p214 = por %p212, %p213
    %p216 = scmp.ne.s32.totalorder %s201, %s215
    %p217 = scmp.eq.s32.totalorder %s23, 0
    %p218 = por %p216, %p217
    %s220 = sadd.s32 %s219, 1
    %p223 = scmp.eq.s32.totalorder %s17, 1
    %p224 = scmp.ne.s32.totalorder %s219, %s221
    %p225 = scmp.eq.s32.totalorder %s17, 0
    %p226 = por %p224, %p225
    %p227 = scmp.ne.s32.totalorder %s219, %s221
    %p228 = scmp.eq.s32.totalorder %s22, 1
    %p229 = por %p227, %p228
    %p230 = scmp.ne.s32.totalorder %s221, %s222
    %p231 = scmp.eq.s32.totalorder %s22, 0
    %p232 = por %p230, %p231
    %p233 = scmp.ne.s32.totalorder %s221, %s222
    %p234 = scmp.eq.s32.totalorder %s23, 1
    %p235 = por %p233, %p234
    %p237 = scmp.ne.s32.totalorder %s222, %s236
    %p238 = scmp.eq.s32.totalorder %s23, 0
    %p239 = por %p237, %p238
    %s241 = sadd.s32 %s240, 1
    %p244 = scmp.eq.s32.totalorder %s17, 1
    %p245 = scmp.ne.s32.totalorder %s240, %s242
    %p246 = scmp.eq.s32.totalorder %s17, 0
    %p247 = por %p245, %p246
    %p248 = scmp.ne.s32.totalorder %s240, %s242
    %p249 = scmp.eq.s32.totalorder %s22, 1
    %p250 = por %p248, %p249
    %p251 = scmp.ne.s32.totalorder %s242, %s243
    %p252 = scmp.eq.s32.totalorder %s22, 0
    %p253 = por %p251, %p252
    %p254 = scmp.ne.s32.totalorder %s242, %s243
    %p255 = scmp.eq.s32.totalorder %s23, 1
    %p256 = por %p254, %p255
    %p258 = scmp.ne.s32.totalorder %s243, %s257
    %p259 = scmp.eq.s32.totalorder %s23, 0
    %p260 = por %p258, %p259
    %s261 = ssub.s32 %s17, %s24
    %p262 = scmp.eq.s32.totalorder %s261, 0
    %s264 = sadd.s32 %s263, 1
    %s265 = scalar_select %p262, %s263, %s264
    %p268 = pneg %p262
    %p269 = scmp.eq.s32.totalorder %s17, 1
    %p270 = por %p268, %p269
    %p271 = scmp.ne.s32.totalorder %s263, %s266
    %p272 = scmp.eq.s32.totalorder %s17, 0
    %p273 = por %p271, %p272
    %p274 = scmp.ne.s32.totalorder %s263, %s266
    %p275 = scmp.eq.s32.totalorder %s22, 1
    %p276 = por %p274, %p275
    %p277 = scmp.ne.s32.totalorder %s266, %s267
    %p278 = scmp.eq.s32.totalorder %s22, 0
    %p279 = por %p277, %p278
    %p280 = scmp.ne.s32.totalorder %s266, %s267
    %p281 = scmp.eq.s32.totalorder %s23, 1
    %p282 = por %p280, %p281
    %p284 = scmp.ne.s32.totalorder %s267, %s283
    %p285 = scmp.eq.s32.totalorder %s23, 0
    %p286 = por %p284, %p285
    %p287 = scmp.le.s32.totalorder 1, %s17
    %p288 = scmp.lt.s32.totalorder %s17, 3
    %p289 = pnand %p287, %p288
    %p290 = pneg %p289
    // Predicated region
    $region9: #{gemini_df_resnet_forward.19} parent=5 // pred_check
      _
    $region10: #{gemini_df_resnet_forward.19} parent=5 // pred_check_branch
      %292 = sbr.rel (%p289) target = $region12
    $region11: #{gemini_df_resnet_forward.19} parent=5 // pred_region
      %s293 = ssub.s32 %s17, 1
      // Predicated region
      $region13: #{gemini_df_resnet_forward.19} parent=11 // pred_check
        %p294 = pneg %p64
      $region14: #{gemini_df_resnet_forward.19} parent=11 // pred_check_branch
        %296 = sbr.rel (%p294) target = $region16
      $region15: #{gemini_df_resnet_forward.19} parent=11 // pred_region
        _
      $region16: #{gemini_df_resnet_forward.19} parent=11 // pred_fallthru
        _
      // Predicated region
      $region17: #{gemini_df_resnet_forward.19} parent=11 // pred_check
        %p297 = pneg %p85
      $region18: #{gemini_df_resnet_forward.19} parent=11 // pred_check_branch
        %299 = sbr.rel (%p297) target = $region20
      $region19: #{gemini_df_resnet_forward.19} parent=11 // pred_region
        _
      $region20: #{gemini_df_resnet_forward.19} parent=11 // pred_fallthru
        _
      // Predicated region
      $region21: #{gemini_df_resnet_forward.19} parent=11 // pred_check
        %p300 = pneg %p106
      $region22: #{gemini_df_resnet_forward.19} parent=11 // pred_check_branch
        %302 = sbr.rel (%p300) target = $region24
      $region23: #{gemini_df_resnet_forward.19} parent=11 // pred_region
        _
      $region24: #{gemini_df_resnet_forward.19} parent=11 // pred_fallthru
        _
      // Predicated region
      $region25: #{gemini_df_resnet_forward.19} parent=11 // pred_check
        %p303 = pneg %p127
      $region26: #{gemini_df_resnet_forward.19} parent=11 // pred_check_branch
        %305 = sbr.rel (%p303) target = $region28
      $region27: #{gemini_df_resnet_forward.19} parent=11 // pred_region
        _
      $region28: #{gemini_df_resnet_forward.19} parent=11 // pred_fallthru
        _
      // Predicated region
      $region29: #{gemini_df_resnet_forward.19} parent=11 // pred_check
        %p306 = pneg %p148
      $region30: #{gemini_df_resnet_forward.19} parent=11 // pred_check_branch
        %308 = sbr.rel (%p306) target = $region32
      $region31: #{gemini_df_resnet_forward.19} parent=11 // pred_region
        _
      $region32: #{gemini_df_resnet_forward.19} parent=11 // pred_fallthru
        _
      // Predicated region
      $region33: #{gemini_df_resnet_forward.19} parent=11 // pred_check
        %p309 = pneg %p169
      $region34: #{gemini_df_resnet_forward.19} parent=11 // pred_check_branch
        %311 = sbr.rel (%p309) target = $region36
      $region35: #{gemini_df_resnet_forward.19} parent=11 // pred_region
        _
      $region36: #{gemini_df_resnet_forward.19} parent=11 // pred_fallthru
        _
      // Predicated region
      $region37: #{gemini_df_resnet_forward.19} parent=11 // pred_check
        %p312 = pneg %p190
      $region38: #{gemini_df_resnet_forward.19} parent=11 // pred_check_branch
        %314 = sbr.rel (%p312) target = $region40
      $region39: #{gemini_df_resnet_forward.19} parent=11 // pred_region
        _
      $region40: #{gemini_df_resnet_forward.19} parent=11 // pred_fallthru
        _
      // Predicated region
      $region41: #{gemini_df_resnet_forward.19} parent=11 // pred_check
        %p315 = pneg %p211
      $region42: #{gemini_df_resnet_forward.19} parent=11 // pred_check_branch
        %317 = sbr.rel (%p315) target = $region44
      $region43: #{gemini_df_resnet_forward.19} parent=11 // pred_region
        _
      $region44: #{gemini_df_resnet_forward.19} parent=11 // pred_fallthru
        _
      // Predicated region
      $region45: #{gemini_df_resnet_forward.19} parent=11 // pred_check
        %p318 = pneg %p232
      $region46: #{gemini_df_resnet_forward.19} parent=11 // pred_check_branch
        %320 = sbr.rel (%p318) target = $region48
      $region47: #{gemini_df_resnet_forward.19} parent=11 // pred_region
        _
      $region48: #{gemini_df_resnet_forward.19} parent=11 // pred_fallthru
        _
      // Predicated region
      $region49: #{gemini_df_resnet_forward.19} parent=11 // pred_check
        %p321 = pneg %p253
      $region50: #{gemini_df_resnet_forward.19} parent=11 // pred_check_branch
        %323 = sbr.rel (%p321) target = $region52
      $region51: #{gemini_df_resnet_forward.19} parent=11 // pred_region
        _
      $region52: #{gemini_df_resnet_forward.19} parent=11 // pred_fallthru
        _
    $region12: #{gemini_df_resnet_forward.19} parent=5 // pred_fallthru
      _
    %p324 = scmp.lt.s32.totalorder %s17, 2
    // Predicated region
    $region53: #{gemini_df_resnet_forward.19} parent=5 // pred_check
      %p325 = pneg %p324
    $region54: #{gemini_df_resnet_forward.19} parent=5 // pred_check_branch
      %327 = sbr.rel (%p325) target = $region56
    $region55: #{gemini_df_resnet_forward.19} parent=5 // pred_region
      // Predicated region
      $region57: #{gemini_df_resnet_forward.19} parent=55 // pred_check
        %p328 = pneg %p37
      $region58: #{gemini_df_resnet_forward.19} parent=55 // pred_check_branch
        %330 = sbr.rel (%p328) target = $region60
      $region59: #{gemini_df_resnet_forward.19} parent=55 // pred_region
        %p331 = scmp.lt.s32.totalorder %s17, 1
        %s332 = scalar_select %p331, %s17, 1
        %s333 = smul.addr %s332, 2
        %s334 = scalar_lea.vmem %s0, %s333
      $region60: #{gemini_df_resnet_forward.19} parent=55 // pred_fallthru
        _
    $region56: #{gemini_df_resnet_forward.19} parent=5 // pred_fallthru
      _
    %p335 = scmp.le.s32.totalorder 1, %s17
    %p336 = scmp.lt.s32.totalorder %s17, 3
    %p337 = pnand %p335, %p336
    %p338 = pneg %p337
    // Predicated region
    $region61: #{gemini_df_resnet_forward.19} parent=5 // pred_check
      _
    $region62: #{gemini_df_resnet_forward.19} parent=5 // pred_check_branch
      %340 = sbr.rel (%p337) target = $region64
    $region63: #{gemini_df_resnet_forward.19} parent=5 // pred_region
      %s341 = ssub.s32 %s17, 1
      %p342 = scmp.lt.s32.totalorder %s22, 1
      %s343 = scalar_select %p342, %s22, 1
      %s344 = smul.addr %s343, 2
      %s345 = scalar_lea.vmem %s0, %s344
      %p346 = pneg %p43
      %p347 = pneg %p40
      %p348 = pneg %p64
      %p349 = pneg %p61
      %p350 = pneg %p85
      %p351 = pneg %p82
      %p352 = pneg %p106
      %p353 = pneg %p103
      %p354 = pneg %p127
      %p355 = pneg %p124
      %p356 = pneg %p148
      %p357 = pneg %p145
      %p358 = pneg %p169
      %p359 = pneg %p166
      %p360 = pneg %p190
      %p361 = pneg %p187
      %p362 = pneg %p211
      %p363 = pneg %p208
      %p364 = pneg %p232
      %p365 = pneg %p229
      %p366 = pneg %p253
      %p367 = pneg %p250
      %p368 = pneg %p279
      %p369 = pneg %p276
      %p370 = scmp.lt.s32.totalorder %s22, 1
      %s371 = scalar_select %p370, %s22, 1
      %s372 = smul.addr %s371, 2
      %s373 = scalar_lea.vmem %s11, %s372
      %p374 = scmp.lt.s32.totalorder %s22, 1
      %s375 = scalar_select %p374, %s22, 1
      %s376 = smul.addr %s375, 2
      %s377 = scalar_lea.vmem %s0, %s376
      %p378 = scmp.lt.s32.totalorder %s22, 1
      %s379 = scalar_select %p378, %s22, 1
      %s380 = smul.addr %s379, 2
      %s381 = scalar_lea.vmem %s11, %s380
      %v383 = vld [vmem:[%s377] sm:$0x3]
      %v384 = vld [vmem:[%s2] sm:$0xff]
      %v385 = vld [vmem:[%s2 + $0x8] sm:$0xff]
      %v386 = vld [vmem:[%s2 + $0x10] sm:$0xff]
      %v387 = vld [vmem:[%s2 + $0x18] sm:$0xff]
      %v388 = vld [vmem:[%s2 + $0x20] sm:$0xff]
      %v389 = vld [vmem:[%s2 + $0x28] sm:$0xff]
      %v390 = vld [vmem:[%s2 + $0x30] sm:$0xff]
      %v391 = vld [vmem:[%s2 + $0x38] sm:$0xff]
      %v400 = vunpack.c.l.b16 %v384
      %v401 = vunpack.c.h.b16 %v384
      %v402 = vunpack.c.l.b16 %v385
      %v403 = vunpack.c.h.b16 %v385
      %v404 = vunpack.c.l.b16 %v386
      %v405 = vunpack.c.h.b16 %v386
      %v406 = vunpack.c.l.b16 %v387
      %v407 = vunpack.c.h.b16 %v387
      %v408 = vunpack.c.l.b16 %v388
      %v409 = vunpack.c.h.b16 %v388
      %v410 = vunpack.c.l.b16 %v389
      %v411 = vunpack.c.h.b16 %v389
      %v412 = vunpack.c.l.b16 %v390
      %v413 = vunpack.c.h.b16 %v390
      %v414 = vunpack.c.l.b16 %v391
      %v415 = vunpack.c.h.b16 %v391
      %v416 = vpack.c.b16 %v402, %v400
      %v417 = vpack.c.b16 %v403, %v401
      %v418 = vpack.c.b16 %v406, %v404
      %v419 = vpack.c.b16 %v407, %v405
      %v420 = vpack.c.b16 %v410, %v408
      %v421 = vpack.c.b16 %v411, %v409
      %v422 = vpack.c.b16 %v414, %v412
      %v423 = vpack.c.b16 %v415, %v413
      %vm432 = vcmask 523264
      %v434 = vsel %vm432, %v383, 0
      %436 = vmatprep.subr.bf16.mxu0 %v417
      %437 = vmatpush1.bf16.msra.mxu0 %v416
      %438 = vmatprep.subr.bf16.mxu0 %v419
      %439 = vmatpush1.bf16.msra.mxu0 %v418
      %440 = vmatprep.subr.bf16.mxu0 %v421
      %441 = vmatpush1.bf16.msra.mxu0 %v420
      %442 = vmatprep.subr.bf16.mxu0 %v423
      %443 = vmatpush1.bf16.msra.mxu0 %v422
      %444 = vmatprep.subr.bf16.mxu0 0
      %445 = vmatpush1.bf16.msra.mxu0 0
      %446 = vmatprep.subr.bf16.mxu0 0
      %447 = vmatpush1.bf16.msra.mxu0 0
      %448 = vmatprep.subr.bf16.mxu0 0
      %449 = vmatpush1.bf16.msra.mxu0 0
      %450 = vmatprep.subr.bf16.mxu0 0
      %451 = vmatpush1.bf16.msra.mxu0 0
      %452 = vmatprep.subr.bf16.mxu0 0
      %453 = vmatpush1.bf16.msra.mxu0 0
      %454 = vmatprep.subr.bf16.mxu0 0
      %455 = vmatpush1.bf16.msra.mxu0 0
      %456 = vmatprep.subr.bf16.mxu0 0
      %457 = vmatpush1.bf16.msra.mxu0 0
      %458 = vmatprep.subr.bf16.mxu0 0
      %459 = vmatpush1.bf16.msra.mxu0 0
      %460 = vmatprep.subr.bf16.mxu0 0
      %461 = vmatpush1.bf16.msra.mxu0 0
      %462 = vmatprep.subr.bf16.mxu0 0
      %463 = vmatpush1.bf16.msra.mxu0 0
      %464 = vmatprep.subr.bf16.mxu0 0
      %465 = vmatpush1.bf16.msra.mxu0 0
      %466 = vmatprep.subr.bf16.mxu0 0
      %467 = vmatpush1.bf16.msra.mxu0 0
      %468 = vmatprep.mubr.bf16.mxu0 0
      %469 = vmatmul.mubr.bf16.gmra.mrb[0].mxu0 %v434
      %v470 = vpop.f32.mrb[0].mxu0
      %v471 = vadd.f32 0.0, %v470
      %v472 = vpop.f32.mrb[0].mxu0
      %v473 = vadd.f32 0.0, %v472
      %v474 = vpop.f32.mrb[0].mxu0
      %v475 = vpop.f32.mrb[0].mxu0
      %476 = vdwg.mxu0
      %v477 = vld [vmem:[%s3] sm:$0x3]
      %v479 = vlaneseq
      %v480 = vshrl.u32 %v479, 7
      %v481 = vsub.s32 0, %v480
      %v482 = vrot.slane %v477, %v481
      %v483 = vlaneseq
      %v484 = vshrl.u32 %v483, 7
      %v485 = vsub.s32 1, %v484
      %v486 = vrot.slane %v477, %v485
      %v489 = vmul.f32 %v471, %v482
      %v490 = vmul.f32 %v473, %v486
      %v491 = vld [vmem:[%s4] sm:$0x3]
      %v493 = vlaneseq
      %v494 = vshrl.u32 %v493, 7
      %v495 = vsub.s32 0, %v494
      %v496 = vrot.slane %v491, %v495
      %v497 = vlaneseq
      %v498 = vshrl.u32 %v497, 7
      %v499 = vsub.s32 1, %v498
      %v500 = vrot.slane %v491, %v499
      %v503 = vadd.f32 %v489, %v496
      %v504 = vadd.f32 %v490, %v500
      %v505 = vmax.f32 %v503, 0.0
      %v506 = vmax.f32 %v504, 0.0
      %507 = vst [vmem:[#allocation2] sm:$0xff] 0.0
      %508 = vst [vmem:[#allocation2 + $0x8] sm:$0xff] 0.0
      %509 = vst [vmem:[#allocation2 + $0x10] sm:$0xff] 0.0
      %510 = vst [vmem:[#allocation2 + $0x18] sm:$0xff] 0.0
      %511 = vst [vmem:[#allocation2 + $0x20] sm:$0xff] 0.0
      %512 = vst [vmem:[#allocation2 + $0x28] sm:$0xff] 0.0
      %513 = vst [vmem:[#allocation2 + $0x10] sm:$0xf] %v505
      %514 = vst [vmem:[#allocation2 + $0x18] sm:$0xf] %v506
      %v515 = vld [vmem:[#allocation2] sm:$0xff]
      %v516 = vld [vmem:[#allocation2 + $0x8] sm:$0xff]
      %v517 = vld [vmem:[#allocation2 + $0x10] sm:$0xff]
      %v518 = vld [vmem:[#allocation2 + $0x18] sm:$0xff]
      %v519 = vld [vmem:[#allocation2 + $0x20] sm:$0xff]
      %v520 = vld [vmem:[#allocation2 + $0x28] sm:$0xff]
      %v521 = vld [vmem:[%s1] sm:$0xf]
      %v522 = vld [vmem:[%s5] sm:$0xff]
      %v523 = vld [vmem:[%s5 + $0x8] sm:$0xff]
      %v524 = vld [vmem:[%s5 + $0x10] sm:$0x1]
      %v525 = vld [vmem:[%s5 + $0x18] sm:$0x1]
      %v526 = vlaneseq
      %v527 = vshrl.u32 %v526, 7
      %v528 = vsub.s32 0, %v527
      %v529 = vrot.slane %v522, %v528
      %v530 = vlaneseq
      %v531 = vshrl.u32 %v530, 7
      %v532 = vsub.s32 0, %v531
      %v533 = vrot.slane %v523, %v532
      %v534 = vmul.f32 %v515, %v529
      %v535 = vmul.f32 %v516, %v533
      %537 = vset.pattern.permute.xlu0 0
      %538 = vperm.xlu0 %537, %v521
      %v539 = vpop.permute.xlu0 %538
      %v540 = vrot.slane %v539, 5
      %v542 = vmul.f32 %v534, %v540
      %v543 = vmul.f32 %v535, %v540
      %v544 = vlaneseq
      %v545 = vshrl.u32 %v544, 7
      %v546 = vsub.s32 1, %v545
      %v547 = vrot.slane %v522, %v546
      %v548 = vlaneseq
      %v549 = vshrl.u32 %v548, 7
      %v550 = vsub.s32 1, %v549
      %v551 = vrot.slane %v523, %v550
      %v552 = vmul.f32 %v515, %v547
      %v553 = vmul.f32 %v516, %v551
      %v556 = vrot.slane %v552, 1
      %v557 = vrot.slane %v553, 1
      %v560 = vadd.f32 %v542, %v556
      %v561 = vadd.f32 %v543, %v557
      %v562 = vlaneseq
      %v563 = vshrl.u32 %v562, 7
      %v564 = vsub.s32 2, %v563
      %v565 = vrot.slane %v522, %v564
      %v566 = vlaneseq
      %v567 = vshrl.u32 %v566, 7
      %v568 = vsub.s32 2, %v567
      %v569 = vrot.slane %v523, %v568
      %v570 = vmul.f32 %v515, %v565
      %v571 = vmul.f32 %v516, %v569
      %v572 = vmul.f32 %v517, %v565
      %v573 = vmul.f32 %v518, %v569
      %574 = vset.pattern.permute.xlu0 1
      %575 = vperm.xlu0 %574, %v521
      %v576 = vpop.permute.xlu0 %575
      %v577 = vrot.slane %v576, 3
      %v579 = vmul.f32 %v570, %v577
      %v580 = vmul.f32 %v571, %v577
      %v581 = vmul.f32 %v572, %v577
      %v582 = vmul.f32 %v573, %v577
      %vm587 = vcmask 1045504
      %v588 = vrot.slane %v579, 2
      %v589 = vrot.slane %v581, 2
      %v590 = vsel %vm587, %v588, %v589
      %v591 = vrot.slane %v580, 2
      %v592 = vrot.slane %v582, 2
      %v593 = vsel %vm587, %v591, %v592
      %v596 = vadd.f32 %v560, %v590
      %v597 = vadd.f32 %v561, %v593
      %v598 = vlaneseq
      %v599 = vshrl.u32 %v598, 7
      %v600 = vsub.s32 3, %v599
      %v601 = vrot.slane %v522, %v600
      %v602 = vlaneseq
      %v603 = vshrl.u32 %v602, 7
      %v604 = vsub.s32 3, %v603
      %v605 = vrot.slane %v523, %v604
      %v606 = vmul.f32 %v515, %v601
      %v607 = vmul.f32 %v516, %v605
      %v608 = vmul.f32 %v517, %v601
      %v609 = vmul.f32 %v518, %v605
      %v610 = vrot.slane %v539, 1
      %v612 = vmul.f32 %v606, %v610
      %v613 = vmul.f32 %v607, %v610
      %v614 = vmul.f32 %v608, %v610
      %v615 = vmul.f32 %v609, %v610
      %vm620 = vcmask 1043456
      %v621 = vrot.slane %v612, 4
      %v622 = vrot.slane %v614, 4
      %v623 = vsel %vm620, %v621, %v622
      %v624 = vrot.slane %v613, 4
      %v625 = vrot.slane %v615, 4
      %v626 = vsel %vm620, %v624, %v625
      %v629 = vadd.f32 %v596, %v623
      %v630 = vadd.f32 %v597, %v626
      %v631 = vlaneseq
      %v632 = vshrl.u32 %v631, 7
      %v633 = vsub.s32 4, %v632
      %v634 = vrot.slane %v522, %v633
      %v635 = vlaneseq
      %v636 = vshrl.u32 %v635, 7
      %v637 = vsub.s32 4, %v636
      %v638 = vrot.slane %v523, %v637
      %v639 = vmul.f32 %v517, %v634
      %v640 = vmul.f32 %v518, %v638
      %v643 = vrot.slane %v639, 5
      %v644 = vrot.slane %v640, 5
      %v647 = vadd.f32 %v629, %v643
      %v648 = vadd.f32 %v630, %v644
      %v649 = vlaneseq
      %v650 = vshrl.u32 %v649, 7
      %v651 = vsub.s32 5, %v650
      %v652 = vrot.slane %v522, %v651
      %v653 = vlaneseq
      %v654 = vshrl.u32 %v653, 7
      %v655 = vsub.s32 5, %v654
      %v656 = vrot.slane %v523, %v655
      %v657 = vmul.f32 %v517, %v652
      %v658 = vmul.f32 %v518, %v656
      %v659 = vrot.slane %v576, 7
      %v661 = vmul.f32 %v657, %v659
      %v662 = vmul.f32 %v658, %v659
      %v665 = vrot.slane %v661, 6
      %v666 = vrot.slane %v662, 6
      %v669 = vadd.f32 %v647, %v665
      %v670 = vadd.f32 %v648, %v666
      %v671 = vlaneseq
      %v672 = vshrl.u32 %v671, 7
      %v673 = vsub.s32 6, %v672
      %v674 = vrot.slane %v522, %v673
      %v675 = vlaneseq
      %v676 = vshrl.u32 %v675, 7
      %v677 = vsub.s32 6, %v676
      %v678 = vrot.slane %v523, %v677
      %v679 = vmul.f32 %v517, %v674
      %v680 = vmul.f32 %v518, %v678
      %v681 = vmul.f32 %v679, %v540
      %v682 = vmul.f32 %v680, %v540
      %v683 = vadd.f32 %v669, %v681
      %v684 = vadd.f32 %v670, %v682
      %v685 = vlaneseq
      %v686 = vshrl.u32 %v685, 7
      %v687 = vsub.s32 7, %v686
      %v688 = vrot.slane %v522, %v687
      %v689 = vlaneseq
      %v690 = vshrl.u32 %v689, 7
      %v691 = vsub.s32 7, %v690
      %v692 = vrot.slane %v523, %v691
      %v693 = vmul.f32 %v517, %v688
      %v694 = vmul.f32 %v518, %v692
      %v697 = vrot.slane %v693, 1
      %v698 = vrot.slane %v694, 1
      %v701 = vadd.f32 %v683, %v697
      %v702 = vadd.f32 %v684, %v698
      %v703 = vlaneseq
      %v704 = vshrl.u32 %v703, 7
      %v705 = vsub.s32 0, %v704
      %v706 = vrot.slane %v524, %v705
      %v707 = vlaneseq
      %v708 = vshrl.u32 %v707, 7
      %v709 = vsub.s32 0, %v708
      %v710 = vrot.slane %v525, %v709
      %v711 = vmul.f32 %v517, %v706
      %v712 = vmul.f32 %v518, %v710
      %v713 = vmul.f32 %v519, %v706
      %v714 = vmul.f32 %v520, %v710
      %v715 = vmul.f32 %v711, %v577
      %v716 = vmul.f32 %v712, %v577
      %v717 = vmul.f32 %v713, %v577
      %v718 = vmul.f32 %v714, %v577
      %v723 = vrot.slane %v715, 2
      %v724 = vrot.slane %v717, 2
      %v725 = vsel %vm587, %v723, %v724
      %v726 = vrot.slane %v716, 2
      %v727 = vrot.slane %v718, 2
      %v728 = vsel %vm587, %v726, %v727
      %v731 = vadd.f32 %v701, %v725
      %v732 = vadd.f32 %v702, %v728
      %v733 = vld [vmem:[%s6] sm:$0x3]
      %v735 = vlaneseq
      %v736 = vshrl.u32 %v735, 7
      %v737 = vsub.s32 0, %v736
      %v738 = vrot.slane %v733, %v737
      %v739 = vlaneseq
      %v740 = vshrl.u32 %v739, 7
      %v741 = vsub.s32 1, %v740
      %v742 = vrot.slane %v733, %v741
      %v745 = vmul.f32 %v731, %v738
      %v746 = vmul.f32 %v732, %v742
      %v747 = vld [vmem:[%s7] sm:$0x3]
      %v749 = vlaneseq
      %v750 = vshrl.u32 %v749, 7
      %v751 = vsub.s32 0, %v750
      %v752 = vrot.slane %v747, %v751
      %v753 = vlaneseq
      %v754 = vshrl.u32 %v753, 7
      %v755 = vsub.s32 1, %v754
      %v756 = vrot.slane %v747, %v755
      %v759 = vadd.f32 %v745, %v752
      %v760 = vadd.f32 %v746, %v756
      %v761 = vmax.f32 %v759, 0.0
      %v762 = vmax.f32 %v760, 0.0
      %v763 = vpack.c.bf16 %v761, %v761
      %v764 = vpack.c.bf16 %v762, %v762
      %v765 = vld [vmem:[%s8] sm:$0xf]
      %v766 = vld [vmem:[%s8 + $0x4] sm:$0xf]
      %v767 = vld [vmem:[%s8 + $0x8] sm:$0xf]
      %v768 = vld [vmem:[%s8 + $0xc] sm:$0xf]
      %v769 = vld [vmem:[%s8 + $0x10] sm:$0xf]
      %v770 = vld [vmem:[%s8 + $0x14] sm:$0xf]
      %v771 = vld [vmem:[%s8 + $0x18] sm:$0xf]
      %v772 = vld [vmem:[%s8 + $0x1c] sm:$0xf]
      %v773 = vld [vmem:[%s8 + $0x20] sm:$0xf]
      %v774 = vld [vmem:[%s8 + $0x24] sm:$0xf]
      %v775 = vld [vmem:[%s8 + $0x28] sm:$0xf]
      %v776 = vld [vmem:[%s8 + $0x2c] sm:$0xf]
      %v777 = vld [vmem:[%s8 + $0x30] sm:$0xf]
      %v778 = vld [vmem:[%s8 + $0x34] sm:$0xf]
      %v779 = vld [vmem:[%s8 + $0x38] sm:$0xf]
      %v780 = vld [vmem:[%s8 + $0x3c] sm:$0xf]
      %v781 = vld [vmem:[%s8 + $0x40] sm:$0xf]
      %v782 = vld [vmem:[%s8 + $0x44] sm:$0xf]
      %v783 = vld [vmem:[%s8 + $0x48] sm:$0xf]
      %v784 = vld [vmem:[%s8 + $0x4c] sm:$0xf]
      %v785 = vld [vmem:[%s8 + $0x50] sm:$0xf]
      %v786 = vld [vmem:[%s8 + $0x54] sm:$0xf]
      %v787 = vld [vmem:[%s8 + $0x58] sm:$0xf]
      %v788 = vld [vmem:[%s8 + $0x5c] sm:$0xf]
      %v789 = vld [vmem:[%s8 + $0x60] sm:$0xf]
      %v790 = vld [vmem:[%s8 + $0x64] sm:$0xf]
      %v791 = vld [vmem:[%s8 + $0x68] sm:$0xf]
      %v792 = vld [vmem:[%s8 + $0x6c] sm:$0xf]
      %v793 = vld [vmem:[%s8 + $0x70] sm:$0xf]
      %v794 = vld [vmem:[%s8 + $0x74] sm:$0xf]
      %v795 = vld [vmem:[%s8 + $0x78] sm:$0xf]
      %v796 = vld [vmem:[%s8 + $0x7c] sm:$0xf]
      %v798 = vshrl.u32 %v763, 16
      %v800 = vrot.slane %v798, 1
      %v801 = vshll.u32 %v763, 16
      %v803 = vrot.slane %v801, 2
      %v804 = vor.u32 %v800, %v803
      %v806 = vshrl.u32 %v764, 16
      %v808 = vrot.slane %v806, 1
      %v809 = vshll.u32 %v764, 16
      %v811 = vrot.slane %v809, 2
      %v812 = vor.u32 %v808, %v811
      %v847 = vunpack.c.l.b16 %v765
      %v848 = vunpack.c.l.b16 %v766
      %v849 = vunpack.c.l.b16 %v767
      %v850 = vunpack.c.l.b16 %v768
      %v851 = vunpack.c.l.b16 %v769
      %v852 = vunpack.c.l.b16 %v770
      %v853 = vunpack.c.l.b16 %v771
      %v854 = vunpack.c.l.b16 %v772
      %v855 = vunpack.c.l.b16 %v773
      %v856 = vunpack.c.l.b16 %v774
      %v857 = vunpack.c.l.b16 %v775
      %v858 = vunpack.c.l.b16 %v776
      %v859 = vunpack.c.l.b16 %v777
      %v860 = vunpack.c.l.b16 %v778
      %v861 = vunpack.c.l.b16 %v779
      %v862 = vunpack.c.l.b16 %v780
      %v863 = vunpack.c.l.b16 %v781
      %v864 = vunpack.c.l.b16 %v782
      %v865 = vunpack.c.l.b16 %v783
      %v866 = vunpack.c.l.b16 %v784
      %v867 = vunpack.c.l.b16 %v785
      %v868 = vunpack.c.l.b16 %v786
      %v869 = vunpack.c.l.b16 %v787
      %v870 = vunpack.c.l.b16 %v788
      %v871 = vunpack.c.l.b16 %v789
      %v872 = vunpack.c.l.b16 %v790
      %v873 = vunpack.c.l.b16 %v791
      %v874 = vunpack.c.l.b16 %v792
      %v875 = vunpack.c.l.b16 %v793
      %v876 = vunpack.c.l.b16 %v794
      %v877 = vunpack.c.l.b16 %v795
      %v878 = vunpack.c.l.b16 %v796
      %v879 = vpack.c.b16 %v848, %v847
      %v880 = vpack.c.b16 %v850, %v849
      %v881 = vpack.c.b16 %v852, %v851
      %v882 = vpack.c.b16 %v854, %v853
      %v883 = vpack.c.b16 %v856, %v855
      %v884 = vpack.c.b16 %v858, %v857
      %v885 = vpack.c.b16 %v860, %v859
      %v886 = vpack.c.b16 %v862, %v861
      %v887 = vpack.c.b16 %v864, %v863
      %v888 = vpack.c.b16 %v866, %v865
      %v889 = vpack.c.b16 %v868, %v867
      %v890 = vpack.c.b16 %v870, %v869
      %v891 = vpack.c.b16 %v872, %v871
      %v892 = vpack.c.b16 %v874, %v873
      %v893 = vpack.c.b16 %v876, %v875
      %v894 = vpack.c.b16 %v878, %v877
      %911 = vmatprep.subr.bf16.mxu0 0
      %912 = vmatpush1.bf16.msra.mxu0 %v879
      %913 = vmatprep.subr.bf16.mxu0 0
      %914 = vmatpush1.bf16.msra.mxu0 %v880
      %915 = vmatprep.subr.bf16.mxu0 0
      %916 = vmatpush1.bf16.msra.mxu0 %v881
      %917 = vmatprep.subr.bf16.mxu0 0
      %918 = vmatpush1.bf16.msra.mxu0 %v882
      %919 = vmatprep.subr.bf16.mxu0 0
      %920 = vmatpush1.bf16.msra.mxu0 %v883
      %921 = vmatprep.subr.bf16.mxu0 0
      %922 = vmatpush1.bf16.msra.mxu0 %v884
      %923 = vmatprep.subr.bf16.mxu0 0
      %924 = vmatpush1.bf16.msra.mxu0 %v885
      %925 = vmatprep.subr.bf16.mxu0 0
      %926 = vmatpush1.bf16.msra.mxu0 %v886
      %927 = vmatprep.subr.bf16.mxu0 0
      %928 = vmatpush1.bf16.msra.mxu0 %v887
      %929 = vmatprep.subr.bf16.mxu0 0
      %930 = vmatpush1.bf16.msra.mxu0 %v888
      %931 = vmatprep.subr.bf16.mxu0 0
      %932 = vmatpush1.bf16.msra.mxu0 %v889
      %933 = vmatprep.subr.bf16.mxu0 0
      %934 = vmatpush1.bf16.msra.mxu0 %v890
      %935 = vmatprep.subr.bf16.mxu0 0
      %936 = vmatpush1.bf16.msra.mxu0 %v891
      %937 = vmatprep.subr.bf16.mxu0 0
      %938 = vmatpush1.bf16.msra.mxu0 %v892
      %939 = vmatprep.subr.bf16.mxu0 0
      %940 = vmatpush1.bf16.msra.mxu0 %v893
      %941 = vmatprep.subr.bf16.mxu0 0
      %942 = vmatpush1.bf16.msra.mxu0 %v894
      %943 = vmatprep.mubr.bf16.mxu0 %v812
      %944 = vmatmul.mubr.bf16.gmra.mrb[0].mxu0 %v804
      %v945 = vpop.f32.mrb[0].mxu0
      %v946 = vadd.f32 0.0, %v945
      %v947 = vpop.f32.mrb[0].mxu0
      %v948 = vpop.f32.mrb[0].mxu0
      %v949 = vpop.f32.mrb[0].mxu0
      %950 = vdwg.mxu0
      %v951 = vld [vmem:[%s9] sm:$0x1]
      %v953 = vlaneseq
      %v954 = vshrl.u32 %v953, 7
      %v955 = vsub.s32 0, %v954
      %v956 = vrot.slane %v951, %v955
      %v958 = vmul.f32 %v946, %v956
      %v959 = vld [vmem:[%s10] sm:$0x1]
      %v961 = vlaneseq
      %v962 = vshrl.u32 %v961, 7
      %v963 = vsub.s32 0, %v962
      %v964 = vrot.slane %v959, %v963
      %v966 = vadd.f32 %v958, %v964
      %v967 = vunpack.c.l.bf16 %v383
      %v968 = vadd.f32 %v966, %v967
      %v969 = vmax.f32 %v968, 0.0
      %v970 = vpack.c.bf16 %v969, %v969
      %vm971 = vcmask 517120
      %972 = vst.msk [vmem:[%s381] sm:$0x3] %vm971, %v970
      %p973 = scmp.lt.s32.totalorder %s22, 1
      %s974 = scalar_select %p973, %s22, 1
      %s975 = smul.addr %s974, 2
      %s976 = scalar_lea.vmem %s11, %s975
      // Predicated region
      $region65: #{gemini_df_resnet_forward.19} parent=63 // pred_check
        %p977 = pneg %p276
      $region66: #{gemini_df_resnet_forward.19} parent=63 // pred_check_branch
        %979 = sbr.rel (%p977) target = $region68
      $region67: #{gemini_df_resnet_forward.19} parent=63 // pred_region
        _
      $region68: #{gemini_df_resnet_forward.19} parent=63 // pred_fallthru
        _
    $region64: #{gemini_df_resnet_forward.19} parent=5 // pred_fallthru
      _
    %p980 = scmp.le.s32.totalorder 2, %s17
    // Predicated region
    $region69: #{gemini_df_resnet_forward.19} parent=5 // pred_check
      %p981 = pneg %p980
    $region70: #{gemini_df_resnet_forward.19} parent=5 // pred_check_branch
      %983 = sbr.rel (%p981) target = $region72
    $region71: #{gemini_df_resnet_forward.19} parent=5 // pred_region
      %s984 = ssub.s32 %s17, 2
      // Predicated region
      $region73: #{gemini_df_resnet_forward.19} parent=71 // pred_check
        %p985 = pneg %p282
      $region74: #{gemini_df_resnet_forward.19} parent=71 // pred_check_branch
        %987 = sbr.rel (%p985) target = $region76
      $region75: #{gemini_df_resnet_forward.19} parent=71 // pred_region
        %p988 = scmp.lt.s32.totalorder %s23, 1
        %s989 = scalar_select %p988, %s23, 1
        %s990 = smul.addr %s989, 2
        %s991 = scalar_lea.vmem %s11, %s990
      $region76: #{gemini_df_resnet_forward.19} parent=71 // pred_fallthru
        _
    $region72: #{gemini_df_resnet_forward.19} parent=5 // pred_fallthru
      _
  $region6: #{gemini_df_resnet_forward.19} parent=0 // loop_footer
    %s21 = sadd.s32 1, %s17
  $region7: #{gemini_df_resnet_forward.19} parent=0 // loop_footer_branch
    %16 = sbr.rel target = $region3
  $region8: #{gemini_df_resnet_forward.19} parent=0 // loop_exit
    _

// kernel: gemini_df_resnet_forward.21
$region0: #{gemini_df_resnet_forward.21}
  #allocation0 [shape = 'u32[]', space=smem, size = 0x4, offset = 0x4, fixed_abs, tag = 'smem constant byte address 0x4 - core index']
  #allocation1 [shape = 'u32[144,128]{1,0:T(1,128)}', space=vmem, size = 0x12000, scoped, tag = 'internal scratch']
  %s0 = inlined_call_operand.vmem [shape: f32[2,128], index: 0, kind: input, shape index: {}]
  %s1 = inlined_call_operand.vmem [shape: f32[128,128], index: 1, kind: input, shape index: {}]
  %s2 = inlined_call_operand.vmem [shape: f32[1,128], index: 2, kind: input, shape index: {}]
  %s3 = inlined_call_operand.hbm [shape: f32[2,128], index: 3, kind: output, shape index: {}]
  %s4 = sld [smem:[#allocation0]]
  $region22: #{gemini_df_resnet_forward.21} parent=0
    _
  %s6 = ssub.s32 1, %s4
  %s7 = scalar_select 0, %s6, %s4
  $region1: #{gemini_df_resnet_forward.21} parent=0
    #allocation2 [shape = 'u8[1024]{0}', space=vmem, size = 0x400, scoped, tag = 'output window, operand 0, single buffered']
    #allocation3 [shape = 's32[1]{0}', space=sflag, size = 0x4, scoped, tag = 'scoped memory for gemini_df_resnet_forward.21']
    %8 = vsyncpa [#allocation3], 0
    // Predicated region
    $region2: #{gemini_df_resnet_forward.21} parent=1 // pred_check
      _
    $region3: #{gemini_df_resnet_forward.21} parent=1 // pred_check_branch
      %10 = sbr.rel (0) target = $region5
    $region4: #{gemini_df_resnet_forward.21} parent=1 // pred_region
      _
    $region5: #{gemini_df_resnet_forward.21} parent=1 // pred_fallthru
      _
    // Predicated region
    $region6: #{gemini_df_resnet_forward.21} parent=1 // pred_check
      _
    $region7: #{gemini_df_resnet_forward.21} parent=1 // pred_check_branch
      %12 = sbr.rel (0) target = $region9
    $region8: #{gemini_df_resnet_forward.21} parent=1 // pred_region
      _
    $region9: #{gemini_df_resnet_forward.21} parent=1 // pred_fallthru
      _
    // Predicated region
    $region10: #{gemini_df_resnet_forward.21} parent=1 // pred_check
      _
    $region11: #{gemini_df_resnet_forward.21} parent=1 // pred_check_branch
      %14 = sbr.rel (0) target = $region13
    $region12: #{gemini_df_resnet_forward.21} parent=1 // pred_region
      _
    $region13: #{gemini_df_resnet_forward.21} parent=1 // pred_fallthru
      _
    %v15 = vld [vmem:[%s0] sm:$0x3]
    %v16 = vld [vmem:[%s1] sm:$0xff]
    %v17 = vld [vmem:[%s1 + $0x8] sm:$0xff]
    %v18 = vld [vmem:[%s1 + $0x10] sm:$0xff]
    %v19 = vld [vmem:[%s1 + $0x18] sm:$0xff]
    %v20 = vld [vmem:[%s1 + $0x20] sm:$0xff]
    %v21 = vld [vmem:[%s1 + $0x28] sm:$0xff]
    %v22 = vld [vmem:[%s1 + $0x30] sm:$0xff]
    %v23 = vld [vmem:[%s1 + $0x38] sm:$0xff]
    %v24 = vld [vmem:[%s1 + $0x40] sm:$0xff]
    %v25 = vld [vmem:[%s1 + $0x48] sm:$0xff]
    %v26 = vld [vmem:[%s1 + $0x50] sm:$0xff]
    %v27 = vld [vmem:[%s1 + $0x58] sm:$0xff]
    %v28 = vld [vmem:[%s1 + $0x60] sm:$0xff]
    %v29 = vld [vmem:[%s1 + $0x68] sm:$0xff]
    %v30 = vld [vmem:[%s1 + $0x70] sm:$0xff]
    %v31 = vld [vmem:[%s1 + $0x78] sm:$0xff]
    %v32 = vld [vmem:[%s2] sm:$0x1]
    %v34 = vlaneseq
    %v35 = vshrl.u32 %v34, 7
    %v36 = vsub.s32 0, %v35
    %v37 = vrot.slane %v32, %v36
    %39 = vmatprep.subr.mxu0 0.0
    %40 = vmatpush1.msra.mxu0 %v16
    %41 = vmatprep.subr.mxu0 0.0
    %42 = vmatpush1.msra.mxu0 %v17
    %43 = vmatprep.subr.mxu0 0.0
    %44 = vmatpush1.msra.mxu0 %v18
    %45 = vmatprep.subr.mxu0 0.0
    %46 = vmatpush1.msra.mxu0 %v19
    %47 = vmatprep.subr.mxu0 0.0
    %48 = vmatpush1.msra.mxu0 %v20
    %49 = vmatprep.subr.mxu0 0.0
    %50 = vmatpush1.msra.mxu0 %v21
    %51 = vmatprep.subr.mxu0 0.0
    %52 = vmatpush1.msra.mxu0 %v22
    %53 = vmatprep.subr.mxu0 0.0
    %54 = vmatpush1.msra.mxu0 %v23
    %55 = vmatprep.subr.mxu0 0.0
    %56 = vmatpush1.msra.mxu0 %v24
    %57 = vmatprep.subr.mxu0 0.0
    %58 = vmatpush1.msra.mxu0 %v25
    %59 = vmatprep.subr.mxu0 0.0
    %60 = vmatpush1.msra.mxu0 %v26
    %61 = vmatprep.subr.mxu0 0.0
    %62 = vmatpush1.msra.mxu0 %v27
    %63 = vmatprep.subr.mxu0 0.0
    %64 = vmatpush1.msra.mxu0 %v28
    %65 = vmatprep.subr.mxu0 0.0
    %66 = vmatpush1.msra.mxu0 %v29
    %67 = vmatprep.subr.mxu0 0.0
    %68 = vmatpush1.msra.mxu0 %v30
    %69 = vmatprep.subr.mxu0 0.0
    %70 = vmatpush1.msra.mxu0 %v31
    %71 = vmatprep.subr.mxu0 0.0
    %72 = vmatpush1.msra.mxu0 0.0
    %73 = vmatprep.subr.mxu0 0.0
    %74 = vmatpush1.msra.mxu0 0.0
    %75 = vmatprep.subr.mxu0 0.0
    %76 = vmatpush1.msra.mxu0 0.0
    %77 = vmatprep.subr.mxu0 0.0
    %78 = vmatpush1.msra.mxu0 0.0
    %79 = vmatprep.subr.mxu0 0.0
    %80 = vmatpush1.msra.mxu0 0.0
    %81 = vmatprep.subr.mxu0 0.0
    %82 = vmatpush1.msra.mxu0 0.0
    %83 = vmatprep.subr.mxu0 0.0
    %84 = vmatpush1.msra.mxu0 0.0
    %85 = vmatprep.subr.mxu0 0.0
    %86 = vmatpush1.msra.mxu0 0.0
    %87 = vmatprep.subr.mxu0 0.0
    %88 = vmatpush1.msra.mxu0 0.0
    %89 = vmatprep.subr.mxu0 0.0
    %90 = vmatpush1.msra.mxu0 0.0
    %91 = vmatprep.subr.mxu0 0.0
    %92 = vmatpush1.msra.mxu0 0.0
    %93 = vmatprep.subr.mxu0 0.0
    %94 = vmatpush1.msra.mxu0 0.0
    %95 = vmatprep.subr.mxu0 0.0
    %96 = vmatpush1.msra.mxu0 0.0
    %97 = vmatprep.subr.mxu0 0.0
    %98 = vmatpush1.msra.mxu0 0.0
    %99 = vmatprep.subr.mxu0 0.0
    %100 = vmatpush1.msra.mxu0 0.0
    %101 = vmatprep.subr.mxu0 0.0
    %102 = vmatpush1.msra.mxu0 0.0
    %103 = vmatprep.mubr.f32.mxu0 0.0
    %104 = vmatmul.mubr.f32.gmra.mrb[0].mxu0 %v15
    %v105 = vpop.f32.mrb[0].mxu0
    %v106 = vadd.f32 %v37, %v105
    %v107 = vpop.f32.mrb[0].mxu0
    %108 = vdwg.mxu0
    %109 = vst [vmem:[#allocation2] sm:$0x3] %v106
    // Predicated region
    $region14: #{gemini_df_resnet_forward.21} parent=1 // pred_check
      _
    $region15: #{gemini_df_resnet_forward.21} parent=1 // pred_check_branch
      %111 = sbr.rel (0) target = $region17
    $region16: #{gemini_df_resnet_forward.21} parent=1 // pred_region
      %s113 = ssub.s32 32, 32
      %114 = vsyncadd [#allocation3], %s113
      %s116 = sshll.u32 [#allocation2], 4
      %s117 = int_to_ptr.vmem [resolvable:$true] %s116
      %119 = dma.vmem_to_hbm [thread:$0]  %s117, 32, %s3, [#allocation3]
    $region17: #{gemini_df_resnet_forward.21} parent=1 // pred_fallthru
      _
    // Predicated region
    $region18: #{gemini_df_resnet_forward.21} parent=1 // pred_check
      _
    $region19: #{gemini_df_resnet_forward.21} parent=1 // pred_check_branch
      %121 = sbr.rel (0) target = $region21
    $region20: #{gemini_df_resnet_forward.21} parent=1 // pred_region
      %122 = dma.done [#allocation3], 32
    $region21: #{gemini_df_resnet_forward.21} parent=1 // pred_fallthru
      _
    %123 = vsyncpa [#allocation3], 1

</llo_original>
